<compile_context>
chip_gen: v5e
topology: v5e:2x2
jax: 0.10.0
libtpu: 0.0.40
codegen_flags: <defaults>
</compile_context>

<pallas_src>
import functools

import numpy as np
import jax
import jax.numpy as jnp
from jax import lax
from jax.experimental import pallas as pl
from jax.experimental.pallas import tpu as pltpu

NNBR = 27  # 3x3x3 neighborhood of supervoxels


def _cdiv(a, b):
    return -(-a // b)


def _round_up(x, m):
    return _cdiv(x, m) * m


# ----------------------------------------------------------------------------
# Pallas kernels
# ----------------------------------------------------------------------------
def _cell_gather_kernel(pblk_ref, sum_ref, *, gc):
    """spFeatGather3d: per-cell sum of [features, validity] over pixel slots."""
    def body(c, carry):
        sum_ref[c] = jnp.sum(pblk_ref[c].astype(jnp.float32), axis=1, keepdims=True)
        return carry
    lax.fori_loop(0, gc, body, 0)


def _assoc_update_kernel(g_ref, pblk_ref, contrib_ref, *, gc):
    """Fused compute_psp_assoc_3d + spFeatUpdate3d (per-cell contributions).

    g rows already carry the softmax scaling: g = scaling*[-2*spFeat, ||spFeat||^2, 0..]
    p cols are [pFeat, validity, 0..]; logits = g @ p (one small MXU dot).
    """
    def body(c, carry):
        p = pblk_ref[c]                                             # (Cp, P) bf16
        d = jnp.dot(g_ref[c], p, preferred_element_type=jnp.float32)  # (27, P) f32
        m = jnp.max(d, axis=0, keepdims=True)
        e = jnp.exp(d - m)
        a = e * pl.reciprocal(jnp.sum(e, axis=0, keepdims=True), approx=True)
        # contrib(j, :) = sum_n a(j, n) * [pFeat_n, valid_n, 0..] -> (27, Cp)
        # TODO(synk): (27, Cp) stores are lane-sparse; packing GC cells into a
        # lane-dense (27, GC*Cp) slab would get unmasked vst (moderate win).
        contrib_ref[c] = lax.dot_general(
            a.astype(jnp.bfloat16), p, (((1,), (1,)), ((), ())),
            preferred_element_type=jnp.float32)
        return carry
    lax.fori_loop(0, gc, body, 0)


def _assoc_only_kernel(g_ref, pblk_ref, assoc_ref, *, gc):
    """compute_psp_assoc_3d: per-cell (27, P) association probabilities."""
    def body(c, carry):
        d = jnp.dot(g_ref[c], pblk_ref[c], preferred_element_type=jnp.float32)
        m = jnp.max(d, axis=0, keepdims=True)
        e = jnp.exp(d - m)
        assoc_ref[c] = e * pl.reciprocal(jnp.sum(e, axis=0, keepdims=True), approx=True)
        return carry
    lax.fori_loop(0, gc, body, 0)


def _conv3x3x3_kernel(x0_ref, x1_ref, x2_ref, w_ref, b_ref, o_ref, *, nout, wp2):
    """3x3x3 conv over one output time-plane; all 27 taps reduced in-kernel.

    x*_ref: (1, 1, Cin, NCOL) bf16 — L-shifted, spatially zero-padded, flattened
            (H+2)(W+2) planes (plus zero tail).  Tap (dh,dw) is a constant
            column offset dh*(W+2)+dw into the same flattened plane.
    """
    planes = (x0_ref, x1_ref, x2_ref)
    acc = None
    for dl in range(3):
        xr = planes[dl]
        for dh in range(3):
            for dw in range(3):
                t = dl * 9 + dh * 3 + dw
                off = dh * wp2 + dw
                xs = xr[0, 0, :, off:off + nout]                    # (Cin, NOUT) bf16
                part = jnp.dot(w_ref[t], xs, preferred_element_type=jnp.float32)
                acc = part if acc is None else acc + part
    o_ref[0, 0] = jnp.maximum(acc + b_ref[...], 0.0).astype(o_ref.dtype)


# ----------------------------------------------------------------------------
# pallas_call wrappers
# ----------------------------------------------------------------------------
def _cell_grid_params(gc, per_cell_bytes):
    vmem_limit = int(min(max(2 * gc * per_cell_bytes + (4 << 20), 16 << 20), 32 << 20))
    return pltpu.CompilerParams(dimension_semantics=("parallel",),
                                vmem_limit_bytes=vmem_limit)


def cell_gather(pblk, gc):
    """pblk: (BKp, Cp, P) bf16 -> per-cell [sum(features), count] (BKp, Cp) f32."""
    bkp, cp, p = pblk.shape
    per_cell = cp * p * pblk.dtype.itemsize + cp * 4
    out = pl.pallas_call(
        functools.partial(_cell_gather_kernel, gc=gc),
        out_shape=jax.ShapeDtypeStruct((bkp, cp, 1), jnp.float32),
        grid=(bkp // gc,),
        in_specs=[pl.BlockSpec((gc, cp, p), lambda i: (i, 0, 0))],
        out_specs=pl.BlockSpec((gc, cp, 1), lambda i: (i, 0, 0)),
        compiler_params=_cell_grid_params(gc, per_cell),
    )(pblk)
    return out[:, :, 0]


def assoc_update(g, pblk, gc):
    """Fused assoc + soft-scatter contributions: (BKp, 27, Cp) f32."""
    bkp, cp, p = pblk.shape
    per_cell = cp * p * 2 + NNBR * cp * 2 + NNBR * cp * 4
    return pl.pallas_call(
        functools.partial(_assoc_update_kernel, gc=gc),
        out_shape=jax.ShapeDtypeStruct((bkp, NNBR, cp), jnp.float32),
        grid=(bkp // gc,),
        in_specs=[pl.BlockSpec((gc, NNBR, cp), lambda i: (i, 0, 0)),
                  pl.BlockSpec((gc, cp, p), lambda i: (i, 0, 0))],
        out_specs=pl.BlockSpec((gc, NNBR, cp), lambda i: (i, 0, 0)),
        compiler_params=_cell_grid_params(gc, per_cell),
    )(g, pblk)


def assoc_probs(g, pblk, gc):
    """Final per-pixel (cell-blocked) association probabilities: (BKp, 27, P)."""
    bkp, cp, p = pblk.shape
    per_cell = cp * p * 2 + NNBR * cp * 2 + NNBR * p * 4
    return pl.pallas_call(
        functools.partial(_assoc_only_kernel, gc=gc),
        out_shape=jax.ShapeDtypeStruct((bkp, NNBR, p), jnp.float32),
        grid=(bkp // gc,),
        in_specs=[pl.BlockSpec((gc, NNBR, cp), lambda i: (i, 0, 0)),
                  pl.BlockSpec((gc, cp, p), lambda i: (i, 0, 0))],
        out_specs=pl.BlockSpec((gc, NNBR, p), lambda i: (i, 0, 0)),
        compiler_params=_cell_grid_params(gc, per_cell),
    )(g, pblk)


def _plane_spec(dl, cin, ncol):
    return pl.BlockSpec((1, 1, cin, ncol), lambda bb, ll: (bb, ll + dl, 0, 0))


def conv3d_relu(x_blc, w, b, *, out_dtype=jnp.float32):
    """3x3x3 same-padding conv + ReLU.

    x_blc: (B, L, Cin, H, W); w: (Cout, Cin, 3, 3, 3); b: (Cout,)
    Returns (B, L, Cout, H, W) in out_dtype.  No im2col: the padded plane is
    flattened once and the 27 taps become constant column offsets reduced
    in-kernel; output stores are lane-dense (NOUT multiple of 128).
    # TODO(synk): the kernel holds full padded (H+2)(W+2) planes in VMEM; tile
    # the flattened plane axis (with a column halo) for very large H*W.
    """
    B, L, cin, H, W = x_blc.shape
    cout = w.shape[0]
    hp, wp = H + 2, W + 2
    npl = hp * wp
    nout = _round_up(npl, 128)
    maxoff = 2 * wp + 2
    ncol = _round_up(nout + maxoff, 128)

    xp = jnp.pad(x_blc.astype(jnp.bfloat16),
                 ((0, 0), (1, 1), (0, 0), (1, 1), (1, 1)))      # (B, L+2, Cin, H+2, W+2)
    xf = xp.reshape(B, L + 2, cin, npl)
    xf = jnp.pad(xf, ((0, 0), (0, 0), (0, 0), (0, ncol - npl)))
    wt = jnp.transpose(w, (2, 3, 4, 0, 1)).reshape(NNBR, cout, cin).astype(jnp.bfloat16)
    bias = b.reshape(cout, 1).astype(jnp.float32)

    blocks_bytes = (3 * cin * ncol * 2 + NNBR * cout * cin * 2 + cout * 4
                    + cout * nout * jnp.dtype(out_dtype).itemsize)
    vmem_limit = int(min(max(2 * blocks_bytes + (4 << 20), 16 << 20), 32 << 20))

    out = pl.pallas_call(
        functools.partial(_conv3x3x3_kernel, nout=nout, wp2=wp),
        out_shape=jax.ShapeDtypeStruct((B, L, cout, nout), out_dtype),
        grid=(B, L),
        in_specs=[_plane_spec(0, cin, ncol),
                  _plane_spec(1, cin, ncol),
                  _plane_spec(2, cin, ncol),
                  pl.BlockSpec((NNBR, cout, cin), lambda bb, ll: (0, 0, 0)),
                  pl.BlockSpec((cout, 1), lambda bb, ll: (0, 0))],
        out_specs=pl.BlockSpec((1, 1, cout, nout), lambda bb, ll: (bb, ll, 0, 0)),
        compiler_params=pltpu.CompilerParams(
            dimension_semantics=("parallel", "parallel"),
            vmem_limit_bytes=vmem_limit),
    )(xf, xf, xf, wt, bias)
    # valid output (h, w) lives at flattened column q = h*(W+2) + w
    out = out[..., :npl].reshape(B, L, cout, hp, wp)[..., :H, :W]
    return out


# ----------------------------------------------------------------------------
# JAX glue (layout / tiny index tables)
# ----------------------------------------------------------------------------
def build_cell_neighbor_table(Kl, Kh, Kw):
    """relToAbsIndex3d as a per-supervoxel table of the 27 clamped grid neighbors."""
    k = np.arange(Kl * Kh * Kw)
    khw = Kh * Kw
    l0, h0, w0 = k // khw, (k % khw) // Kw, k % Kw
    cols = []
    for dl in (-1, 0, 1):
        for dh in (-1, 0, 1):
            for dw in (-1, 0, 1):
                l = np.clip(l0 + dl, 0, Kl - 1)
                h = np.clip(h0 + dh, 0, Kh - 1)
                w = np.clip(w0 + dw, 0, Kw - 1)
                cols.append(l * khw + h * Kw + w)
    return jnp.asarray(np.stack(cols, axis=1), dtype=jnp.int32)     # (K, 27)


def build_pixel_tables(sp_idx, K, P):
    """Block pixels by their initial supervoxel id (one batch element).

    Returns table (K, P) pixel index per (cell, slot) with sentinel N for empty
    slots, and slot (N,) = cell*P + rank of each pixel.
    # TODO(synk): assumes a regular-grid init_spIndx (<= P pixels per supervoxel,
    # ids in [0, K)); matches the SVX/SSN initialization.
    """
    n = sp_idx.shape[0]
    order = jnp.argsort(sp_idx).astype(jnp.int32)
    sorted_sp = sp_idx[order]
    counts = jnp.bincount(sp_idx, length=K)
    starts = (jnp.cumsum(counts) - counts).astype(jnp.int32)
    rank = jnp.arange(n, dtype=jnp.int32) - starts[sorted_sp]
    table = jnp.full((K, P), n, dtype=jnp.int32)
    table = table.at[sorted_sp, rank].set(order, mode="drop")
    slot = jnp.zeros((n,), jnp.int32).at[order].set(sorted_sp * P + rank)
    return table, slot


def build_pblk(pfeat_pix, table, caug_p):
    """Gather pixel features into cell-blocked bf16 layout (K, Cp, P); validity at
    channel C, extra channels zero; padded slots all-zero and inert."""
    n, c = pfeat_pix.shape
    K, P = table.shape
    padded = jnp.concatenate([pfeat_pix, jnp.zeros((1, c), pfeat_pix.dtype)], axis=0)
    flat = table.reshape(-1)
    gath = padded[flat]                                             # (K*P, C)
    valid = (flat < n).astype(pfeat_pix.dtype)[:, None]             # (K*P, 1)
    blk = jnp.concatenate(
        [gath, valid, jnp.zeros((K * P, caug_p - c - 1), pfeat_pix.dtype)], axis=1)
    return blk.reshape(K, P, caug_p).swapaxes(1, 2).astype(jnp.bfloat16)


def _neighbor_feats(spfeat, nbr_bkp, scaling, caug_p):
    """scaling*[-2*spFeat, ||spFeat||^2, 0..] gathered per (cell, neighbor), bf16."""
    c = spfeat.shape[1]
    s2 = jnp.sum(spfeat * spfeat, axis=1, keepdims=True)
    saug = jnp.concatenate([(-2.0 * scaling) * spfeat, scaling * s2], axis=1)
    pad = caug_p - (c + 1)
    if pad:
        saug = jnp.pad(saug, ((0, 0), (0, pad)))
    return saug[nbr_bkp].astype(jnp.bfloat16)                       # (BKp, 27, Cp)


# ----------------------------------------------------------------------------
# SVX module (JAX / Pallas)
# ----------------------------------------------------------------------------
class SVXPallas:
    def __init__(self, use_cnn=True, num_in=6, num_out=14, num_ch=32, seed=0):
        self.use_cnn = use_cnn
        if use_cnn:
            # TODO(synk): SVX_CNN is not defined in the reference; a deterministic
            # 2-layer 3x3x3 conv + ReLU stack (num_in -> num_ch -> num_out) stands in.
            k1, k2 = jax.random.split(jax.random.PRNGKey(seed))
            self.w1 = 0.1 * jax.random.normal(k1, (num_ch, num_in, 3, 3, 3), jnp.float32)
            self.b1 = jnp.zeros((num_ch,), jnp.float32)
            self.w2 = 0.1 * jax.random.normal(k2, (num_out, num_ch, 3, 3, 3), jnp.float32)
            self.b2 = jnp.zeros((num_out,), jnp.float32)

    def configure(self, vid_shape, t_sv, n_sv, p_scale, lab_scale, softscale, num_steps):
        _, _, L, H, W = vid_shape
        Kl = int(t_sv)
        Kh = int(np.floor(np.sqrt(float(n_sv) * H / W)))
        Kw = int(np.floor(np.sqrt(float(n_sv) * W / H)))
        Khw = Kl * Kw
        Klhw = Kl * Khw
        t_scale = Kl / (p_scale * L)
        y_scale = Kh / (p_scale * H)
        x_scale = Kw / (p_scale * W)
        yx_scale = max(y_scale, x_scale)
        self.Kl, self.Kh, self.Kw = int(Kl), int(Kh), int(Kw)
        self.t_scale = float(t_scale)
        self.yx_scale = float(yx_scale)
        self.lab_scale = float(lab_scale)
        self.softscale = float(softscale)
        self.num_steps = int(num_steps)
        # static per-cell pixel capacity, lane-dense (multiple of 128)
        self.P = _round_up(_cdiv(L, Kl) * _cdiv(H, Kh) * _cdiv(W, Kw), 128)
        return (L, H, W, Kl, Kh, Kw, Khw, Klhw)

    def forward(self, vid_lab, init_spIndx):
        B, _, L, H, W = vid_lab.shape
        Kl, Kh, Kw = self.Kl, self.Kh, self.Kw
        K = Kl * Kh * Kw
        N = L * H * W
        P = self.P
        f32 = jnp.float32

        # ---- get_pFeat_tyxlab_3d (elementwise glue) ----
        T = jnp.broadcast_to(jnp.arange(L, dtype=f32).reshape(1, 1, L, 1, 1), (B, 1, L, H, W))
        Y = jnp.broadcast_to(jnp.arange(H, dtype=f32).reshape(1, 1, 1, H, 1), (B, 1, L, H, W))
        X = jnp.broadcast_to(jnp.arange(W, dtype=f32).reshape(1, 1, 1, 1, W), (B, 1, L, H, W))
        pfeat_tyxlab = jnp.concatenate(
            [self.t_scale * T, self.yx_scale * Y, self.yx_scale * X,
             self.lab_scale * vid_lab.astype(f32)], axis=1)          # (B, 6, L, H, W)

        if self.use_cnn:
            x_blc = jnp.transpose(pfeat_tyxlab, (0, 2, 1, 3, 4))     # (B, L, 6, H, W)
            h1 = conv3d_relu(x_blc, self.w1, self.b1, out_dtype=jnp.bfloat16)
            h2 = conv3d_relu(h1, self.w2, self.b2, out_dtype=jnp.float32)
            pFeat = jnp.concatenate(
                [pfeat_tyxlab, jnp.transpose(h2, (0, 2, 1, 3, 4))], axis=1)  # (B, 20, ...)
        else:
            pFeat = pfeat_tyxlab
        C = pFeat.shape[1]
        Caug = C + 1
        Cp = _round_up(Caug, 8)

        # ---- pixel -> supervoxel-cell blocking (layout glue, vmapped over B) ----
        sp = init_spIndx.reshape(B, N).astype(jnp.int32)
        pfeat_pix = pFeat.reshape(B, C, N).transpose(0, 2, 1).astype(jnp.bfloat16)
        tables, slot = jax.vmap(lambda s: build_pixel_tables(s, K, P))(sp)   # (B,K,P),(B,N)
        pblk = jax.vmap(lambda f, t: build_pblk(f, t, Cp))(pfeat_pix, tables)
        pblk = pblk.reshape(B * K, Cp, P)                            # (B*K, Cp, P) bf16

        # ---- tile sizing: biggest GC that fits double-buffered VMEM, >= 2 even steps
        BK = B * K
        per_cell = Cp * P * 2 + NNBR * Cp * 2 + NNBR * P * 4
        gc_cap = max(1, min(128, (10 << 20) // per_cell))
        nsteps = _round_up(max(2, _cdiv(BK, gc_cap)), 2)
        GC = _cdiv(BK, nsteps)
        BKp = GC * nsteps
        if BKp != BK:
            pblk = jnp.pad(pblk, ((0, BKp - BK), (0, 0), (0, 0)))

        nbrtab = build_cell_neighbor_table(Kl, Kh, Kw)               # (K, 27)
        nbr_bk = (nbrtab[None, :, :]
                  + (jnp.arange(B, dtype=jnp.int32) * K)[:, None, None]).reshape(BK, NNBR)
        nbr_bkp = jnp.pad(nbr_bk, ((0, BKp - BK), (0, 0)))           # pads -> cell 0 (zero contribs)

        # ---- spFeatGather3d: hard mean per supervoxel (Pallas) ----
        sums = cell_gather(pblk, GC)[:BK]                            # (BK, Cp) = [sum, count, 0..]
        spfeat = sums[:, :C] / jnp.maximum(sums[:, C:C + 1], 1e-12)  # (BK, C)

        # ---- iterative soft refinement: fused assoc + update (Pallas) ----
        for _ in range(1, self.num_steps):
            g = _neighbor_feats(spfeat, nbr_bkp, self.softscale, Cp)   # (BKp, 27, Cp) bf16
            contrib = assoc_update(g, pblk, GC)                        # (BKp, 27, Cp) f32
            sums = jnp.zeros((BK, Cp), f32).at[nbr_bkp.reshape(-1)].add(
                contrib.reshape(-1, Cp))                               # tiny O(K*27) scatter
            spfeat = sums[:, :C] / jnp.maximum(sums[:, C:C + 1], 1e-12)

        # ---- final associations (Pallas, lane-dense (27, P) per cell) ----
        g = _neighbor_feats(spfeat, nbr_bkp, self.softscale, Cp)
        assoc_blk = assoc_probs(g, pblk, GC)[:BK]                    # (BK, 27, P)
        assoc_cells = assoc_blk.reshape(B, K, NNBR, P)

        # scatter back to pixel order (gather by per-pixel slot)
        assoc_flat = assoc_cells.transpose(0, 2, 1, 3).reshape(B, NNBR, K * P)
        psp_assoc = jnp.take_along_axis(assoc_flat, slot[:, None, :], axis=2)
        psp_assoc = psp_assoc.reshape(B, NNBR, L, H, W)

        # compute_final_spixel_index_3d (argmax over 27 -> absolute id)
        rel_cells = jnp.argmax(assoc_cells, axis=2)                  # (B, K, P)
        nbr_b = jnp.broadcast_to(nbrtab[None], (B, K, NNBR))
        abs_cells = jnp.take_along_axis(nbr_b, rel_cells, axis=2)    # (B, K, P)
        final = jnp.take_along_axis(abs_cells.reshape(B, K * P), slot, axis=1)
        final_spIndx = final.reshape(B, 1, L, H, W).astype(jnp.int32)

        spFeat = spfeat.reshape(B, K, C).transpose(0, 2, 1)          # (B, C, K)
        return pFeat, spFeat, psp_assoc, final_spIndx


def make_init_spindx(B, L, H, W, Kl, Kh, Kw):
    l_idx = (jnp.arange(L) * Kl) // L
    h_idx = (jnp.arange(H) * Kh) // H
    w_idx = (jnp.arange(W) * Kw) // W
    idx = (l_idx[:, None, None] * (Kh * Kw)
           + h_idx[None, :, None] * Kw
           + w_idx[None, None, :])
    return jnp.broadcast_to(idx[None, None], (B, 1, L, H, W)).astype(jnp.int32)


if __name__ == "__main__":
    B, C3, L, H, W = 2, 3, 4, 16, 16
    vid_lab = jax.random.uniform(jax.random.PRNGKey(0), (B, C3, L, H, W),
                                 dtype=jnp.float32)

    model = SVXPallas(use_cnn=True, num_in=6, num_out=14, num_ch=32)
    model.configure((B, C3, L, H, W), t_sv=2, n_sv=9, p_scale=0.4,
                    lab_scale=0.26, softscale=-2.0, num_steps=3)
    init_spIndx = make_init_spindx(B, L, H, W, model.Kl, model.Kh, model.Kw)
    K = model.Kl * model.Kh * model.Kw

    fwd = jax.jit(model.forward)
    pFeat, spFeat, psp_assoc, final_spIndx = jax.block_until_ready(
        fwd(vid_lab, init_spIndx))

    assert pFeat.shape == (B, 20, L, H, W)
    assert spFeat.shape == (B, 20, K)
    assert psp_assoc.shape == (B, 27, L, H, W)
    assert final_spIndx.shape == (B, 1, L, H, W)
    # approx-reciprocal normalization: allow a slightly looser tolerance
    assert np.allclose(np.asarray(jnp.sum(psp_assoc, axis=1)), 1.0, atol=5e-3)
    assert int(jnp.min(final_spIndx)) >= 0 and int(jnp.max(final_spIndx)) < K
    print("KERNEL_OK")
</pallas_src>

<mosaic_0001>
module attributes {stable_mosaic.version = 11 : i64} {
  func.func @_conv3x3x3_kernel(%arg0: i32, %arg1: i32, %arg2: memref<1x1x6x512xbf16, #tpu.memory_space<vmem>>, %arg3: memref<1x1x6x512xbf16, #tpu.memory_space<vmem>>, %arg4: memref<1x1x6x512xbf16, #tpu.memory_space<vmem>>, %arg5: memref<27x32x6xbf16, #tpu.memory_space<vmem>>, %arg6: memref<32x1xf32, #tpu.memory_space<vmem>>, %arg7: memref<1x1x32x384xbf16, #tpu.memory_space<vmem>>) attributes {dimension_semantics = [#tpu.dimension_semantics<parallel>, #tpu.dimension_semantics<parallel>], iteration_bounds = array<i64: 2, 4>, scalar_prefetch = 0 : i64, scratch_operands = 0 : i64, tpu.core_type = #tpu.core_type<tc>, window_params = [{transform_indices = @transform_0, window_bounds = array<i64: 1, 1, 6, 512>}, {transform_indices = @transform_1, window_bounds = array<i64: 1, 1, 6, 512>}, {transform_indices = @transform_2, window_bounds = array<i64: 1, 1, 6, 512>}, {pipeline_mode = #tpu.pipeline_mode<synchronous>, transform_indices = @transform_3, window_bounds = array<i64: 27, 32, 6>}, {pipeline_mode = #tpu.pipeline_mode<synchronous>, transform_indices = @transform_4, window_bounds = array<i64: 32, 1>}, {transform_indices = @transform_5, window_bounds = array<i64: 1, 1, 32, 384>}]} {
    %c0 = arith.constant 0 : index
    %c0_0 = arith.constant 0 : index
    %c0_1 = arith.constant 0 : index
    %c0_2 = arith.constant 0 : index
    %0 = vector.load %arg2[%c0, %c0_0, %c0_1, %c0_2] : memref<1x1x6x512xbf16, #tpu.memory_space<vmem>>, vector<1x1x6x384xbf16>
    %1 = vector.shape_cast %0 : vector<1x1x6x384xbf16> to vector<6x384xbf16>
    %c0_3 = arith.constant 0 : index
    %c0_4 = arith.constant 0 : index
    %c0_5 = arith.constant 0 : index
    %2 = vector.load %arg5[%c0_3, %c0_4, %c0_5] : memref<27x32x6xbf16, #tpu.memory_space<vmem>>, vector<1x32x6xbf16>
    %3 = vector.shape_cast %2 : vector<1x32x6xbf16> to vector<32x6xbf16>
    %cst = arith.constant dense<0.000000e+00> : vector<32x384xf32>
    %4 = tpu.matmul %3, %1, %cst {dimension_numbers = #tpu.dot_dimension_numbers<[1], [0], [0], [1], [0, 0, 1, 1], [], []>} : vector<32x6xbf16>, vector<6x384xbf16>, vector<32x384xf32> -> vector<32x384xf32>
    %c0_6 = arith.constant 0 : index
    %c0_7 = arith.constant 0 : index
    %c0_8 = arith.constant 0 : index
    %c1 = arith.constant 1 : index
    %5 = vector.load %arg2[%c0_6, %c0_7, %c0_8, %c1] : memref<1x1x6x512xbf16, #tpu.memory_space<vmem>>, vector<1x1x6x384xbf16>
    %6 = vector.shape_cast %5 : vector<1x1x6x384xbf16> to vector<6x384xbf16>
    %c1_9 = arith.constant 1 : index
    %c0_10 = arith.constant 0 : index
    %c0_11 = arith.constant 0 : index
    %7 = vector.load %arg5[%c1_9, %c0_10, %c0_11] : memref<27x32x6xbf16, #tpu.memory_space<vmem>>, vector<1x32x6xbf16>
    %8 = vector.shape_cast %7 : vector<1x32x6xbf16> to vector<32x6xbf16>
    %cst_12 = arith.constant dense<0.000000e+00> : vector<32x384xf32>
    %9 = tpu.matmul %8, %6, %cst_12 {dimension_numbers = #tpu.dot_dimension_numbers<[1], [0], [0], [1], [0, 0, 1, 1], [], []>} : vector<32x6xbf16>, vector<6x384xbf16>, vector<32x384xf32> -> vector<32x384xf32>
    %10 = arith.addf %4, %9 : vector<32x384xf32>
    %c0_13 = arith.constant 0 : index
    %c0_14 = arith.constant 0 : index
    %c0_15 = arith.constant 0 : index
    %c2 = arith.constant 2 : index
    %11 = vector.load %arg2[%c0_13, %c0_14, %c0_15, %c2] : memref<1x1x6x512xbf16, #tpu.memory_space<vmem>>, vector<1x1x6x384xbf16>
    %12 = vector.shape_cast %11 : vector<1x1x6x384xbf16> to vector<6x384xbf16>
    %c2_16 = arith.constant 2 : index
    %c0_17 = arith.constant 0 : index
    %c0_18 = arith.constant 0 : index
    %13 = vector.load %arg5[%c2_16, %c0_17, %c0_18] : memref<27x32x6xbf16, #tpu.memory_space<vmem>>, vector<1x32x6xbf16>
    %14 = vector.shape_cast %13 : vector<1x32x6xbf16> to vector<32x6xbf16>
    %cst_19 = arith.constant dense<0.000000e+00> : vector<32x384xf32>
    %15 = tpu.matmul %14, %12, %cst_19 {dimension_numbers = #tpu.dot_dimension_numbers<[1], [0], [0], [1], [0, 0, 1, 1], [], []>} : vector<32x6xbf16>, vector<6x384xbf16>, vector<32x384xf32> -> vector<32x384xf32>
    %16 = arith.addf %10, %15 : vector<32x384xf32>
    %c0_20 = arith.constant 0 : index
    %c0_21 = arith.constant 0 : index
    %c0_22 = arith.constant 0 : index
    %c18 = arith.constant 18 : index
    %17 = vector.load %arg2[%c0_20, %c0_21, %c0_22, %c18] : memref<1x1x6x512xbf16, #tpu.memory_space<vmem>>, vector<1x1x6x384xbf16>
    %18 = vector.shape_cast %17 : vector<1x1x6x384xbf16> to vector<6x384xbf16>
    %c3 = arith.constant 3 : index
    %c0_23 = arith.constant 0 : index
    %c0_24 = arith.constant 0 : index
    %19 = vector.load %arg5[%c3, %c0_23, %c0_24] : memref<27x32x6xbf16, #tpu.memory_space<vmem>>, vector<1x32x6xbf16>
    %20 = vector.shape_cast %19 : vector<1x32x6xbf16> to vector<32x6xbf16>
    %cst_25 = arith.constant dense<0.000000e+00> : vector<32x384xf32>
    %21 = tpu.matmul %20, %18, %cst_25 {dimension_numbers = #tpu.dot_dimension_numbers<[1], [0], [0], [1], [0, 0, 1, 1], [], []>} : vector<32x6xbf16>, vector<6x384xbf16>, vector<32x384xf32> -> vector<32x384xf32>
    %22 = arith.addf %16, %21 : vector<32x384xf32>
    %c0_26 = arith.constant 0 : index
    %c0_27 = arith.constant 0 : index
    %c0_28 = arith.constant 0 : index
    %c19 = arith.constant 19 : index
    %23 = vector.load %arg2[%c0_26, %c0_27, %c0_28, %c19] : memref<1x1x6x512xbf16, #tpu.memory_space<vmem>>, vector<1x1x6x384xbf16>
    %24 = vector.shape_cast %23 : vector<1x1x6x384xbf16> to vector<6x384xbf16>
    %c4 = arith.constant 4 : index
    %c0_29 = arith.constant 0 : index
    %c0_30 = arith.constant 0 : index
    %25 = vector.load %arg5[%c4, %c0_29, %c0_30] : memref<27x32x6xbf16, #tpu.memory_space<vmem>>, vector<1x32x6xbf16>
    %26 = vector.shape_cast %25 : vector<1x32x6xbf16> to vector<32x6xbf16>
    %cst_31 = arith.constant dense<0.000000e+00> : vector<32x384xf32>
    %27 = tpu.matmul %26, %24, %cst_31 {dimension_numbers = #tpu.dot_dimension_numbers<[1], [0], [0], [1], [0, 0, 1, 1], [], []>} : vector<32x6xbf16>, vector<6x384xbf16>, vector<32x384xf32> -> vector<32x384xf32>
    %28 = arith.addf %22, %27 : vector<32x384xf32>
    %c0_32 = arith.constant 0 : index
    %c0_33 = arith.constant 0 : index
    %c0_34 = arith.constant 0 : index
    %c20 = arith.constant 20 : index
    %29 = vector.load %arg2[%c0_32, %c0_33, %c0_34, %c20] : memref<1x1x6x512xbf16, #tpu.memory_space<vmem>>, vector<1x1x6x384xbf16>
    %30 = vector.shape_cast %29 : vector<1x1x6x384xbf16> to vector<6x384xbf16>
    %c5 = arith.constant 5 : index
    %c0_35 = arith.constant 0 : index
    %c0_36 = arith.constant 0 : index
    %31 = vector.load %arg5[%c5, %c0_35, %c0_36] : memref<27x32x6xbf16, #tpu.memory_space<vmem>>, vector<1x32x6xbf16>
    %32 = vector.shape_cast %31 : vector<1x32x6xbf16> to vector<32x6xbf16>
    %cst_37 = arith.constant dense<0.000000e+00> : vector<32x384xf32>
    %33 = tpu.matmul %32, %30, %cst_37 {dimension_numbers = #tpu.dot_dimension_numbers<[1], [0], [0], [1], [0, 0, 1, 1], [], []>} : vector<32x6xbf16>, vector<6x384xbf16>, vector<32x384xf32> -> vector<32x384xf32>
    %34 = arith.addf %28, %33 : vector<32x384xf32>
    %c0_38 = arith.constant 0 : index
    %c0_39 = arith.constant 0 : index
    %c0_40 = arith.constant 0 : index
    %c36 = arith.constant 36 : index
    %35 = vector.load %arg2[%c0_38, %c0_39, %c0_40, %c36] : memref<1x1x6x512xbf16, #tpu.memory_space<vmem>>, vector<1x1x6x384xbf16>
    %36 = vector.shape_cast %35 : vector<1x1x6x384xbf16> to vector<6x384xbf16>
    %c6 = arith.constant 6 : index
    %c0_41 = arith.constant 0 : index
    %c0_42 = arith.constant 0 : index
    %37 = vector.load %arg5[%c6, %c0_41, %c0_42] : memref<27x32x6xbf16, #tpu.memory_space<vmem>>, vector<1x32x6xbf16>
    %38 = vector.shape_cast %37 : vector<1x32x6xbf16> to vector<32x6xbf16>
    %cst_43 = arith.constant dense<0.000000e+00> : vector<32x384xf32>
    %39 = tpu.matmul %38, %36, %cst_43 {dimension_numbers = #tpu.dot_dimension_numbers<[1], [0], [0], [1], [0, 0, 1, 1], [], []>} : vector<32x6xbf16>, vector<6x384xbf16>, vector<32x384xf32> -> vector<32x384xf32>
    %40 = arith.addf %34, %39 : vector<32x384xf32>
    %c0_44 = arith.constant 0 : index
    %c0_45 = arith.constant 0 : index
    %c0_46 = arith.constant 0 : index
    %c37 = arith.constant 37 : index
    %41 = vector.load %arg2[%c0_44, %c0_45, %c0_46, %c37] : memref<1x1x6x512xbf16, #tpu.memory_space<vmem>>, vector<1x1x6x384xbf16>
    %42 = vector.shape_cast %41 : vector<1x1x6x384xbf16> to vector<6x384xbf16>
    %c7 = arith.constant 7 : index
    %c0_47 = arith.constant 0 : index
    %c0_48 = arith.constant 0 : index
    %43 = vector.load %arg5[%c7, %c0_47, %c0_48] : memref<27x32x6xbf16, #tpu.memory_space<vmem>>, vector<1x32x6xbf16>
    %44 = vector.shape_cast %43 : vector<1x32x6xbf16> to vector<32x6xbf16>
    %cst_49 = arith.constant dense<0.000000e+00> : vector<32x384xf32>
    %45 = tpu.matmul %44, %42, %cst_49 {dimension_numbers = #tpu.dot_dimension_numbers<[1], [0], [0], [1], [0, 0, 1, 1], [], []>} : vector<32x6xbf16>, vector<6x384xbf16>, vector<32x384xf32> -> vector<32x384xf32>
    %46 = arith.addf %40, %45 : vector<32x384xf32>
    %c0_50 = arith.constant 0 : index
    %c0_51 = arith.constant 0 : index
    %c0_52 = arith.constant 0 : index
    %c38 = arith.constant 38 : index
    %47 = vector.load %arg2[%c0_50, %c0_51, %c0_52, %c38] : memref<1x1x6x512xbf16, #tpu.memory_space<vmem>>, vector<1x1x6x384xbf16>
    %48 = vector.shape_cast %47 : vector<1x1x6x384xbf16> to vector<6x384xbf16>
    %c8 = arith.constant 8 : index
    %c0_53 = arith.constant 0 : index
    %c0_54 = arith.constant 0 : index
    %49 = vector.load %arg5[%c8, %c0_53, %c0_54] : memref<27x32x6xbf16, #tpu.memory_space<vmem>>, vector<1x32x6xbf16>
    %50 = vector.shape_cast %49 : vector<1x32x6xbf16> to vector<32x6xbf16>
    %cst_55 = arith.constant dense<0.000000e+00> : vector<32x384xf32>
    %51 = tpu.matmul %50, %48, %cst_55 {dimension_numbers = #tpu.dot_dimension_numbers<[1], [0], [0], [1], [0, 0, 1, 1], [], []>} : vector<32x6xbf16>, vector<6x384xbf16>, vector<32x384xf32> -> vector<32x384xf32>
    %52 = arith.addf %46, %51 : vector<32x384xf32>
    %c0_56 = arith.constant 0 : index
    %c0_57 = arith.constant 0 : index
    %c0_58 = arith.constant 0 : index
    %c0_59 = arith.constant 0 : index
    %53 = vector.load %arg3[%c0_56, %c0_57, %c0_58, %c0_59] : memref<1x1x6x512xbf16, #tpu.memory_space<vmem>>, vector<1x1x6x384xbf16>
    %54 = vector.shape_cast %53 : vector<1x1x6x384xbf16> to vector<6x384xbf16>
    %c9 = arith.constant 9 : index
    %c0_60 = arith.constant 0 : index
    %c0_61 = arith.constant 0 : index
    %55 = vector.load %arg5[%c9, %c0_60, %c0_61] : memref<27x32x6xbf16, #tpu.memory_space<vmem>>, vector<1x32x6xbf16>
    %56 = vector.shape_cast %55 : vector<1x32x6xbf16> to vector<32x6xbf16>
    %cst_62 = arith.constant dense<0.000000e+00> : vector<32x384xf32>
    %57 = tpu.matmul %56, %54, %cst_62 {dimension_numbers = #tpu.dot_dimension_numbers<[1], [0], [0], [1], [0, 0, 1, 1], [], []>} : vector<32x6xbf16>, vector<6x384xbf16>, vector<32x384xf32> -> vector<32x384xf32>
    %58 = arith.addf %52, %57 : vector<32x384xf32>
    %c0_63 = arith.constant 0 : index
    %c0_64 = arith.constant 0 : index
    %c0_65 = arith.constant 0 : index
    %c1_66 = arith.constant 1 : index
    %59 = vector.load %arg3[%c0_63, %c0_64, %c0_65, %c1_66] : memref<1x1x6x512xbf16, #tpu.memory_space<vmem>>, vector<1x1x6x384xbf16>
    %60 = vector.shape_cast %59 : vector<1x1x6x384xbf16> to vector<6x384xbf16>
    %c10 = arith.constant 10 : index
    %c0_67 = arith.constant 0 : index
    %c0_68 = arith.constant 0 : index
    %61 = vector.load %arg5[%c10, %c0_67, %c0_68] : memref<27x32x6xbf16, #tpu.memory_space<vmem>>, vector<1x32x6xbf16>
    %62 = vector.shape_cast %61 : vector<1x32x6xbf16> to vector<32x6xbf16>
    %cst_69 = arith.constant dense<0.000000e+00> : vector<32x384xf32>
    %63 = tpu.matmul %62, %60, %cst_69 {dimension_numbers = #tpu.dot_dimension_numbers<[1], [0], [0], [1], [0, 0, 1, 1], [], []>} : vector<32x6xbf16>, vector<6x384xbf16>, vector<32x384xf32> -> vector<32x384xf32>
    %64 = arith.addf %58, %63 : vector<32x384xf32>
    %c0_70 = arith.constant 0 : index
    %c0_71 = arith.constant 0 : index
    %c0_72 = arith.constant 0 : index
    %c2_73 = arith.constant 2 : index
    %65 = vector.load %arg3[%c0_70, %c0_71, %c0_72, %c2_73] : memref<1x1x6x512xbf16, #tpu.memory_space<vmem>>, vector<1x1x6x384xbf16>
    %66 = vector.shape_cast %65 : vector<1x1x6x384xbf16> to vector<6x384xbf16>
    %c11 = arith.constant 11 : index
    %c0_74 = arith.constant 0 : index
    %c0_75 = arith.constant 0 : index
    %67 = vector.load %arg5[%c11, %c0_74, %c0_75] : memref<27x32x6xbf16, #tpu.memory_space<vmem>>, vector<1x32x6xbf16>
    %68 = vector.shape_cast %67 : vector<1x32x6xbf16> to vector<32x6xbf16>
    %cst_76 = arith.constant dense<0.000000e+00> : vector<32x384xf32>
    %69 = tpu.matmul %68, %66, %cst_76 {dimension_numbers = #tpu.dot_dimension_numbers<[1], [0], [0], [1], [0, 0, 1, 1], [], []>} : vector<32x6xbf16>, vector<6x384xbf16>, vector<32x384xf32> -> vector<32x384xf32>
    %70 = arith.addf %64, %69 : vector<32x384xf32>
    %c0_77 = arith.constant 0 : index
    %c0_78 = arith.constant 0 : index
    %c0_79 = arith.constant 0 : index
    %c18_80 = arith.constant 18 : index
    %71 = vector.load %arg3[%c0_77, %c0_78, %c0_79, %c18_80] : memref<1x1x6x512xbf16, #tpu.memory_space<vmem>>, vector<1x1x6x384xbf16>
    %72 = vector.shape_cast %71 : vector<1x1x6x384xbf16> to vector<6x384xbf16>
    %c12 = arith.constant 12 : index
    %c0_81 = arith.constant 0 : index
    %c0_82 = arith.constant 0 : index
    %73 = vector.load %arg5[%c12, %c0_81, %c0_82] : memref<27x32x6xbf16, #tpu.memory_space<vmem>>, vector<1x32x6xbf16>
    %74 = vector.shape_cast %73 : vector<1x32x6xbf16> to vector<32x6xbf16>
    %cst_83 = arith.constant dense<0.000000e+00> : vector<32x384xf32>
    %75 = tpu.matmul %74, %72, %cst_83 {dimension_numbers = #tpu.dot_dimension_numbers<[1], [0], [0], [1], [0, 0, 1, 1], [], []>} : vector<32x6xbf16>, vector<6x384xbf16>, vector<32x384xf32> -> vector<32x384xf32>
    %76 = arith.addf %70, %75 : vector<32x384xf32>
    %c0_84 = arith.constant 0 : index
    %c0_85 = arith.constant 0 : index
    %c0_86 = arith.constant 0 : index
    %c19_87 = arith.constant 19 : index
    %77 = vector.load %arg3[%c0_84, %c0_85, %c0_86, %c19_87] : memref<1x1x6x512xbf16, #tpu.memory_space<vmem>>, vector<1x1x6x384xbf16>
    %78 = vector.shape_cast %77 : vector<1x1x6x384xbf16> to vector<6x384xbf16>
    %c13 = arith.constant 13 : index
    %c0_88 = arith.constant 0 : index
    %c0_89 = arith.constant 0 : index
    %79 = vector.load %arg5[%c13, %c0_88, %c0_89] : memref<27x32x6xbf16, #tpu.memory_space<vmem>>, vector<1x32x6xbf16>
    %80 = vector.shape_cast %79 : vector<1x32x6xbf16> to vector<32x6xbf16>
    %cst_90 = arith.constant dense<0.000000e+00> : vector<32x384xf32>
    %81 = tpu.matmul %80, %78, %cst_90 {dimension_numbers = #tpu.dot_dimension_numbers<[1], [0], [0], [1], [0, 0, 1, 1], [], []>} : vector<32x6xbf16>, vector<6x384xbf16>, vector<32x384xf32> -> vector<32x384xf32>
    %82 = arith.addf %76, %81 : vector<32x384xf32>
    %c0_91 = arith.constant 0 : index
    %c0_92 = arith.constant 0 : index
    %c0_93 = arith.constant 0 : index
    %c20_94 = arith.constant 20 : index
    %83 = vector.load %arg3[%c0_91, %c0_92, %c0_93, %c20_94] : memref<1x1x6x512xbf16, #tpu.memory_space<vmem>>, vector<1x1x6x384xbf16>
    %84 = vector.shape_cast %83 : vector<1x1x6x384xbf16> to vector<6x384xbf16>
    %c14 = arith.constant 14 : index
    %c0_95 = arith.constant 0 : index
    %c0_96 = arith.constant 0 : index
    %85 = vector.load %arg5[%c14, %c0_95, %c0_96] : memref<27x32x6xbf16, #tpu.memory_space<vmem>>, vector<1x32x6xbf16>
    %86 = vector.shape_cast %85 : vector<1x32x6xbf16> to vector<32x6xbf16>
    %cst_97 = arith.constant dense<0.000000e+00> : vector<32x384xf32>
    %87 = tpu.matmul %86, %84, %cst_97 {dimension_numbers = #tpu.dot_dimension_numbers<[1], [0], [0], [1], [0, 0, 1, 1], [], []>} : vector<32x6xbf16>, vector<6x384xbf16>, vector<32x384xf32> -> vector<32x384xf32>
    %88 = arith.addf %82, %87 : vector<32x384xf32>
    %c0_98 = arith.constant 0 : index
    %c0_99 = arith.constant 0 : index
    %c0_100 = arith.constant 0 : index
    %c36_101 = arith.constant 36 : index
    %89 = vector.load %arg3[%c0_98, %c0_99, %c0_100, %c36_101] : memref<1x1x6x512xbf16, #tpu.memory_space<vmem>>, vector<1x1x6x384xbf16>
    %90 = vector.shape_cast %89 : vector<1x1x6x384xbf16> to vector<6x384xbf16>
    %c15 = arith.constant 15 : index
    %c0_102 = arith.constant 0 : index
    %c0_103 = arith.constant 0 : index
    %91 = vector.load %arg5[%c15, %c0_102, %c0_103] : memref<27x32x6xbf16, #tpu.memory_space<vmem>>, vector<1x32x6xbf16>
    %92 = vector.shape_cast %91 : vector<1x32x6xbf16> to vector<32x6xbf16>
    %cst_104 = arith.constant dense<0.000000e+00> : vector<32x384xf32>
    %93 = tpu.matmul %92, %90, %cst_104 {dimension_numbers = #tpu.dot_dimension_numbers<[1], [0], [0], [1], [0, 0, 1, 1], [], []>} : vector<32x6xbf16>, vector<6x384xbf16>, vector<32x384xf32> -> vector<32x384xf32>
    %94 = arith.addf %88, %93 : vector<32x384xf32>
    %c0_105 = arith.constant 0 : index
    %c0_106 = arith.constant 0 : index
    %c0_107 = arith.constant 0 : index
    %c37_108 = arith.constant 37 : index
    %95 = vector.load %arg3[%c0_105, %c0_106, %c0_107, %c37_108] : memref<1x1x6x512xbf16, #tpu.memory_space<vmem>>, vector<1x1x6x384xbf16>
    %96 = vector.shape_cast %95 : vector<1x1x6x384xbf16> to vector<6x384xbf16>
    %c16 = arith.constant 16 : index
    %c0_109 = arith.constant 0 : index
    %c0_110 = arith.constant 0 : index
    %97 = vector.load %arg5[%c16, %c0_109, %c0_110] : memref<27x32x6xbf16, #tpu.memory_space<vmem>>, vector<1x32x6xbf16>
    %98 = vector.shape_cast %97 : vector<1x32x6xbf16> to vector<32x6xbf16>
    %cst_111 = arith.constant dense<0.000000e+00> : vector<32x384xf32>
    %99 = tpu.matmul %98, %96, %cst_111 {dimension_numbers = #tpu.dot_dimension_numbers<[1], [0], [0], [1], [0, 0, 1, 1], [], []>} : vector<32x6xbf16>, vector<6x384xbf16>, vector<32x384xf32> -> vector<32x384xf32>
    %100 = arith.addf %94, %99 : vector<32x384xf32>
    %c0_112 = arith.constant 0 : index
    %c0_113 = arith.constant 0 : index
    %c0_114 = arith.constant 0 : index
    %c38_115 = arith.constant 38 : index
    %101 = vector.load %arg3[%c0_112, %c0_113, %c0_114, %c38_115] : memref<1x1x6x512xbf16, #tpu.memory_space<vmem>>, vector<1x1x6x384xbf16>
    %102 = vector.shape_cast %101 : vector<1x1x6x384xbf16> to vector<6x384xbf16>
    %c17 = arith.constant 17 : index
    %c0_116 = arith.constant 0 : index
    %c0_117 = arith.constant 0 : index
    %103 = vector.load %arg5[%c17, %c0_116, %c0_117] : memref<27x32x6xbf16, #tpu.memory_space<vmem>>, vector<1x32x6xbf16>
    %104 = vector.shape_cast %103 : vector<1x32x6xbf16> to vector<32x6xbf16>
    %cst_118 = arith.constant dense<0.000000e+00> : vector<32x384xf32>
    %105 = tpu.matmul %104, %102, %cst_118 {dimension_numbers = #tpu.dot_dimension_numbers<[1], [0], [0], [1], [0, 0, 1, 1], [], []>} : vector<32x6xbf16>, vector<6x384xbf16>, vector<32x384xf32> -> vector<32x384xf32>
    %106 = arith.addf %100, %105 : vector<32x384xf32>
    %c0_119 = arith.constant 0 : index
    %c0_120 = arith.constant 0 : index
    %c0_121 = arith.constant 0 : index
    %c0_122 = arith.constant 0 : index
    %107 = vector.load %arg4[%c0_119, %c0_120, %c0_121, %c0_122] : memref<1x1x6x512xbf16, #tpu.memory_space<vmem>>, vector<1x1x6x384xbf16>
    %108 = vector.shape_cast %107 : vector<1x1x6x384xbf16> to vector<6x384xbf16>
    %c18_123 = arith.constant 18 : index
    %c0_124 = arith.constant 0 : index
    %c0_125 = arith.constant 0 : index
    %109 = vector.load %arg5[%c18_123, %c0_124, %c0_125] : memref<27x32x6xbf16, #tpu.memory_space<vmem>>, vector<1x32x6xbf16>
    %110 = vector.shape_cast %109 : vector<1x32x6xbf16> to vector<32x6xbf16>
    %cst_126 = arith.constant dense<0.000000e+00> : vector<32x384xf32>
    %111 = tpu.matmul %110, %108, %cst_126 {dimension_numbers = #tpu.dot_dimension_numbers<[1], [0], [0], [1], [0, 0, 1, 1], [], []>} : vector<32x6xbf16>, vector<6x384xbf16>, vector<32x384xf32> -> vector<32x384xf32>
    %112 = arith.addf %106, %111 : vector<32x384xf32>
    %c0_127 = arith.constant 0 : index
    %c0_128 = arith.constant 0 : index
    %c0_129 = arith.constant 0 : index
    %c1_130 = arith.constant 1 : index
    %113 = vector.load %arg4[%c0_127, %c0_128, %c0_129, %c1_130] : memref<1x1x6x512xbf16, #tpu.memory_space<vmem>>, vector<1x1x6x384xbf16>
    %114 = vector.shape_cast %113 : vector<1x1x6x384xbf16> to vector<6x384xbf16>
    %c19_131 = arith.constant 19 : index
    %c0_132 = arith.constant 0 : index
    %c0_133 = arith.constant 0 : index
    %115 = vector.load %arg5[%c19_131, %c0_132, %c0_133] : memref<27x32x6xbf16, #tpu.memory_space<vmem>>, vector<1x32x6xbf16>
    %116 = vector.shape_cast %115 : vector<1x32x6xbf16> to vector<32x6xbf16>
    %cst_134 = arith.constant dense<0.000000e+00> : vector<32x384xf32>
    %117 = tpu.matmul %116, %114, %cst_134 {dimension_numbers = #tpu.dot_dimension_numbers<[1], [0], [0], [1], [0, 0, 1, 1], [], []>} : vector<32x6xbf16>, vector<6x384xbf16>, vector<32x384xf32> -> vector<32x384xf32>
    %118 = arith.addf %112, %117 : vector<32x384xf32>
    %c0_135 = arith.constant 0 : index
    %c0_136 = arith.constant 0 : index
    %c0_137 = arith.constant 0 : index
    %c2_138 = arith.constant 2 : index
    %119 = vector.load %arg4[%c0_135, %c0_136, %c0_137, %c2_138] : memref<1x1x6x512xbf16, #tpu.memory_space<vmem>>, vector<1x1x6x384xbf16>
    %120 = vector.shape_cast %119 : vector<1x1x6x384xbf16> to vector<6x384xbf16>
    %c20_139 = arith.constant 20 : index
    %c0_140 = arith.constant 0 : index
    %c0_141 = arith.constant 0 : index
    %121 = vector.load %arg5[%c20_139, %c0_140, %c0_141] : memref<27x32x6xbf16, #tpu.memory_space<vmem>>, vector<1x32x6xbf16>
    %122 = vector.shape_cast %121 : vector<1x32x6xbf16> to vector<32x6xbf16>
    %cst_142 = arith.constant dense<0.000000e+00> : vector<32x384xf32>
    %123 = tpu.matmul %122, %120, %cst_142 {dimension_numbers = #tpu.dot_dimension_numbers<[1], [0], [0], [1], [0, 0, 1, 1], [], []>} : vector<32x6xbf16>, vector<6x384xbf16>, vector<32x384xf32> -> vector<32x384xf32>
    %124 = arith.addf %118, %123 : vector<32x384xf32>
    %c0_143 = arith.constant 0 : index
    %c0_144 = arith.constant 0 : index
    %c0_145 = arith.constant 0 : index
    %c18_146 = arith.constant 18 : index
    %125 = vector.load %arg4[%c0_143, %c0_144, %c0_145, %c18_146] : memref<1x1x6x512xbf16, #tpu.memory_space<vmem>>, vector<1x1x6x384xbf16>
    %126 = vector.shape_cast %125 : vector<1x1x6x384xbf16> to vector<6x384xbf16>
    %c21 = arith.constant 21 : index
    %c0_147 = arith.constant 0 : index
    %c0_148 = arith.constant 0 : index
    %127 = vector.load %arg5[%c21, %c0_147, %c0_148] : memref<27x32x6xbf16, #tpu.memory_space<vmem>>, vector<1x32x6xbf16>
    %128 = vector.shape_cast %127 : vector<1x32x6xbf16> to vector<32x6xbf16>
    %cst_149 = arith.constant dense<0.000000e+00> : vector<32x384xf32>
    %129 = tpu.matmul %128, %126, %cst_149 {dimension_numbers = #tpu.dot_dimension_numbers<[1], [0], [0], [1], [0, 0, 1, 1], [], []>} : vector<32x6xbf16>, vector<6x384xbf16>, vector<32x384xf32> -> vector<32x384xf32>
    %130 = arith.addf %124, %129 : vector<32x384xf32>
    %c0_150 = arith.constant 0 : index
    %c0_151 = arith.constant 0 : index
    %c0_152 = arith.constant 0 : index
    %c19_153 = arith.constant 19 : index
    %131 = vector.load %arg4[%c0_150, %c0_151, %c0_152, %c19_153] : memref<1x1x6x512xbf16, #tpu.memory_space<vmem>>, vector<1x1x6x384xbf16>
    %132 = vector.shape_cast %131 : vector<1x1x6x384xbf16> to vector<6x384xbf16>
    %c22 = arith.constant 22 : index
    %c0_154 = arith.constant 0 : index
    %c0_155 = arith.constant 0 : index
    %133 = vector.load %arg5[%c22, %c0_154, %c0_155] : memref<27x32x6xbf16, #tpu.memory_space<vmem>>, vector<1x32x6xbf16>
    %134 = vector.shape_cast %133 : vector<1x32x6xbf16> to vector<32x6xbf16>
    %cst_156 = arith.constant dense<0.000000e+00> : vector<32x384xf32>
    %135 = tpu.matmul %134, %132, %cst_156 {dimension_numbers = #tpu.dot_dimension_numbers<[1], [0], [0], [1], [0, 0, 1, 1], [], []>} : vector<32x6xbf16>, vector<6x384xbf16>, vector<32x384xf32> -> vector<32x384xf32>
    %136 = arith.addf %130, %135 : vector<32x384xf32>
    %c0_157 = arith.constant 0 : index
    %c0_158 = arith.constant 0 : index
    %c0_159 = arith.constant 0 : index
    %c20_160 = arith.constant 20 : index
    %137 = vector.load %arg4[%c0_157, %c0_158, %c0_159, %c20_160] : memref<1x1x6x512xbf16, #tpu.memory_space<vmem>>, vector<1x1x6x384xbf16>
    %138 = vector.shape_cast %137 : vector<1x1x6x384xbf16> to vector<6x384xbf16>
    %c23 = arith.constant 23 : index
    %c0_161 = arith.constant 0 : index
    %c0_162 = arith.constant 0 : index
    %139 = vector.load %arg5[%c23, %c0_161, %c0_162] : memref<27x32x6xbf16, #tpu.memory_space<vmem>>, vector<1x32x6xbf16>
    %140 = vector.shape_cast %139 : vector<1x32x6xbf16> to vector<32x6xbf16>
    %cst_163 = arith.constant dense<0.000000e+00> : vector<32x384xf32>
    %141 = tpu.matmul %140, %138, %cst_163 {dimension_numbers = #tpu.dot_dimension_numbers<[1], [0], [0], [1], [0, 0, 1, 1], [], []>} : vector<32x6xbf16>, vector<6x384xbf16>, vector<32x384xf32> -> vector<32x384xf32>
    %142 = arith.addf %136, %141 : vector<32x384xf32>
    %c0_164 = arith.constant 0 : index
    %c0_165 = arith.constant 0 : index
    %c0_166 = arith.constant 0 : index
    %c36_167 = arith.constant 36 : index
    %143 = vector.load %arg4[%c0_164, %c0_165, %c0_166, %c36_167] : memref<1x1x6x512xbf16, #tpu.memory_space<vmem>>, vector<1x1x6x384xbf16>
    %144 = vector.shape_cast %143 : vector<1x1x6x384xbf16> to vector<6x384xbf16>
    %c24 = arith.constant 24 : index
    %c0_168 = arith.constant 0 : index
    %c0_169 = arith.constant 0 : index
    %145 = vector.load %arg5[%c24, %c0_168, %c0_169] : memref<27x32x6xbf16, #tpu.memory_space<vmem>>, vector<1x32x6xbf16>
    %146 = vector.shape_cast %145 : vector<1x32x6xbf16> to vector<32x6xbf16>
    %cst_170 = arith.constant dense<0.000000e+00> : vector<32x384xf32>
    %147 = tpu.matmul %146, %144, %cst_170 {dimension_numbers = #tpu.dot_dimension_numbers<[1], [0], [0], [1], [0, 0, 1, 1], [], []>} : vector<32x6xbf16>, vector<6x384xbf16>, vector<32x384xf32> -> vector<32x384xf32>
    %148 = arith.addf %142, %147 : vector<32x384xf32>
    %c0_171 = arith.constant 0 : index
    %c0_172 = arith.constant 0 : index
    %c0_173 = arith.constant 0 : index
    %c37_174 = arith.constant 37 : index
    %149 = vector.load %arg4[%c0_171, %c0_172, %c0_173, %c37_174] : memref<1x1x6x512xbf16, #tpu.memory_space<vmem>>, vector<1x1x6x384xbf16>
    %150 = vector.shape_cast %149 : vector<1x1x6x384xbf16> to vector<6x384xbf16>
    %c25 = arith.constant 25 : index
    %c0_175 = arith.constant 0 : index
    %c0_176 = arith.constant 0 : index
    %151 = vector.load %arg5[%c25, %c0_175, %c0_176] : memref<27x32x6xbf16, #tpu.memory_space<vmem>>, vector<1x32x6xbf16>
    %152 = vector.shape_cast %151 : vector<1x32x6xbf16> to vector<32x6xbf16>
    %cst_177 = arith.constant dense<0.000000e+00> : vector<32x384xf32>
    %153 = tpu.matmul %152, %150, %cst_177 {dimension_numbers = #tpu.dot_dimension_numbers<[1], [0], [0], [1], [0, 0, 1, 1], [], []>} : vector<32x6xbf16>, vector<6x384xbf16>, vector<32x384xf32> -> vector<32x384xf32>
    %154 = arith.addf %148, %153 : vector<32x384xf32>
    %c0_178 = arith.constant 0 : index
    %c0_179 = arith.constant 0 : index
    %c0_180 = arith.constant 0 : index
    %c38_181 = arith.constant 38 : index
    %155 = vector.load %arg4[%c0_178, %c0_179, %c0_180, %c38_181] : memref<1x1x6x512xbf16, #tpu.memory_space<vmem>>, vector<1x1x6x384xbf16>
    %156 = vector.shape_cast %155 : vector<1x1x6x384xbf16> to vector<6x384xbf16>
    %c26 = arith.constant 26 : index
    %c0_182 = arith.constant 0 : index
    %c0_183 = arith.constant 0 : index
    %157 = vector.load %arg5[%c26, %c0_182, %c0_183] : memref<27x32x6xbf16, #tpu.memory_space<vmem>>, vector<1x32x6xbf16>
    %158 = vector.shape_cast %157 : vector<1x32x6xbf16> to vector<32x6xbf16>
    %cst_184 = arith.constant dense<0.000000e+00> : vector<32x384xf32>
    %159 = tpu.matmul %158, %156, %cst_184 {dimension_numbers = #tpu.dot_dimension_numbers<[1], [0], [0], [1], [0, 0, 1, 1], [], []>} : vector<32x6xbf16>, vector<6x384xbf16>, vector<32x384xf32> -> vector<32x384xf32>
    %160 = arith.addf %154, %159 : vector<32x384xf32>
    %c0_185 = arith.constant 0 : index
    %c0_186 = arith.constant 0 : index
    %161 = vector.load %arg6[%c0_185, %c0_186] : memref<32x1xf32, #tpu.memory_space<vmem>>, vector<32x1xf32>
    %162 = vector.broadcast %161 : vector<32x1xf32> to vector<32x384xf32>
    %163 = arith.addf %160, %162 : vector<32x384xf32>
    %cst_187 = arith.constant 0.000000e+00 : f32
    %164 = vector.broadcast %cst_187 : f32 to vector<32x384xf32>
    %165 = arith.maximumf %163, %164 : vector<32x384xf32>
    %166 = arith.truncf %165 : vector<32x384xf32> to vector<32x384xbf16>
    %c0_188 = arith.constant 0 : index
    %c0_189 = arith.constant 0 : index
    %c0_190 = arith.constant 0 : index
    %c0_191 = arith.constant 0 : index
    %167 = vector.load %arg7[%c0_188, %c0_189, %c0_190, %c0_191] : memref<1x1x32x384xbf16, #tpu.memory_space<vmem>>, vector<1x1x32x384xbf16>
    %168 = vector.shape_cast %167 : vector<1x1x32x384xbf16> to vector<32x384xbf16>
    %169 = vector.shape_cast %166 : vector<32x384xbf16> to vector<1x1x32x384xbf16>
    tpu.vector_store %arg7[%c0_188, %c0_189, %c0_190, %c0_191], %169 {strides = array<i32>} : memref<1x1x32x384xbf16, #tpu.memory_space<vmem>>, vector<1x1x32x384xbf16>,
    return
  }
  func.func @transform_0(%arg0: i32, %arg1: i32) -> (i32, i32, i32, i32) {
    %c0_i32 = arith.constant 0 : i32
    %0 = arith.addi %arg1, %c0_i32 : i32
    %c0_i32_0 = arith.constant 0 : i32
    %c0_i32_1 = arith.constant 0 : i32
    %c0_i32_2 = arith.constant 0 : i32
    return %arg0, %0, %c0_i32_0, %c0_i32_1 : i32, i32, i32, i32
  }
  func.func @transform_1(%arg0: i32, %arg1: i32) -> (i32, i32, i32, i32) {
    %c1_i32 = arith.constant 1 : i32
    %0 = arith.addi %arg1, %c1_i32 : i32
    %c0_i32 = arith.constant 0 : i32
    %c0_i32_0 = arith.constant 0 : i32
    %c0_i32_1 = arith.constant 0 : i32
    return %arg0, %0, %c0_i32, %c0_i32_0 : i32, i32, i32, i32
  }
  func.func @transform_2(%arg0: i32, %arg1: i32) -> (i32, i32, i32, i32) {
    %c2_i32 = arith.constant 2 : i32
    %0 = arith.addi %arg1, %c2_i32 : i32
    %c0_i32 = arith.constant 0 : i32
    %c0_i32_0 = arith.constant 0 : i32
    %c0_i32_1 = arith.constant 0 : i32
    return %arg0, %0, %c0_i32, %c0_i32_0 : i32, i32, i32, i32
  }
  func.func @transform_3(%arg0: i32, %arg1: i32) -> (i32, i32, i32) {
    %c0_i32 = arith.constant 0 : i32
    %c0_i32_0 = arith.constant 0 : i32
    %c0_i32_1 = arith.constant 0 : i32
    %c0_i32_2 = arith.constant 0 : i32
    return %c0_i32, %c0_i32_0, %c0_i32_1 : i32, i32, i32
  }
  func.func @transform_4(%arg0: i32, %arg1: i32) -> (i32, i32) {
    %c0_i32 = arith.constant 0 : i32
    %c0_i32_0 = arith.constant 0 : i32
    %c0_i32_1 = arith.constant 0 : i32
    return %c0_i32, %c0_i32_0 : i32, i32
  }
  func.func @transform_5(%arg0: i32, %arg1: i32) -> (i32, i32, i32, i32) {
    %c0_i32 = arith.constant 0 : i32
    %c0_i32_0 = arith.constant 0 : i32
    %c0_i32_1 = arith.constant 0 : i32
    return %arg0, %arg1, %c0_i32, %c0_i32_0 : i32, i32, i32, i32
  }
}

module attributes {stable_mosaic.version = 11 : i64} {
  func.func @_conv3x3x3_kernel(%arg0: i32, %arg1: i32, %arg2: memref<1x1x32x512xbf16, #tpu.memory_space<vmem>>, %arg3: memref<1x1x32x512xbf16, #tpu.memory_space<vmem>>, %arg4: memref<1x1x32x512xbf16, #tpu.memory_space<vmem>>, %arg5: memref<27x14x32xbf16, #tpu.memory_space<vmem>>, %arg6: memref<14x1xf32, #tpu.memory_space<vmem>>, %arg7: memref<1x1x14x384xf32, #tpu.memory_space<vmem>>) attributes {dimension_semantics = [#tpu.dimension_semantics<parallel>, #tpu.dimension_semantics<parallel>], iteration_bounds = array<i64: 2, 4>, scalar_prefetch = 0 : i64, scratch_operands = 0 : i64, tpu.core_type = #tpu.core_type<tc>, window_params = [{transform_indices = @transform_0, window_bounds = array<i64: 1, 1, 32, 512>}, {transform_indices = @transform_1, window_bounds = array<i64: 1, 1, 32, 512>}, {transform_indices = @transform_2, window_bounds = array<i64: 1, 1, 32, 512>}, {pipeline_mode = #tpu.pipeline_mode<synchronous>, transform_indices = @transform_3, window_bounds = array<i64: 27, 14, 32>}, {pipeline_mode = #tpu.pipeline_mode<synchronous>, transform_indices = @transform_4, window_bounds = array<i64: 14, 1>}, {transform_indices = @transform_5, window_bounds = array<i64: 1, 1, 14, 384>}]} {
    %c0 = arith.constant 0 : index
    %c0_0 = arith.constant 0 : index
    %c0_1 = arith.constant 0 : index
    %c0_2 = arith.constant 0 : index
    %0 = vector.load %arg2[%c0, %c0_0, %c0_1, %c0_2] : memref<1x1x32x512xbf16, #tpu.memory_space<vmem>>, vector<1x1x32x384xbf16>
    %1 = vector.shape_cast %0 : vector<1x1x32x384xbf16> to vector<32x384xbf16>
    %c0_3 = arith.constant 0 : index
    %c0_4 = arith.constant 0 : index
    %c0_5 = arith.constant 0 : index
    %2 = vector.load %arg5[%c0_3, %c0_4, %c0_5] : memref<27x14x32xbf16, #tpu.memory_space<vmem>>, vector<1x14x32xbf16>
    %3 = vector.shape_cast %2 : vector<1x14x32xbf16> to vector<14x32xbf16>
    %cst = arith.constant dense<0.000000e+00> : vector<14x384xf32>
    %4 = tpu.matmul %3, %1, %cst {dimension_numbers = #tpu.dot_dimension_numbers<[1], [0], [0], [1], [0, 0, 1, 1], [], []>} : vector<14x32xbf16>, vector<32x384xbf16>, vector<14x384xf32> -> vector<14x384xf32>
    %c0_6 = arith.constant 0 : index
    %c0_7 = arith.constant 0 : index
    %c0_8 = arith.constant 0 : index
    %c1 = arith.constant 1 : index
    %5 = vector.load %arg2[%c0_6, %c0_7, %c0_8, %c1] : memref<1x1x32x512xbf16, #tpu.memory_space<vmem>>, vector<1x1x32x384xbf16>
    %6 = vector.shape_cast %5 : vector<1x1x32x384xbf16> to vector<32x384xbf16>
    %c1_9 = arith.constant 1 : index
    %c0_10 = arith.constant 0 : index
    %c0_11 = arith.constant 0 : index
    %7 = vector.load %arg5[%c1_9, %c0_10, %c0_11] : memref<27x14x32xbf16, #tpu.memory_space<vmem>>, vector<1x14x32xbf16>
    %8 = vector.shape_cast %7 : vector<1x14x32xbf16> to vector<14x32xbf16>
    %cst_12 = arith.constant dense<0.000000e+00> : vector<14x384xf32>
    %9 = tpu.matmul %8, %6, %cst_12 {dimension_numbers = #tpu.dot_dimension_numbers<[1], [0], [0], [1], [0, 0, 1, 1], [], []>} : vector<14x32xbf16>, vector<32x384xbf16>, vector<14x384xf32> -> vector<14x384xf32>
    %10 = arith.addf %4, %9 : vector<14x384xf32>
    %c0_13 = arith.constant 0 : index
    %c0_14 = arith.constant 0 : index
    %c0_15 = arith.constant 0 : index
    %c2 = arith.constant 2 : index
    %11 = vector.load %arg2[%c0_13, %c0_14, %c0_15, %c2] : memref<1x1x32x512xbf16, #tpu.memory_space<vmem>>, vector<1x1x32x384xbf16>
    %12 = vector.shape_cast %11 : vector<1x1x32x384xbf16> to vector<32x384xbf16>
    %c2_16 = arith.constant 2 : index
    %c0_17 = arith.constant 0 : index
    %c0_18 = arith.constant 0 : index
    %13 = vector.load %arg5[%c2_16, %c0_17, %c0_18] : memref<27x14x32xbf16, #tpu.memory_space<vmem>>, vector<1x14x32xbf16>
    %14 = vector.shape_cast %13 : vector<1x14x32xbf16> to vector<14x32xbf16>
    %cst_19 = arith.constant dense<0.000000e+00> : vector<14x384xf32>
    %15 = tpu.matmul %14, %12, %cst_19 {dimension_numbers = #tpu.dot_dimension_numbers<[1], [0], [0], [1], [0, 0, 1, 1], [], []>} : vector<14x32xbf16>, vector<32x384xbf16>, vector<14x384xf32> -> vector<14x384xf32>
    %16 = arith.addf %10, %15 : vector<14x384xf32>
    %c0_20 = arith.constant 0 : index
    %c0_21 = arith.constant 0 : index
    %c0_22 = arith.constant 0 : index
    %c18 = arith.constant 18 : index
    %17 = vector.load %arg2[%c0_20, %c0_21, %c0_22, %c18] : memref<1x1x32x512xbf16, #tpu.memory_space<vmem>>, vector<1x1x32x384xbf16>
    %18 = vector.shape_cast %17 : vector<1x1x32x384xbf16> to vector<32x384xbf16>
    %c3 = arith.constant 3 : index
    %c0_23 = arith.constant 0 : index
    %c0_24 = arith.constant 0 : index
    %19 = vector.load %arg5[%c3, %c0_23, %c0_24] : memref<27x14x32xbf16, #tpu.memory_space<vmem>>, vector<1x14x32xbf16>
    %20 = vector.shape_cast %19 : vector<1x14x32xbf16> to vector<14x32xbf16>
    %cst_25 = arith.constant dense<0.000000e+00> : vector<14x384xf32>
    %21 = tpu.matmul %20, %18, %cst_25 {dimension_numbers = #tpu.dot_dimension_numbers<[1], [0], [0], [1], [0, 0, 1, 1], [], []>} : vector<14x32xbf16>, vector<32x384xbf16>, vector<14x384xf32> -> vector<14x384xf32>
    %22 = arith.addf %16, %21 : vector<14x384xf32>
    %c0_26 = arith.constant 0 : index
    %c0_27 = arith.constant 0 : index
    %c0_28 = arith.constant 0 : index
    %c19 = arith.constant 19 : index
    %23 = vector.load %arg2[%c0_26, %c0_27, %c0_28, %c19] : memref<1x1x32x512xbf16, #tpu.memory_space<vmem>>, vector<1x1x32x384xbf16>
    %24 = vector.shape_cast %23 : vector<1x1x32x384xbf16> to vector<32x384xbf16>
    %c4 = arith.constant 4 : index
    %c0_29 = arith.constant 0 : index
    %c0_30 = arith.constant 0 : index
    %25 = vector.load %arg5[%c4, %c0_29, %c0_30] : memref<27x14x32xbf16, #tpu.memory_space<vmem>>, vector<1x14x32xbf16>
    %26 = vector.shape_cast %25 : vector<1x14x32xbf16> to vector<14x32xbf16>
    %cst_31 = arith.constant dense<0.000000e+00> : vector<14x384xf32>
    %27 = tpu.matmul %26, %24, %cst_31 {dimension_numbers = #tpu.dot_dimension_numbers<[1], [0], [0], [1], [0, 0, 1, 1], [], []>} : vector<14x32xbf16>, vector<32x384xbf16>, vector<14x384xf32> -> vector<14x384xf32>
    %28 = arith.addf %22, %27 : vector<14x384xf32>
    %c0_32 = arith.constant 0 : index
    %c0_33 = arith.constant 0 : index
    %c0_34 = arith.constant 0 : index
    %c20 = arith.constant 20 : index
    %29 = vector.load %arg2[%c0_32, %c0_33, %c0_34, %c20] : memref<1x1x32x512xbf16, #tpu.memory_space<vmem>>, vector<1x1x32x384xbf16>
    %30 = vector.shape_cast %29 : vector<1x1x32x384xbf16> to vector<32x384xbf16>
    %c5 = arith.constant 5 : index
    %c0_35 = arith.constant 0 : index
    %c0_36 = arith.constant 0 : index
    %31 = vector.load %arg5[%c5, %c0_35, %c0_36] : memref<27x14x32xbf16, #tpu.memory_space<vmem>>, vector<1x14x32xbf16>
    %32 = vector.shape_cast %31 : vector<1x14x32xbf16> to vector<14x32xbf16>
    %cst_37 = arith.constant dense<0.000000e+00> : vector<14x384xf32>
    %33 = tpu.matmul %32, %30, %cst_37 {dimension_numbers = #tpu.dot_dimension_numbers<[1], [0], [0], [1], [0, 0, 1, 1], [], []>} : vector<14x32xbf16>, vector<32x384xbf16>, vector<14x384xf32> -> vector<14x384xf32>
    %34 = arith.addf %28, %33 : vector<14x384xf32>
    %c0_38 = arith.constant 0 : index
    %c0_39 = arith.constant 0 : index
    %c0_40 = arith.constant 0 : index
    %c36 = arith.constant 36 : index
    %35 = vector.load %arg2[%c0_38, %c0_39, %c0_40, %c36] : memref<1x1x32x512xbf16, #tpu.memory_space<vmem>>, vector<1x1x32x384xbf16>
    %36 = vector.shape_cast %35 : vector<1x1x32x384xbf16> to vector<32x384xbf16>
    %c6 = arith.constant 6 : index
    %c0_41 = arith.constant 0 : index
    %c0_42 = arith.constant 0 : index
    %37 = vector.load %arg5[%c6, %c0_41, %c0_42] : memref<27x14x32xbf16, #tpu.memory_space<vmem>>, vector<1x14x32xbf16>
    %38 = vector.shape_cast %37 : vector<1x14x32xbf16> to vector<14x32xbf16>
    %cst_43 = arith.constant dense<0.000000e+00> : vector<14x384xf32>
    %39 = tpu.matmul %38, %36, %cst_43 {dimension_numbers = #tpu.dot_dimension_numbers<[1], [0], [0], [1], [0, 0, 1, 1], [], []>} : vector<14x32xbf16>, vector<32x384xbf16>, vector<14x384xf32> -> vector<14x384xf32>
    %40 = arith.addf %34, %39 : vector<14x384xf32>
    %c0_44 = arith.constant 0 : index
    %c0_45 = arith.constant 0 : index
    %c0_46 = arith.constant 0 : index
    %c37 = arith.constant 37 : index
    %41 = vector.load %arg2[%c0_44, %c0_45, %c0_46, %c37] : memref<1x1x32x512xbf16, #tpu.memory_space<vmem>>, vector<1x1x32x384xbf16>
    %42 = vector.shape_cast %41 : vector<1x1x32x384xbf16> to vector<32x384xbf16>
    %c7 = arith.constant 7 : index
    %c0_47 = arith.constant 0 : index
    %c0_48 = arith.constant 0 : index
    %43 = vector.load %arg5[%c7, %c0_47, %c0_48] : memref<27x14x32xbf16, #tpu.memory_space<vmem>>, vector<1x14x32xbf16>
    %44 = vector.shape_cast %43 : vector<1x14x32xbf16> to vector<14x32xbf16>
    %cst_49 = arith.constant dense<0.000000e+00> : vector<14x384xf32>
    %45 = tpu.matmul %44, %42, %cst_49 {dimension_numbers = #tpu.dot_dimension_numbers<[1], [0], [0], [1], [0, 0, 1, 1], [], []>} : vector<14x32xbf16>, vector<32x384xbf16>, vector<14x384xf32> -> vector<14x384xf32>
    %46 = arith.addf %40, %45 : vector<14x384xf32>
    %c0_50 = arith.constant 0 : index
    %c0_51 = arith.constant 0 : index
    %c0_52 = arith.constant 0 : index
    %c38 = arith.constant 38 : index
    %47 = vector.load %arg2[%c0_50, %c0_51, %c0_52, %c38] : memref<1x1x32x512xbf16, #tpu.memory_space<vmem>>, vector<1x1x32x384xbf16>
    %48 = vector.shape_cast %47 : vector<1x1x32x384xbf16> to vector<32x384xbf16>
    %c8 = arith.constant 8 : index
    %c0_53 = arith.constant 0 : index
    %c0_54 = arith.constant 0 : index
    %49 = vector.load %arg5[%c8, %c0_53, %c0_54] : memref<27x14x32xbf16, #tpu.memory_space<vmem>>, vector<1x14x32xbf16>
    %50 = vector.shape_cast %49 : vector<1x14x32xbf16> to vector<14x32xbf16>
    %cst_55 = arith.constant dense<0.000000e+00> : vector<14x384xf32>
    %51 = tpu.matmul %50, %48, %cst_55 {dimension_numbers = #tpu.dot_dimension_numbers<[1], [0], [0], [1], [0, 0, 1, 1], [], []>} : vector<14x32xbf16>, vector<32x384xbf16>, vector<14x384xf32> -> vector<14x384xf32>
    %52 = arith.addf %46, %51 : vector<14x384xf32>
    %c0_56 = arith.constant 0 : index
    %c0_57 = arith.constant 0 : index
    %c0_58 = arith.constant 0 : index
    %c0_59 = arith.constant 0 : index
    %53 = vector.load %arg3[%c0_56, %c0_57, %c0_58, %c0_59] : memref<1x1x32x512xbf16, #tpu.memory_space<vmem>>, vector<1x1x32x384xbf16>
    %54 = vector.shape_cast %53 : vector<1x1x32x384xbf16> to vector<32x384xbf16>
    %c9 = arith.constant 9 : index
    %c0_60 = arith.constant 0 : index
    %c0_61 = arith.constant 0 : index
    %55 = vector.load %arg5[%c9, %c0_60, %c0_61] : memref<27x14x32xbf16, #tpu.memory_space<vmem>>, vector<1x14x32xbf16>
    %56 = vector.shape_cast %55 : vector<1x14x32xbf16> to vector<14x32xbf16>
    %cst_62 = arith.constant dense<0.000000e+00> : vector<14x384xf32>
    %57 = tpu.matmul %56, %54, %cst_62 {dimension_numbers = #tpu.dot_dimension_numbers<[1], [0], [0], [1], [0, 0, 1, 1], [], []>} : vector<14x32xbf16>, vector<32x384xbf16>, vector<14x384xf32> -> vector<14x384xf32>
    %58 = arith.addf %52, %57 : vector<14x384xf32>
    %c0_63 = arith.constant 0 : index
    %c0_64 = arith.constant 0 : index
    %c0_65 = arith.constant 0 : index
    %c1_66 = arith.constant 1 : index
    %59 = vector.load %arg3[%c0_63, %c0_64, %c0_65, %c1_66] : memref<1x1x32x512xbf16, #tpu.memory_space<vmem>>, vector<1x1x32x384xbf16>
    %60 = vector.shape_cast %59 : vector<1x1x32x384xbf16> to vector<32x384xbf16>
    %c10 = arith.constant 10 : index
    %c0_67 = arith.constant 0 : index
    %c0_68 = arith.constant 0 : index
    %61 = vector.load %arg5[%c10, %c0_67, %c0_68] : memref<27x14x32xbf16, #tpu.memory_space<vmem>>, vector<1x14x32xbf16>
    %62 = vector.shape_cast %61 : vector<1x14x32xbf16> to vector<14x32xbf16>
    %cst_69 = arith.constant dense<0.000000e+00> : vector<14x384xf32>
    %63 = tpu.matmul %62, %60, %cst_69 {dimension_numbers = #tpu.dot_dimension_numbers<[1], [0], [0], [1], [0, 0, 1, 1], [], []>} : vector<14x32xbf16>, vector<32x384xbf16>, vector<14x384xf32> -> vector<14x384xf32>
    %64 = arith.addf %58, %63 : vector<14x384xf32>
    %c0_70 = arith.constant 0 : index
    %c0_71 = arith.constant 0 : index
    %c0_72 = arith.constant 0 : index
    %c2_73 = arith.constant 2 : index
    %65 = vector.load %arg3[%c0_70, %c0_71, %c0_72, %c2_73] : memref<1x1x32x512xbf16, #tpu.memory_space<vmem>>, vector<1x1x32x384xbf16>
    %66 = vector.shape_cast %65 : vector<1x1x32x384xbf16> to vector<32x384xbf16>
    %c11 = arith.constant 11 : index
    %c0_74 = arith.constant 0 : index
    %c0_75 = arith.constant 0 : index
    %67 = vector.load %arg5[%c11, %c0_74, %c0_75] : memref<27x14x32xbf16, #tpu.memory_space<vmem>>, vector<1x14x32xbf16>
    %68 = vector.shape_cast %67 : vector<1x14x32xbf16> to vector<14x32xbf16>
    %cst_76 = arith.constant dense<0.000000e+00> : vector<14x384xf32>
    %69 = tpu.matmul %68, %66, %cst_76 {dimension_numbers = #tpu.dot_dimension_numbers<[1], [0], [0], [1], [0, 0, 1, 1], [], []>} : vector<14x32xbf16>, vector<32x384xbf16>, vector<14x384xf32> -> vector<14x384xf32>
    %70 = arith.addf %64, %69 : vector<14x384xf32>
    %c0_77 = arith.constant 0 : index
    %c0_78 = arith.constant 0 : index
    %c0_79 = arith.constant 0 : index
    %c18_80 = arith.constant 18 : index
    %71 = vector.load %arg3[%c0_77, %c0_78, %c0_79, %c18_80] : memref<1x1x32x512xbf16, #tpu.memory_space<vmem>>, vector<1x1x32x384xbf16>
    %72 = vector.shape_cast %71 : vector<1x1x32x384xbf16> to vector<32x384xbf16>
    %c12 = arith.constant 12 : index
    %c0_81 = arith.constant 0 : index
    %c0_82 = arith.constant 0 : index
    %73 = vector.load %arg5[%c12, %c0_81, %c0_82] : memref<27x14x32xbf16, #tpu.memory_space<vmem>>, vector<1x14x32xbf16>
    %74 = vector.shape_cast %73 : vector<1x14x32xbf16> to vector<14x32xbf16>
    %cst_83 = arith.constant dense<0.000000e+00> : vector<14x384xf32>
    %75 = tpu.matmul %74, %72, %cst_83 {dimension_numbers = #tpu.dot_dimension_numbers<[1], [0], [0], [1], [0, 0, 1, 1], [], []>} : vector<14x32xbf16>, vector<32x384xbf16>, vector<14x384xf32> -> vector<14x384xf32>
    %76 = arith.addf %70, %75 : vector<14x384xf32>
    %c0_84 = arith.constant 0 : index
    %c0_85 = arith.constant 0 : index
    %c0_86 = arith.constant 0 : index
    %c19_87 = arith.constant 19 : index
    %77 = vector.load %arg3[%c0_84, %c0_85, %c0_86, %c19_87] : memref<1x1x32x512xbf16, #tpu.memory_space<vmem>>, vector<1x1x32x384xbf16>
    %78 = vector.shape_cast %77 : vector<1x1x32x384xbf16> to vector<32x384xbf16>
    %c13 = arith.constant 13 : index
    %c0_88 = arith.constant 0 : index
    %c0_89 = arith.constant 0 : index
    %79 = vector.load %arg5[%c13, %c0_88, %c0_89] : memref<27x14x32xbf16, #tpu.memory_space<vmem>>, vector<1x14x32xbf16>
    %80 = vector.shape_cast %79 : vector<1x14x32xbf16> to vector<14x32xbf16>
    %cst_90 = arith.constant dense<0.000000e+00> : vector<14x384xf32>
    %81 = tpu.matmul %80, %78, %cst_90 {dimension_numbers = #tpu.dot_dimension_numbers<[1], [0], [0], [1], [0, 0, 1, 1], [], []>} : vector<14x32xbf16>, vector<32x384xbf16>, vector<14x384xf32> -> vector<14x384xf32>
    %82 = arith.addf %76, %81 : vector<14x384xf32>
    %c0_91 = arith.constant 0 : index
    %c0_92 = arith.constant 0 : index
    %c0_93 = arith.constant 0 : index
    %c20_94 = arith.constant 20 : index
    %83 = vector.load %arg3[%c0_91, %c0_92, %c0_93, %c20_94] : memref<1x1x32x512xbf16, #tpu.memory_space<vmem>>, vector<1x1x32x384xbf16>
    %84 = vector.shape_cast %83 : vector<1x1x32x384xbf16> to vector<32x384xbf16>
    %c14 = arith.constant 14 : index
    %c0_95 = arith.constant 0 : index
    %c0_96 = arith.constant 0 : index
    %85 = vector.load %arg5[%c14, %c0_95, %c0_96] : memref<27x14x32xbf16, #tpu.memory_space<vmem>>, vector<1x14x32xbf16>
    %86 = vector.shape_cast %85 : vector<1x14x32xbf16> to vector<14x32xbf16>
    %cst_97 = arith.constant dense<0.000000e+00> : vector<14x384xf32>
    %87 = tpu.matmul %86, %84, %cst_97 {dimension_numbers = #tpu.dot_dimension_numbers<[1], [0], [0], [1], [0, 0, 1, 1], [], []>} : vector<14x32xbf16>, vector<32x384xbf16>, vector<14x384xf32> -> vector<14x384xf32>
    %88 = arith.addf %82, %87 : vector<14x384xf32>
    %c0_98 = arith.constant 0 : index
    %c0_99 = arith.constant 0 : index
    %c0_100 = arith.constant 0 : index
    %c36_101 = arith.constant 36 : index
    %89 = vector.load %arg3[%c0_98, %c0_99, %c0_100, %c36_101] : memref<1x1x32x512xbf16, #tpu.memory_space<vmem>>, vector<1x1x32x384xbf16>
    %90 = vector.shape_cast %89 : vector<1x1x32x384xbf16> to vector<32x384xbf16>
    %c15 = arith.constant 15 : index
    %c0_102 = arith.constant 0 : index
    %c0_103 = arith.constant 0 : index
    %91 = vector.load %arg5[%c15, %c0_102, %c0_103] : memref<27x14x32xbf16, #tpu.memory_space<vmem>>, vector<1x14x32xbf16>
    %92 = vector.shape_cast %91 : vector<1x14x32xbf16> to vector<14x32xbf16>
    %cst_104 = arith.constant dense<0.000000e+00> : vector<14x384xf32>
    %93 = tpu.matmul %92, %90, %cst_104 {dimension_numbers = #tpu.dot_dimension_numbers<[1], [0], [0], [1], [0, 0, 1, 1], [], []>} : vector<14x32xbf16>, vector<32x384xbf16>, vector<14x384xf32> -> vector<14x384xf32>
    %94 = arith.addf %88, %93 : vector<14x384xf32>
    %c0_105 = arith.constant 0 : index
    %c0_106 = arith.constant 0 : index
    %c0_107 = arith.constant 0 : index
    %c37_108 = arith.constant 37 : index
    %95 = vector.load %arg3[%c0_105, %c0_106, %c0_107, %c37_108] : memref<1x1x32x512xbf16, #tpu.memory_space<vmem>>, vector<1x1x32x384xbf16>
    %96 = vector.shape_cast %95 : vector<1x1x32x384xbf16> to vector<32x384xbf16>
    %c16 = arith.constant 16 : index
    %c0_109 = arith.constant 0 : index
    %c0_110 = arith.constant 0 : index
    %97 = vector.load %arg5[%c16, %c0_109, %c0_110] : memref<27x14x32xbf16, #tpu.memory_space<vmem>>, vector<1x14x32xbf16>
    %98 = vector.shape_cast %97 : vector<1x14x32xbf16> to vector<14x32xbf16>
    %cst_111 = arith.constant dense<0.000000e+00> : vector<14x384xf32>
    %99 = tpu.matmul %98, %96, %cst_111 {dimension_numbers = #tpu.dot_dimension_numbers<[1], [0], [0], [1], [0, 0, 1, 1], [], []>} : vector<14x32xbf16>, vector<32x384xbf16>, vector<14x384xf32> -> vector<14x384xf32>
    %100 = arith.addf %94, %99 : vector<14x384xf32>
    %c0_112 = arith.constant 0 : index
    %c0_113 = arith.constant 0 : index
    %c0_114 = arith.constant 0 : index
    %c38_115 = arith.constant 38 : index
    %101 = vector.load %arg3[%c0_112, %c0_113, %c0_114, %c38_115] : memref<1x1x32x512xbf16, #tpu.memory_space<vmem>>, vector<1x1x32x384xbf16>
    %102 = vector.shape_cast %101 : vector<1x1x32x384xbf16> to vector<32x384xbf16>
    %c17 = arith.constant 17 : index
    %c0_116 = arith.constant 0 : index
    %c0_117 = arith.constant 0 : index
    %103 = vector.load %arg5[%c17, %c0_116, %c0_117] : memref<27x14x32xbf16, #tpu.memory_space<vmem>>, vector<1x14x32xbf16>
    %104 = vector.shape_cast %103 : vector<1x14x32xbf16> to vector<14x32xbf16>
    %cst_118 = arith.constant dense<0.000000e+00> : vector<14x384xf32>
    %105 = tpu.matmul %104, %102, %cst_118 {dimension_numbers = #tpu.dot_dimension_numbers<[1], [0], [0], [1], [0, 0, 1, 1], [], []>} : vector<14x32xbf16>, vector<32x384xbf16>, vector<14x384xf32> -> vector<14x384xf32>
    %106 = arith.addf %100, %105 : vector<14x384xf32>
    %c0_119 = arith.constant 0 : index
    %c0_120 = arith.constant 0 : index
    %c0_121 = arith.constant 0 : index
    %c0_122 = arith.constant 0 : index
    %107 = vector.load %arg4[%c0_119, %c0_120, %c0_121, %c0_122] : memref<1x1x32x512xbf16, #tpu.memory_space<vmem>>, vector<1x1x32x384xbf16>
    %108 = vector.shape_cast %107 : vector<1x1x32x384xbf16> to vector<32x384xbf16>
    %c18_123 = arith.constant 18 : index
    %c0_124 = arith.constant 0 : index
    %c0_125 = arith.constant 0 : index
    %109 = vector.load %arg5[%c18_123, %c0_124, %c0_125] : memref<27x14x32xbf16, #tpu.memory_space<vmem>>, vector<1x14x32xbf16>
    %110 = vector.shape_cast %109 : vector<1x14x32xbf16> to vector<14x32xbf16>
    %cst_126 = arith.constant dense<0.000000e+00> : vector<14x384xf32>
    %111 = tpu.matmul %110, %108, %cst_126 {dimension_numbers = #tpu.dot_dimension_numbers<[1], [0], [0], [1], [0, 0, 1, 1], [], []>} : vector<14x32xbf16>, vector<32x384xbf16>, vector<14x384xf32> -> vector<14x384xf32>
    %112 = arith.addf %106, %111 : vector<14x384xf32>
    %c0_127 = arith.constant 0 : index
    %c0_128 = arith.constant 0 : index
    %c0_129 = arith.constant 0 : index
    %c1_130 = arith.constant 1 : index
    %113 = vector.load %arg4[%c0_127, %c0_128, %c0_129, %c1_130] : memref<1x1x32x512xbf16, #tpu.memory_space<vmem>>, vector<1x1x32x384xbf16>
    %114 = vector.shape_cast %113 : vector<1x1x32x384xbf16> to vector<32x384xbf16>
    %c19_131 = arith.constant 19 : index
    %c0_132 = arith.constant 0 : index
    %c0_133 = arith.constant 0 : index
    %115 = vector.load %arg5[%c19_131, %c0_132, %c0_133] : memref<27x14x32xbf16, #tpu.memory_space<vmem>>, vector<1x14x32xbf16>
    %116 = vector.shape_cast %115 : vector<1x14x32xbf16> to vector<14x32xbf16>
    %cst_134 = arith.constant dense<0.000000e+00> : vector<14x384xf32>
    %117 = tpu.matmul %116, %114, %cst_134 {dimension_numbers = #tpu.dot_dimension_numbers<[1], [0], [0], [1], [0, 0, 1, 1], [], []>} : vector<14x32xbf16>, vector<32x384xbf16>, vector<14x384xf32> -> vector<14x384xf32>
    %118 = arith.addf %112, %117 : vector<14x384xf32>
    %c0_135 = arith.constant 0 : index
    %c0_136 = arith.constant 0 : index
    %c0_137 = arith.constant 0 : index
    %c2_138 = arith.constant 2 : index
    %119 = vector.load %arg4[%c0_135, %c0_136, %c0_137, %c2_138] : memref<1x1x32x512xbf16, #tpu.memory_space<vmem>>, vector<1x1x32x384xbf16>
    %120 = vector.shape_cast %119 : vector<1x1x32x384xbf16> to vector<32x384xbf16>
    %c20_139 = arith.constant 20 : index
    %c0_140 = arith.constant 0 : index
    %c0_141 = arith.constant 0 : index
    %121 = vector.load %arg5[%c20_139, %c0_140, %c0_141] : memref<27x14x32xbf16, #tpu.memory_space<vmem>>, vector<1x14x32xbf16>
    %122 = vector.shape_cast %121 : vector<1x14x32xbf16> to vector<14x32xbf16>
    %cst_142 = arith.constant dense<0.000000e+00> : vector<14x384xf32>
    %123 = tpu.matmul %122, %120, %cst_142 {dimension_numbers = #tpu.dot_dimension_numbers<[1], [0], [0], [1], [0, 0, 1, 1], [], []>} : vector<14x32xbf16>, vector<32x384xbf16>, vector<14x384xf32> -> vector<14x384xf32>
    %124 = arith.addf %118, %123 : vector<14x384xf32>
    %c0_143 = arith.constant 0 : index
    %c0_144 = arith.constant 0 : index
    %c0_145 = arith.constant 0 : index
    %c18_146 = arith.constant 18 : index
    %125 = vector.load %arg4[%c0_143, %c0_144, %c0_145, %c18_146] : memref<1x1x32x512xbf16, #tpu.memory_space<vmem>>, vector<1x1x32x384xbf16>
    %126 = vector.shape_cast %125 : vector<1x1x32x384xbf16> to vector<32x384xbf16>
    %c21 = arith.constant 21 : index
    %c0_147 = arith.constant 0 : index
    %c0_148 = arith.constant 0 : index
    %127 = vector.load %arg5[%c21, %c0_147, %c0_148] : memref<27x14x32xbf16, #tpu.memory_space<vmem>>, vector<1x14x32xbf16>
    %128 = vector.shape_cast %127 : vector<1x14x32xbf16> to vector<14x32xbf16>
    %cst_149 = arith.constant dense<0.000000e+00> : vector<14x384xf32>
    %129 = tpu.matmul %128, %126, %cst_149 {dimension_numbers = #tpu.dot_dimension_numbers<[1], [0], [0], [1], [0, 0, 1, 1], [], []>} : vector<14x32xbf16>, vector<32x384xbf16>, vector<14x384xf32> -> vector<14x384xf32>
    %130 = arith.addf %124, %129 : vector<14x384xf32>
    %c0_150 = arith.constant 0 : index
    %c0_151 = arith.constant 0 : index
    %c0_152 = arith.constant 0 : index
    %c19_153 = arith.constant 19 : index
    %131 = vector.load %arg4[%c0_150, %c0_151, %c0_152, %c19_153] : memref<1x1x32x512xbf16, #tpu.memory_space<vmem>>, vector<1x1x32x384xbf16>
    %132 = vector.shape_cast %131 : vector<1x1x32x384xbf16> to vector<32x384xbf16>
    %c22 = arith.constant 22 : index
    %c0_154 = arith.constant 0 : index
    %c0_155 = arith.constant 0 : index
    %133 = vector.load %arg5[%c22, %c0_154, %c0_155] : memref<27x14x32xbf16, #tpu.memory_space<vmem>>, vector<1x14x32xbf16>
    %134 = vector.shape_cast %133 : vector<1x14x32xbf16> to vector<14x32xbf16>
    %cst_156 = arith.constant dense<0.000000e+00> : vector<14x384xf32>
    %135 = tpu.matmul %134, %132, %cst_156 {dimension_numbers = #tpu.dot_dimension_numbers<[1], [0], [0], [1], [0, 0, 1, 1], [], []>} : vector<14x32xbf16>, vector<32x384xbf16>, vector<14x384xf32> -> vector<14x384xf32>
    %136 = arith.addf %130, %135 : vector<14x384xf32>
    %c0_157 = arith.constant 0 : index
    %c0_158 = arith.constant 0 : index
    %c0_159 = arith.constant 0 : index
    %c20_160 = arith.constant 20 : index
    %137 = vector.load %arg4[%c0_157, %c0_158, %c0_159, %c20_160] : memref<1x1x32x512xbf16, #tpu.memory_space<vmem>>, vector<1x1x32x384xbf16>
    %138 = vector.shape_cast %137 : vector<1x1x32x384xbf16> to vector<32x384xbf16>
    %c23 = arith.constant 23 : index
    %c0_161 = arith.constant 0 : index
    %c0_162 = arith.constant 0 : index
    %139 = vector.load %arg5[%c23, %c0_161, %c0_162] : memref<27x14x32xbf16, #tpu.memory_space<vmem>>, vector<1x14x32xbf16>
    %140 = vector.shape_cast %139 : vector<1x14x32xbf16> to vector<14x32xbf16>
    %cst_163 = arith.constant dense<0.000000e+00> : vector<14x384xf32>
    %141 = tpu.matmul %140, %138, %cst_163 {dimension_numbers = #tpu.dot_dimension_numbers<[1], [0], [0], [1], [0, 0, 1, 1], [], []>} : vector<14x32xbf16>, vector<32x384xbf16>, vector<14x384xf32> -> vector<14x384xf32>
    %142 = arith.addf %136, %141 : vector<14x384xf32>
    %c0_164 = arith.constant 0 : index
    %c0_165 = arith.constant 0 : index
    %c0_166 = arith.constant 0 : index
    %c36_167 = arith.constant 36 : index
    %143 = vector.load %arg4[%c0_164, %c0_165, %c0_166, %c36_167] : memref<1x1x32x512xbf16, #tpu.memory_space<vmem>>, vector<1x1x32x384xbf16>
    %144 = vector.shape_cast %143 : vector<1x1x32x384xbf16> to vector<32x384xbf16>
    %c24 = arith.constant 24 : index
    %c0_168 = arith.constant 0 : index
    %c0_169 = arith.constant 0 : index
    %145 = vector.load %arg5[%c24, %c0_168, %c0_169] : memref<27x14x32xbf16, #tpu.memory_space<vmem>>, vector<1x14x32xbf16>
    %146 = vector.shape_cast %145 : vector<1x14x32xbf16> to vector<14x32xbf16>
    %cst_170 = arith.constant dense<0.000000e+00> : vector<14x384xf32>
    %147 = tpu.matmul %146, %144, %cst_170 {dimension_numbers = #tpu.dot_dimension_numbers<[1], [0], [0], [1], [0, 0, 1, 1], [], []>} : vector<14x32xbf16>, vector<32x384xbf16>, vector<14x384xf32> -> vector<14x384xf32>
    %148 = arith.addf %142, %147 : vector<14x384xf32>
    %c0_171 = arith.constant 0 : index
    %c0_172 = arith.constant 0 : index
    %c0_173 = arith.constant 0 : index
    %c37_174 = arith.constant 37 : index
    %149 = vector.load %arg4[%c0_171, %c0_172, %c0_173, %c37_174] : memref<1x1x32x512xbf16, #tpu.memory_space<vmem>>, vector<1x1x32x384xbf16>
    %150 = vector.shape_cast %149 : vector<1x1x32x384xbf16> to vector<32x384xbf16>
    %c25 = arith.constant 25 : index
    %c0_175 = arith.constant 0 : index
    %c0_176 = arith.constant 0 : index
    %151 = vector.load %arg5[%c25, %c0_175, %c0_176] : memref<27x14x32xbf16, #tpu.memory_space<vmem>>, vector<1x14x32xbf16>
    %152 = vector.shape_cast %151 : vector<1x14x32xbf16> to vector<14x32xbf16>
    %cst_177 = arith.constant dense<0.000000e+00> : vector<14x384xf32>
    %153 = tpu.matmul %152, %150, %cst_177 {dimension_numbers = #tpu.dot_dimension_numbers<[1], [0], [0], [1], [0, 0, 1, 1], [], []>} : vector<14x32xbf16>, vector<32x384xbf16>, vector<14x384xf32> -> vector<14x384xf32>
    %154 = arith.addf %148, %153 : vector<14x384xf32>
    %c0_178 = arith.constant 0 : index
    %c0_179 = arith.constant 0 : index
    %c0_180 = arith.constant 0 : index
    %c38_181 = arith.constant 38 : index
    %155 = vector.load %arg4[%c0_178, %c0_179, %c0_180, %c38_181] : memref<1x1x32x512xbf16, #tpu.memory_space<vmem>>, vector<1x1x32x384xbf16>
    %156 = vector.shape_cast %155 : vector<1x1x32x384xbf16> to vector<32x384xbf16>
    %c26 = arith.constant 26 : index
    %c0_182 = arith.constant 0 : index
    %c0_183 = arith.constant 0 : index
    %157 = vector.load %arg5[%c26, %c0_182, %c0_183] : memref<27x14x32xbf16, #tpu.memory_space<vmem>>, vector<1x14x32xbf16>
    %158 = vector.shape_cast %157 : vector<1x14x32xbf16> to vector<14x32xbf16>
    %cst_184 = arith.constant dense<0.000000e+00> : vector<14x384xf32>
    %159 = tpu.matmul %158, %156, %cst_184 {dimension_numbers = #tpu.dot_dimension_numbers<[1], [0], [0], [1], [0, 0, 1, 1], [], []>} : vector<14x32xbf16>, vector<32x384xbf16>, vector<14x384xf32> -> vector<14x384xf32>
    %160 = arith.addf %154, %159 : vector<14x384xf32>
    %c0_185 = arith.constant 0 : index
    %c0_186 = arith.constant 0 : index
    %161 = vector.load %arg6[%c0_185, %c0_186] : memref<14x1xf32, #tpu.memory_space<vmem>>, vector<14x1xf32>
    %162 = vector.broadcast %161 : vector<14x1xf32> to vector<14x384xf32>
    %163 = arith.addf %160, %162 : vector<14x384xf32>
    %cst_187 = arith.constant 0.000000e+00 : f32
    %164 = vector.broadcast %cst_187 : f32 to vector<14x384xf32>
    %165 = arith.maximumf %163, %164 : vector<14x384xf32>
    %c0_188 = arith.constant 0 : index
    %c0_189 = arith.constant 0 : index
    %c0_190 = arith.constant 0 : index
    %c0_191 = arith.constant 0 : index
    %166 = vector.load %arg7[%c0_188, %c0_189, %c0_190, %c0_191] : memref<1x1x14x384xf32, #tpu.memory_space<vmem>>, vector<1x1x14x384xf32>
    %167 = vector.shape_cast %166 : vector<1x1x14x384xf32> to vector<14x384xf32>
    %168 = vector.shape_cast %165 : vector<14x384xf32> to vector<1x1x14x384xf32>
    tpu.vector_store %arg7[%c0_188, %c0_189, %c0_190, %c0_191], %168 {strides = array<i32>} : memref<1x1x14x384xf32, #tpu.memory_space<vmem>>, vector<1x1x14x384xf32>,
    return
  }
  func.func @transform_0(%arg0: i32, %arg1: i32) -> (i32, i32, i32, i32) {
    %c0_i32 = arith.constant 0 : i32
    %0 = arith.addi %arg1, %c0_i32 : i32
    %c0_i32_0 = arith.constant 0 : i32
    %c0_i32_1 = arith.constant 0 : i32
    %c0_i32_2 = arith.constant 0 : i32
    return %arg0, %0, %c0_i32_0, %c0_i32_1 : i32, i32, i32, i32
  }
  func.func @transform_1(%arg0: i32, %arg1: i32) -> (i32, i32, i32, i32) {
    %c1_i32 = arith.constant 1 : i32
    %0 = arith.addi %arg1, %c1_i32 : i32
    %c0_i32 = arith.constant 0 : i32
    %c0_i32_0 = arith.constant 0 : i32
    %c0_i32_1 = arith.constant 0 : i32
    return %arg0, %0, %c0_i32, %c0_i32_0 : i32, i32, i32, i32
  }
  func.func @transform_2(%arg0: i32, %arg1: i32) -> (i32, i32, i32, i32) {
    %c2_i32 = arith.constant 2 : i32
    %0 = arith.addi %arg1, %c2_i32 : i32
    %c0_i32 = arith.constant 0 : i32
    %c0_i32_0 = arith.constant 0 : i32
    %c0_i32_1 = arith.constant 0 : i32
    return %arg0, %0, %c0_i32, %c0_i32_0 : i32, i32, i32, i32
  }
  func.func @transform_3(%arg0: i32, %arg1: i32) -> (i32, i32, i32) {
    %c0_i32 = arith.constant 0 : i32
    %c0_i32_0 = arith.constant 0 : i32
    %c0_i32_1 = arith.constant 0 : i32
    %c0_i32_2 = arith.constant 0 : i32
    return %c0_i32, %c0_i32_0, %c0_i32_1 : i32, i32, i32
  }
  func.func @transform_4(%arg0: i32, %arg1: i32) -> (i32, i32) {
    %c0_i32 = arith.constant 0 : i32
    %c0_i32_0 = arith.constant 0 : i32
    %c0_i32_1 = arith.constant 0 : i32
    return %c0_i32, %c0_i32_0 : i32, i32
  }
  func.func @transform_5(%arg0: i32, %arg1: i32) -> (i32, i32, i32, i32) {
    %c0_i32 = arith.constant 0 : i32
    %c0_i32_0 = arith.constant 0 : i32
    %c0_i32_1 = arith.constant 0 : i32
    return %arg0, %arg1, %c0_i32, %c0_i32_0 : i32, i32, i32, i32
  }
}

module attributes {stable_mosaic.version = 11 : i64} {
  func.func @_cell_gather_kernel(%arg0: i32, %arg1: memref<18x24x128xbf16, #tpu.memory_space<vmem>>, %arg2: memref<18x24x1xf32, #tpu.memory_space<vmem>>) attributes {dimension_semantics = [#tpu.dimension_semantics<parallel>], iteration_bounds = array<i64: 2>, scalar_prefetch = 0 : i64, scratch_operands = 0 : i64, tpu.core_type = #tpu.core_type<tc>, window_params = [{transform_indices = @transform_0, window_bounds = array<i64: 18, 24, 128>}, {transform_indices = @transform_1, window_bounds = array<i64: 18, 24, 1>}]} {
    %c0_i32 = arith.constant 0 : i32
    %c18_i32 = arith.constant 18 : i32
    %0 = arith.addi %c0_i32, %c18_i32 : i32
    %c1_i32 = arith.constant 1 : i32
    scf.for %arg3 = %c0_i32 to %0 step %c1_i32  : i32 {
      %1 = arith.index_cast %arg3 : i32 to index
      %c0 = arith.constant 0 : index
      %c0_1 = arith.constant 0 : index
      %2 = vector.load %arg1[%1, %c0, %c0_1] : memref<18x24x128xbf16, #tpu.memory_space<vmem>>, vector<1x24x128xbf16>
      %3 = vector.shape_cast %2 : vector<1x24x128xbf16> to vector<24x128xbf16>
      %4 = arith.extf %3 : vector<24x128xbf16> to vector<24x128xf32>
      %cst = arith.constant dense<0.000000e+00> : vector<24xf32>
      %5 = vector.multi_reduction <add>, %4, %cst [1] : vector<24x128xf32> to vector<24xf32>
      %6 = vector.shape_cast %5 : vector<24xf32> to vector<24x1xf32>
      %7 = arith.index_cast %arg3 : i32 to index
      %c0_2 = arith.constant 0 : index
      %c0_3 = arith.constant 0 : index
      %8 = vector.load %arg2[%7, %c0_2, %c0_3] : memref<18x24x1xf32, #tpu.memory_space<vmem>>, vector<1x24x1xf32>
      %9 = vector.shape_cast %8 : vector<1x24x1xf32> to vector<24x1xf32>
      %10 = vector.shape_cast %6 : vector<24x1xf32> to vector<1x24x1xf32>
      tpu.vector_store %arg2[%7, %c0_2, %c0_3], %10 {strides = array<i32>} : memref<18x24x1xf32, #tpu.memory_space<vmem>>, vector<1x24x1xf32>,
    }
    %c18_i32_0 = arith.constant 18 : i32
    return
  }
  func.func @transform_0(%arg0: i32) -> (i32, i32, i32) {
    %c0_i32 = arith.constant 0 : i32
    %c0_i32_0 = arith.constant 0 : i32
    %c0_i32_1 = arith.constant 0 : i32
    return %arg0, %c0_i32, %c0_i32_0 : i32, i32, i32
  }
  func.func @transform_1(%arg0: i32) -> (i32, i32, i32) {
    %c0_i32 = arith.constant 0 : i32
    %c0_i32_0 = arith.constant 0 : i32
    %c0_i32_1 = arith.constant 0 : i32
    return %arg0, %c0_i32, %c0_i32_0 : i32, i32, i32
  }
}

module attributes {stable_mosaic.version = 11 : i64} {
  func.func @_assoc_update_kernel(%arg0: i32, %arg1: memref<18x27x24xbf16, #tpu.memory_space<vmem>>, %arg2: memref<18x24x128xbf16, #tpu.memory_space<vmem>>, %arg3: memref<18x27x24xf32, #tpu.memory_space<vmem>>) attributes {dimension_semantics = [#tpu.dimension_semantics<parallel>], iteration_bounds = array<i64: 2>, scalar_prefetch = 0 : i64, scratch_operands = 0 : i64, tpu.core_type = #tpu.core_type<tc>, window_params = [{transform_indices = @transform_0, window_bounds = array<i64: 18, 27, 24>}, {transform_indices = @transform_1, window_bounds = array<i64: 18, 24, 128>}, {transform_indices = @transform_2, window_bounds = array<i64: 18, 27, 24>}]} {
    %c0_i32 = arith.constant 0 : i32
    %c18_i32 = arith.constant 18 : i32
    %0 = arith.addi %c0_i32, %c18_i32 : i32
    %c1_i32 = arith.constant 1 : i32
    scf.for %arg4 = %c0_i32 to %0 step %c1_i32  : i32 {
      %1 = arith.index_cast %arg4 : i32 to index
      %c0 = arith.constant 0 : index
      %c0_1 = arith.constant 0 : index
      %2 = vector.load %arg2[%1, %c0, %c0_1] : memref<18x24x128xbf16, #tpu.memory_space<vmem>>, vector<1x24x128xbf16>
      %3 = vector.shape_cast %2 : vector<1x24x128xbf16> to vector<24x128xbf16>
      %4 = arith.index_cast %arg4 : i32 to index
      %c0_2 = arith.constant 0 : index
      %c0_3 = arith.constant 0 : index
      %5 = vector.load %arg1[%4, %c0_2, %c0_3] : memref<18x27x24xbf16, #tpu.memory_space<vmem>>, vector<1x27x24xbf16>
      %6 = vector.shape_cast %5 : vector<1x27x24xbf16> to vector<27x24xbf16>
      %cst = arith.constant dense<0.000000e+00> : vector<27x128xf32>
      %7 = tpu.matmul %6, %3, %cst {dimension_numbers = #tpu.dot_dimension_numbers<[1], [0], [0], [1], [0, 0, 1, 1], [], []>} : vector<27x24xbf16>, vector<24x128xbf16>, vector<27x128xf32> -> vector<27x128xf32>
      %cst_4 = arith.constant dense<0xFF800000> : vector<128xf32>
      %8 = vector.multi_reduction <maximumf>, %7, %cst_4 [0] : vector<27x128xf32> to vector<128xf32>
      %9 = vector.shape_cast %8 : vector<128xf32> to vector<1x128xf32>
      %10 = vector.broadcast %9 : vector<1x128xf32> to vector<27x128xf32>
      %11 = arith.subf %7, %10 : vector<27x128xf32>
      %12 = math.exp %11 : vector<27x128xf32>
      %cst_5 = arith.constant dense<0.000000e+00> : vector<128xf32>
      %13 = vector.multi_reduction <add>, %12, %cst_5 [0] : vector<27x128xf32> to vector<128xf32>
      %14 = vector.shape_cast %13 : vector<128xf32> to vector<1x128xf32>
      %15 = tpu.reciprocal %14 {approx = true} : vector<1x128xf32> -> vector<1x128xf32>
      %16 = vector.broadcast %15 : vector<1x128xf32> to vector<27x128xf32>
      %17 = arith.mulf %12, %16 : vector<27x128xf32>
      %18 = arith.truncf %17 : vector<27x128xf32> to vector<27x128xbf16>
      %cst_6 = arith.constant dense<0.000000e+00> : vector<27x24xf32>
      %19 = tpu.matmul %18, %3, %cst_6 {dimension_numbers = #tpu.dot_dimension_numbers<[1], [1], [0], [0], [0, 0, 1, 0], [], []>} : vector<27x128xbf16>, vector<24x128xbf16>, vector<27x24xf32> -> vector<27x24xf32>
      %20 = arith.index_cast %arg4 : i32 to index
      %c0_7 = arith.constant 0 : index
      %c0_8 = arith.constant 0 : index
      %21 = vector.load %arg3[%20, %c0_7, %c0_8] : memref<18x27x24xf32, #tpu.memory_space<vmem>>, vector<1x27x24xf32>
      %22 = vector.shape_cast %21 : vector<1x27x24xf32> to vector<27x24xf32>
      %23 = vector.shape_cast %19 : vector<27x24xf32> to vector<1x27x24xf32>
      tpu.vector_store %arg3[%20, %c0_7, %c0_8], %23 {strides = array<i32>} : memref<18x27x24xf32, #tpu.memory_space<vmem>>, vector<1x27x24xf32>,
    }
    %c18_i32_0 = arith.constant 18 : i32
    return
  }
  func.func @transform_0(%arg0: i32) -> (i32, i32, i32) {
    %c0_i32 = arith.constant 0 : i32
    %c0_i32_0 = arith.constant 0 : i32
    %c0_i32_1 = arith.constant 0 : i32
    return %arg0, %c0_i32, %c0_i32_0 : i32, i32, i32
  }
  func.func @transform_1(%arg0: i32) -> (i32, i32, i32) {
    %c0_i32 = arith.constant 0 : i32
    %c0_i32_0 = arith.constant 0 : i32
    %c0_i32_1 = arith.constant 0 : i32
    return %arg0, %c0_i32, %c0_i32_0 : i32, i32, i32
  }
  func.func @transform_2(%arg0: i32) -> (i32, i32, i32) {
    %c0_i32 = arith.constant 0 : i32
    %c0_i32_0 = arith.constant 0 : i32
    %c0_i32_1 = arith.constant 0 : i32
    return %arg0, %c0_i32, %c0_i32_0 : i32, i32, i32
  }
}

module attributes {stable_mosaic.version = 11 : i64} {
  func.func @_assoc_only_kernel(%arg0: i32, %arg1: memref<18x27x24xbf16, #tpu.memory_space<vmem>>, %arg2: memref<18x24x128xbf16, #tpu.memory_space<vmem>>, %arg3: memref<18x27x128xf32, #tpu.memory_space<vmem>>) attributes {dimension_semantics = [#tpu.dimension_semantics<parallel>], iteration_bounds = array<i64: 2>, scalar_prefetch = 0 : i64, scratch_operands = 0 : i64, tpu.core_type = #tpu.core_type<tc>, window_params = [{transform_indices = @transform_0, window_bounds = array<i64: 18, 27, 24>}, {transform_indices = @transform_1, window_bounds = array<i64: 18, 24, 128>}, {transform_indices = @transform_2, window_bounds = array<i64: 18, 27, 128>}]} {
    %c0_i32 = arith.constant 0 : i32
    %c18_i32 = arith.constant 18 : i32
    %0 = arith.addi %c0_i32, %c18_i32 : i32
    %c1_i32 = arith.constant 1 : i32
    scf.for %arg4 = %c0_i32 to %0 step %c1_i32  : i32 {
      %1 = arith.index_cast %arg4 : i32 to index
      %c0 = arith.constant 0 : index
      %c0_1 = arith.constant 0 : index
      %2 = vector.load %arg1[%1, %c0, %c0_1] : memref<18x27x24xbf16, #tpu.memory_space<vmem>>, vector<1x27x24xbf16>
      %3 = vector.shape_cast %2 : vector<1x27x24xbf16> to vector<27x24xbf16>
      %4 = arith.index_cast %arg4 : i32 to index
      %c0_2 = arith.constant 0 : index
      %c0_3 = arith.constant 0 : index
      %5 = vector.load %arg2[%4, %c0_2, %c0_3] : memref<18x24x128xbf16, #tpu.memory_space<vmem>>, vector<1x24x128xbf16>
      %6 = vector.shape_cast %5 : vector<1x24x128xbf16> to vector<24x128xbf16>
      %cst = arith.constant dense<0.000000e+00> : vector<27x128xf32>
      %7 = tpu.matmul %3, %6, %cst {dimension_numbers = #tpu.dot_dimension_numbers<[1], [0], [0], [1], [0, 0, 1, 1], [], []>} : vector<27x24xbf16>, vector<24x128xbf16>, vector<27x128xf32> -> vector<27x128xf32>
      %cst_4 = arith.constant dense<0xFF800000> : vector<128xf32>
      %8 = vector.multi_reduction <maximumf>, %7, %cst_4 [0] : vector<27x128xf32> to vector<128xf32>
      %9 = vector.shape_cast %8 : vector<128xf32> to vector<1x128xf32>
      %10 = vector.broadcast %9 : vector<1x128xf32> to vector<27x128xf32>
      %11 = arith.subf %7, %10 : vector<27x128xf32>
      %12 = math.exp %11 : vector<27x128xf32>
      %cst_5 = arith.constant dense<0.000000e+00> : vector<128xf32>
      %13 = vector.multi_reduction <add>, %12, %cst_5 [0] : vector<27x128xf32> to vector<128xf32>
      %14 = vector.shape_cast %13 : vector<128xf32> to vector<1x128xf32>
      %15 = tpu.reciprocal %14 {approx = true} : vector<1x128xf32> -> vector<1x128xf32>
      %16 = vector.broadcast %15 : vector<1x128xf32> to vector<27x128xf32>
      %17 = arith.mulf %12, %16 : vector<27x128xf32>
      %18 = arith.index_cast %arg4 : i32 to index
      %c0_6 = arith.constant 0 : index
      %c0_7 = arith.constant 0 : index
      %19 = vector.load %arg3[%18, %c0_6, %c0_7] : memref<18x27x128xf32, #tpu.memory_space<vmem>>, vector<1x27x128xf32>
      %20 = vector.shape_cast %19 : vector<1x27x128xf32> to vector<27x128xf32>
      %21 = vector.shape_cast %17 : vector<27x128xf32> to vector<1x27x128xf32>
      tpu.vector_store %arg3[%18, %c0_6, %c0_7], %21 {strides = array<i32>} : memref<18x27x128xf32, #tpu.memory_space<vmem>>, vector<1x27x128xf32>,
    }
    %c18_i32_0 = arith.constant 18 : i32
    return
  }
  func.func @transform_0(%arg0: i32) -> (i32, i32, i32) {
    %c0_i32 = arith.constant 0 : i32
    %c0_i32_0 = arith.constant 0 : i32
    %c0_i32_1 = arith.constant 0 : i32
    return %arg0, %c0_i32, %c0_i32_0 : i32, i32, i32
  }
  func.func @transform_1(%arg0: i32) -> (i32, i32, i32) {
    %c0_i32 = arith.constant 0 : i32
    %c0_i32_0 = arith.constant 0 : i32
    %c0_i32_1 = arith.constant 0 : i32
    return %arg0, %c0_i32, %c0_i32_0 : i32, i32, i32
  }
  func.func @transform_2(%arg0: i32) -> (i32, i32, i32) {
    %c0_i32 = arith.constant 0 : i32
    %c0_i32_0 = arith.constant 0 : i32
    %c0_i32_1 = arith.constant 0 : i32
    return %arg0, %c0_i32, %c0_i32_0 : i32, i32, i32
  }
}

</mosaic_0001>

<llo_original>
// kernel: sub.5
$region0: #{sub.5}
  #allocation0 [shape = 's32[1]{0}', space=sflag, size = 0x4, scoped, tag = 'scoped memory for sub.5']
  %s0 = inlined_call_operand.vmem [shape: s32[2,18], index: 0, kind: input, shape index: {}]
  %s1 = inlined_call_operand.vmem [shape: s32[2,18], index: 1, kind: input, shape index: {}]
  %s2 = inlined_call_operand.vmem [shape: s32[2,18], index: 2, kind: output, shape index: {}]
  %v3 = vld [vmem:[%s0] sm:$0x3]
  %v4 = vld [vmem:[%s1] sm:$0x3]
  %5 = xla_tuple %v3, %v4
  %6 = xla_tuple %5
  %v7 = vsub.s32 %v3, %v4
  %8 = xla_tuple %v7
  %9 = vst [vmem:[%s2] sm:$0x3] %v7

// kernel: forward.6
$region0: #{forward.6}
  #allocation0 [shape = 'u32[]', space=smem, size = 0x4, offset = 0x4, fixed_abs, tag = 'smem constant byte address 0x4 - core index']
  #allocation1 [shape = 'u32[72,128]{1,0:T(1,128)}', space=vmem, size = 0x9000, scoped, tag = 'internal scratch']
  %s0 = inlined_call_operand.vmem [shape: bf16[2,6,6,512], index: 0, kind: input, shape index: {}, may-alias: {0,1,2}]
  %s1 = inlined_call_operand.vmem [shape: bf16[2,6,6,512], index: 1, kind: input, shape index: {}, may-alias: {0,1,2}]
  %s2 = inlined_call_operand.vmem [shape: bf16[2,6,6,512], index: 2, kind: input, shape index: {}, may-alias: {0,1,2}]
  %s3 = inlined_call_operand.vmem [shape: bf16[27,32,6], index: 3, kind: input, shape index: {}]
  %s4 = inlined_call_operand.vmem [shape: f32[32,1], index: 4, kind: input, shape index: {}]
  %s5 = inlined_call_operand.vmem [shape: bf16[2,4,32,384], index: 5, kind: output, shape index: {}]
  %s6 = sld [smem:[#allocation0]]
  $region53: #{forward.6} parent=0
    _
  %s8 = ssub.s32 1, %s6
  %s9 = scalar_select 0, %s8, %s6
  loop: start=0, step=1, limit=10
  $region2: #{forward.6} parent=0 // loop_pre_header
    _
  $region3: #{forward.6} parent=0 // loop_header
    %s11 = sphi 0, %s15
    %p12 = scmp.ge.s32.totalorder %s11, 10
    %s18 = sphi 0, %s30
    %s19 = sphi 0, %s26
    %s20 = sphi 0, %s18
    %s21 = sphi 0, %s19
    %s22 = sphi 0, %s20
    %s23 = sphi 0, %s21
    %s35 = sphi 0, %s37
    %s38 = sphi 0, %s35
    %s39 = sphi 0, %s38
    %s55 = sphi 0, %s39
    %s65 = sphi 0, %s67
    %s68 = sphi 0, %s65
    %s69 = sphi 0, %s68
    %s85 = sphi 0, %s69
    %s95 = sphi 0, %s97
    %s98 = sphi 0, %s95
    %s99 = sphi 0, %s98
    %s115 = sphi 0, %s99
    %s119 = sphi 0, %s119
    %s121 = sphi 0, %s119
    %s122 = sphi 0, %s121
    %s136 = sphi 0, %s122
    %s140 = sphi 0, %s140
    %s142 = sphi 0, %s140
    %s143 = sphi 0, %s142
    %s157 = sphi 0, %s143
    %s165 = sphi 0, %s167
    %s168 = sphi 0, %s165
    %s169 = sphi 0, %s168
    %s185 = sphi 0, %s169
  $region4: #{forward.6} parent=0 // loop_header_branch
    %14 = sbr.rel (%p12) target = $region8
  $region5: #{forward.6} parent=0 // loop_body
    %s16 = ssub.s32 %s11, 1
    %s17 = ssub.s32 %s11, 2
    %s24 = sadd.s32 1, %s19
    %p25 = scmp.ge.s32.totalorder %s24, 4
    %s26 = scalar_select %p25, 0, %s24
    %s27 = sadd.s32 1, %s18
    %s28 = scalar_select %p25, %s27, %s18
    %p29 = scmp.ge.s32.totalorder %s28, 2
    %s30 = scalar_select %p29, 0, %s28
    %s31 = ssub.s32 %s18, %s30
    %s32 = ssub.s32 %s19, %s26
    %s33 = sor.u32 %s31, %s32
    %p34 = scmp.eq.s32.totalorder %s33, 0
    %s36 = sadd.s32 %s35, 1
    %s37 = scalar_select %p34, %s35, %s36
    %p40 = pneg %p34
    %p41 = scmp.eq.s32.totalorder %s11, 7
    %p42 = por %p40, %p41
    %p43 = scmp.ne.s32.totalorder %s35, %s38
    %p44 = scmp.eq.s32.totalorder %s11, 0
    %p45 = por %p43, %p44
    %p46 = scmp.ne.s32.totalorder %s35, %s38
    %p47 = scmp.eq.s32.totalorder %s16, 7
    %p48 = por %p46, %p47
    %p49 = scmp.ne.s32.totalorder %s38, %s39
    %p50 = scmp.eq.s32.totalorder %s16, 0
    %p51 = por %p49, %p50
    %p52 = scmp.ne.s32.totalorder %s38, %s39
    %p53 = scmp.eq.s32.totalorder %s17, 7
    %p54 = por %p52, %p53
    %p56 = scmp.ne.s32.totalorder %s39, %s55
    %p57 = scmp.eq.s32.totalorder %s17, 0
    %p58 = por %p56, %p57
    %s59 = sadd.s32 %s19, 1
    %s60 = sadd.s32 %s26, 1
    %s61 = ssub.s32 %s18, %s30
    %s62 = ssub.s32 %s59, %s60
    %s63 = sor.u32 %s61, %s62
    %p64 = scmp.eq.s32.totalorder %s63, 0
    %s66 = sadd.s32 %s65, 1
    %s67 = scalar_select %p64, %s65, %s66
    %p70 = pneg %p64
    %p71 = scmp.eq.s32.totalorder %s11, 7
    %p72 = por %p70, %p71
    %p73 = scmp.ne.s32.totalorder %s65, %s68
    %p74 = scmp.eq.s32.totalorder %s11, 0
    %p75 = por %p73, %p74
    %p76 = scmp.ne.s32.totalorder %s65, %s68
    %p77 = scmp.eq.s32.totalorder %s16, 7
    %p78 = por %p76, %p77
    %p79 = scmp.ne.s32.totalorder %s68, %s69
    %p80 = scmp.eq.s32.totalorder %s16, 0
    %p81 = por %p79, %p80
    %p82 = scmp.ne.s32.totalorder %s68, %s69
    %p83 = scmp.eq.s32.totalorder %s17, 7
    %p84 = por %p82, %p83
    %p86 = scmp.ne.s32.totalorder %s69, %s85
    %p87 = scmp.eq.s32.totalorder %s17, 0
    %p88 = por %p86, %p87
    %s89 = sadd.s32 %s19, 2
    %s90 = sadd.s32 %s26, 2
    %s91 = ssub.s32 %s18, %s30
    %s92 = ssub.s32 %s89, %s90
    %s93 = sor.u32 %s91, %s92
    %p94 = scmp.eq.s32.totalorder %s93, 0
    %s96 = sadd.s32 %s95, 1
    %s97 = scalar_select %p94, %s95, %s96
    %p100 = pneg %p94
    %p101 = scmp.eq.s32.totalorder %s11, 7
    %p102 = por %p100, %p101
    %p103 = scmp.ne.s32.totalorder %s95, %s98
    %p104 = scmp.eq.s32.totalorder %s11, 0
    %p105 = por %p103, %p104
    %p106 = scmp.ne.s32.totalorder %s95, %s98
    %p107 = scmp.eq.s32.totalorder %s16, 7
    %p108 = por %p106, %p107
    %p109 = scmp.ne.s32.totalorder %s98, %s99
    %p110 = scmp.eq.s32.totalorder %s16, 0
    %p111 = por %p109, %p110
    %p112 = scmp.ne.s32.totalorder %s98, %s99
    %p113 = scmp.eq.s32.totalorder %s17, 7
    %p114 = por %p112, %p113
    %p116 = scmp.ne.s32.totalorder %s99, %s115
    %p117 = scmp.eq.s32.totalorder %s17, 0
    %p118 = por %p116, %p117
    %s120 = sadd.s32 %s119, 1
    %p123 = scmp.eq.s32.totalorder %s11, 7
    %p124 = scmp.ne.s32.totalorder %s119, %s121
    %p125 = scmp.eq.s32.totalorder %s11, 0
    %p126 = por %p124, %p125
    %p127 = scmp.ne.s32.totalorder %s119, %s121
    %p128 = scmp.eq.s32.totalorder %s16, 7
    %p129 = por %p127, %p128
    %p130 = scmp.ne.s32.totalorder %s121, %s122
    %p131 = scmp.eq.s32.totalorder %s16, 0
    %p132 = por %p130, %p131
    %p133 = scmp.ne.s32.totalorder %s121, %s122
    %p134 = scmp.eq.s32.totalorder %s17, 7
    %p135 = por %p133, %p134
    %p137 = scmp.ne.s32.totalorder %s122, %s136
    %p138 = scmp.eq.s32.totalorder %s17, 0
    %p139 = por %p137, %p138
    %s141 = sadd.s32 %s140, 1
    %p144 = scmp.eq.s32.totalorder %s11, 7
    %p145 = scmp.ne.s32.totalorder %s140, %s142
    %p146 = scmp.eq.s32.totalorder %s11, 0
    %p147 = por %p145, %p146
    %p148 = scmp.ne.s32.totalorder %s140, %s142
    %p149 = scmp.eq.s32.totalorder %s16, 7
    %p150 = por %p148, %p149
    %p151 = scmp.ne.s32.totalorder %s142, %s143
    %p152 = scmp.eq.s32.totalorder %s16, 0
    %p153 = por %p151, %p152
    %p154 = scmp.ne.s32.totalorder %s142, %s143
    %p155 = scmp.eq.s32.totalorder %s17, 7
    %p156 = por %p154, %p155
    %p158 = scmp.ne.s32.totalorder %s143, %s157
    %p159 = scmp.eq.s32.totalorder %s17, 0
    %p160 = por %p158, %p159
    %s161 = ssub.s32 %s18, %s30
    %s162 = ssub.s32 %s19, %s26
    %s163 = sor.u32 %s161, %s162
    %p164 = scmp.eq.s32.totalorder %s163, 0
    %s166 = sadd.s32 %s165, 1
    %s167 = scalar_select %p164, %s165, %s166
    %p170 = pneg %p164
    %p171 = scmp.eq.s32.totalorder %s11, 7
    %p172 = por %p170, %p171
    %p173 = scmp.ne.s32.totalorder %s165, %s168
    %p174 = scmp.eq.s32.totalorder %s11, 0
    %p175 = por %p173, %p174
    %p176 = scmp.ne.s32.totalorder %s165, %s168
    %p177 = scmp.eq.s32.totalorder %s16, 7
    %p178 = por %p176, %p177
    %p179 = scmp.ne.s32.totalorder %s168, %s169
    %p180 = scmp.eq.s32.totalorder %s16, 0
    %p181 = por %p179, %p180
    %p182 = scmp.ne.s32.totalorder %s168, %s169
    %p183 = scmp.eq.s32.totalorder %s17, 7
    %p184 = por %p182, %p183
    %p186 = scmp.ne.s32.totalorder %s169, %s185
    %p187 = scmp.eq.s32.totalorder %s17, 0
    %p188 = por %p186, %p187
    %p189 = scmp.le.s32.totalorder 1, %s11
    %p190 = scmp.lt.s32.totalorder %s11, 9
    %p191 = pnand %p189, %p190
    %p192 = pneg %p191
    // Predicated region
    $region9: #{forward.6} parent=5 // pred_check
      _
    $region10: #{forward.6} parent=5 // pred_check_branch
      %194 = sbr.rel (%p191) target = $region12
    $region11: #{forward.6} parent=5 // pred_region
      %s195 = ssub.s32 %s11, 1
      // Predicated region
      $region13: #{forward.6} parent=11 // pred_check
        %p196 = pneg %p132
      $region14: #{forward.6} parent=11 // pred_check_branch
        %198 = sbr.rel (%p196) target = $region16
      $region15: #{forward.6} parent=11 // pred_region
        _
      $region16: #{forward.6} parent=11 // pred_fallthru
        _
      // Predicated region
      $region17: #{forward.6} parent=11 // pred_check
        %p199 = pneg %p153
      $region18: #{forward.6} parent=11 // pred_check_branch
        %201 = sbr.rel (%p199) target = $region20
      $region19: #{forward.6} parent=11 // pred_region
        _
      $region20: #{forward.6} parent=11 // pred_fallthru
        _
    $region12: #{forward.6} parent=5 // pred_fallthru
      _
    %p202 = scmp.lt.s32.totalorder %s11, 8
    // Predicated region
    $region21: #{forward.6} parent=5 // pred_check
      %p203 = pneg %p202
    $region22: #{forward.6} parent=5 // pred_check_branch
      %205 = sbr.rel (%p203) target = $region24
    $region23: #{forward.6} parent=5 // pred_region
      // Predicated region
      $region25: #{forward.6} parent=23 // pred_check
        %p206 = pneg %p45
      $region26: #{forward.6} parent=23 // pred_check_branch
        %208 = sbr.rel (%p206) target = $region28
      $region27: #{forward.6} parent=23 // pred_region
        %p209 = scmp.lt.s32.totalorder %s18, 1
        %s210 = scalar_select %p209, %s18, 1
        %p211 = scmp.lt.s32.totalorder %s19, 5
        %s212 = scalar_select %p211, %s19, 5
        %s213 = smul.addr %s212, 4
        %s214 = smul.addr %s210, 24
        %s215 = sadd.s32 %s213, %s214
        %s216 = smul.addr %s215, 4
        %s217 = scalar_lea.vmem %s0, %s216
      $region28: #{forward.6} parent=23 // pred_fallthru
        _
      // Predicated region
      $region29: #{forward.6} parent=23 // pred_check
        %p218 = pneg %p75
      $region30: #{forward.6} parent=23 // pred_check_branch
        %220 = sbr.rel (%p218) target = $region32
      $region31: #{forward.6} parent=23 // pred_region
        %s221 = sadd.s32 %s19, 1
        %p222 = scmp.lt.s32.totalorder %s18, 1
        %s223 = scalar_select %p222, %s18, 1
        %p224 = scmp.lt.s32.totalorder %s221, 5
        %s225 = scalar_select %p224, %s221, 5
        %s226 = smul.addr %s225, 4
        %s227 = smul.addr %s223, 24
        %s228 = sadd.s32 %s226, %s227
        %s229 = smul.addr %s228, 4
        %s230 = scalar_lea.vmem %s1, %s229
        %s231 = sadd.s32 %s19, 1
      $region32: #{forward.6} parent=23 // pred_fallthru
        _
      // Predicated region
      $region33: #{forward.6} parent=23 // pred_check
        %p232 = pneg %p105
      $region34: #{forward.6} parent=23 // pred_check_branch
        %234 = sbr.rel (%p232) target = $region36
      $region35: #{forward.6} parent=23 // pred_region
        %s235 = sadd.s32 %s19, 2
        %p236 = scmp.lt.s32.totalorder %s18, 1
        %s237 = scalar_select %p236, %s18, 1
        %p238 = scmp.lt.s32.totalorder %s235, 5
        %s239 = scalar_select %p238, %s235, 5
        %s240 = smul.addr %s239, 4
        %s241 = smul.addr %s237, 24
        %s242 = sadd.s32 %s240, %s241
        %s243 = smul.addr %s242, 4
        %s244 = scalar_lea.vmem %s2, %s243
        %s245 = sadd.s32 %s19, 2
      $region36: #{forward.6} parent=23 // pred_fallthru
        _
    $region24: #{forward.6} parent=5 // pred_fallthru
      _
    %p246 = scmp.le.s32.totalorder 1, %s11
    %p247 = scmp.lt.s32.totalorder %s11, 9
    %p248 = pnand %p246, %p247
    %p249 = pneg %p248
    // Predicated region
    $region37: #{forward.6} parent=5 // pred_check
      _
    $region38: #{forward.6} parent=5 // pred_check_branch
      %251 = sbr.rel (%p248) target = $region40
    $region39: #{forward.6} parent=5 // pred_region
      %s252 = ssub.s32 %s11, 1
      %p253 = scmp.lt.s32.totalorder %s20, 1
      %s254 = scalar_select %p253, %s20, 1
      %p255 = scmp.lt.s32.totalorder %s21, 5
      %s256 = scalar_select %p255, %s21, 5
      %s257 = smul.addr %s256, 4
      %s258 = smul.addr %s254, 24
      %s259 = sadd.s32 %s257, %s258
      %s260 = smul.addr %s259, 4
      %s261 = scalar_lea.vmem %s0, %s260
      %p262 = pneg %p51
      %p263 = pneg %p48
      %s264 = sadd.s32 %s21, 1
      %p265 = scmp.lt.s32.totalorder %s20, 1
      %s266 = scalar_select %p265, %s20, 1
      %p267 = scmp.lt.s32.totalorder %s264, 5
      %s268 = scalar_select %p267, %s264, 5
      %s269 = smul.addr %s268, 4
      %s270 = smul.addr %s266, 24
      %s271 = sadd.s32 %s269, %s270
      %s272 = smul.addr %s271, 4
      %s273 = scalar_lea.vmem %s1, %s272
      %p274 = pneg %p81
      %p275 = pneg %p78
      %s276 = sadd.s32 %s21, 2
      %p277 = scmp.lt.s32.totalorder %s20, 1
      %s278 = scalar_select %p277, %s20, 1
      %p279 = scmp.lt.s32.totalorder %s276, 5
      %s280 = scalar_select %p279, %s276, 5
      %s281 = smul.addr %s280, 4
      %s282 = smul.addr %s278, 24
      %s283 = sadd.s32 %s281, %s282
      %s284 = smul.addr %s283, 4
      %s285 = scalar_lea.vmem %s2, %s284
      %p286 = pneg %p111
      %p287 = pneg %p108
      %p288 = pneg %p132
      %p289 = pneg %p129
      %p290 = pneg %p153
      %p291 = pneg %p150
      %p292 = pneg %p181
      %p293 = pneg %p178
      %p294 = scmp.lt.s32.totalorder %s20, 1
      %s295 = scalar_select %p294, %s20, 1
      %p296 = scmp.lt.s32.totalorder %s21, 3
      %s297 = scalar_select %p296, %s21, 3
      %s298 = smul.addr %s297, 12
      %s299 = smul.addr %s295, 48
      %s300 = sadd.s32 %s298, %s299
      %s301 = smul.addr %s300, 4
      %s302 = scalar_lea.vmem %s5, %s301
      %p303 = scmp.lt.s32.totalorder %s20, 1
      %s304 = scalar_select %p303, %s20, 1
      %p305 = scmp.lt.s32.totalorder %s21, 5
      %s306 = scalar_select %p305, %s21, 5
      %s307 = smul.addr %s306, 4
      %s308 = smul.addr %s304, 24
      %s309 = sadd.s32 %s307, %s308
      %s310 = smul.addr %s309, 4
      %s311 = scalar_lea.vmem %s0, %s310
      %s312 = sadd.s32 %s21, 1
      %p313 = scmp.lt.s32.totalorder %s20, 1
      %s314 = scalar_select %p313, %s20, 1
      %p315 = scmp.lt.s32.totalorder %s312, 5
      %s316 = scalar_select %p315, %s312, 5
      %s317 = smul.addr %s316, 4
      %s318 = smul.addr %s314, 24
      %s319 = sadd.s32 %s317, %s318
      %s320 = smul.addr %s319, 4
      %s321 = scalar_lea.vmem %s1, %s320
      %s322 = sadd.s32 %s21, 1
      %s323 = sadd.s32 %s21, 2
      %p324 = scmp.lt.s32.totalorder %s20, 1
      %s325 = scalar_select %p324, %s20, 1
      %p326 = scmp.lt.s32.totalorder %s323, 5
      %s327 = scalar_select %p326, %s323, 5
      %s328 = smul.addr %s327, 4
      %s329 = smul.addr %s325, 24
      %s330 = sadd.s32 %s328, %s329
      %s331 = smul.addr %s330, 4
      %s332 = scalar_lea.vmem %s2, %s331
      %s333 = sadd.s32 %s21, 2
      %p334 = scmp.lt.s32.totalorder %s20, 1
      %s335 = scalar_select %p334, %s20, 1
      %p336 = scmp.lt.s32.totalorder %s21, 3
      %s337 = scalar_select %p336, %s21, 3
      %s338 = smul.addr %s337, 12
      %s339 = smul.addr %s335, 48
      %s340 = sadd.s32 %s338, %s339
      %s341 = smul.addr %s340, 4
      %s342 = scalar_lea.vmem %s5, %s341
      %v344 = vld [vmem:[%s311] sm:$0x77]
      %v345 = vld [vmem:[%s311 + $0x8] sm:$0x7]
      %v346 = vld [vmem:[%s3] sm:$0xf]
      %v347 = vld [vmem:[%s3 + $0x4] sm:$0xf]
      %v348 = vld [vmem:[%s3 + $0x8] sm:$0xf]
      %v349 = vld [vmem:[%s3 + $0xc] sm:$0xf]
      %v350 = vld [vmem:[%s311 + $0x8] sm:$0x77]
      %s351 = scalar_lea.vmem %s3, 16
      %v352 = vld [vmem:[%s351] sm:$0xf]
      %v353 = vld [vmem:[%s351 + $0x4] sm:$0xf]
      %v354 = vld [vmem:[%s351 + $0x8] sm:$0xf]
      %v355 = vld [vmem:[%s351 + $0xc] sm:$0xf]
      %v360 = vunpack.c.l.b16 %v352
      %v361 = vunpack.c.l.b16 %v353
      %v362 = vunpack.c.l.b16 %v354
      %v363 = vunpack.c.l.b16 %v355
      %v364 = vpack.c.b16 %v361, %v360
      %v365 = vpack.c.b16 %v363, %v362
      %v368 = vunpack.c.l.b16 %v344
      %v369 = vunpack.c.h.b16 %v344
      %v370 = vunpack.c.l.b16 %v350
      %v371 = vunpack.c.h.b16 %v350
      %v372 = vpack.c.b16 %v368, %v368
      %v373 = vpack.c.b16 %v369, %v369
      %v374 = vpack.c.b16 %v370, %v370
      %v375 = vpack.c.b16 %v371, %v371
      %376 = vrot.lane.b32.xlu0 %v372, 127
      %v377 = vpop.permute.xlu0 %376
      %378 = vrot.lane.b32.xlu0 %v373, 127
      %v379 = vpop.permute.xlu0 %378
      %380 = vrot.lane.b32.xlu0 %v374, 127
      %v381 = vpop.permute.xlu0 %380
      %382 = vrot.lane.b32.xlu0 %v375, 127
      %v383 = vpop.permute.xlu0 %382
      %vm384 = vcmask 1039360
      %v385 = vsel %vm384, %v377, %v379
      %v386 = vsel %vm384, %v379, %v381
      %v387 = vsel %vm384, %v381, %v383
      %vm388 = vcmask 48128
      %v390 = vsel %vm388, %v364, 0
      %v393 = vsel %vm388, %v365, 0
      %vm395 = vcmask 1042432
      %v397 = vsel %vm395, %v385, 0
      %v400 = vsel %vm395, %v386, 0
      %v403 = vsel %vm395, %v387, 0
      %405 = vmatpush.bf16.msra.mxu0 0
      %406 = vmatpush.bf16.msra.mxu0 0
      %407 = vmatpush.bf16.msra.mxu0 0
      %408 = vmatpush.bf16.msra.mxu0 0
      %409 = vmatpush.bf16.msra.mxu0 0
      %410 = vmatpush.bf16.msra.mxu0 0
      %411 = vmatpush.bf16.msra.mxu0 0
      %412 = vmatpush.bf16.msra.mxu0 %v397
      %413 = vmatmul.bf16.gmra.mxu0 %v390
      %v414 = vpop.f32.mrf.mxu0
      %v415 = vadd.f32 0.0, %v414
      %v416 = vpop.f32.mrf.mxu0
      %v417 = vadd.f32 0.0, %v416
      %418 = vmatmul.bf16.gmra.mxu0 %v393
      %v419 = vpop.f32.mrf.mxu0
      %v420 = vadd.f32 0.0, %v419
      %v421 = vpop.f32.mrf.mxu0
      %v422 = vadd.f32 0.0, %v421
      %423 = vdwg.mxu0
      %424 = vmatpush.bf16.msra.mxu0 0
      %425 = vmatpush.bf16.msra.mxu0 0
      %426 = vmatpush.bf16.msra.mxu0 0
      %427 = vmatpush.bf16.msra.mxu0 0
      %428 = vmatpush.bf16.msra.mxu0 0
      %429 = vmatpush.bf16.msra.mxu0 0
      %430 = vmatpush.bf16.msra.mxu0 0
      %431 = vmatpush.bf16.msra.mxu0 %v400
      %432 = vmatmul.bf16.gmra.mxu0 %v390
      %v433 = vpop.f32.mrf.mxu0
      %v434 = vadd.f32 0.0, %v433
      %v435 = vpop.f32.mrf.mxu0
      %v436 = vadd.f32 0.0, %v435
      %437 = vmatmul.bf16.gmra.mxu0 %v393
      %v438 = vpop.f32.mrf.mxu0
      %v439 = vadd.f32 0.0, %v438
      %v440 = vpop.f32.mrf.mxu0
      %v441 = vadd.f32 0.0, %v440
      %442 = vdwg.mxu0
      %443 = vmatpush.bf16.msra.mxu0 0
      %444 = vmatpush.bf16.msra.mxu0 0
      %445 = vmatpush.bf16.msra.mxu0 0
      %446 = vmatpush.bf16.msra.mxu0 0
      %447 = vmatpush.bf16.msra.mxu0 0
      %448 = vmatpush.bf16.msra.mxu0 0
      %449 = vmatpush.bf16.msra.mxu0 0
      %450 = vmatpush.bf16.msra.mxu0 %v403
      %451 = vmatmul.bf16.gmra.mxu0 %v390
      %v452 = vpop.f32.mrf.mxu0
      %v453 = vadd.f32 0.0, %v452
      %v454 = vpop.f32.mrf.mxu0
      %v455 = vadd.f32 0.0, %v454
      %456 = vmatmul.bf16.gmra.mxu0 %v393
      %v457 = vpop.f32.mrf.mxu0
      %v458 = vadd.f32 0.0, %v457
      %v459 = vpop.f32.mrf.mxu0
      %v460 = vadd.f32 0.0, %v459
      %461 = vdwg.mxu0
      %v466 = vunpack.c.l.b16 %v346
      %v467 = vunpack.c.l.b16 %v347
      %v468 = vunpack.c.l.b16 %v348
      %v469 = vunpack.c.l.b16 %v349
      %v470 = vpack.c.b16 %v467, %v466
      %v471 = vpack.c.b16 %v469, %v468
      %v473 = vunpack.c.l.b16 %v345
      %v474 = vpack.c.b16 %v473, %v473
      %v476 = vsel %vm388, %v470, 0
      %v479 = vsel %vm388, %v471, 0
      %v482 = vsel %vm395, %v372, 0
      %v485 = vsel %vm395, %v373, 0
      %v488 = vsel %vm395, %v474, 0
      %490 = vmatpush.bf16.msra.mxu0 0
      %491 = vmatpush.bf16.msra.mxu0 0
      %492 = vmatpush.bf16.msra.mxu0 0
      %493 = vmatpush.bf16.msra.mxu0 0
      %494 = vmatpush.bf16.msra.mxu0 0
      %495 = vmatpush.bf16.msra.mxu0 0
      %496 = vmatpush.bf16.msra.mxu0 0
      %497 = vmatpush.bf16.msra.mxu0 %v482
      %498 = vmatmul.bf16.gmra.mxu0 %v476
      %v499 = vpop.f32.mrf.mxu0
      %v500 = vadd.f32 %v415, %v499
      %v501 = vpop.f32.mrf.mxu0
      %v502 = vadd.f32 %v417, %v501
      %503 = vmatmul.bf16.gmra.mxu0 %v479
      %v504 = vpop.f32.mrf.mxu0
      %v505 = vadd.f32 %v420, %v504
      %v506 = vpop.f32.mrf.mxu0
      %v507 = vadd.f32 %v422, %v506
      %508 = vdwg.mxu0
      %509 = vmatpush.bf16.msra.mxu0 0
      %510 = vmatpush.bf16.msra.mxu0 0
      %511 = vmatpush.bf16.msra.mxu0 0
      %512 = vmatpush.bf16.msra.mxu0 0
      %513 = vmatpush.bf16.msra.mxu0 0
      %514 = vmatpush.bf16.msra.mxu0 0
      %515 = vmatpush.bf16.msra.mxu0 0
      %516 = vmatpush.bf16.msra.mxu0 %v485
      %517 = vmatmul.bf16.gmra.mxu0 %v476
      %v518 = vpop.f32.mrf.mxu0
      %v519 = vadd.f32 %v434, %v518
      %v520 = vpop.f32.mrf.mxu0
      %v521 = vadd.f32 %v436, %v520
      %522 = vmatmul.bf16.gmra.mxu0 %v479
      %v523 = vpop.f32.mrf.mxu0
      %v524 = vadd.f32 %v439, %v523
      %v525 = vpop.f32.mrf.mxu0
      %v526 = vadd.f32 %v441, %v525
      %527 = vdwg.mxu0
      %528 = vmatpush.bf16.msra.mxu0 0
      %529 = vmatpush.bf16.msra.mxu0 0
      %530 = vmatpush.bf16.msra.mxu0 0
      %531 = vmatpush.bf16.msra.mxu0 0
      %532 = vmatpush.bf16.msra.mxu0 0
      %533 = vmatpush.bf16.msra.mxu0 0
      %534 = vmatpush.bf16.msra.mxu0 0
      %535 = vmatpush.bf16.msra.mxu0 %v488
      %536 = vmatmul.bf16.gmra.mxu0 %v476
      %v537 = vpop.f32.mrf.mxu0
      %v538 = vadd.f32 %v453, %v537
      %v539 = vpop.f32.mrf.mxu0
      %v540 = vadd.f32 %v455, %v539
      %541 = vmatmul.bf16.gmra.mxu0 %v479
      %v542 = vpop.f32.mrf.mxu0
      %v543 = vadd.f32 %v458, %v542
      %v544 = vpop.f32.mrf.mxu0
      %v545 = vadd.f32 %v460, %v544
      %546 = vdwg.mxu0
      %s547 = scalar_lea.vmem %s3, 32
      %v548 = vld [vmem:[%s547] sm:$0xf]
      %v549 = vld [vmem:[%s547 + $0x4] sm:$0xf]
      %v550 = vld [vmem:[%s547 + $0x8] sm:$0xf]
      %v551 = vld [vmem:[%s547 + $0xc] sm:$0xf]
      %v556 = vunpack.c.l.b16 %v548
      %v557 = vunpack.c.l.b16 %v549
      %v558 = vunpack.c.l.b16 %v550
      %v559 = vunpack.c.l.b16 %v551
      %v560 = vpack.c.b16 %v557, %v556
      %v561 = vpack.c.b16 %v559, %v558
      %562 = vrot.lane.b32.xlu0 %v372, 126
      %v563 = vpop.permute.xlu0 %562
      %564 = vrot.lane.b32.xlu0 %v373, 126
      %v565 = vpop.permute.xlu0 %564
      %566 = vrot.lane.b32.xlu0 %v374, 126
      %v567 = vpop.permute.xlu0 %566
      %568 = vrot.lane.b32.xlu0 %v375, 126
      %v569 = vpop.permute.xlu0 %568
      %vm570 = vcmask 1031168
      %v571 = vsel %vm570, %v563, %v565
      %v572 = vsel %vm570, %v565, %v567
      %v573 = vsel %vm570, %v567, %v569
      %v575 = vsel %vm388, %v560, 0
      %v578 = vsel %vm388, %v561, 0
      %v581 = vsel %vm395, %v571, 0
      %v584 = vsel %vm395, %v572, 0
      %v587 = vsel %vm395, %v573, 0
      %589 = vmatpush.bf16.msra.mxu0 0
      %590 = vmatpush.bf16.msra.mxu0 0
      %591 = vmatpush.bf16.msra.mxu0 0
      %592 = vmatpush.bf16.msra.mxu0 0
      %593 = vmatpush.bf16.msra.mxu0 0
      %594 = vmatpush.bf16.msra.mxu0 0
      %595 = vmatpush.bf16.msra.mxu0 0
      %596 = vmatpush.bf16.msra.mxu0 %v581
      %597 = vmatmul.bf16.gmra.mxu0 %v575
      %v598 = vpop.f32.mrf.mxu0
      %v599 = vadd.f32 0.0, %v598
      %v600 = vpop.f32.mrf.mxu0
      %v601 = vadd.f32 0.0, %v600
      %602 = vmatmul.bf16.gmra.mxu0 %v578
      %v603 = vpop.f32.mrf.mxu0
      %v604 = vadd.f32 0.0, %v603
      %v605 = vpop.f32.mrf.mxu0
      %v606 = vadd.f32 0.0, %v605
      %607 = vdwg.mxu0
      %608 = vmatpush.bf16.msra.mxu0 0
      %609 = vmatpush.bf16.msra.mxu0 0
      %610 = vmatpush.bf16.msra.mxu0 0
      %611 = vmatpush.bf16.msra.mxu0 0
      %612 = vmatpush.bf16.msra.mxu0 0
      %613 = vmatpush.bf16.msra.mxu0 0
      %614 = vmatpush.bf16.msra.mxu0 0
      %615 = vmatpush.bf16.msra.mxu0 %v584
      %616 = vmatmul.bf16.gmra.mxu0 %v575
      %v617 = vpop.f32.mrf.mxu0
      %v618 = vadd.f32 0.0, %v617
      %v619 = vpop.f32.mrf.mxu0
      %v620 = vadd.f32 0.0, %v619
      %621 = vmatmul.bf16.gmra.mxu0 %v578
      %v622 = vpop.f32.mrf.mxu0
      %v623 = vadd.f32 0.0, %v622
      %v624 = vpop.f32.mrf.mxu0
      %v625 = vadd.f32 0.0, %v624
      %626 = vdwg.mxu0
      %627 = vmatpush.bf16.msra.mxu0 0
      %628 = vmatpush.bf16.msra.mxu0 0
      %629 = vmatpush.bf16.msra.mxu0 0
      %630 = vmatpush.bf16.msra.mxu0 0
      %631 = vmatpush.bf16.msra.mxu0 0
      %632 = vmatpush.bf16.msra.mxu0 0
      %633 = vmatpush.bf16.msra.mxu0 0
      %634 = vmatpush.bf16.msra.mxu0 %v587
      %635 = vmatmul.bf16.gmra.mxu0 %v575
      %v636 = vpop.f32.mrf.mxu0
      %v637 = vadd.f32 0.0, %v636
      %v638 = vpop.f32.mrf.mxu0
      %v639 = vadd.f32 0.0, %v638
      %640 = vmatmul.bf16.gmra.mxu0 %v578
      %v641 = vpop.f32.mrf.mxu0
      %v642 = vadd.f32 0.0, %v641
      %v643 = vpop.f32.mrf.mxu0
      %v644 = vadd.f32 0.0, %v643
      %645 = vdwg.mxu0
      %v646 = vadd.f32 %v500, %v599
      %v647 = vadd.f32 %v519, %v618
      %v648 = vadd.f32 %v538, %v637
      %v649 = vadd.f32 %v502, %v601
      %v650 = vadd.f32 %v521, %v620
      %v651 = vadd.f32 %v540, %v639
      %v652 = vadd.f32 %v505, %v604
      %v653 = vadd.f32 %v524, %v623
      %v654 = vadd.f32 %v543, %v642
      %v655 = vadd.f32 %v507, %v606
      %v656 = vadd.f32 %v526, %v625
      %v657 = vadd.f32 %v545, %v644
      %s658 = scalar_lea.vmem %s3, 48
      %v659 = vld [vmem:[%s658] sm:$0xf]
      %v660 = vld [vmem:[%s658 + $0x4] sm:$0xf]
      %v661 = vld [vmem:[%s658 + $0x8] sm:$0xf]
      %v662 = vld [vmem:[%s658 + $0xc] sm:$0xf]
      %v667 = vunpack.c.l.b16 %v659
      %v668 = vunpack.c.l.b16 %v660
      %v669 = vunpack.c.l.b16 %v661
      %v670 = vunpack.c.l.b16 %v662
      %v671 = vpack.c.b16 %v668, %v667
      %v672 = vpack.c.b16 %v670, %v669
      %673 = vrot.lane.b32.xlu0 %v372, 110
      %v674 = vpop.permute.xlu0 %673
      %675 = vrot.lane.b32.xlu0 %v373, 110
      %v676 = vpop.permute.xlu0 %675
      %677 = vrot.lane.b32.xlu0 %v374, 110
      %v678 = vpop.permute.xlu0 %677
      %679 = vrot.lane.b32.xlu0 %v375, 110
      %v680 = vpop.permute.xlu0 %679
      %vm681 = vcmask 900096
      %v682 = vsel %vm681, %v674, %v676
      %v683 = vsel %vm681, %v676, %v678
      %v684 = vsel %vm681, %v678, %v680
      %v686 = vsel %vm388, %v671, 0
      %v689 = vsel %vm388, %v672, 0
      %v692 = vsel %vm395, %v682, 0
      %v695 = vsel %vm395, %v683, 0
      %v698 = vsel %vm395, %v684, 0
      %700 = vmatpush.bf16.msra.mxu0 0
      %701 = vmatpush.bf16.msra.mxu0 0
      %702 = vmatpush.bf16.msra.mxu0 0
      %703 = vmatpush.bf16.msra.mxu0 0
      %704 = vmatpush.bf16.msra.mxu0 0
      %705 = vmatpush.bf16.msra.mxu0 0
      %706 = vmatpush.bf16.msra.mxu0 0
      %707 = vmatpush.bf16.msra.mxu0 %v692
      %708 = vmatmul.bf16.gmra.mxu0 %v686
      %v709 = vpop.f32.mrf.mxu0
      %v710 = vadd.f32 0.0, %v709
      %v711 = vpop.f32.mrf.mxu0
      %v712 = vadd.f32 0.0, %v711
      %713 = vmatmul.bf16.gmra.mxu0 %v689
      %v714 = vpop.f32.mrf.mxu0
      %v715 = vadd.f32 0.0, %v714
      %v716 = vpop.f32.mrf.mxu0
      %v717 = vadd.f32 0.0, %v716
      %718 = vdwg.mxu0
      %719 = vmatpush.bf16.msra.mxu0 0
      %720 = vmatpush.bf16.msra.mxu0 0
      %721 = vmatpush.bf16.msra.mxu0 0
      %722 = vmatpush.bf16.msra.mxu0 0
      %723 = vmatpush.bf16.msra.mxu0 0
      %724 = vmatpush.bf16.msra.mxu0 0
      %725 = vmatpush.bf16.msra.mxu0 0
      %726 = vmatpush.bf16.msra.mxu0 %v695
      %727 = vmatmul.bf16.gmra.mxu0 %v686
      %v728 = vpop.f32.mrf.mxu0
      %v729 = vadd.f32 0.0, %v728
      %v730 = vpop.f32.mrf.mxu0
      %v731 = vadd.f32 0.0, %v730
      %732 = vmatmul.bf16.gmra.mxu0 %v689
      %v733 = vpop.f32.mrf.mxu0
      %v734 = vadd.f32 0.0, %v733
      %v735 = vpop.f32.mrf.mxu0
      %v736 = vadd.f32 0.0, %v735
      %737 = vdwg.mxu0
      %738 = vmatpush.bf16.msra.mxu0 0
      %739 = vmatpush.bf16.msra.mxu0 0
      %740 = vmatpush.bf16.msra.mxu0 0
      %741 = vmatpush.bf16.msra.mxu0 0
      %742 = vmatpush.bf16.msra.mxu0 0
      %743 = vmatpush.bf16.msra.mxu0 0
      %744 = vmatpush.bf16.msra.mxu0 0
      %745 = vmatpush.bf16.msra.mxu0 %v698
      %746 = vmatmul.bf16.gmra.mxu0 %v686
      %v747 = vpop.f32.mrf.mxu0
      %v748 = vadd.f32 0.0, %v747
      %v749 = vpop.f32.mrf.mxu0
      %v750 = vadd.f32 0.0, %v749
      %751 = vmatmul.bf16.gmra.mxu0 %v689
      %v752 = vpop.f32.mrf.mxu0
      %v753 = vadd.f32 0.0, %v752
      %v754 = vpop.f32.mrf.mxu0
      %v755 = vadd.f32 0.0, %v754
      %756 = vdwg.mxu0
      %v757 = vadd.f32 %v646, %v710
      %v758 = vadd.f32 %v647, %v729
      %v759 = vadd.f32 %v648, %v748
      %v760 = vadd.f32 %v649, %v712
      %v761 = vadd.f32 %v650, %v731
      %v762 = vadd.f32 %v651, %v750
      %v763 = vadd.f32 %v652, %v715
      %v764 = vadd.f32 %v653, %v734
      %v765 = vadd.f32 %v654, %v753
      %v766 = vadd.f32 %v655, %v717
      %v767 = vadd.f32 %v656, %v736
      %v768 = vadd.f32 %v657, %v755
      %s769 = scalar_lea.vmem %s3, 64
      %v770 = vld [vmem:[%s769] sm:$0xf]
      %v771 = vld [vmem:[%s769 + $0x4] sm:$0xf]
      %v772 = vld [vmem:[%s769 + $0x8] sm:$0xf]
      %v773 = vld [vmem:[%s769 + $0xc] sm:$0xf]
      %v778 = vunpack.c.l.b16 %v770
      %v779 = vunpack.c.l.b16 %v771
      %v780 = vunpack.c.l.b16 %v772
      %v781 = vunpack.c.l.b16 %v773
      %v782 = vpack.c.b16 %v779, %v778
      %v783 = vpack.c.b16 %v781, %v780
      %784 = vrot.lane.b32.xlu0 %v372, 109
      %v785 = vpop.permute.xlu0 %784
      %786 = vrot.lane.b32.xlu0 %v373, 109
      %v787 = vpop.permute.xlu0 %786
      %788 = vrot.lane.b32.xlu0 %v374, 109
      %v789 = vpop.permute.xlu0 %788
      %790 = vrot.lane.b32.xlu0 %v375, 109
      %v791 = vpop.permute.xlu0 %790
      %vm792 = vcmask 891904
      %v793 = vsel %vm792, %v785, %v787
      %v794 = vsel %vm792, %v787, %v789
      %v795 = vsel %vm792, %v789, %v791
      %v797 = vsel %vm388, %v782, 0
      %v800 = vsel %vm388, %v783, 0
      %v803 = vsel %vm395, %v793, 0
      %v806 = vsel %vm395, %v794, 0
      %v809 = vsel %vm395, %v795, 0
      %811 = vmatpush.bf16.msra.mxu0 0
      %812 = vmatpush.bf16.msra.mxu0 0
      %813 = vmatpush.bf16.msra.mxu0 0
      %814 = vmatpush.bf16.msra.mxu0 0
      %815 = vmatpush.bf16.msra.mxu0 0
      %816 = vmatpush.bf16.msra.mxu0 0
      %817 = vmatpush.bf16.msra.mxu0 0
      %818 = vmatpush.bf16.msra.mxu0 %v803
      %819 = vmatmul.bf16.gmra.mxu0 %v797
      %v820 = vpop.f32.mrf.mxu0
      %v821 = vadd.f32 0.0, %v820
      %v822 = vpop.f32.mrf.mxu0
      %v823 = vadd.f32 0.0, %v822
      %824 = vmatmul.bf16.gmra.mxu0 %v800
      %v825 = vpop.f32.mrf.mxu0
      %v826 = vadd.f32 0.0, %v825
      %v827 = vpop.f32.mrf.mxu0
      %v828 = vadd.f32 0.0, %v827
      %829 = vdwg.mxu0
      %830 = vmatpush.bf16.msra.mxu0 0
      %831 = vmatpush.bf16.msra.mxu0 0
      %832 = vmatpush.bf16.msra.mxu0 0
      %833 = vmatpush.bf16.msra.mxu0 0
      %834 = vmatpush.bf16.msra.mxu0 0
      %835 = vmatpush.bf16.msra.mxu0 0
      %836 = vmatpush.bf16.msra.mxu0 0
      %837 = vmatpush.bf16.msra.mxu0 %v806
      %838 = vmatmul.bf16.gmra.mxu0 %v797
      %v839 = vpop.f32.mrf.mxu0
      %v840 = vadd.f32 0.0, %v839
      %v841 = vpop.f32.mrf.mxu0
      %v842 = vadd.f32 0.0, %v841
      %843 = vmatmul.bf16.gmra.mxu0 %v800
      %v844 = vpop.f32.mrf.mxu0
      %v845 = vadd.f32 0.0, %v844
      %v846 = vpop.f32.mrf.mxu0
      %v847 = vadd.f32 0.0, %v846
      %848 = vdwg.mxu0
      %849 = vmatpush.bf16.msra.mxu0 0
      %850 = vmatpush.bf16.msra.mxu0 0
      %851 = vmatpush.bf16.msra.mxu0 0
      %852 = vmatpush.bf16.msra.mxu0 0
      %853 = vmatpush.bf16.msra.mxu0 0
      %854 = vmatpush.bf16.msra.mxu0 0
      %855 = vmatpush.bf16.msra.mxu0 0
      %856 = vmatpush.bf16.msra.mxu0 %v809
      %857 = vmatmul.bf16.gmra.mxu0 %v797
      %v858 = vpop.f32.mrf.mxu0
      %v859 = vadd.f32 0.0, %v858
      %v860 = vpop.f32.mrf.mxu0
      %v861 = vadd.f32 0.0, %v860
      %862 = vmatmul.bf16.gmra.mxu0 %v800
      %v863 = vpop.f32.mrf.mxu0
      %v864 = vadd.f32 0.0, %v863
      %v865 = vpop.f32.mrf.mxu0
      %v866 = vadd.f32 0.0, %v865
      %867 = vdwg.mxu0
      %v868 = vadd.f32 %v757, %v821
      %v869 = vadd.f32 %v758, %v840
      %v870 = vadd.f32 %v759, %v859
      %v871 = vadd.f32 %v760, %v823
      %v872 = vadd.f32 %v761, %v842
      %v873 = vadd.f32 %v762, %v861
      %v874 = vadd.f32 %v763, %v826
      %v875 = vadd.f32 %v764, %v845
      %v876 = vadd.f32 %v765, %v864
      %v877 = vadd.f32 %v766, %v828
      %v878 = vadd.f32 %v767, %v847
      %v879 = vadd.f32 %v768, %v866
      %s880 = scalar_lea.vmem %s3, 80
      %v881 = vld [vmem:[%s880] sm:$0xf]
      %v882 = vld [vmem:[%s880 + $0x4] sm:$0xf]
      %v883 = vld [vmem:[%s880 + $0x8] sm:$0xf]
      %v884 = vld [vmem:[%s880 + $0xc] sm:$0xf]
      %v889 = vunpack.c.l.b16 %v881
      %v890 = vunpack.c.l.b16 %v882
      %v891 = vunpack.c.l.b16 %v883
      %v892 = vunpack.c.l.b16 %v884
      %v893 = vpack.c.b16 %v890, %v889
      %v894 = vpack.c.b16 %v892, %v891
      %895 = vrot.lane.b32.xlu0 %v372, 108
      %v896 = vpop.permute.xlu0 %895
      %897 = vrot.lane.b32.xlu0 %v373, 108
      %v898 = vpop.permute.xlu0 %897
      %899 = vrot.lane.b32.xlu0 %v374, 108
      %v900 = vpop.permute.xlu0 %899
      %901 = vrot.lane.b32.xlu0 %v375, 108
      %v902 = vpop.permute.xlu0 %901
      %vm903 = vcmask 883712
      %v904 = vsel %vm903, %v896, %v898
      %v905 = vsel %vm903, %v898, %v900
      %v906 = vsel %vm903, %v900, %v902
      %v908 = vsel %vm388, %v893, 0
      %v911 = vsel %vm388, %v894, 0
      %v914 = vsel %vm395, %v904, 0
      %v917 = vsel %vm395, %v905, 0
      %v920 = vsel %vm395, %v906, 0
      %922 = vmatpush.bf16.msra.mxu0 0
      %923 = vmatpush.bf16.msra.mxu0 0
      %924 = vmatpush.bf16.msra.mxu0 0
      %925 = vmatpush.bf16.msra.mxu0 0
      %926 = vmatpush.bf16.msra.mxu0 0
      %927 = vmatpush.bf16.msra.mxu0 0
      %928 = vmatpush.bf16.msra.mxu0 0
      %929 = vmatpush.bf16.msra.mxu0 %v914
      %930 = vmatmul.bf16.gmra.mxu0 %v908
      %v931 = vpop.f32.mrf.mxu0
      %v932 = vadd.f32 0.0, %v931
      %v933 = vpop.f32.mrf.mxu0
      %v934 = vadd.f32 0.0, %v933
      %935 = vmatmul.bf16.gmra.mxu0 %v911
      %v936 = vpop.f32.mrf.mxu0
      %v937 = vadd.f32 0.0, %v936
      %v938 = vpop.f32.mrf.mxu0
      %v939 = vadd.f32 0.0, %v938
      %940 = vdwg.mxu0
      %941 = vmatpush.bf16.msra.mxu0 0
      %942 = vmatpush.bf16.msra.mxu0 0
      %943 = vmatpush.bf16.msra.mxu0 0
      %944 = vmatpush.bf16.msra.mxu0 0
      %945 = vmatpush.bf16.msra.mxu0 0
      %946 = vmatpush.bf16.msra.mxu0 0
      %947 = vmatpush.bf16.msra.mxu0 0
      %948 = vmatpush.bf16.msra.mxu0 %v917
      %949 = vmatmul.bf16.gmra.mxu0 %v908
      %v950 = vpop.f32.mrf.mxu0
      %v951 = vadd.f32 0.0, %v950
      %v952 = vpop.f32.mrf.mxu0
      %v953 = vadd.f32 0.0, %v952
      %954 = vmatmul.bf16.gmra.mxu0 %v911
      %v955 = vpop.f32.mrf.mxu0
      %v956 = vadd.f32 0.0, %v955
      %v957 = vpop.f32.mrf.mxu0
      %v958 = vadd.f32 0.0, %v957
      %959 = vdwg.mxu0
      %960 = vmatpush.bf16.msra.mxu0 0
      %961 = vmatpush.bf16.msra.mxu0 0
      %962 = vmatpush.bf16.msra.mxu0 0
      %963 = vmatpush.bf16.msra.mxu0 0
      %964 = vmatpush.bf16.msra.mxu0 0
      %965 = vmatpush.bf16.msra.mxu0 0
      %966 = vmatpush.bf16.msra.mxu0 0
      %967 = vmatpush.bf16.msra.mxu0 %v920
      %968 = vmatmul.bf16.gmra.mxu0 %v908
      %v969 = vpop.f32.mrf.mxu0
      %v970 = vadd.f32 0.0, %v969
      %v971 = vpop.f32.mrf.mxu0
      %v972 = vadd.f32 0.0, %v971
      %973 = vmatmul.bf16.gmra.mxu0 %v911
      %v974 = vpop.f32.mrf.mxu0
      %v975 = vadd.f32 0.0, %v974
      %v976 = vpop.f32.mrf.mxu0
      %v977 = vadd.f32 0.0, %v976
      %978 = vdwg.mxu0
      %v979 = vadd.f32 %v868, %v932
      %v980 = vadd.f32 %v869, %v951
      %v981 = vadd.f32 %v870, %v970
      %v982 = vadd.f32 %v871, %v934
      %v983 = vadd.f32 %v872, %v953
      %v984 = vadd.f32 %v873, %v972
      %v985 = vadd.f32 %v874, %v937
      %v986 = vadd.f32 %v875, %v956
      %v987 = vadd.f32 %v876, %v975
      %v988 = vadd.f32 %v877, %v939
      %v989 = vadd.f32 %v878, %v958
      %v990 = vadd.f32 %v879, %v977
      %s991 = scalar_lea.vmem %s3, 96
      %v992 = vld [vmem:[%s991] sm:$0xf]
      %v993 = vld [vmem:[%s991 + $0x4] sm:$0xf]
      %v994 = vld [vmem:[%s991 + $0x8] sm:$0xf]
      %v995 = vld [vmem:[%s991 + $0xc] sm:$0xf]
      %v1000 = vunpack.c.l.b16 %v992
      %v1001 = vunpack.c.l.b16 %v993
      %v1002 = vunpack.c.l.b16 %v994
      %v1003 = vunpack.c.l.b16 %v995
      %v1004 = vpack.c.b16 %v1001, %v1000
      %v1005 = vpack.c.b16 %v1003, %v1002
      %1006 = vrot.lane.b32.xlu0 %v372, 92
      %v1007 = vpop.permute.xlu0 %1006
      %1008 = vrot.lane.b32.xlu0 %v373, 92
      %v1009 = vpop.permute.xlu0 %1008
      %1010 = vrot.lane.b32.xlu0 %v374, 92
      %v1011 = vpop.permute.xlu0 %1010
      %1012 = vrot.lane.b32.xlu0 %v375, 92
      %v1013 = vpop.permute.xlu0 %1012
      %vm1014 = vcmask 752640
      %v1015 = vsel %vm1014, %v1007, %v1009
      %v1016 = vsel %vm1014, %v1009, %v1011
      %v1017 = vsel %vm1014, %v1011, %v1013
      %v1019 = vsel %vm388, %v1004, 0
      %v1022 = vsel %vm388, %v1005, 0
      %v1025 = vsel %vm395, %v1015, 0
      %v1028 = vsel %vm395, %v1016, 0
      %v1031 = vsel %vm395, %v1017, 0
      %1033 = vmatpush.bf16.msra.mxu0 0
      %1034 = vmatpush.bf16.msra.mxu0 0
      %1035 = vmatpush.bf16.msra.mxu0 0
      %1036 = vmatpush.bf16.msra.mxu0 0
      %1037 = vmatpush.bf16.msra.mxu0 0
      %1038 = vmatpush.bf16.msra.mxu0 0
      %1039 = vmatpush.bf16.msra.mxu0 0
      %1040 = vmatpush.bf16.msra.mxu0 %v1025
      %1041 = vmatmul.bf16.gmra.mxu0 %v1019
      %v1042 = vpop.f32.mrf.mxu0
      %v1043 = vadd.f32 0.0, %v1042
      %v1044 = vpop.f32.mrf.mxu0
      %v1045 = vadd.f32 0.0, %v1044
      %1046 = vmatmul.bf16.gmra.mxu0 %v1022
      %v1047 = vpop.f32.mrf.mxu0
      %v1048 = vadd.f32 0.0, %v1047
      %v1049 = vpop.f32.mrf.mxu0
      %v1050 = vadd.f32 0.0, %v1049
      %1051 = vdwg.mxu0
      %1052 = vmatpush.bf16.msra.mxu0 0
      %1053 = vmatpush.bf16.msra.mxu0 0
      %1054 = vmatpush.bf16.msra.mxu0 0
      %1055 = vmatpush.bf16.msra.mxu0 0
      %1056 = vmatpush.bf16.msra.mxu0 0
      %1057 = vmatpush.bf16.msra.mxu0 0
      %1058 = vmatpush.bf16.msra.mxu0 0
      %1059 = vmatpush.bf16.msra.mxu0 %v1028
      %1060 = vmatmul.bf16.gmra.mxu0 %v1019
      %v1061 = vpop.f32.mrf.mxu0
      %v1062 = vadd.f32 0.0, %v1061
      %v1063 = vpop.f32.mrf.mxu0
      %v1064 = vadd.f32 0.0, %v1063
      %1065 = vmatmul.bf16.gmra.mxu0 %v1022
      %v1066 = vpop.f32.mrf.mxu0
      %v1067 = vadd.f32 0.0, %v1066
      %v1068 = vpop.f32.mrf.mxu0
      %v1069 = vadd.f32 0.0, %v1068
      %1070 = vdwg.mxu0
      %1071 = vmatpush.bf16.msra.mxu0 0
      %1072 = vmatpush.bf16.msra.mxu0 0
      %1073 = vmatpush.bf16.msra.mxu0 0
      %1074 = vmatpush.bf16.msra.mxu0 0
      %1075 = vmatpush.bf16.msra.mxu0 0
      %1076 = vmatpush.bf16.msra.mxu0 0
      %1077 = vmatpush.bf16.msra.mxu0 0
      %1078 = vmatpush.bf16.msra.mxu0 %v1031
      %1079 = vmatmul.bf16.gmra.mxu0 %v1019
      %v1080 = vpop.f32.mrf.mxu0
      %v1081 = vadd.f32 0.0, %v1080
      %v1082 = vpop.f32.mrf.mxu0
      %v1083 = vadd.f32 0.0, %v1082
      %1084 = vmatmul.bf16.gmra.mxu0 %v1022
      %v1085 = vpop.f32.mrf.mxu0
      %v1086 = vadd.f32 0.0, %v1085
      %v1087 = vpop.f32.mrf.mxu0
      %v1088 = vadd.f32 0.0, %v1087
      %1089 = vdwg.mxu0
      %v1090 = vadd.f32 %v979, %v1043
      %v1091 = vadd.f32 %v980, %v1062
      %v1092 = vadd.f32 %v981, %v1081
      %v1093 = vadd.f32 %v982, %v1045
      %v1094 = vadd.f32 %v983, %v1064
      %v1095 = vadd.f32 %v984, %v1083
      %v1096 = vadd.f32 %v985, %v1048
      %v1097 = vadd.f32 %v986, %v1067
      %v1098 = vadd.f32 %v987, %v1086
      %v1099 = vadd.f32 %v988, %v1050
      %v1100 = vadd.f32 %v989, %v1069
      %v1101 = vadd.f32 %v990, %v1088
      %s1102 = scalar_lea.vmem %s3, 112
      %v1103 = vld [vmem:[%s1102] sm:$0xf]
      %v1104 = vld [vmem:[%s1102 + $0x4] sm:$0xf]
      %v1105 = vld [vmem:[%s1102 + $0x8] sm:$0xf]
      %v1106 = vld [vmem:[%s1102 + $0xc] sm:$0xf]
      %v1111 = vunpack.c.l.b16 %v1103
      %v1112 = vunpack.c.l.b16 %v1104
      %v1113 = vunpack.c.l.b16 %v1105
      %v1114 = vunpack.c.l.b16 %v1106
      %v1115 = vpack.c.b16 %v1112, %v1111
      %v1116 = vpack.c.b16 %v1114, %v1113
      %1117 = vrot.lane.b32.xlu0 %v372, 91
      %v1118 = vpop.permute.xlu0 %1117
      %1119 = vrot.lane.b32.xlu0 %v373, 91
      %v1120 = vpop.permute.xlu0 %1119
      %1121 = vrot.lane.b32.xlu0 %v374, 91
      %v1122 = vpop.permute.xlu0 %1121
      %1123 = vrot.lane.b32.xlu0 %v375, 91
      %v1124 = vpop.permute.xlu0 %1123
      %vm1125 = vcmask 744448
      %v1126 = vsel %vm1125, %v1118, %v1120
      %v1127 = vsel %vm1125, %v1120, %v1122
      %v1128 = vsel %vm1125, %v1122, %v1124
      %v1130 = vsel %vm388, %v1115, 0
      %v1133 = vsel %vm388, %v1116, 0
      %v1136 = vsel %vm395, %v1126, 0
      %v1139 = vsel %vm395, %v1127, 0
      %v1142 = vsel %vm395, %v1128, 0
      %1144 = vmatpush.bf16.msra.mxu0 0
      %1145 = vmatpush.bf16.msra.mxu0 0
      %1146 = vmatpush.bf16.msra.mxu0 0
      %1147 = vmatpush.bf16.msra.mxu0 0
      %1148 = vmatpush.bf16.msra.mxu0 0
      %1149 = vmatpush.bf16.msra.mxu0 0
      %1150 = vmatpush.bf16.msra.mxu0 0
      %1151 = vmatpush.bf16.msra.mxu0 %v1136
      %1152 = vmatmul.bf16.gmra.mxu0 %v1130
      %v1153 = vpop.f32.mrf.mxu0
      %v1154 = vadd.f32 0.0, %v1153
      %v1155 = vpop.f32.mrf.mxu0
      %v1156 = vadd.f32 0.0, %v1155
      %1157 = vmatmul.bf16.gmra.mxu0 %v1133
      %v1158 = vpop.f32.mrf.mxu0
      %v1159 = vadd.f32 0.0, %v1158
      %v1160 = vpop.f32.mrf.mxu0
      %v1161 = vadd.f32 0.0, %v1160
      %1162 = vdwg.mxu0
      %1163 = vmatpush.bf16.msra.mxu0 0
      %1164 = vmatpush.bf16.msra.mxu0 0
      %1165 = vmatpush.bf16.msra.mxu0 0
      %1166 = vmatpush.bf16.msra.mxu0 0
      %1167 = vmatpush.bf16.msra.mxu0 0
      %1168 = vmatpush.bf16.msra.mxu0 0
      %1169 = vmatpush.bf16.msra.mxu0 0
      %1170 = vmatpush.bf16.msra.mxu0 %v1139
      %1171 = vmatmul.bf16.gmra.mxu0 %v1130
      %v1172 = vpop.f32.mrf.mxu0
      %v1173 = vadd.f32 0.0, %v1172
      %v1174 = vpop.f32.mrf.mxu0
      %v1175 = vadd.f32 0.0, %v1174
      %1176 = vmatmul.bf16.gmra.mxu0 %v1133
      %v1177 = vpop.f32.mrf.mxu0
      %v1178 = vadd.f32 0.0, %v1177
      %v1179 = vpop.f32.mrf.mxu0
      %v1180 = vadd.f32 0.0, %v1179
      %1181 = vdwg.mxu0
      %1182 = vmatpush.bf16.msra.mxu0 0
      %1183 = vmatpush.bf16.msra.mxu0 0
      %1184 = vmatpush.bf16.msra.mxu0 0
      %1185 = vmatpush.bf16.msra.mxu0 0
      %1186 = vmatpush.bf16.msra.mxu0 0
      %1187 = vmatpush.bf16.msra.mxu0 0
      %1188 = vmatpush.bf16.msra.mxu0 0
      %1189 = vmatpush.bf16.msra.mxu0 %v1142
      %1190 = vmatmul.bf16.gmra.mxu0 %v1130
      %v1191 = vpop.f32.mrf.mxu0
      %v1192 = vadd.f32 0.0, %v1191
      %v1193 = vpop.f32.mrf.mxu0
      %v1194 = vadd.f32 0.0, %v1193
      %1195 = vmatmul.bf16.gmra.mxu0 %v1133
      %v1196 = vpop.f32.mrf.mxu0
      %v1197 = vadd.f32 0.0, %v1196
      %v1198 = vpop.f32.mrf.mxu0
      %v1199 = vadd.f32 0.0, %v1198
      %1200 = vdwg.mxu0
      %v1201 = vadd.f32 %v1090, %v1154
      %v1202 = vadd.f32 %v1091, %v1173
      %v1203 = vadd.f32 %v1092, %v1192
      %v1204 = vadd.f32 %v1093, %v1156
      %v1205 = vadd.f32 %v1094, %v1175
      %v1206 = vadd.f32 %v1095, %v1194
      %v1207 = vadd.f32 %v1096, %v1159
      %v1208 = vadd.f32 %v1097, %v1178
      %v1209 = vadd.f32 %v1098, %v1197
      %v1210 = vadd.f32 %v1099, %v1161
      %v1211 = vadd.f32 %v1100, %v1180
      %v1212 = vadd.f32 %v1101, %v1199
      %s1213 = scalar_lea.vmem %s3, 128
      %v1214 = vld [vmem:[%s1213] sm:$0xf]
      %v1215 = vld [vmem:[%s1213 + $0x4] sm:$0xf]
      %v1216 = vld [vmem:[%s1213 + $0x8] sm:$0xf]
      %v1217 = vld [vmem:[%s1213 + $0xc] sm:$0xf]
      %v1222 = vunpack.c.l.b16 %v1214
      %v1223 = vunpack.c.l.b16 %v1215
      %v1224 = vunpack.c.l.b16 %v1216
      %v1225 = vunpack.c.l.b16 %v1217
      %v1226 = vpack.c.b16 %v1223, %v1222
      %v1227 = vpack.c.b16 %v1225, %v1224
      %1228 = vrot.lane.b32.xlu0 %v372, 90
      %v1229 = vpop.permute.xlu0 %1228
      %1230 = vrot.lane.b32.xlu0 %v373, 90
      %v1231 = vpop.permute.xlu0 %1230
      %1232 = vrot.lane.b32.xlu0 %v374, 90
      %v1233 = vpop.permute.xlu0 %1232
      %1234 = vrot.lane.b32.xlu0 %v375, 90
      %v1235 = vpop.permute.xlu0 %1234
      %vm1236 = vcmask 736256
      %v1237 = vsel %vm1236, %v1229, %v1231
      %v1238 = vsel %vm1236, %v1231, %v1233
      %v1239 = vsel %vm1236, %v1233, %v1235
      %v1241 = vsel %vm388, %v1226, 0
      %v1244 = vsel %vm388, %v1227, 0
      %v1247 = vsel %vm395, %v1237, 0
      %v1250 = vsel %vm395, %v1238, 0
      %v1253 = vsel %vm395, %v1239, 0
      %1255 = vmatpush.bf16.msra.mxu0 0
      %1256 = vmatpush.bf16.msra.mxu0 0
      %1257 = vmatpush.bf16.msra.mxu0 0
      %1258 = vmatpush.bf16.msra.mxu0 0
      %1259 = vmatpush.bf16.msra.mxu0 0
      %1260 = vmatpush.bf16.msra.mxu0 0
      %1261 = vmatpush.bf16.msra.mxu0 0
      %1262 = vmatpush.bf16.msra.mxu0 %v1247
      %1263 = vmatmul.bf16.gmra.mxu0 %v1241
      %v1264 = vpop.f32.mrf.mxu0
      %v1265 = vadd.f32 0.0, %v1264
      %v1266 = vpop.f32.mrf.mxu0
      %v1267 = vadd.f32 0.0, %v1266
      %1268 = vmatmul.bf16.gmra.mxu0 %v1244
      %v1269 = vpop.f32.mrf.mxu0
      %v1270 = vadd.f32 0.0, %v1269
      %v1271 = vpop.f32.mrf.mxu0
      %v1272 = vadd.f32 0.0, %v1271
      %1273 = vdwg.mxu0
      %1274 = vmatpush.bf16.msra.mxu0 0
      %1275 = vmatpush.bf16.msra.mxu0 0
      %1276 = vmatpush.bf16.msra.mxu0 0
      %1277 = vmatpush.bf16.msra.mxu0 0
      %1278 = vmatpush.bf16.msra.mxu0 0
      %1279 = vmatpush.bf16.msra.mxu0 0
      %1280 = vmatpush.bf16.msra.mxu0 0
      %1281 = vmatpush.bf16.msra.mxu0 %v1250
      %1282 = vmatmul.bf16.gmra.mxu0 %v1241
      %v1283 = vpop.f32.mrf.mxu0
      %v1284 = vadd.f32 0.0, %v1283
      %v1285 = vpop.f32.mrf.mxu0
      %v1286 = vadd.f32 0.0, %v1285
      %1287 = vmatmul.bf16.gmra.mxu0 %v1244
      %v1288 = vpop.f32.mrf.mxu0
      %v1289 = vadd.f32 0.0, %v1288
      %v1290 = vpop.f32.mrf.mxu0
      %v1291 = vadd.f32 0.0, %v1290
      %1292 = vdwg.mxu0
      %1293 = vmatpush.bf16.msra.mxu0 0
      %1294 = vmatpush.bf16.msra.mxu0 0
      %1295 = vmatpush.bf16.msra.mxu0 0
      %1296 = vmatpush.bf16.msra.mxu0 0
      %1297 = vmatpush.bf16.msra.mxu0 0
      %1298 = vmatpush.bf16.msra.mxu0 0
      %1299 = vmatpush.bf16.msra.mxu0 0
      %1300 = vmatpush.bf16.msra.mxu0 %v1253
      %1301 = vmatmul.bf16.gmra.mxu0 %v1241
      %v1302 = vpop.f32.mrf.mxu0
      %v1303 = vadd.f32 0.0, %v1302
      %v1304 = vpop.f32.mrf.mxu0
      %v1305 = vadd.f32 0.0, %v1304
      %1306 = vmatmul.bf16.gmra.mxu0 %v1244
      %v1307 = vpop.f32.mrf.mxu0
      %v1308 = vadd.f32 0.0, %v1307
      %v1309 = vpop.f32.mrf.mxu0
      %v1310 = vadd.f32 0.0, %v1309
      %1311 = vdwg.mxu0
      %v1312 = vadd.f32 %v1201, %v1265
      %v1313 = vadd.f32 %v1202, %v1284
      %v1314 = vadd.f32 %v1203, %v1303
      %v1315 = vadd.f32 %v1204, %v1267
      %v1316 = vadd.f32 %v1205, %v1286
      %v1317 = vadd.f32 %v1206, %v1305
      %v1318 = vadd.f32 %v1207, %v1270
      %v1319 = vadd.f32 %v1208, %v1289
      %v1320 = vadd.f32 %v1209, %v1308
      %v1321 = vadd.f32 %v1210, %v1272
      %v1322 = vadd.f32 %v1211, %v1291
      %v1323 = vadd.f32 %v1212, %v1310
      %v1324 = vld [vmem:[%s321] sm:$0x77]
      %v1325 = vld [vmem:[%s321 + $0x8] sm:$0x7]
      %s1326 = scalar_lea.vmem %s3, 144
      %v1327 = vld [vmem:[%s1326] sm:$0xf]
      %v1328 = vld [vmem:[%s1326 + $0x4] sm:$0xf]
      %v1329 = vld [vmem:[%s1326 + $0x8] sm:$0xf]
      %v1330 = vld [vmem:[%s1326 + $0xc] sm:$0xf]
      %v1335 = vunpack.c.l.b16 %v1327
      %v1336 = vunpack.c.l.b16 %v1328
      %v1337 = vunpack.c.l.b16 %v1329
      %v1338 = vunpack.c.l.b16 %v1330
      %v1339 = vpack.c.b16 %v1336, %v1335
      %v1340 = vpack.c.b16 %v1338, %v1337
      %v1343 = vunpack.c.l.b16 %v1324
      %v1344 = vunpack.c.h.b16 %v1324
      %v1345 = vunpack.c.l.b16 %v1325
      %v1346 = vpack.c.b16 %v1343, %v1343
      %v1347 = vpack.c.b16 %v1344, %v1344
      %v1348 = vpack.c.b16 %v1345, %v1345
      %v1350 = vsel %vm388, %v1339, 0
      %v1353 = vsel %vm388, %v1340, 0
      %v1356 = vsel %vm395, %v1346, 0
      %v1359 = vsel %vm395, %v1347, 0
      %v1362 = vsel %vm395, %v1348, 0
      %1364 = vmatpush.bf16.msra.mxu0 0
      %1365 = vmatpush.bf16.msra.mxu0 0
      %1366 = vmatpush.bf16.msra.mxu0 0
      %1367 = vmatpush.bf16.msra.mxu0 0
      %1368 = vmatpush.bf16.msra.mxu0 0
      %1369 = vmatpush.bf16.msra.mxu0 0
      %1370 = vmatpush.bf16.msra.mxu0 0
      %1371 = vmatpush.bf16.msra.mxu0 %v1356
      %1372 = vmatmul.bf16.gmra.mxu0 %v1350
      %v1373 = vpop.f32.mrf.mxu0
      %v1374 = vadd.f32 0.0, %v1373
      %v1375 = vpop.f32.mrf.mxu0
      %v1376 = vadd.f32 0.0, %v1375
      %1377 = vmatmul.bf16.gmra.mxu0 %v1353
      %v1378 = vpop.f32.mrf.mxu0
      %v1379 = vadd.f32 0.0, %v1378
      %v1380 = vpop.f32.mrf.mxu0
      %v1381 = vadd.f32 0.0, %v1380
      %1382 = vdwg.mxu0
      %1383 = vmatpush.bf16.msra.mxu0 0
      %1384 = vmatpush.bf16.msra.mxu0 0
      %1385 = vmatpush.bf16.msra.mxu0 0
      %1386 = vmatpush.bf16.msra.mxu0 0
      %1387 = vmatpush.bf16.msra.mxu0 0
      %1388 = vmatpush.bf16.msra.mxu0 0
      %1389 = vmatpush.bf16.msra.mxu0 0
      %1390 = vmatpush.bf16.msra.mxu0 %v1359
      %1391 = vmatmul.bf16.gmra.mxu0 %v1350
      %v1392 = vpop.f32.mrf.mxu0
      %v1393 = vadd.f32 0.0, %v1392
      %v1394 = vpop.f32.mrf.mxu0
      %v1395 = vadd.f32 0.0, %v1394
      %1396 = vmatmul.bf16.gmra.mxu0 %v1353
      %v1397 = vpop.f32.mrf.mxu0
      %v1398 = vadd.f32 0.0, %v1397
      %v1399 = vpop.f32.mrf.mxu0
      %v1400 = vadd.f32 0.0, %v1399
      %1401 = vdwg.mxu0
      %1402 = vmatpush.bf16.msra.mxu0 0
      %1403 = vmatpush.bf16.msra.mxu0 0
      %1404 = vmatpush.bf16.msra.mxu0 0
      %1405 = vmatpush.bf16.msra.mxu0 0
      %1406 = vmatpush.bf16.msra.mxu0 0
      %1407 = vmatpush.bf16.msra.mxu0 0
      %1408 = vmatpush.bf16.msra.mxu0 0
      %1409 = vmatpush.bf16.msra.mxu0 %v1362
      %1410 = vmatmul.bf16.gmra.mxu0 %v1350
      %v1411 = vpop.f32.mrf.mxu0
      %v1412 = vadd.f32 0.0, %v1411
      %v1413 = vpop.f32.mrf.mxu0
      %v1414 = vadd.f32 0.0, %v1413
      %1415 = vmatmul.bf16.gmra.mxu0 %v1353
      %v1416 = vpop.f32.mrf.mxu0
      %v1417 = vadd.f32 0.0, %v1416
      %v1418 = vpop.f32.mrf.mxu0
      %v1419 = vadd.f32 0.0, %v1418
      %1420 = vdwg.mxu0
      %v1421 = vadd.f32 %v1312, %v1374
      %v1422 = vadd.f32 %v1313, %v1393
      %v1423 = vadd.f32 %v1314, %v1412
      %v1424 = vadd.f32 %v1315, %v1376
      %v1425 = vadd.f32 %v1316, %v1395
      %v1426 = vadd.f32 %v1317, %v1414
      %v1427 = vadd.f32 %v1318, %v1379
      %v1428 = vadd.f32 %v1319, %v1398
      %v1429 = vadd.f32 %v1320, %v1417
      %v1430 = vadd.f32 %v1321, %v1381
      %v1431 = vadd.f32 %v1322, %v1400
      %v1432 = vadd.f32 %v1323, %v1419
      %v1433 = vld [vmem:[%s321] sm:$0x77]
      %v1434 = vld [vmem:[%s321 + $0x8] sm:$0x77]
      %s1435 = scalar_lea.vmem %s3, 160
      %v1436 = vld [vmem:[%s1435] sm:$0xf]
      %v1437 = vld [vmem:[%s1435 + $0x4] sm:$0xf]
      %v1438 = vld [vmem:[%s1435 + $0x8] sm:$0xf]
      %v1439 = vld [vmem:[%s1435 + $0xc] sm:$0xf]
      %v1444 = vunpack.c.l.b16 %v1436
      %v1445 = vunpack.c.l.b16 %v1437
      %v1446 = vunpack.c.l.b16 %v1438
      %v1447 = vunpack.c.l.b16 %v1439
      %v1448 = vpack.c.b16 %v1445, %v1444
      %v1449 = vpack.c.b16 %v1447, %v1446
      %v1452 = vunpack.c.l.b16 %v1433
      %v1453 = vunpack.c.h.b16 %v1433
      %v1454 = vunpack.c.l.b16 %v1434
      %v1455 = vunpack.c.h.b16 %v1434
      %v1456 = vpack.c.b16 %v1452, %v1452
      %v1457 = vpack.c.b16 %v1453, %v1453
      %v1458 = vpack.c.b16 %v1454, %v1454
      %v1459 = vpack.c.b16 %v1455, %v1455
      %1460 = vrot.lane.b32.xlu0 %v1456, 127
      %v1461 = vpop.permute.xlu0 %1460
      %1462 = vrot.lane.b32.xlu0 %v1457, 127
      %v1463 = vpop.permute.xlu0 %1462
      %1464 = vrot.lane.b32.xlu0 %v1458, 127
      %v1465 = vpop.permute.xlu0 %1464
      %1466 = vrot.lane.b32.xlu0 %v1459, 127
      %v1467 = vpop.permute.xlu0 %1466
      %v1468 = vsel %vm384, %v1461, %v1463
      %v1469 = vsel %vm384, %v1463, %v1465
      %v1470 = vsel %vm384, %v1465, %v1467
      %v1472 = vsel %vm388, %v1448, 0
      %v1475 = vsel %vm388, %v1449, 0
      %v1478 = vsel %vm395, %v1468, 0
      %v1481 = vsel %vm395, %v1469, 0
      %v1484 = vsel %vm395, %v1470, 0
      %1486 = vmatpush.bf16.msra.mxu0 0
      %1487 = vmatpush.bf16.msra.mxu0 0
      %1488 = vmatpush.bf16.msra.mxu0 0
      %1489 = vmatpush.bf16.msra.mxu0 0
      %1490 = vmatpush.bf16.msra.mxu0 0
      %1491 = vmatpush.bf16.msra.mxu0 0
      %1492 = vmatpush.bf16.msra.mxu0 0
      %1493 = vmatpush.bf16.msra.mxu0 %v1478
      %1494 = vmatmul.bf16.gmra.mxu0 %v1472
      %v1495 = vpop.f32.mrf.mxu0
      %v1496 = vadd.f32 0.0, %v1495
      %v1497 = vpop.f32.mrf.mxu0
      %v1498 = vadd.f32 0.0, %v1497
      %1499 = vmatmul.bf16.gmra.mxu0 %v1475
      %v1500 = vpop.f32.mrf.mxu0
      %v1501 = vadd.f32 0.0, %v1500
      %v1502 = vpop.f32.mrf.mxu0
      %v1503 = vadd.f32 0.0, %v1502
      %1504 = vdwg.mxu0
      %1505 = vmatpush.bf16.msra.mxu0 0
      %1506 = vmatpush.bf16.msra.mxu0 0
      %1507 = vmatpush.bf16.msra.mxu0 0
      %1508 = vmatpush.bf16.msra.mxu0 0
      %1509 = vmatpush.bf16.msra.mxu0 0
      %1510 = vmatpush.bf16.msra.mxu0 0
      %1511 = vmatpush.bf16.msra.mxu0 0
      %1512 = vmatpush.bf16.msra.mxu0 %v1481
      %1513 = vmatmul.bf16.gmra.mxu0 %v1472
      %v1514 = vpop.f32.mrf.mxu0
      %v1515 = vadd.f32 0.0, %v1514
      %v1516 = vpop.f32.mrf.mxu0
      %v1517 = vadd.f32 0.0, %v1516
      %1518 = vmatmul.bf16.gmra.mxu0 %v1475
      %v1519 = vpop.f32.mrf.mxu0
      %v1520 = vadd.f32 0.0, %v1519
      %v1521 = vpop.f32.mrf.mxu0
      %v1522 = vadd.f32 0.0, %v1521
      %1523 = vdwg.mxu0
      %1524 = vmatpush.bf16.msra.mxu0 0
      %1525 = vmatpush.bf16.msra.mxu0 0
      %1526 = vmatpush.bf16.msra.mxu0 0
      %1527 = vmatpush.bf16.msra.mxu0 0
      %1528 = vmatpush.bf16.msra.mxu0 0
      %1529 = vmatpush.bf16.msra.mxu0 0
      %1530 = vmatpush.bf16.msra.mxu0 0
      %1531 = vmatpush.bf16.msra.mxu0 %v1484
      %1532 = vmatmul.bf16.gmra.mxu0 %v1472
      %v1533 = vpop.f32.mrf.mxu0
      %v1534 = vadd.f32 0.0, %v1533
      %v1535 = vpop.f32.mrf.mxu0
      %v1536 = vadd.f32 0.0, %v1535
      %1537 = vmatmul.bf16.gmra.mxu0 %v1475
      %v1538 = vpop.f32.mrf.mxu0
      %v1539 = vadd.f32 0.0, %v1538
      %v1540 = vpop.f32.mrf.mxu0
      %v1541 = vadd.f32 0.0, %v1540
      %1542 = vdwg.mxu0
      %v1543 = vadd.f32 %v1421, %v1496
      %v1544 = vadd.f32 %v1422, %v1515
      %v1545 = vadd.f32 %v1423, %v1534
      %v1546 = vadd.f32 %v1424, %v1498
      %v1547 = vadd.f32 %v1425, %v1517
      %v1548 = vadd.f32 %v1426, %v1536
      %v1549 = vadd.f32 %v1427, %v1501
      %v1550 = vadd.f32 %v1428, %v1520
      %v1551 = vadd.f32 %v1429, %v1539
      %v1552 = vadd.f32 %v1430, %v1503
      %v1553 = vadd.f32 %v1431, %v1522
      %v1554 = vadd.f32 %v1432, %v1541
      %s1555 = scalar_lea.vmem %s3, 176
      %v1556 = vld [vmem:[%s1555] sm:$0xf]
      %v1557 = vld [vmem:[%s1555 + $0x4] sm:$0xf]
      %v1558 = vld [vmem:[%s1555 + $0x8] sm:$0xf]
      %v1559 = vld [vmem:[%s1555 + $0xc] sm:$0xf]
      %v1564 = vunpack.c.l.b16 %v1556
      %v1565 = vunpack.c.l.b16 %v1557
      %v1566 = vunpack.c.l.b16 %v1558
      %v1567 = vunpack.c.l.b16 %v1559
      %v1568 = vpack.c.b16 %v1565, %v1564
      %v1569 = vpack.c.b16 %v1567, %v1566
      %1570 = vrot.lane.b32.xlu0 %v1456, 126
      %v1571 = vpop.permute.xlu0 %1570
      %1572 = vrot.lane.b32.xlu0 %v1457, 126
      %v1573 = vpop.permute.xlu0 %1572
      %1574 = vrot.lane.b32.xlu0 %v1458, 126
      %v1575 = vpop.permute.xlu0 %1574
      %1576 = vrot.lane.b32.xlu0 %v1459, 126
      %v1577 = vpop.permute.xlu0 %1576
      %v1578 = vsel %vm570, %v1571, %v1573
      %v1579 = vsel %vm570, %v1573, %v1575
      %v1580 = vsel %vm570, %v1575, %v1577
      %v1582 = vsel %vm388, %v1568, 0
      %v1585 = vsel %vm388, %v1569, 0
      %v1588 = vsel %vm395, %v1578, 0
      %v1591 = vsel %vm395, %v1579, 0
      %v1594 = vsel %vm395, %v1580, 0
      %1596 = vmatpush.bf16.msra.mxu0 0
      %1597 = vmatpush.bf16.msra.mxu0 0
      %1598 = vmatpush.bf16.msra.mxu0 0
      %1599 = vmatpush.bf16.msra.mxu0 0
      %1600 = vmatpush.bf16.msra.mxu0 0
      %1601 = vmatpush.bf16.msra.mxu0 0
      %1602 = vmatpush.bf16.msra.mxu0 0
      %1603 = vmatpush.bf16.msra.mxu0 %v1588
      %1604 = vmatmul.bf16.gmra.mxu0 %v1582
      %v1605 = vpop.f32.mrf.mxu0
      %v1606 = vadd.f32 0.0, %v1605
      %v1607 = vpop.f32.mrf.mxu0
      %v1608 = vadd.f32 0.0, %v1607
      %1609 = vmatmul.bf16.gmra.mxu0 %v1585
      %v1610 = vpop.f32.mrf.mxu0
      %v1611 = vadd.f32 0.0, %v1610
      %v1612 = vpop.f32.mrf.mxu0
      %v1613 = vadd.f32 0.0, %v1612
      %1614 = vdwg.mxu0
      %1615 = vmatpush.bf16.msra.mxu0 0
      %1616 = vmatpush.bf16.msra.mxu0 0
      %1617 = vmatpush.bf16.msra.mxu0 0
      %1618 = vmatpush.bf16.msra.mxu0 0
      %1619 = vmatpush.bf16.msra.mxu0 0
      %1620 = vmatpush.bf16.msra.mxu0 0
      %1621 = vmatpush.bf16.msra.mxu0 0
      %1622 = vmatpush.bf16.msra.mxu0 %v1591
      %1623 = vmatmul.bf16.gmra.mxu0 %v1582
      %v1624 = vpop.f32.mrf.mxu0
      %v1625 = vadd.f32 0.0, %v1624
      %v1626 = vpop.f32.mrf.mxu0
      %v1627 = vadd.f32 0.0, %v1626
      %1628 = vmatmul.bf16.gmra.mxu0 %v1585
      %v1629 = vpop.f32.mrf.mxu0
      %v1630 = vadd.f32 0.0, %v1629
      %v1631 = vpop.f32.mrf.mxu0
      %v1632 = vadd.f32 0.0, %v1631
      %1633 = vdwg.mxu0
      %1634 = vmatpush.bf16.msra.mxu0 0
      %1635 = vmatpush.bf16.msra.mxu0 0
      %1636 = vmatpush.bf16.msra.mxu0 0
      %1637 = vmatpush.bf16.msra.mxu0 0
      %1638 = vmatpush.bf16.msra.mxu0 0
      %1639 = vmatpush.bf16.msra.mxu0 0
      %1640 = vmatpush.bf16.msra.mxu0 0
      %1641 = vmatpush.bf16.msra.mxu0 %v1594
      %1642 = vmatmul.bf16.gmra.mxu0 %v1582
      %v1643 = vpop.f32.mrf.mxu0
      %v1644 = vadd.f32 0.0, %v1643
      %v1645 = vpop.f32.mrf.mxu0
      %v1646 = vadd.f32 0.0, %v1645
      %1647 = vmatmul.bf16.gmra.mxu0 %v1585
      %v1648 = vpop.f32.mrf.mxu0
      %v1649 = vadd.f32 0.0, %v1648
      %v1650 = vpop.f32.mrf.mxu0
      %v1651 = vadd.f32 0.0, %v1650
      %1652 = vdwg.mxu0
      %v1653 = vadd.f32 %v1543, %v1606
      %v1654 = vadd.f32 %v1544, %v1625
      %v1655 = vadd.f32 %v1545, %v1644
      %v1656 = vadd.f32 %v1546, %v1608
      %v1657 = vadd.f32 %v1547, %v1627
      %v1658 = vadd.f32 %v1548, %v1646
      %v1659 = vadd.f32 %v1549, %v1611
      %v1660 = vadd.f32 %v1550, %v1630
      %v1661 = vadd.f32 %v1551, %v1649
      %v1662 = vadd.f32 %v1552, %v1613
      %v1663 = vadd.f32 %v1553, %v1632
      %v1664 = vadd.f32 %v1554, %v1651
      %s1665 = scalar_lea.vmem %s3, 192
      %v1666 = vld [vmem:[%s1665] sm:$0xf]
      %v1667 = vld [vmem:[%s1665 + $0x4] sm:$0xf]
      %v1668 = vld [vmem:[%s1665 + $0x8] sm:$0xf]
      %v1669 = vld [vmem:[%s1665 + $0xc] sm:$0xf]
      %v1674 = vunpack.c.l.b16 %v1666
      %v1675 = vunpack.c.l.b16 %v1667
      %v1676 = vunpack.c.l.b16 %v1668
      %v1677 = vunpack.c.l.b16 %v1669
      %v1678 = vpack.c.b16 %v1675, %v1674
      %v1679 = vpack.c.b16 %v1677, %v1676
      %1680 = vrot.lane.b32.xlu0 %v1456, 110
      %v1681 = vpop.permute.xlu0 %1680
      %1682 = vrot.lane.b32.xlu0 %v1457, 110
      %v1683 = vpop.permute.xlu0 %1682
      %1684 = vrot.lane.b32.xlu0 %v1458, 110
      %v1685 = vpop.permute.xlu0 %1684
      %1686 = vrot.lane.b32.xlu0 %v1459, 110
      %v1687 = vpop.permute.xlu0 %1686
      %v1688 = vsel %vm681, %v1681, %v1683
      %v1689 = vsel %vm681, %v1683, %v1685
      %v1690 = vsel %vm681, %v1685, %v1687
      %v1692 = vsel %vm388, %v1678, 0
      %v1695 = vsel %vm388, %v1679, 0
      %v1698 = vsel %vm395, %v1688, 0
      %v1701 = vsel %vm395, %v1689, 0
      %v1704 = vsel %vm395, %v1690, 0
      %1706 = vmatpush.bf16.msra.mxu0 0
      %1707 = vmatpush.bf16.msra.mxu0 0
      %1708 = vmatpush.bf16.msra.mxu0 0
      %1709 = vmatpush.bf16.msra.mxu0 0
      %1710 = vmatpush.bf16.msra.mxu0 0
      %1711 = vmatpush.bf16.msra.mxu0 0
      %1712 = vmatpush.bf16.msra.mxu0 0
      %1713 = vmatpush.bf16.msra.mxu0 %v1698
      %1714 = vmatmul.bf16.gmra.mxu0 %v1692
      %v1715 = vpop.f32.mrf.mxu0
      %v1716 = vadd.f32 0.0, %v1715
      %v1717 = vpop.f32.mrf.mxu0
      %v1718 = vadd.f32 0.0, %v1717
      %1719 = vmatmul.bf16.gmra.mxu0 %v1695
      %v1720 = vpop.f32.mrf.mxu0
      %v1721 = vadd.f32 0.0, %v1720
      %v1722 = vpop.f32.mrf.mxu0
      %v1723 = vadd.f32 0.0, %v1722
      %1724 = vdwg.mxu0
      %1725 = vmatpush.bf16.msra.mxu0 0
      %1726 = vmatpush.bf16.msra.mxu0 0
      %1727 = vmatpush.bf16.msra.mxu0 0
      %1728 = vmatpush.bf16.msra.mxu0 0
      %1729 = vmatpush.bf16.msra.mxu0 0
      %1730 = vmatpush.bf16.msra.mxu0 0
      %1731 = vmatpush.bf16.msra.mxu0 0
      %1732 = vmatpush.bf16.msra.mxu0 %v1701
      %1733 = vmatmul.bf16.gmra.mxu0 %v1692
      %v1734 = vpop.f32.mrf.mxu0
      %v1735 = vadd.f32 0.0, %v1734
      %v1736 = vpop.f32.mrf.mxu0
      %v1737 = vadd.f32 0.0, %v1736
      %1738 = vmatmul.bf16.gmra.mxu0 %v1695
      %v1739 = vpop.f32.mrf.mxu0
      %v1740 = vadd.f32 0.0, %v1739
      %v1741 = vpop.f32.mrf.mxu0
      %v1742 = vadd.f32 0.0, %v1741
      %1743 = vdwg.mxu0
      %1744 = vmatpush.bf16.msra.mxu0 0
      %1745 = vmatpush.bf16.msra.mxu0 0
      %1746 = vmatpush.bf16.msra.mxu0 0
      %1747 = vmatpush.bf16.msra.mxu0 0
      %1748 = vmatpush.bf16.msra.mxu0 0
      %1749 = vmatpush.bf16.msra.mxu0 0
      %1750 = vmatpush.bf16.msra.mxu0 0
      %1751 = vmatpush.bf16.msra.mxu0 %v1704
      %1752 = vmatmul.bf16.gmra.mxu0 %v1692
      %v1753 = vpop.f32.mrf.mxu0
      %v1754 = vadd.f32 0.0, %v1753
      %v1755 = vpop.f32.mrf.mxu0
      %v1756 = vadd.f32 0.0, %v1755
      %1757 = vmatmul.bf16.gmra.mxu0 %v1695
      %v1758 = vpop.f32.mrf.mxu0
      %v1759 = vadd.f32 0.0, %v1758
      %v1760 = vpop.f32.mrf.mxu0
      %v1761 = vadd.f32 0.0, %v1760
      %1762 = vdwg.mxu0
      %v1763 = vadd.f32 %v1653, %v1716
      %v1764 = vadd.f32 %v1654, %v1735
      %v1765 = vadd.f32 %v1655, %v1754
      %v1766 = vadd.f32 %v1656, %v1718
      %v1767 = vadd.f32 %v1657, %v1737
      %v1768 = vadd.f32 %v1658, %v1756
      %v1769 = vadd.f32 %v1659, %v1721
      %v1770 = vadd.f32 %v1660, %v1740
      %v1771 = vadd.f32 %v1661, %v1759
      %v1772 = vadd.f32 %v1662, %v1723
      %v1773 = vadd.f32 %v1663, %v1742
      %v1774 = vadd.f32 %v1664, %v1761
      %s1775 = scalar_lea.vmem %s3, 208
      %v1776 = vld [vmem:[%s1775] sm:$0xf]
      %v1777 = vld [vmem:[%s1775 + $0x4] sm:$0xf]
      %v1778 = vld [vmem:[%s1775 + $0x8] sm:$0xf]
      %v1779 = vld [vmem:[%s1775 + $0xc] sm:$0xf]
      %v1784 = vunpack.c.l.b16 %v1776
      %v1785 = vunpack.c.l.b16 %v1777
      %v1786 = vunpack.c.l.b16 %v1778
      %v1787 = vunpack.c.l.b16 %v1779
      %v1788 = vpack.c.b16 %v1785, %v1784
      %v1789 = vpack.c.b16 %v1787, %v1786
      %1790 = vrot.lane.b32.xlu0 %v1456, 109
      %v1791 = vpop.permute.xlu0 %1790
      %1792 = vrot.lane.b32.xlu0 %v1457, 109
      %v1793 = vpop.permute.xlu0 %1792
      %1794 = vrot.lane.b32.xlu0 %v1458, 109
      %v1795 = vpop.permute.xlu0 %1794
      %1796 = vrot.lane.b32.xlu0 %v1459, 109
      %v1797 = vpop.permute.xlu0 %1796
      %v1798 = vsel %vm792, %v1791, %v1793
      %v1799 = vsel %vm792, %v1793, %v1795
      %v1800 = vsel %vm792, %v1795, %v1797
      %v1802 = vsel %vm388, %v1788, 0
      %v1805 = vsel %vm388, %v1789, 0
      %v1808 = vsel %vm395, %v1798, 0
      %v1811 = vsel %vm395, %v1799, 0
      %v1814 = vsel %vm395, %v1800, 0
      %1816 = vmatpush.bf16.msra.mxu0 0
      %1817 = vmatpush.bf16.msra.mxu0 0
      %1818 = vmatpush.bf16.msra.mxu0 0
      %1819 = vmatpush.bf16.msra.mxu0 0
      %1820 = vmatpush.bf16.msra.mxu0 0
      %1821 = vmatpush.bf16.msra.mxu0 0
      %1822 = vmatpush.bf16.msra.mxu0 0
      %1823 = vmatpush.bf16.msra.mxu0 %v1808
      %1824 = vmatmul.bf16.gmra.mxu0 %v1802
      %v1825 = vpop.f32.mrf.mxu0
      %v1826 = vadd.f32 0.0, %v1825
      %v1827 = vpop.f32.mrf.mxu0
      %v1828 = vadd.f32 0.0, %v1827
      %1829 = vmatmul.bf16.gmra.mxu0 %v1805
      %v1830 = vpop.f32.mrf.mxu0
      %v1831 = vadd.f32 0.0, %v1830
      %v1832 = vpop.f32.mrf.mxu0
      %v1833 = vadd.f32 0.0, %v1832
      %1834 = vdwg.mxu0
      %1835 = vmatpush.bf16.msra.mxu0 0
      %1836 = vmatpush.bf16.msra.mxu0 0
      %1837 = vmatpush.bf16.msra.mxu0 0
      %1838 = vmatpush.bf16.msra.mxu0 0
      %1839 = vmatpush.bf16.msra.mxu0 0
      %1840 = vmatpush.bf16.msra.mxu0 0
      %1841 = vmatpush.bf16.msra.mxu0 0
      %1842 = vmatpush.bf16.msra.mxu0 %v1811
      %1843 = vmatmul.bf16.gmra.mxu0 %v1802
      %v1844 = vpop.f32.mrf.mxu0
      %v1845 = vadd.f32 0.0, %v1844
      %v1846 = vpop.f32.mrf.mxu0
      %v1847 = vadd.f32 0.0, %v1846
      %1848 = vmatmul.bf16.gmra.mxu0 %v1805
      %v1849 = vpop.f32.mrf.mxu0
      %v1850 = vadd.f32 0.0, %v1849
      %v1851 = vpop.f32.mrf.mxu0
      %v1852 = vadd.f32 0.0, %v1851
      %1853 = vdwg.mxu0
      %1854 = vmatpush.bf16.msra.mxu0 0
      %1855 = vmatpush.bf16.msra.mxu0 0
      %1856 = vmatpush.bf16.msra.mxu0 0
      %1857 = vmatpush.bf16.msra.mxu0 0
      %1858 = vmatpush.bf16.msra.mxu0 0
      %1859 = vmatpush.bf16.msra.mxu0 0
      %1860 = vmatpush.bf16.msra.mxu0 0
      %1861 = vmatpush.bf16.msra.mxu0 %v1814
      %1862 = vmatmul.bf16.gmra.mxu0 %v1802
      %v1863 = vpop.f32.mrf.mxu0
      %v1864 = vadd.f32 0.0, %v1863
      %v1865 = vpop.f32.mrf.mxu0
      %v1866 = vadd.f32 0.0, %v1865
      %1867 = vmatmul.bf16.gmra.mxu0 %v1805
      %v1868 = vpop.f32.mrf.mxu0
      %v1869 = vadd.f32 0.0, %v1868
      %v1870 = vpop.f32.mrf.mxu0
      %v1871 = vadd.f32 0.0, %v1870
      %1872 = vdwg.mxu0
      %v1873 = vadd.f32 %v1763, %v1826
      %v1874 = vadd.f32 %v1764, %v1845
      %v1875 = vadd.f32 %v1765, %v1864
      %v1876 = vadd.f32 %v1766, %v1828
      %v1877 = vadd.f32 %v1767, %v1847
      %v1878 = vadd.f32 %v1768, %v1866
      %v1879 = vadd.f32 %v1769, %v1831
      %v1880 = vadd.f32 %v1770, %v1850
      %v1881 = vadd.f32 %v1771, %v1869
      %v1882 = vadd.f32 %v1772, %v1833
      %v1883 = vadd.f32 %v1773, %v1852
      %v1884 = vadd.f32 %v1774, %v1871
      %s1885 = scalar_lea.vmem %s3, 224
      %v1886 = vld [vmem:[%s1885] sm:$0xf]
      %v1887 = vld [vmem:[%s1885 + $0x4] sm:$0xf]
      %v1888 = vld [vmem:[%s1885 + $0x8] sm:$0xf]
      %v1889 = vld [vmem:[%s1885 + $0xc] sm:$0xf]
      %v1894 = vunpack.c.l.b16 %v1886
      %v1895 = vunpack.c.l.b16 %v1887
      %v1896 = vunpack.c.l.b16 %v1888
      %v1897 = vunpack.c.l.b16 %v1889
      %v1898 = vpack.c.b16 %v1895, %v1894
      %v1899 = vpack.c.b16 %v1897, %v1896
      %1900 = vrot.lane.b32.xlu0 %v1456, 108
      %v1901 = vpop.permute.xlu0 %1900
      %1902 = vrot.lane.b32.xlu0 %v1457, 108
      %v1903 = vpop.permute.xlu0 %1902
      %1904 = vrot.lane.b32.xlu0 %v1458, 108
      %v1905 = vpop.permute.xlu0 %1904
      %1906 = vrot.lane.b32.xlu0 %v1459, 108
      %v1907 = vpop.permute.xlu0 %1906
      %v1908 = vsel %vm903, %v1901, %v1903
      %v1909 = vsel %vm903, %v1903, %v1905
      %v1910 = vsel %vm903, %v1905, %v1907
      %v1912 = vsel %vm388, %v1898, 0
      %v1915 = vsel %vm388, %v1899, 0
      %v1918 = vsel %vm395, %v1908, 0
      %v1921 = vsel %vm395, %v1909, 0
      %v1924 = vsel %vm395, %v1910, 0
      %1926 = vmatpush.bf16.msra.mxu0 0
      %1927 = vmatpush.bf16.msra.mxu0 0
      %1928 = vmatpush.bf16.msra.mxu0 0
      %1929 = vmatpush.bf16.msra.mxu0 0
      %1930 = vmatpush.bf16.msra.mxu0 0
      %1931 = vmatpush.bf16.msra.mxu0 0
      %1932 = vmatpush.bf16.msra.mxu0 0
      %1933 = vmatpush.bf16.msra.mxu0 %v1918
      %1934 = vmatmul.bf16.gmra.mxu0 %v1912
      %v1935 = vpop.f32.mrf.mxu0
      %v1936 = vadd.f32 0.0, %v1935
      %v1937 = vpop.f32.mrf.mxu0
      %v1938 = vadd.f32 0.0, %v1937
      %1939 = vmatmul.bf16.gmra.mxu0 %v1915
      %v1940 = vpop.f32.mrf.mxu0
      %v1941 = vadd.f32 0.0, %v1940
      %v1942 = vpop.f32.mrf.mxu0
      %v1943 = vadd.f32 0.0, %v1942
      %1944 = vdwg.mxu0
      %1945 = vmatpush.bf16.msra.mxu0 0
      %1946 = vmatpush.bf16.msra.mxu0 0
      %1947 = vmatpush.bf16.msra.mxu0 0
      %1948 = vmatpush.bf16.msra.mxu0 0
      %1949 = vmatpush.bf16.msra.mxu0 0
      %1950 = vmatpush.bf16.msra.mxu0 0
      %1951 = vmatpush.bf16.msra.mxu0 0
      %1952 = vmatpush.bf16.msra.mxu0 %v1921
      %1953 = vmatmul.bf16.gmra.mxu0 %v1912
      %v1954 = vpop.f32.mrf.mxu0
      %v1955 = vadd.f32 0.0, %v1954
      %v1956 = vpop.f32.mrf.mxu0
      %v1957 = vadd.f32 0.0, %v1956
      %1958 = vmatmul.bf16.gmra.mxu0 %v1915
      %v1959 = vpop.f32.mrf.mxu0
      %v1960 = vadd.f32 0.0, %v1959
      %v1961 = vpop.f32.mrf.mxu0
      %v1962 = vadd.f32 0.0, %v1961
      %1963 = vdwg.mxu0
      %1964 = vmatpush.bf16.msra.mxu0 0
      %1965 = vmatpush.bf16.msra.mxu0 0
      %1966 = vmatpush.bf16.msra.mxu0 0
      %1967 = vmatpush.bf16.msra.mxu0 0
      %1968 = vmatpush.bf16.msra.mxu0 0
      %1969 = vmatpush.bf16.msra.mxu0 0
      %1970 = vmatpush.bf16.msra.mxu0 0
      %1971 = vmatpush.bf16.msra.mxu0 %v1924
      %1972 = vmatmul.bf16.gmra.mxu0 %v1912
      %v1973 = vpop.f32.mrf.mxu0
      %v1974 = vadd.f32 0.0, %v1973
      %v1975 = vpop.f32.mrf.mxu0
      %v1976 = vadd.f32 0.0, %v1975
      %1977 = vmatmul.bf16.gmra.mxu0 %v1915
      %v1978 = vpop.f32.mrf.mxu0
      %v1979 = vadd.f32 0.0, %v1978
      %v1980 = vpop.f32.mrf.mxu0
      %v1981 = vadd.f32 0.0, %v1980
      %1982 = vdwg.mxu0
      %v1983 = vadd.f32 %v1873, %v1936
      %v1984 = vadd.f32 %v1874, %v1955
      %v1985 = vadd.f32 %v1875, %v1974
      %v1986 = vadd.f32 %v1876, %v1938
      %v1987 = vadd.f32 %v1877, %v1957
      %v1988 = vadd.f32 %v1878, %v1976
      %v1989 = vadd.f32 %v1879, %v1941
      %v1990 = vadd.f32 %v1880, %v1960
      %v1991 = vadd.f32 %v1881, %v1979
      %v1992 = vadd.f32 %v1882, %v1943
      %v1993 = vadd.f32 %v1883, %v1962
      %v1994 = vadd.f32 %v1884, %v1981
      %s1995 = scalar_lea.vmem %s3, 240
      %v1996 = vld [vmem:[%s1995] sm:$0xf]
      %v1997 = vld [vmem:[%s1995 + $0x4] sm:$0xf]
      %v1998 = vld [vmem:[%s1995 + $0x8] sm:$0xf]
      %v1999 = vld [vmem:[%s1995 + $0xc] sm:$0xf]
      %v2004 = vunpack.c.l.b16 %v1996
      %v2005 = vunpack.c.l.b16 %v1997
      %v2006 = vunpack.c.l.b16 %v1998
      %v2007 = vunpack.c.l.b16 %v1999
      %v2008 = vpack.c.b16 %v2005, %v2004
      %v2009 = vpack.c.b16 %v2007, %v2006
      %2010 = vrot.lane.b32.xlu0 %v1456, 92
      %v2011 = vpop.permute.xlu0 %2010
      %2012 = vrot.lane.b32.xlu0 %v1457, 92
      %v2013 = vpop.permute.xlu0 %2012
      %2014 = vrot.lane.b32.xlu0 %v1458, 92
      %v2015 = vpop.permute.xlu0 %2014
      %2016 = vrot.lane.b32.xlu0 %v1459, 92
      %v2017 = vpop.permute.xlu0 %2016
      %v2018 = vsel %vm1014, %v2011, %v2013
      %v2019 = vsel %vm1014, %v2013, %v2015
      %v2020 = vsel %vm1014, %v2015, %v2017
      %v2022 = vsel %vm388, %v2008, 0
      %v2025 = vsel %vm388, %v2009, 0
      %v2028 = vsel %vm395, %v2018, 0
      %v2031 = vsel %vm395, %v2019, 0
      %v2034 = vsel %vm395, %v2020, 0
      %2036 = vmatpush.bf16.msra.mxu0 0
      %2037 = vmatpush.bf16.msra.mxu0 0
      %2038 = vmatpush.bf16.msra.mxu0 0
      %2039 = vmatpush.bf16.msra.mxu0 0
      %2040 = vmatpush.bf16.msra.mxu0 0
      %2041 = vmatpush.bf16.msra.mxu0 0
      %2042 = vmatpush.bf16.msra.mxu0 0
      %2043 = vmatpush.bf16.msra.mxu0 %v2028
      %2044 = vmatmul.bf16.gmra.mxu0 %v2022
      %v2045 = vpop.f32.mrf.mxu0
      %v2046 = vadd.f32 0.0, %v2045
      %v2047 = vpop.f32.mrf.mxu0
      %v2048 = vadd.f32 0.0, %v2047
      %2049 = vmatmul.bf16.gmra.mxu0 %v2025
      %v2050 = vpop.f32.mrf.mxu0
      %v2051 = vadd.f32 0.0, %v2050
      %v2052 = vpop.f32.mrf.mxu0
      %v2053 = vadd.f32 0.0, %v2052
      %2054 = vdwg.mxu0
      %2055 = vmatpush.bf16.msra.mxu0 0
      %2056 = vmatpush.bf16.msra.mxu0 0
      %2057 = vmatpush.bf16.msra.mxu0 0
      %2058 = vmatpush.bf16.msra.mxu0 0
      %2059 = vmatpush.bf16.msra.mxu0 0
      %2060 = vmatpush.bf16.msra.mxu0 0
      %2061 = vmatpush.bf16.msra.mxu0 0
      %2062 = vmatpush.bf16.msra.mxu0 %v2031
      %2063 = vmatmul.bf16.gmra.mxu0 %v2022
      %v2064 = vpop.f32.mrf.mxu0
      %v2065 = vadd.f32 0.0, %v2064
      %v2066 = vpop.f32.mrf.mxu0
      %v2067 = vadd.f32 0.0, %v2066
      %2068 = vmatmul.bf16.gmra.mxu0 %v2025
      %v2069 = vpop.f32.mrf.mxu0
      %v2070 = vadd.f32 0.0, %v2069
      %v2071 = vpop.f32.mrf.mxu0
      %v2072 = vadd.f32 0.0, %v2071
      %2073 = vdwg.mxu0
      %2074 = vmatpush.bf16.msra.mxu0 0
      %2075 = vmatpush.bf16.msra.mxu0 0
      %2076 = vmatpush.bf16.msra.mxu0 0
      %2077 = vmatpush.bf16.msra.mxu0 0
      %2078 = vmatpush.bf16.msra.mxu0 0
      %2079 = vmatpush.bf16.msra.mxu0 0
      %2080 = vmatpush.bf16.msra.mxu0 0
      %2081 = vmatpush.bf16.msra.mxu0 %v2034
      %2082 = vmatmul.bf16.gmra.mxu0 %v2022
      %v2083 = vpop.f32.mrf.mxu0
      %v2084 = vadd.f32 0.0, %v2083
      %v2085 = vpop.f32.mrf.mxu0
      %v2086 = vadd.f32 0.0, %v2085
      %2087 = vmatmul.bf16.gmra.mxu0 %v2025
      %v2088 = vpop.f32.mrf.mxu0
      %v2089 = vadd.f32 0.0, %v2088
      %v2090 = vpop.f32.mrf.mxu0
      %v2091 = vadd.f32 0.0, %v2090
      %2092 = vdwg.mxu0
      %v2093 = vadd.f32 %v1983, %v2046
      %v2094 = vadd.f32 %v1984, %v2065
      %v2095 = vadd.f32 %v1985, %v2084
      %v2096 = vadd.f32 %v1986, %v2048
      %v2097 = vadd.f32 %v1987, %v2067
      %v2098 = vadd.f32 %v1988, %v2086
      %v2099 = vadd.f32 %v1989, %v2051
      %v2100 = vadd.f32 %v1990, %v2070
      %v2101 = vadd.f32 %v1991, %v2089
      %v2102 = vadd.f32 %v1992, %v2053
      %v2103 = vadd.f32 %v1993, %v2072
      %v2104 = vadd.f32 %v1994, %v2091
      %s2105 = scalar_lea.vmem %s3, 256
      %v2106 = vld [vmem:[%s2105] sm:$0xf]
      %v2107 = vld [vmem:[%s2105 + $0x4] sm:$0xf]
      %v2108 = vld [vmem:[%s2105 + $0x8] sm:$0xf]
      %v2109 = vld [vmem:[%s2105 + $0xc] sm:$0xf]
      %v2114 = vunpack.c.l.b16 %v2106
      %v2115 = vunpack.c.l.b16 %v2107
      %v2116 = vunpack.c.l.b16 %v2108
      %v2117 = vunpack.c.l.b16 %v2109
      %v2118 = vpack.c.b16 %v2115, %v2114
      %v2119 = vpack.c.b16 %v2117, %v2116
      %2120 = vrot.lane.b32.xlu0 %v1456, 91
      %v2121 = vpop.permute.xlu0 %2120
      %2122 = vrot.lane.b32.xlu0 %v1457, 91
      %v2123 = vpop.permute.xlu0 %2122
      %2124 = vrot.lane.b32.xlu0 %v1458, 91
      %v2125 = vpop.permute.xlu0 %2124
      %2126 = vrot.lane.b32.xlu0 %v1459, 91
      %v2127 = vpop.permute.xlu0 %2126
      %v2128 = vsel %vm1125, %v2121, %v2123
      %v2129 = vsel %vm1125, %v2123, %v2125
      %v2130 = vsel %vm1125, %v2125, %v2127
      %v2132 = vsel %vm388, %v2118, 0
      %v2135 = vsel %vm388, %v2119, 0
      %v2138 = vsel %vm395, %v2128, 0
      %v2141 = vsel %vm395, %v2129, 0
      %v2144 = vsel %vm395, %v2130, 0
      %2146 = vmatpush.bf16.msra.mxu0 0
      %2147 = vmatpush.bf16.msra.mxu0 0
      %2148 = vmatpush.bf16.msra.mxu0 0
      %2149 = vmatpush.bf16.msra.mxu0 0
      %2150 = vmatpush.bf16.msra.mxu0 0
      %2151 = vmatpush.bf16.msra.mxu0 0
      %2152 = vmatpush.bf16.msra.mxu0 0
      %2153 = vmatpush.bf16.msra.mxu0 %v2138
      %2154 = vmatmul.bf16.gmra.mxu0 %v2132
      %v2155 = vpop.f32.mrf.mxu0
      %v2156 = vadd.f32 0.0, %v2155
      %v2157 = vpop.f32.mrf.mxu0
      %v2158 = vadd.f32 0.0, %v2157
      %2159 = vmatmul.bf16.gmra.mxu0 %v2135
      %v2160 = vpop.f32.mrf.mxu0
      %v2161 = vadd.f32 0.0, %v2160
      %v2162 = vpop.f32.mrf.mxu0
      %v2163 = vadd.f32 0.0, %v2162
      %2164 = vdwg.mxu0
      %2165 = vmatpush.bf16.msra.mxu0 0
      %2166 = vmatpush.bf16.msra.mxu0 0
      %2167 = vmatpush.bf16.msra.mxu0 0
      %2168 = vmatpush.bf16.msra.mxu0 0
      %2169 = vmatpush.bf16.msra.mxu0 0
      %2170 = vmatpush.bf16.msra.mxu0 0
      %2171 = vmatpush.bf16.msra.mxu0 0
      %2172 = vmatpush.bf16.msra.mxu0 %v2141
      %2173 = vmatmul.bf16.gmra.mxu0 %v2132
      %v2174 = vpop.f32.mrf.mxu0
      %v2175 = vadd.f32 0.0, %v2174
      %v2176 = vpop.f32.mrf.mxu0
      %v2177 = vadd.f32 0.0, %v2176
      %2178 = vmatmul.bf16.gmra.mxu0 %v2135
      %v2179 = vpop.f32.mrf.mxu0
      %v2180 = vadd.f32 0.0, %v2179
      %v2181 = vpop.f32.mrf.mxu0
      %v2182 = vadd.f32 0.0, %v2181
      %2183 = vdwg.mxu0
      %2184 = vmatpush.bf16.msra.mxu0 0
      %2185 = vmatpush.bf16.msra.mxu0 0
      %2186 = vmatpush.bf16.msra.mxu0 0
      %2187 = vmatpush.bf16.msra.mxu0 0
      %2188 = vmatpush.bf16.msra.mxu0 0
      %2189 = vmatpush.bf16.msra.mxu0 0
      %2190 = vmatpush.bf16.msra.mxu0 0
      %2191 = vmatpush.bf16.msra.mxu0 %v2144
      %2192 = vmatmul.bf16.gmra.mxu0 %v2132
      %v2193 = vpop.f32.mrf.mxu0
      %v2194 = vadd.f32 0.0, %v2193
      %v2195 = vpop.f32.mrf.mxu0
      %v2196 = vadd.f32 0.0, %v2195
      %2197 = vmatmul.bf16.gmra.mxu0 %v2135
      %v2198 = vpop.f32.mrf.mxu0
      %v2199 = vadd.f32 0.0, %v2198
      %v2200 = vpop.f32.mrf.mxu0
      %v2201 = vadd.f32 0.0, %v2200
      %2202 = vdwg.mxu0
      %v2203 = vadd.f32 %v2093, %v2156
      %v2204 = vadd.f32 %v2094, %v2175
      %v2205 = vadd.f32 %v2095, %v2194
      %v2206 = vadd.f32 %v2096, %v2158
      %v2207 = vadd.f32 %v2097, %v2177
      %v2208 = vadd.f32 %v2098, %v2196
      %v2209 = vadd.f32 %v2099, %v2161
      %v2210 = vadd.f32 %v2100, %v2180
      %v2211 = vadd.f32 %v2101, %v2199
      %v2212 = vadd.f32 %v2102, %v2163
      %v2213 = vadd.f32 %v2103, %v2182
      %v2214 = vadd.f32 %v2104, %v2201
      %s2215 = scalar_lea.vmem %s3, 272
      %v2216 = vld [vmem:[%s2215] sm:$0xf]
      %v2217 = vld [vmem:[%s2215 + $0x4] sm:$0xf]
      %v2218 = vld [vmem:[%s2215 + $0x8] sm:$0xf]
      %v2219 = vld [vmem:[%s2215 + $0xc] sm:$0xf]
      %v2224 = vunpack.c.l.b16 %v2216
      %v2225 = vunpack.c.l.b16 %v2217
      %v2226 = vunpack.c.l.b16 %v2218
      %v2227 = vunpack.c.l.b16 %v2219
      %v2228 = vpack.c.b16 %v2225, %v2224
      %v2229 = vpack.c.b16 %v2227, %v2226
      %2230 = vrot.lane.b32.xlu0 %v1456, 90
      %v2231 = vpop.permute.xlu0 %2230
      %2232 = vrot.lane.b32.xlu0 %v1457, 90
      %v2233 = vpop.permute.xlu0 %2232
      %2234 = vrot.lane.b32.xlu0 %v1458, 90
      %v2235 = vpop.permute.xlu0 %2234
      %2236 = vrot.lane.b32.xlu0 %v1459, 90
      %v2237 = vpop.permute.xlu0 %2236
      %v2238 = vsel %vm1236, %v2231, %v2233
      %v2239 = vsel %vm1236, %v2233, %v2235
      %v2240 = vsel %vm1236, %v2235, %v2237
      %v2242 = vsel %vm388, %v2228, 0
      %v2245 = vsel %vm388, %v2229, 0
      %v2248 = vsel %vm395, %v2238, 0
      %v2251 = vsel %vm395, %v2239, 0
      %v2254 = vsel %vm395, %v2240, 0
      %2256 = vmatpush.bf16.msra.mxu0 0
      %2257 = vmatpush.bf16.msra.mxu0 0
      %2258 = vmatpush.bf16.msra.mxu0 0
      %2259 = vmatpush.bf16.msra.mxu0 0
      %2260 = vmatpush.bf16.msra.mxu0 0
      %2261 = vmatpush.bf16.msra.mxu0 0
      %2262 = vmatpush.bf16.msra.mxu0 0
      %2263 = vmatpush.bf16.msra.mxu0 %v2248
      %2264 = vmatmul.bf16.gmra.mxu0 %v2242
      %v2265 = vpop.f32.mrf.mxu0
      %v2266 = vadd.f32 0.0, %v2265
      %v2267 = vpop.f32.mrf.mxu0
      %v2268 = vadd.f32 0.0, %v2267
      %2269 = vmatmul.bf16.gmra.mxu0 %v2245
      %v2270 = vpop.f32.mrf.mxu0
      %v2271 = vadd.f32 0.0, %v2270
      %v2272 = vpop.f32.mrf.mxu0
      %v2273 = vadd.f32 0.0, %v2272
      %2274 = vdwg.mxu0
      %2275 = vmatpush.bf16.msra.mxu0 0
      %2276 = vmatpush.bf16.msra.mxu0 0
      %2277 = vmatpush.bf16.msra.mxu0 0
      %2278 = vmatpush.bf16.msra.mxu0 0
      %2279 = vmatpush.bf16.msra.mxu0 0
      %2280 = vmatpush.bf16.msra.mxu0 0
      %2281 = vmatpush.bf16.msra.mxu0 0
      %2282 = vmatpush.bf16.msra.mxu0 %v2251
      %2283 = vmatmul.bf16.gmra.mxu0 %v2242
      %v2284 = vpop.f32.mrf.mxu0
      %v2285 = vadd.f32 0.0, %v2284
      %v2286 = vpop.f32.mrf.mxu0
      %v2287 = vadd.f32 0.0, %v2286
      %2288 = vmatmul.bf16.gmra.mxu0 %v2245
      %v2289 = vpop.f32.mrf.mxu0
      %v2290 = vadd.f32 0.0, %v2289
      %v2291 = vpop.f32.mrf.mxu0
      %v2292 = vadd.f32 0.0, %v2291
      %2293 = vdwg.mxu0
      %2294 = vmatpush.bf16.msra.mxu0 0
      %2295 = vmatpush.bf16.msra.mxu0 0
      %2296 = vmatpush.bf16.msra.mxu0 0
      %2297 = vmatpush.bf16.msra.mxu0 0
      %2298 = vmatpush.bf16.msra.mxu0 0
      %2299 = vmatpush.bf16.msra.mxu0 0
      %2300 = vmatpush.bf16.msra.mxu0 0
      %2301 = vmatpush.bf16.msra.mxu0 %v2254
      %2302 = vmatmul.bf16.gmra.mxu0 %v2242
      %v2303 = vpop.f32.mrf.mxu0
      %v2304 = vadd.f32 0.0, %v2303
      %v2305 = vpop.f32.mrf.mxu0
      %v2306 = vadd.f32 0.0, %v2305
      %2307 = vmatmul.bf16.gmra.mxu0 %v2245
      %v2308 = vpop.f32.mrf.mxu0
      %v2309 = vadd.f32 0.0, %v2308
      %v2310 = vpop.f32.mrf.mxu0
      %v2311 = vadd.f32 0.0, %v2310
      %2312 = vdwg.mxu0
      %v2313 = vadd.f32 %v2203, %v2266
      %v2314 = vadd.f32 %v2204, %v2285
      %v2315 = vadd.f32 %v2205, %v2304
      %v2316 = vadd.f32 %v2206, %v2268
      %v2317 = vadd.f32 %v2207, %v2287
      %v2318 = vadd.f32 %v2208, %v2306
      %v2319 = vadd.f32 %v2209, %v2271
      %v2320 = vadd.f32 %v2210, %v2290
      %v2321 = vadd.f32 %v2211, %v2309
      %v2322 = vadd.f32 %v2212, %v2273
      %v2323 = vadd.f32 %v2213, %v2292
      %v2324 = vadd.f32 %v2214, %v2311
      %v2325 = vld [vmem:[%s332] sm:$0x77]
      %v2326 = vld [vmem:[%s332 + $0x8] sm:$0x7]
      %s2327 = scalar_lea.vmem %s3, 288
      %v2328 = vld [vmem:[%s2327] sm:$0xf]
      %v2329 = vld [vmem:[%s2327 + $0x4] sm:$0xf]
      %v2330 = vld [vmem:[%s2327 + $0x8] sm:$0xf]
      %v2331 = vld [vmem:[%s2327 + $0xc] sm:$0xf]
      %v2336 = vunpack.c.l.b16 %v2328
      %v2337 = vunpack.c.l.b16 %v2329
      %v2338 = vunpack.c.l.b16 %v2330
      %v2339 = vunpack.c.l.b16 %v2331
      %v2340 = vpack.c.b16 %v2337, %v2336
      %v2341 = vpack.c.b16 %v2339, %v2338
      %v2344 = vunpack.c.l.b16 %v2325
      %v2345 = vunpack.c.h.b16 %v2325
      %v2346 = vunpack.c.l.b16 %v2326
      %v2347 = vpack.c.b16 %v2344, %v2344
      %v2348 = vpack.c.b16 %v2345, %v2345
      %v2349 = vpack.c.b16 %v2346, %v2346
      %v2351 = vsel %vm388, %v2340, 0
      %v2354 = vsel %vm388, %v2341, 0
      %v2357 = vsel %vm395, %v2347, 0
      %v2360 = vsel %vm395, %v2348, 0
      %v2363 = vsel %vm395, %v2349, 0
      %2365 = vmatpush.bf16.msra.mxu0 0
      %2366 = vmatpush.bf16.msra.mxu0 0
      %2367 = vmatpush.bf16.msra.mxu0 0
      %2368 = vmatpush.bf16.msra.mxu0 0
      %2369 = vmatpush.bf16.msra.mxu0 0
      %2370 = vmatpush.bf16.msra.mxu0 0
      %2371 = vmatpush.bf16.msra.mxu0 0
      %2372 = vmatpush.bf16.msra.mxu0 %v2357
      %2373 = vmatmul.bf16.gmra.mxu0 %v2351
      %v2374 = vpop.f32.mrf.mxu0
      %v2375 = vadd.f32 0.0, %v2374
      %v2376 = vpop.f32.mrf.mxu0
      %v2377 = vadd.f32 0.0, %v2376
      %2378 = vmatmul.bf16.gmra.mxu0 %v2354
      %v2379 = vpop.f32.mrf.mxu0
      %v2380 = vadd.f32 0.0, %v2379
      %v2381 = vpop.f32.mrf.mxu0
      %v2382 = vadd.f32 0.0, %v2381
      %2383 = vdwg.mxu0
      %2384 = vmatpush.bf16.msra.mxu0 0
      %2385 = vmatpush.bf16.msra.mxu0 0
      %2386 = vmatpush.bf16.msra.mxu0 0
      %2387 = vmatpush.bf16.msra.mxu0 0
      %2388 = vmatpush.bf16.msra.mxu0 0
      %2389 = vmatpush.bf16.msra.mxu0 0
      %2390 = vmatpush.bf16.msra.mxu0 0
      %2391 = vmatpush.bf16.msra.mxu0 %v2360
      %2392 = vmatmul.bf16.gmra.mxu0 %v2351
      %v2393 = vpop.f32.mrf.mxu0
      %v2394 = vadd.f32 0.0, %v2393
      %v2395 = vpop.f32.mrf.mxu0
      %v2396 = vadd.f32 0.0, %v2395
      %2397 = vmatmul.bf16.gmra.mxu0 %v2354
      %v2398 = vpop.f32.mrf.mxu0
      %v2399 = vadd.f32 0.0, %v2398
      %v2400 = vpop.f32.mrf.mxu0
      %v2401 = vadd.f32 0.0, %v2400
      %2402 = vdwg.mxu0
      %2403 = vmatpush.bf16.msra.mxu0 0
      %2404 = vmatpush.bf16.msra.mxu0 0
      %2405 = vmatpush.bf16.msra.mxu0 0
      %2406 = vmatpush.bf16.msra.mxu0 0
      %2407 = vmatpush.bf16.msra.mxu0 0
      %2408 = vmatpush.bf16.msra.mxu0 0
      %2409 = vmatpush.bf16.msra.mxu0 0
      %2410 = vmatpush.bf16.msra.mxu0 %v2363
      %2411 = vmatmul.bf16.gmra.mxu0 %v2351
      %v2412 = vpop.f32.mrf.mxu0
      %v2413 = vadd.f32 0.0, %v2412
      %v2414 = vpop.f32.mrf.mxu0
      %v2415 = vadd.f32 0.0, %v2414
      %2416 = vmatmul.bf16.gmra.mxu0 %v2354
      %v2417 = vpop.f32.mrf.mxu0
      %v2418 = vadd.f32 0.0, %v2417
      %v2419 = vpop.f32.mrf.mxu0
      %v2420 = vadd.f32 0.0, %v2419
      %2421 = vdwg.mxu0
      %v2422 = vadd.f32 %v2313, %v2375
      %v2423 = vadd.f32 %v2314, %v2394
      %v2424 = vadd.f32 %v2315, %v2413
      %v2425 = vadd.f32 %v2316, %v2377
      %v2426 = vadd.f32 %v2317, %v2396
      %v2427 = vadd.f32 %v2318, %v2415
      %v2428 = vadd.f32 %v2319, %v2380
      %v2429 = vadd.f32 %v2320, %v2399
      %v2430 = vadd.f32 %v2321, %v2418
      %v2431 = vadd.f32 %v2322, %v2382
      %v2432 = vadd.f32 %v2323, %v2401
      %v2433 = vadd.f32 %v2324, %v2420
      %v2434 = vld [vmem:[%s332] sm:$0x77]
      %v2435 = vld [vmem:[%s332 + $0x8] sm:$0x77]
      %s2436 = scalar_lea.vmem %s3, 304
      %v2437 = vld [vmem:[%s2436] sm:$0xf]
      %v2438 = vld [vmem:[%s2436 + $0x4] sm:$0xf]
      %v2439 = vld [vmem:[%s2436 + $0x8] sm:$0xf]
      %v2440 = vld [vmem:[%s2436 + $0xc] sm:$0xf]
      %v2445 = vunpack.c.l.b16 %v2437
      %v2446 = vunpack.c.l.b16 %v2438
      %v2447 = vunpack.c.l.b16 %v2439
      %v2448 = vunpack.c.l.b16 %v2440
      %v2449 = vpack.c.b16 %v2446, %v2445
      %v2450 = vpack.c.b16 %v2448, %v2447
      %v2453 = vunpack.c.l.b16 %v2434
      %v2454 = vunpack.c.h.b16 %v2434
      %v2455 = vunpack.c.l.b16 %v2435
      %v2456 = vunpack.c.h.b16 %v2435
      %v2457 = vpack.c.b16 %v2453, %v2453
      %v2458 = vpack.c.b16 %v2454, %v2454
      %v2459 = vpack.c.b16 %v2455, %v2455
      %v2460 = vpack.c.b16 %v2456, %v2456
      %2461 = vrot.lane.b32.xlu0 %v2457, 127
      %v2462 = vpop.permute.xlu0 %2461
      %2463 = vrot.lane.b32.xlu0 %v2458, 127
      %v2464 = vpop.permute.xlu0 %2463
      %2465 = vrot.lane.b32.xlu0 %v2459, 127
      %v2466 = vpop.permute.xlu0 %2465
      %2467 = vrot.lane.b32.xlu0 %v2460, 127
      %v2468 = vpop.permute.xlu0 %2467
      %v2469 = vsel %vm384, %v2462, %v2464
      %v2470 = vsel %vm384, %v2464, %v2466
      %v2471 = vsel %vm384, %v2466, %v2468
      %v2473 = vsel %vm388, %v2449, 0
      %v2476 = vsel %vm388, %v2450, 0
      %v2479 = vsel %vm395, %v2469, 0
      %v2482 = vsel %vm395, %v2470, 0
      %v2485 = vsel %vm395, %v2471, 0
      %2487 = vmatpush.bf16.msra.mxu0 0
      %2488 = vmatpush.bf16.msra.mxu0 0
      %2489 = vmatpush.bf16.msra.mxu0 0
      %2490 = vmatpush.bf16.msra.mxu0 0
      %2491 = vmatpush.bf16.msra.mxu0 0
      %2492 = vmatpush.bf16.msra.mxu0 0
      %2493 = vmatpush.bf16.msra.mxu0 0
      %2494 = vmatpush.bf16.msra.mxu0 %v2479
      %2495 = vmatmul.bf16.gmra.mxu0 %v2473
      %v2496 = vpop.f32.mrf.mxu0
      %v2497 = vadd.f32 0.0, %v2496
      %v2498 = vpop.f32.mrf.mxu0
      %v2499 = vadd.f32 0.0, %v2498
      %2500 = vmatmul.bf16.gmra.mxu0 %v2476
      %v2501 = vpop.f32.mrf.mxu0
      %v2502 = vadd.f32 0.0, %v2501
      %v2503 = vpop.f32.mrf.mxu0
      %v2504 = vadd.f32 0.0, %v2503
      %2505 = vdwg.mxu0
      %2506 = vmatpush.bf16.msra.mxu0 0
      %2507 = vmatpush.bf16.msra.mxu0 0
      %2508 = vmatpush.bf16.msra.mxu0 0
      %2509 = vmatpush.bf16.msra.mxu0 0
      %2510 = vmatpush.bf16.msra.mxu0 0
      %2511 = vmatpush.bf16.msra.mxu0 0
      %2512 = vmatpush.bf16.msra.mxu0 0
      %2513 = vmatpush.bf16.msra.mxu0 %v2482
      %2514 = vmatmul.bf16.gmra.mxu0 %v2473
      %v2515 = vpop.f32.mrf.mxu0
      %v2516 = vadd.f32 0.0, %v2515
      %v2517 = vpop.f32.mrf.mxu0
      %v2518 = vadd.f32 0.0, %v2517
      %2519 = vmatmul.bf16.gmra.mxu0 %v2476
      %v2520 = vpop.f32.mrf.mxu0
      %v2521 = vadd.f32 0.0, %v2520
      %v2522 = vpop.f32.mrf.mxu0
      %v2523 = vadd.f32 0.0, %v2522
      %2524 = vdwg.mxu0
      %2525 = vmatpush.bf16.msra.mxu0 0
      %2526 = vmatpush.bf16.msra.mxu0 0
      %2527 = vmatpush.bf16.msra.mxu0 0
      %2528 = vmatpush.bf16.msra.mxu0 0
      %2529 = vmatpush.bf16.msra.mxu0 0
      %2530 = vmatpush.bf16.msra.mxu0 0
      %2531 = vmatpush.bf16.msra.mxu0 0
      %2532 = vmatpush.bf16.msra.mxu0 %v2485
      %2533 = vmatmul.bf16.gmra.mxu0 %v2473
      %v2534 = vpop.f32.mrf.mxu0
      %v2535 = vadd.f32 0.0, %v2534
      %v2536 = vpop.f32.mrf.mxu0
      %v2537 = vadd.f32 0.0, %v2536
      %2538 = vmatmul.bf16.gmra.mxu0 %v2476
      %v2539 = vpop.f32.mrf.mxu0
      %v2540 = vadd.f32 0.0, %v2539
      %v2541 = vpop.f32.mrf.mxu0
      %v2542 = vadd.f32 0.0, %v2541
      %2543 = vdwg.mxu0
      %v2544 = vadd.f32 %v2422, %v2497
      %v2545 = vadd.f32 %v2423, %v2516
      %v2546 = vadd.f32 %v2424, %v2535
      %v2547 = vadd.f32 %v2425, %v2499
      %v2548 = vadd.f32 %v2426, %v2518
      %v2549 = vadd.f32 %v2427, %v2537
      %v2550 = vadd.f32 %v2428, %v2502
      %v2551 = vadd.f32 %v2429, %v2521
      %v2552 = vadd.f32 %v2430, %v2540
      %v2553 = vadd.f32 %v2431, %v2504
      %v2554 = vadd.f32 %v2432, %v2523
      %v2555 = vadd.f32 %v2433, %v2542
      %s2556 = scalar_lea.vmem %s3, 320
      %v2557 = vld [vmem:[%s2556] sm:$0xf]
      %v2558 = vld [vmem:[%s2556 + $0x4] sm:$0xf]
      %v2559 = vld [vmem:[%s2556 + $0x8] sm:$0xf]
      %v2560 = vld [vmem:[%s2556 + $0xc] sm:$0xf]
      %v2565 = vunpack.c.l.b16 %v2557
      %v2566 = vunpack.c.l.b16 %v2558
      %v2567 = vunpack.c.l.b16 %v2559
      %v2568 = vunpack.c.l.b16 %v2560
      %v2569 = vpack.c.b16 %v2566, %v2565
      %v2570 = vpack.c.b16 %v2568, %v2567
      %2571 = vrot.lane.b32.xlu0 %v2457, 126
      %v2572 = vpop.permute.xlu0 %2571
      %2573 = vrot.lane.b32.xlu0 %v2458, 126
      %v2574 = vpop.permute.xlu0 %2573
      %2575 = vrot.lane.b32.xlu0 %v2459, 126
      %v2576 = vpop.permute.xlu0 %2575
      %2577 = vrot.lane.b32.xlu0 %v2460, 126
      %v2578 = vpop.permute.xlu0 %2577
      %v2579 = vsel %vm570, %v2572, %v2574
      %v2580 = vsel %vm570, %v2574, %v2576
      %v2581 = vsel %vm570, %v2576, %v2578
      %v2583 = vsel %vm388, %v2569, 0
      %v2586 = vsel %vm388, %v2570, 0
      %v2589 = vsel %vm395, %v2579, 0
      %v2592 = vsel %vm395, %v2580, 0
      %v2595 = vsel %vm395, %v2581, 0
      %2597 = vmatpush.bf16.msra.mxu0 0
      %2598 = vmatpush.bf16.msra.mxu0 0
      %2599 = vmatpush.bf16.msra.mxu0 0
      %2600 = vmatpush.bf16.msra.mxu0 0
      %2601 = vmatpush.bf16.msra.mxu0 0
      %2602 = vmatpush.bf16.msra.mxu0 0
      %2603 = vmatpush.bf16.msra.mxu0 0
      %2604 = vmatpush.bf16.msra.mxu0 %v2589
      %2605 = vmatmul.bf16.gmra.mxu0 %v2583
      %v2606 = vpop.f32.mrf.mxu0
      %v2607 = vadd.f32 0.0, %v2606
      %v2608 = vpop.f32.mrf.mxu0
      %v2609 = vadd.f32 0.0, %v2608
      %2610 = vmatmul.bf16.gmra.mxu0 %v2586
      %v2611 = vpop.f32.mrf.mxu0
      %v2612 = vadd.f32 0.0, %v2611
      %v2613 = vpop.f32.mrf.mxu0
      %v2614 = vadd.f32 0.0, %v2613
      %2615 = vdwg.mxu0
      %2616 = vmatpush.bf16.msra.mxu0 0
      %2617 = vmatpush.bf16.msra.mxu0 0
      %2618 = vmatpush.bf16.msra.mxu0 0
      %2619 = vmatpush.bf16.msra.mxu0 0
      %2620 = vmatpush.bf16.msra.mxu0 0
      %2621 = vmatpush.bf16.msra.mxu0 0
      %2622 = vmatpush.bf16.msra.mxu0 0
      %2623 = vmatpush.bf16.msra.mxu0 %v2592
      %2624 = vmatmul.bf16.gmra.mxu0 %v2583
      %v2625 = vpop.f32.mrf.mxu0
      %v2626 = vadd.f32 0.0, %v2625
      %v2627 = vpop.f32.mrf.mxu0
      %v2628 = vadd.f32 0.0, %v2627
      %2629 = vmatmul.bf16.gmra.mxu0 %v2586
      %v2630 = vpop.f32.mrf.mxu0
      %v2631 = vadd.f32 0.0, %v2630
      %v2632 = vpop.f32.mrf.mxu0
      %v2633 = vadd.f32 0.0, %v2632
      %2634 = vdwg.mxu0
      %2635 = vmatpush.bf16.msra.mxu0 0
      %2636 = vmatpush.bf16.msra.mxu0 0
      %2637 = vmatpush.bf16.msra.mxu0 0
      %2638 = vmatpush.bf16.msra.mxu0 0
      %2639 = vmatpush.bf16.msra.mxu0 0
      %2640 = vmatpush.bf16.msra.mxu0 0
      %2641 = vmatpush.bf16.msra.mxu0 0
      %2642 = vmatpush.bf16.msra.mxu0 %v2595
      %2643 = vmatmul.bf16.gmra.mxu0 %v2583
      %v2644 = vpop.f32.mrf.mxu0
      %v2645 = vadd.f32 0.0, %v2644
      %v2646 = vpop.f32.mrf.mxu0
      %v2647 = vadd.f32 0.0, %v2646
      %2648 = vmatmul.bf16.gmra.mxu0 %v2586
      %v2649 = vpop.f32.mrf.mxu0
      %v2650 = vadd.f32 0.0, %v2649
      %v2651 = vpop.f32.mrf.mxu0
      %v2652 = vadd.f32 0.0, %v2651
      %2653 = vdwg.mxu0
      %v2654 = vadd.f32 %v2544, %v2607
      %v2655 = vadd.f32 %v2545, %v2626
      %v2656 = vadd.f32 %v2546, %v2645
      %v2657 = vadd.f32 %v2547, %v2609
      %v2658 = vadd.f32 %v2548, %v2628
      %v2659 = vadd.f32 %v2549, %v2647
      %v2660 = vadd.f32 %v2550, %v2612
      %v2661 = vadd.f32 %v2551, %v2631
      %v2662 = vadd.f32 %v2552, %v2650
      %v2663 = vadd.f32 %v2553, %v2614
      %v2664 = vadd.f32 %v2554, %v2633
      %v2665 = vadd.f32 %v2555, %v2652
      %s2666 = scalar_lea.vmem %s3, 336
      %v2667 = vld [vmem:[%s2666] sm:$0xf]
      %v2668 = vld [vmem:[%s2666 + $0x4] sm:$0xf]
      %v2669 = vld [vmem:[%s2666 + $0x8] sm:$0xf]
      %v2670 = vld [vmem:[%s2666 + $0xc] sm:$0xf]
      %v2675 = vunpack.c.l.b16 %v2667
      %v2676 = vunpack.c.l.b16 %v2668
      %v2677 = vunpack.c.l.b16 %v2669
      %v2678 = vunpack.c.l.b16 %v2670
      %v2679 = vpack.c.b16 %v2676, %v2675
      %v2680 = vpack.c.b16 %v2678, %v2677
      %2681 = vrot.lane.b32.xlu0 %v2457, 110
      %v2682 = vpop.permute.xlu0 %2681
      %2683 = vrot.lane.b32.xlu0 %v2458, 110
      %v2684 = vpop.permute.xlu0 %2683
      %2685 = vrot.lane.b32.xlu0 %v2459, 110
      %v2686 = vpop.permute.xlu0 %2685
      %2687 = vrot.lane.b32.xlu0 %v2460, 110
      %v2688 = vpop.permute.xlu0 %2687
      %v2689 = vsel %vm681, %v2682, %v2684
      %v2690 = vsel %vm681, %v2684, %v2686
      %v2691 = vsel %vm681, %v2686, %v2688
      %v2693 = vsel %vm388, %v2679, 0
      %v2696 = vsel %vm388, %v2680, 0
      %v2699 = vsel %vm395, %v2689, 0
      %v2702 = vsel %vm395, %v2690, 0
      %v2705 = vsel %vm395, %v2691, 0
      %2707 = vmatpush.bf16.msra.mxu0 0
      %2708 = vmatpush.bf16.msra.mxu0 0
      %2709 = vmatpush.bf16.msra.mxu0 0
      %2710 = vmatpush.bf16.msra.mxu0 0
      %2711 = vmatpush.bf16.msra.mxu0 0
      %2712 = vmatpush.bf16.msra.mxu0 0
      %2713 = vmatpush.bf16.msra.mxu0 0
      %2714 = vmatpush.bf16.msra.mxu0 %v2699
      %2715 = vmatmul.bf16.gmra.mxu0 %v2693
      %v2716 = vpop.f32.mrf.mxu0
      %v2717 = vadd.f32 0.0, %v2716
      %v2718 = vpop.f32.mrf.mxu0
      %v2719 = vadd.f32 0.0, %v2718
      %2720 = vmatmul.bf16.gmra.mxu0 %v2696
      %v2721 = vpop.f32.mrf.mxu0
      %v2722 = vadd.f32 0.0, %v2721
      %v2723 = vpop.f32.mrf.mxu0
      %v2724 = vadd.f32 0.0, %v2723
      %2725 = vdwg.mxu0
      %2726 = vmatpush.bf16.msra.mxu0 0
      %2727 = vmatpush.bf16.msra.mxu0 0
      %2728 = vmatpush.bf16.msra.mxu0 0
      %2729 = vmatpush.bf16.msra.mxu0 0
      %2730 = vmatpush.bf16.msra.mxu0 0
      %2731 = vmatpush.bf16.msra.mxu0 0
      %2732 = vmatpush.bf16.msra.mxu0 0
      %2733 = vmatpush.bf16.msra.mxu0 %v2702
      %2734 = vmatmul.bf16.gmra.mxu0 %v2693
      %v2735 = vpop.f32.mrf.mxu0
      %v2736 = vadd.f32 0.0, %v2735
      %v2737 = vpop.f32.mrf.mxu0
      %v2738 = vadd.f32 0.0, %v2737
      %2739 = vmatmul.bf16.gmra.mxu0 %v2696
      %v2740 = vpop.f32.mrf.mxu0
      %v2741 = vadd.f32 0.0, %v2740
      %v2742 = vpop.f32.mrf.mxu0
      %v2743 = vadd.f32 0.0, %v2742
      %2744 = vdwg.mxu0
      %2745 = vmatpush.bf16.msra.mxu0 0
      %2746 = vmatpush.bf16.msra.mxu0 0
      %2747 = vmatpush.bf16.msra.mxu0 0
      %2748 = vmatpush.bf16.msra.mxu0 0
      %2749 = vmatpush.bf16.msra.mxu0 0
      %2750 = vmatpush.bf16.msra.mxu0 0
      %2751 = vmatpush.bf16.msra.mxu0 0
      %2752 = vmatpush.bf16.msra.mxu0 %v2705
      %2753 = vmatmul.bf16.gmra.mxu0 %v2693
      %v2754 = vpop.f32.mrf.mxu0
      %v2755 = vadd.f32 0.0, %v2754
      %v2756 = vpop.f32.mrf.mxu0
      %v2757 = vadd.f32 0.0, %v2756
      %2758 = vmatmul.bf16.gmra.mxu0 %v2696
      %v2759 = vpop.f32.mrf.mxu0
      %v2760 = vadd.f32 0.0, %v2759
      %v2761 = vpop.f32.mrf.mxu0
      %v2762 = vadd.f32 0.0, %v2761
      %2763 = vdwg.mxu0
      %v2764 = vadd.f32 %v2654, %v2717
      %v2765 = vadd.f32 %v2655, %v2736
      %v2766 = vadd.f32 %v2656, %v2755
      %v2767 = vadd.f32 %v2657, %v2719
      %v2768 = vadd.f32 %v2658, %v2738
      %v2769 = vadd.f32 %v2659, %v2757
      %v2770 = vadd.f32 %v2660, %v2722
      %v2771 = vadd.f32 %v2661, %v2741
      %v2772 = vadd.f32 %v2662, %v2760
      %v2773 = vadd.f32 %v2663, %v2724
      %v2774 = vadd.f32 %v2664, %v2743
      %v2775 = vadd.f32 %v2665, %v2762
      %s2776 = scalar_lea.vmem %s3, 352
      %v2777 = vld [vmem:[%s2776] sm:$0xf]
      %v2778 = vld [vmem:[%s2776 + $0x4] sm:$0xf]
      %v2779 = vld [vmem:[%s2776 + $0x8] sm:$0xf]
      %v2780 = vld [vmem:[%s2776 + $0xc] sm:$0xf]
      %v2785 = vunpack.c.l.b16 %v2777
      %v2786 = vunpack.c.l.b16 %v2778
      %v2787 = vunpack.c.l.b16 %v2779
      %v2788 = vunpack.c.l.b16 %v2780
      %v2789 = vpack.c.b16 %v2786, %v2785
      %v2790 = vpack.c.b16 %v2788, %v2787
      %2791 = vrot.lane.b32.xlu0 %v2457, 109
      %v2792 = vpop.permute.xlu0 %2791
      %2793 = vrot.lane.b32.xlu0 %v2458, 109
      %v2794 = vpop.permute.xlu0 %2793
      %2795 = vrot.lane.b32.xlu0 %v2459, 109
      %v2796 = vpop.permute.xlu0 %2795
      %2797 = vrot.lane.b32.xlu0 %v2460, 109
      %v2798 = vpop.permute.xlu0 %2797
      %v2799 = vsel %vm792, %v2792, %v2794
      %v2800 = vsel %vm792, %v2794, %v2796
      %v2801 = vsel %vm792, %v2796, %v2798
      %v2803 = vsel %vm388, %v2789, 0
      %v2806 = vsel %vm388, %v2790, 0
      %v2809 = vsel %vm395, %v2799, 0
      %v2812 = vsel %vm395, %v2800, 0
      %v2815 = vsel %vm395, %v2801, 0
      %2817 = vmatpush.bf16.msra.mxu0 0
      %2818 = vmatpush.bf16.msra.mxu0 0
      %2819 = vmatpush.bf16.msra.mxu0 0
      %2820 = vmatpush.bf16.msra.mxu0 0
      %2821 = vmatpush.bf16.msra.mxu0 0
      %2822 = vmatpush.bf16.msra.mxu0 0
      %2823 = vmatpush.bf16.msra.mxu0 0
      %2824 = vmatpush.bf16.msra.mxu0 %v2809
      %2825 = vmatmul.bf16.gmra.mxu0 %v2803
      %v2826 = vpop.f32.mrf.mxu0
      %v2827 = vadd.f32 0.0, %v2826
      %v2828 = vpop.f32.mrf.mxu0
      %v2829 = vadd.f32 0.0, %v2828
      %2830 = vmatmul.bf16.gmra.mxu0 %v2806
      %v2831 = vpop.f32.mrf.mxu0
      %v2832 = vadd.f32 0.0, %v2831
      %v2833 = vpop.f32.mrf.mxu0
      %v2834 = vadd.f32 0.0, %v2833
      %2835 = vdwg.mxu0
      %2836 = vmatpush.bf16.msra.mxu0 0
      %2837 = vmatpush.bf16.msra.mxu0 0
      %2838 = vmatpush.bf16.msra.mxu0 0
      %2839 = vmatpush.bf16.msra.mxu0 0
      %2840 = vmatpush.bf16.msra.mxu0 0
      %2841 = vmatpush.bf16.msra.mxu0 0
      %2842 = vmatpush.bf16.msra.mxu0 0
      %2843 = vmatpush.bf16.msra.mxu0 %v2812
      %2844 = vmatmul.bf16.gmra.mxu0 %v2803
      %v2845 = vpop.f32.mrf.mxu0
      %v2846 = vadd.f32 0.0, %v2845
      %v2847 = vpop.f32.mrf.mxu0
      %v2848 = vadd.f32 0.0, %v2847
      %2849 = vmatmul.bf16.gmra.mxu0 %v2806
      %v2850 = vpop.f32.mrf.mxu0
      %v2851 = vadd.f32 0.0, %v2850
      %v2852 = vpop.f32.mrf.mxu0
      %v2853 = vadd.f32 0.0, %v2852
      %2854 = vdwg.mxu0
      %2855 = vmatpush.bf16.msra.mxu0 0
      %2856 = vmatpush.bf16.msra.mxu0 0
      %2857 = vmatpush.bf16.msra.mxu0 0
      %2858 = vmatpush.bf16.msra.mxu0 0
      %2859 = vmatpush.bf16.msra.mxu0 0
      %2860 = vmatpush.bf16.msra.mxu0 0
      %2861 = vmatpush.bf16.msra.mxu0 0
      %2862 = vmatpush.bf16.msra.mxu0 %v2815
      %2863 = vmatmul.bf16.gmra.mxu0 %v2803
      %v2864 = vpop.f32.mrf.mxu0
      %v2865 = vadd.f32 0.0, %v2864
      %v2866 = vpop.f32.mrf.mxu0
      %v2867 = vadd.f32 0.0, %v2866
      %2868 = vmatmul.bf16.gmra.mxu0 %v2806
      %v2869 = vpop.f32.mrf.mxu0
      %v2870 = vadd.f32 0.0, %v2869
      %v2871 = vpop.f32.mrf.mxu0
      %v2872 = vadd.f32 0.0, %v2871
      %2873 = vdwg.mxu0
      %v2874 = vadd.f32 %v2764, %v2827
      %v2875 = vadd.f32 %v2765, %v2846
      %v2876 = vadd.f32 %v2766, %v2865
      %v2877 = vadd.f32 %v2767, %v2829
      %v2878 = vadd.f32 %v2768, %v2848
      %v2879 = vadd.f32 %v2769, %v2867
      %v2880 = vadd.f32 %v2770, %v2832
      %v2881 = vadd.f32 %v2771, %v2851
      %v2882 = vadd.f32 %v2772, %v2870
      %v2883 = vadd.f32 %v2773, %v2834
      %v2884 = vadd.f32 %v2774, %v2853
      %v2885 = vadd.f32 %v2775, %v2872
      %s2886 = scalar_lea.vmem %s3, 368
      %v2887 = vld [vmem:[%s2886] sm:$0xf]
      %v2888 = vld [vmem:[%s2886 + $0x4] sm:$0xf]
      %v2889 = vld [vmem:[%s2886 + $0x8] sm:$0xf]
      %v2890 = vld [vmem:[%s2886 + $0xc] sm:$0xf]
      %v2895 = vunpack.c.l.b16 %v2887
      %v2896 = vunpack.c.l.b16 %v2888
      %v2897 = vunpack.c.l.b16 %v2889
      %v2898 = vunpack.c.l.b16 %v2890
      %v2899 = vpack.c.b16 %v2896, %v2895
      %v2900 = vpack.c.b16 %v2898, %v2897
      %2901 = vrot.lane.b32.xlu0 %v2457, 108
      %v2902 = vpop.permute.xlu0 %2901
      %2903 = vrot.lane.b32.xlu0 %v2458, 108
      %v2904 = vpop.permute.xlu0 %2903
      %2905 = vrot.lane.b32.xlu0 %v2459, 108
      %v2906 = vpop.permute.xlu0 %2905
      %2907 = vrot.lane.b32.xlu0 %v2460, 108
      %v2908 = vpop.permute.xlu0 %2907
      %v2909 = vsel %vm903, %v2902, %v2904
      %v2910 = vsel %vm903, %v2904, %v2906
      %v2911 = vsel %vm903, %v2906, %v2908
      %v2913 = vsel %vm388, %v2899, 0
      %v2916 = vsel %vm388, %v2900, 0
      %v2919 = vsel %vm395, %v2909, 0
      %v2922 = vsel %vm395, %v2910, 0
      %v2925 = vsel %vm395, %v2911, 0
      %2927 = vmatpush.bf16.msra.mxu0 0
      %2928 = vmatpush.bf16.msra.mxu0 0
      %2929 = vmatpush.bf16.msra.mxu0 0
      %2930 = vmatpush.bf16.msra.mxu0 0
      %2931 = vmatpush.bf16.msra.mxu0 0
      %2932 = vmatpush.bf16.msra.mxu0 0
      %2933 = vmatpush.bf16.msra.mxu0 0
      %2934 = vmatpush.bf16.msra.mxu0 %v2919
      %2935 = vmatmul.bf16.gmra.mxu0 %v2913
      %v2936 = vpop.f32.mrf.mxu0
      %v2937 = vadd.f32 0.0, %v2936
      %v2938 = vpop.f32.mrf.mxu0
      %v2939 = vadd.f32 0.0, %v2938
      %2940 = vmatmul.bf16.gmra.mxu0 %v2916
      %v2941 = vpop.f32.mrf.mxu0
      %v2942 = vadd.f32 0.0, %v2941
      %v2943 = vpop.f32.mrf.mxu0
      %v2944 = vadd.f32 0.0, %v2943
      %2945 = vdwg.mxu0
      %2946 = vmatpush.bf16.msra.mxu0 0
      %2947 = vmatpush.bf16.msra.mxu0 0
      %2948 = vmatpush.bf16.msra.mxu0 0
      %2949 = vmatpush.bf16.msra.mxu0 0
      %2950 = vmatpush.bf16.msra.mxu0 0
      %2951 = vmatpush.bf16.msra.mxu0 0
      %2952 = vmatpush.bf16.msra.mxu0 0
      %2953 = vmatpush.bf16.msra.mxu0 %v2922
      %2954 = vmatmul.bf16.gmra.mxu0 %v2913
      %v2955 = vpop.f32.mrf.mxu0
      %v2956 = vadd.f32 0.0, %v2955
      %v2957 = vpop.f32.mrf.mxu0
      %v2958 = vadd.f32 0.0, %v2957
      %2959 = vmatmul.bf16.gmra.mxu0 %v2916
      %v2960 = vpop.f32.mrf.mxu0
      %v2961 = vadd.f32 0.0, %v2960
      %v2962 = vpop.f32.mrf.mxu0
      %v2963 = vadd.f32 0.0, %v2962
      %2964 = vdwg.mxu0
      %2965 = vmatpush.bf16.msra.mxu0 0
      %2966 = vmatpush.bf16.msra.mxu0 0
      %2967 = vmatpush.bf16.msra.mxu0 0
      %2968 = vmatpush.bf16.msra.mxu0 0
      %2969 = vmatpush.bf16.msra.mxu0 0
      %2970 = vmatpush.bf16.msra.mxu0 0
      %2971 = vmatpush.bf16.msra.mxu0 0
      %2972 = vmatpush.bf16.msra.mxu0 %v2925
      %2973 = vmatmul.bf16.gmra.mxu0 %v2913
      %v2974 = vpop.f32.mrf.mxu0
      %v2975 = vadd.f32 0.0, %v2974
      %v2976 = vpop.f32.mrf.mxu0
      %v2977 = vadd.f32 0.0, %v2976
      %2978 = vmatmul.bf16.gmra.mxu0 %v2916
      %v2979 = vpop.f32.mrf.mxu0
      %v2980 = vadd.f32 0.0, %v2979
      %v2981 = vpop.f32.mrf.mxu0
      %v2982 = vadd.f32 0.0, %v2981
      %2983 = vdwg.mxu0
      %v2984 = vadd.f32 %v2874, %v2937
      %v2985 = vadd.f32 %v2875, %v2956
      %v2986 = vadd.f32 %v2876, %v2975
      %v2987 = vadd.f32 %v2877, %v2939
      %v2988 = vadd.f32 %v2878, %v2958
      %v2989 = vadd.f32 %v2879, %v2977
      %v2990 = vadd.f32 %v2880, %v2942
      %v2991 = vadd.f32 %v2881, %v2961
      %v2992 = vadd.f32 %v2882, %v2980
      %v2993 = vadd.f32 %v2883, %v2944
      %v2994 = vadd.f32 %v2884, %v2963
      %v2995 = vadd.f32 %v2885, %v2982
      %s2996 = scalar_lea.vmem %s3, 384
      %v2997 = vld [vmem:[%s2996] sm:$0xf]
      %v2998 = vld [vmem:[%s2996 + $0x4] sm:$0xf]
      %v2999 = vld [vmem:[%s2996 + $0x8] sm:$0xf]
      %v3000 = vld [vmem:[%s2996 + $0xc] sm:$0xf]
      %v3005 = vunpack.c.l.b16 %v2997
      %v3006 = vunpack.c.l.b16 %v2998
      %v3007 = vunpack.c.l.b16 %v2999
      %v3008 = vunpack.c.l.b16 %v3000
      %v3009 = vpack.c.b16 %v3006, %v3005
      %v3010 = vpack.c.b16 %v3008, %v3007
      %3011 = vrot.lane.b32.xlu0 %v2457, 92
      %v3012 = vpop.permute.xlu0 %3011
      %3013 = vrot.lane.b32.xlu0 %v2458, 92
      %v3014 = vpop.permute.xlu0 %3013
      %3015 = vrot.lane.b32.xlu0 %v2459, 92
      %v3016 = vpop.permute.xlu0 %3015
      %3017 = vrot.lane.b32.xlu0 %v2460, 92
      %v3018 = vpop.permute.xlu0 %3017
      %v3019 = vsel %vm1014, %v3012, %v3014
      %v3020 = vsel %vm1014, %v3014, %v3016
      %v3021 = vsel %vm1014, %v3016, %v3018
      %v3023 = vsel %vm388, %v3009, 0
      %v3026 = vsel %vm388, %v3010, 0
      %v3029 = vsel %vm395, %v3019, 0
      %v3032 = vsel %vm395, %v3020, 0
      %v3035 = vsel %vm395, %v3021, 0
      %3037 = vmatpush.bf16.msra.mxu0 0
      %3038 = vmatpush.bf16.msra.mxu0 0
      %3039 = vmatpush.bf16.msra.mxu0 0
      %3040 = vmatpush.bf16.msra.mxu0 0
      %3041 = vmatpush.bf16.msra.mxu0 0
      %3042 = vmatpush.bf16.msra.mxu0 0
      %3043 = vmatpush.bf16.msra.mxu0 0
      %3044 = vmatpush.bf16.msra.mxu0 %v3029
      %3045 = vmatmul.bf16.gmra.mxu0 %v3023
      %v3046 = vpop.f32.mrf.mxu0
      %v3047 = vadd.f32 0.0, %v3046
      %v3048 = vpop.f32.mrf.mxu0
      %v3049 = vadd.f32 0.0, %v3048
      %3050 = vmatmul.bf16.gmra.mxu0 %v3026
      %v3051 = vpop.f32.mrf.mxu0
      %v3052 = vadd.f32 0.0, %v3051
      %v3053 = vpop.f32.mrf.mxu0
      %v3054 = vadd.f32 0.0, %v3053
      %3055 = vdwg.mxu0
      %3056 = vmatpush.bf16.msra.mxu0 0
      %3057 = vmatpush.bf16.msra.mxu0 0
      %3058 = vmatpush.bf16.msra.mxu0 0
      %3059 = vmatpush.bf16.msra.mxu0 0
      %3060 = vmatpush.bf16.msra.mxu0 0
      %3061 = vmatpush.bf16.msra.mxu0 0
      %3062 = vmatpush.bf16.msra.mxu0 0
      %3063 = vmatpush.bf16.msra.mxu0 %v3032
      %3064 = vmatmul.bf16.gmra.mxu0 %v3023
      %v3065 = vpop.f32.mrf.mxu0
      %v3066 = vadd.f32 0.0, %v3065
      %v3067 = vpop.f32.mrf.mxu0
      %v3068 = vadd.f32 0.0, %v3067
      %3069 = vmatmul.bf16.gmra.mxu0 %v3026
      %v3070 = vpop.f32.mrf.mxu0
      %v3071 = vadd.f32 0.0, %v3070
      %v3072 = vpop.f32.mrf.mxu0
      %v3073 = vadd.f32 0.0, %v3072
      %3074 = vdwg.mxu0
      %3075 = vmatpush.bf16.msra.mxu0 0
      %3076 = vmatpush.bf16.msra.mxu0 0
      %3077 = vmatpush.bf16.msra.mxu0 0
      %3078 = vmatpush.bf16.msra.mxu0 0
      %3079 = vmatpush.bf16.msra.mxu0 0
      %3080 = vmatpush.bf16.msra.mxu0 0
      %3081 = vmatpush.bf16.msra.mxu0 0
      %3082 = vmatpush.bf16.msra.mxu0 %v3035
      %3083 = vmatmul.bf16.gmra.mxu0 %v3023
      %v3084 = vpop.f32.mrf.mxu0
      %v3085 = vadd.f32 0.0, %v3084
      %v3086 = vpop.f32.mrf.mxu0
      %v3087 = vadd.f32 0.0, %v3086
      %3088 = vmatmul.bf16.gmra.mxu0 %v3026
      %v3089 = vpop.f32.mrf.mxu0
      %v3090 = vadd.f32 0.0, %v3089
      %v3091 = vpop.f32.mrf.mxu0
      %v3092 = vadd.f32 0.0, %v3091
      %3093 = vdwg.mxu0
      %v3094 = vadd.f32 %v2984, %v3047
      %v3095 = vadd.f32 %v2985, %v3066
      %v3096 = vadd.f32 %v2986, %v3085
      %v3097 = vadd.f32 %v2987, %v3049
      %v3098 = vadd.f32 %v2988, %v3068
      %v3099 = vadd.f32 %v2989, %v3087
      %v3100 = vadd.f32 %v2990, %v3052
      %v3101 = vadd.f32 %v2991, %v3071
      %v3102 = vadd.f32 %v2992, %v3090
      %v3103 = vadd.f32 %v2993, %v3054
      %v3104 = vadd.f32 %v2994, %v3073
      %v3105 = vadd.f32 %v2995, %v3092
      %s3106 = scalar_lea.vmem %s3, 400
      %v3107 = vld [vmem:[%s3106] sm:$0xf]
      %v3108 = vld [vmem:[%s3106 + $0x4] sm:$0xf]
      %v3109 = vld [vmem:[%s3106 + $0x8] sm:$0xf]
      %v3110 = vld [vmem:[%s3106 + $0xc] sm:$0xf]
      %v3115 = vunpack.c.l.b16 %v3107
      %v3116 = vunpack.c.l.b16 %v3108
      %v3117 = vunpack.c.l.b16 %v3109
      %v3118 = vunpack.c.l.b16 %v3110
      %v3119 = vpack.c.b16 %v3116, %v3115
      %v3120 = vpack.c.b16 %v3118, %v3117
      %3121 = vrot.lane.b32.xlu0 %v2457, 91
      %v3122 = vpop.permute.xlu0 %3121
      %3123 = vrot.lane.b32.xlu0 %v2458, 91
      %v3124 = vpop.permute.xlu0 %3123
      %3125 = vrot.lane.b32.xlu0 %v2459, 91
      %v3126 = vpop.permute.xlu0 %3125
      %3127 = vrot.lane.b32.xlu0 %v2460, 91
      %v3128 = vpop.permute.xlu0 %3127
      %v3129 = vsel %vm1125, %v3122, %v3124
      %v3130 = vsel %vm1125, %v3124, %v3126
      %v3131 = vsel %vm1125, %v3126, %v3128
      %v3133 = vsel %vm388, %v3119, 0
      %v3136 = vsel %vm388, %v3120, 0
      %v3139 = vsel %vm395, %v3129, 0
      %v3142 = vsel %vm395, %v3130, 0
      %v3145 = vsel %vm395, %v3131, 0
      %3147 = vmatpush.bf16.msra.mxu0 0
      %3148 = vmatpush.bf16.msra.mxu0 0
      %3149 = vmatpush.bf16.msra.mxu0 0
      %3150 = vmatpush.bf16.msra.mxu0 0
      %3151 = vmatpush.bf16.msra.mxu0 0
      %3152 = vmatpush.bf16.msra.mxu0 0
      %3153 = vmatpush.bf16.msra.mxu0 0
      %3154 = vmatpush.bf16.msra.mxu0 %v3139
      %3155 = vmatmul.bf16.gmra.mxu0 %v3133
      %v3156 = vpop.f32.mrf.mxu0
      %v3157 = vadd.f32 0.0, %v3156
      %v3158 = vpop.f32.mrf.mxu0
      %v3159 = vadd.f32 0.0, %v3158
      %3160 = vmatmul.bf16.gmra.mxu0 %v3136
      %v3161 = vpop.f32.mrf.mxu0
      %v3162 = vadd.f32 0.0, %v3161
      %v3163 = vpop.f32.mrf.mxu0
      %v3164 = vadd.f32 0.0, %v3163
      %3165 = vdwg.mxu0
      %3166 = vmatpush.bf16.msra.mxu0 0
      %3167 = vmatpush.bf16.msra.mxu0 0
      %3168 = vmatpush.bf16.msra.mxu0 0
      %3169 = vmatpush.bf16.msra.mxu0 0
      %3170 = vmatpush.bf16.msra.mxu0 0
      %3171 = vmatpush.bf16.msra.mxu0 0
      %3172 = vmatpush.bf16.msra.mxu0 0
      %3173 = vmatpush.bf16.msra.mxu0 %v3142
      %3174 = vmatmul.bf16.gmra.mxu0 %v3133
      %v3175 = vpop.f32.mrf.mxu0
      %v3176 = vadd.f32 0.0, %v3175
      %v3177 = vpop.f32.mrf.mxu0
      %v3178 = vadd.f32 0.0, %v3177
      %3179 = vmatmul.bf16.gmra.mxu0 %v3136
      %v3180 = vpop.f32.mrf.mxu0
      %v3181 = vadd.f32 0.0, %v3180
      %v3182 = vpop.f32.mrf.mxu0
      %v3183 = vadd.f32 0.0, %v3182
      %3184 = vdwg.mxu0
      %3185 = vmatpush.bf16.msra.mxu0 0
      %3186 = vmatpush.bf16.msra.mxu0 0
      %3187 = vmatpush.bf16.msra.mxu0 0
      %3188 = vmatpush.bf16.msra.mxu0 0
      %3189 = vmatpush.bf16.msra.mxu0 0
      %3190 = vmatpush.bf16.msra.mxu0 0
      %3191 = vmatpush.bf16.msra.mxu0 0
      %3192 = vmatpush.bf16.msra.mxu0 %v3145
      %3193 = vmatmul.bf16.gmra.mxu0 %v3133
      %v3194 = vpop.f32.mrf.mxu0
      %v3195 = vadd.f32 0.0, %v3194
      %v3196 = vpop.f32.mrf.mxu0
      %v3197 = vadd.f32 0.0, %v3196
      %3198 = vmatmul.bf16.gmra.mxu0 %v3136
      %v3199 = vpop.f32.mrf.mxu0
      %v3200 = vadd.f32 0.0, %v3199
      %v3201 = vpop.f32.mrf.mxu0
      %v3202 = vadd.f32 0.0, %v3201
      %3203 = vdwg.mxu0
      %v3204 = vadd.f32 %v3094, %v3157
      %v3205 = vadd.f32 %v3095, %v3176
      %v3206 = vadd.f32 %v3096, %v3195
      %v3207 = vadd.f32 %v3097, %v3159
      %v3208 = vadd.f32 %v3098, %v3178
      %v3209 = vadd.f32 %v3099, %v3197
      %v3210 = vadd.f32 %v3100, %v3162
      %v3211 = vadd.f32 %v3101, %v3181
      %v3212 = vadd.f32 %v3102, %v3200
      %v3213 = vadd.f32 %v3103, %v3164
      %v3214 = vadd.f32 %v3104, %v3183
      %v3215 = vadd.f32 %v3105, %v3202
      %s3216 = scalar_lea.vmem %s3, 416
      %v3217 = vld [vmem:[%s3216] sm:$0xf]
      %v3218 = vld [vmem:[%s3216 + $0x4] sm:$0xf]
      %v3219 = vld [vmem:[%s3216 + $0x8] sm:$0xf]
      %v3220 = vld [vmem:[%s3216 + $0xc] sm:$0xf]
      %v3225 = vunpack.c.l.b16 %v3217
      %v3226 = vunpack.c.l.b16 %v3218
      %v3227 = vunpack.c.l.b16 %v3219
      %v3228 = vunpack.c.l.b16 %v3220
      %v3229 = vpack.c.b16 %v3226, %v3225
      %v3230 = vpack.c.b16 %v3228, %v3227
      %3231 = vrot.lane.b32.xlu0 %v2457, 90
      %v3232 = vpop.permute.xlu0 %3231
      %3233 = vrot.lane.b32.xlu0 %v2458, 90
      %v3234 = vpop.permute.xlu0 %3233
      %3235 = vrot.lane.b32.xlu0 %v2459, 90
      %v3236 = vpop.permute.xlu0 %3235
      %3237 = vrot.lane.b32.xlu0 %v2460, 90
      %v3238 = vpop.permute.xlu0 %3237
      %v3239 = vsel %vm1236, %v3232, %v3234
      %v3240 = vsel %vm1236, %v3234, %v3236
      %v3241 = vsel %vm1236, %v3236, %v3238
      %v3243 = vsel %vm388, %v3229, 0
      %v3246 = vsel %vm388, %v3230, 0
      %v3249 = vsel %vm395, %v3239, 0
      %v3252 = vsel %vm395, %v3240, 0
      %v3255 = vsel %vm395, %v3241, 0
      %3257 = vmatpush.bf16.msra.mxu0 0
      %3258 = vmatpush.bf16.msra.mxu0 0
      %3259 = vmatpush.bf16.msra.mxu0 0
      %3260 = vmatpush.bf16.msra.mxu0 0
      %3261 = vmatpush.bf16.msra.mxu0 0
      %3262 = vmatpush.bf16.msra.mxu0 0
      %3263 = vmatpush.bf16.msra.mxu0 0
      %3264 = vmatpush.bf16.msra.mxu0 %v3249
      %3265 = vmatmul.bf16.gmra.mxu0 %v3243
      %v3266 = vpop.f32.mrf.mxu0
      %v3267 = vadd.f32 0.0, %v3266
      %v3268 = vpop.f32.mrf.mxu0
      %v3269 = vadd.f32 0.0, %v3268
      %3270 = vmatmul.bf16.gmra.mxu0 %v3246
      %v3271 = vpop.f32.mrf.mxu0
      %v3272 = vadd.f32 0.0, %v3271
      %v3273 = vpop.f32.mrf.mxu0
      %v3274 = vadd.f32 0.0, %v3273
      %3275 = vdwg.mxu0
      %3276 = vmatpush.bf16.msra.mxu0 0
      %3277 = vmatpush.bf16.msra.mxu0 0
      %3278 = vmatpush.bf16.msra.mxu0 0
      %3279 = vmatpush.bf16.msra.mxu0 0
      %3280 = vmatpush.bf16.msra.mxu0 0
      %3281 = vmatpush.bf16.msra.mxu0 0
      %3282 = vmatpush.bf16.msra.mxu0 0
      %3283 = vmatpush.bf16.msra.mxu0 %v3252
      %3284 = vmatmul.bf16.gmra.mxu0 %v3243
      %v3285 = vpop.f32.mrf.mxu0
      %v3286 = vadd.f32 0.0, %v3285
      %v3287 = vpop.f32.mrf.mxu0
      %v3288 = vadd.f32 0.0, %v3287
      %3289 = vmatmul.bf16.gmra.mxu0 %v3246
      %v3290 = vpop.f32.mrf.mxu0
      %v3291 = vadd.f32 0.0, %v3290
      %v3292 = vpop.f32.mrf.mxu0
      %v3293 = vadd.f32 0.0, %v3292
      %3294 = vdwg.mxu0
      %3295 = vmatpush.bf16.msra.mxu0 0
      %3296 = vmatpush.bf16.msra.mxu0 0
      %3297 = vmatpush.bf16.msra.mxu0 0
      %3298 = vmatpush.bf16.msra.mxu0 0
      %3299 = vmatpush.bf16.msra.mxu0 0
      %3300 = vmatpush.bf16.msra.mxu0 0
      %3301 = vmatpush.bf16.msra.mxu0 0
      %3302 = vmatpush.bf16.msra.mxu0 %v3255
      %3303 = vmatmul.bf16.gmra.mxu0 %v3243
      %v3304 = vpop.f32.mrf.mxu0
      %v3305 = vadd.f32 0.0, %v3304
      %v3306 = vpop.f32.mrf.mxu0
      %v3307 = vadd.f32 0.0, %v3306
      %3308 = vmatmul.bf16.gmra.mxu0 %v3246
      %v3309 = vpop.f32.mrf.mxu0
      %v3310 = vadd.f32 0.0, %v3309
      %v3311 = vpop.f32.mrf.mxu0
      %v3312 = vadd.f32 0.0, %v3311
      %3313 = vdwg.mxu0
      %v3314 = vadd.f32 %v3204, %v3267
      %v3315 = vadd.f32 %v3205, %v3286
      %v3316 = vadd.f32 %v3206, %v3305
      %v3317 = vadd.f32 %v3207, %v3269
      %v3318 = vadd.f32 %v3208, %v3288
      %v3319 = vadd.f32 %v3209, %v3307
      %v3320 = vadd.f32 %v3210, %v3272
      %v3321 = vadd.f32 %v3211, %v3291
      %v3322 = vadd.f32 %v3212, %v3310
      %v3323 = vadd.f32 %v3213, %v3274
      %v3324 = vadd.f32 %v3214, %v3293
      %v3325 = vadd.f32 %v3215, %v3312
      %v3326 = vld [vmem:[%s4] sm:$0xff]
      %v3327 = vld [vmem:[%s4 + $0x8] sm:$0xff]
      %v3328 = vld [vmem:[%s4 + $0x10] sm:$0xff]
      %v3329 = vld [vmem:[%s4 + $0x18] sm:$0xff]
      %3331 = vset.pattern.permute.xlu0 0
      %3332 = vperm.xlu0 %3331, %v3326
      %v3333 = vpop.permute.xlu0 %3332
      %3336 = vset.pattern.permute.xlu0 0
      %3337 = vperm.xlu0 %3336, %v3327
      %v3338 = vpop.permute.xlu0 %3337
      %3341 = vset.pattern.permute.xlu0 0
      %3342 = vperm.xlu0 %3341, %v3328
      %v3343 = vpop.permute.xlu0 %3342
      %3346 = vset.pattern.permute.xlu0 0
      %3347 = vperm.xlu0 %3346, %v3329
      %v3348 = vpop.permute.xlu0 %3347
      %v3350 = vadd.f32 %v3314, %v3333
      %v3351 = vadd.f32 %v3315, %v3333
      %v3352 = vadd.f32 %v3316, %v3333
      %v3353 = vadd.f32 %v3317, %v3338
      %v3354 = vadd.f32 %v3318, %v3338
      %v3355 = vadd.f32 %v3319, %v3338
      %v3356 = vadd.f32 %v3320, %v3343
      %v3357 = vadd.f32 %v3321, %v3343
      %v3358 = vadd.f32 %v3322, %v3343
      %v3359 = vadd.f32 %v3323, %v3348
      %v3360 = vadd.f32 %v3324, %v3348
      %v3361 = vadd.f32 %v3325, %v3348
      %v3362 = vmax.f32 %v3350, 0.0
      %v3363 = vmax.f32 %v3351, 0.0
      %v3364 = vmax.f32 %v3352, 0.0
      %v3365 = vmax.f32 %v3353, 0.0
      %v3366 = vmax.f32 %v3354, 0.0
      %v3367 = vmax.f32 %v3355, 0.0
      %v3368 = vmax.f32 %v3356, 0.0
      %v3369 = vmax.f32 %v3357, 0.0
      %v3370 = vmax.f32 %v3358, 0.0
      %v3371 = vmax.f32 %v3359, 0.0
      %v3372 = vmax.f32 %v3360, 0.0
      %v3373 = vmax.f32 %v3361, 0.0
      %v3374 = vpack.c.bf16 %v3363, %v3362
      %v3375 = vpack.c.bf16 %v3364, %v3364
      %v3376 = vpack.c.bf16 %v3366, %v3365
      %v3377 = vpack.c.bf16 %v3367, %v3367
      %v3378 = vpack.c.bf16 %v3369, %v3368
      %v3379 = vpack.c.bf16 %v3370, %v3370
      %v3380 = vpack.c.bf16 %v3372, %v3371
      %v3381 = vpack.c.bf16 %v3373, %v3373
      %3382 = vst [vmem:[%s342] sm:$0xff] %v3374
      %3383 = vst [vmem:[%s342 + $0x8] sm:$0xf] %v3375
      %3384 = vst [vmem:[%s342 + $0xc] sm:$0xff] %v3376
      %3385 = vst [vmem:[%s342 + $0x14] sm:$0xf] %v3377
      %3386 = vst [vmem:[%s342 + $0x18] sm:$0xff] %v3378
      %3387 = vst [vmem:[%s342 + $0x20] sm:$0xf] %v3379
      %3388 = vst [vmem:[%s342 + $0x24] sm:$0xff] %v3380
      %3389 = vst [vmem:[%s342 + $0x2c] sm:$0xf] %v3381
      %p3390 = scmp.lt.s32.totalorder %s20, 1
      %s3391 = scalar_select %p3390, %s20, 1
      %p3392 = scmp.lt.s32.totalorder %s21, 3
      %s3393 = scalar_select %p3392, %s21, 3
      %s3394 = smul.addr %s3393, 12
      %s3395 = smul.addr %s3391, 48
      %s3396 = sadd.s32 %s3394, %s3395
      %s3397 = smul.addr %s3396, 4
      %s3398 = scalar_lea.vmem %s5, %s3397
      // Predicated region
      $region41: #{forward.6} parent=39 // pred_check
        %p3399 = pneg %p178
      $region42: #{forward.6} parent=39 // pred_check_branch
        %3401 = sbr.rel (%p3399) target = $region44
      $region43: #{forward.6} parent=39 // pred_region
        _
      $region44: #{forward.6} parent=39 // pred_fallthru
        _
    $region40: #{forward.6} parent=5 // pred_fallthru
      _
    %p3402 = scmp.le.s32.totalorder 2, %s11
    // Predicated region
    $region45: #{forward.6} parent=5 // pred_check
      %p3403 = pneg %p3402
    $region46: #{forward.6} parent=5 // pred_check_branch
      %3405 = sbr.rel (%p3403) target = $region48
    $region47: #{forward.6} parent=5 // pred_region
      %s3406 = ssub.s32 %s11, 2
      // Predicated region
      $region49: #{forward.6} parent=47 // pred_check
        %p3407 = pneg %p184
      $region50: #{forward.6} parent=47 // pred_check_branch
        %3409 = sbr.rel (%p3407) target = $region52
      $region51: #{forward.6} parent=47 // pred_region
        %p3410 = scmp.lt.s32.totalorder %s22, 1
        %s3411 = scalar_select %p3410, %s22, 1
        %p3412 = scmp.lt.s32.totalorder %s23, 3
        %s3413 = scalar_select %p3412, %s23, 3
        %s3414 = smul.addr %s3413, 12
        %s3415 = smul.addr %s3411, 48
        %s3416 = sadd.s32 %s3414, %s3415
        %s3417 = smul.addr %s3416, 4
        %s3418 = scalar_lea.vmem %s5, %s3417
      $region52: #{forward.6} parent=47 // pred_fallthru
        _
    $region48: #{forward.6} parent=5 // pred_fallthru
      _
  $region6: #{forward.6} parent=0 // loop_footer
    %s15 = sadd.s32 1, %s11
  $region7: #{forward.6} parent=0 // loop_footer_branch
    %10 = sbr.rel target = $region3
  $region8: #{forward.6} parent=0 // loop_exit
    _

// kernel: forward.7
$region0: #{forward.7}
  #allocation0 [shape = 'u32[]', space=smem, size = 0x4, offset = 0x4, fixed_abs, tag = 'smem constant byte address 0x4 - core index']
  #allocation1 [shape = 'u32[72,128]{1,0:T(1,128)}', space=vmem, size = 0x9000, scoped, tag = 'internal scratch']
  %s0 = inlined_call_operand.vmem [shape: bf16[2,6,32,512], index: 0, kind: input, shape index: {}, may-alias: {0,1,2}]
  %s1 = inlined_call_operand.vmem [shape: bf16[2,6,32,512], index: 1, kind: input, shape index: {}, may-alias: {0,1,2}]
  %s2 = inlined_call_operand.vmem [shape: bf16[2,6,32,512], index: 2, kind: input, shape index: {}, may-alias: {0,1,2}]
  %s3 = inlined_call_operand.vmem [shape: bf16[27,14,32], index: 3, kind: input, shape index: {}]
  %s4 = inlined_call_operand.vmem [shape: f32[14,1], index: 4, kind: input, shape index: {}]
  %s5 = inlined_call_operand.vmem [shape: f32[2,4,14,384], index: 5, kind: output, shape index: {}]
  %s6 = sld [smem:[#allocation0]]
  $region53: #{forward.7} parent=0
    _
  %s8 = ssub.s32 1, %s6
  %s9 = scalar_select 0, %s8, %s6
  loop: start=0, step=1, limit=10
  $region2: #{forward.7} parent=0 // loop_pre_header
    _
  $region3: #{forward.7} parent=0 // loop_header
    %s11 = sphi 0, %s15
    %p12 = scmp.ge.s32.totalorder %s11, 10
    %s18 = sphi 0, %s30
    %s19 = sphi 0, %s26
    %s20 = sphi 0, %s18
    %s21 = sphi 0, %s19
    %s22 = sphi 0, %s20
    %s23 = sphi 0, %s21
    %s35 = sphi 0, %s37
    %s38 = sphi 0, %s35
    %s39 = sphi 0, %s38
    %s55 = sphi 0, %s39
    %s65 = sphi 0, %s67
    %s68 = sphi 0, %s65
    %s69 = sphi 0, %s68
    %s85 = sphi 0, %s69
    %s95 = sphi 0, %s97
    %s98 = sphi 0, %s95
    %s99 = sphi 0, %s98
    %s115 = sphi 0, %s99
    %s119 = sphi 0, %s119
    %s121 = sphi 0, %s119
    %s122 = sphi 0, %s121
    %s136 = sphi 0, %s122
    %s140 = sphi 0, %s140
    %s142 = sphi 0, %s140
    %s143 = sphi 0, %s142
    %s157 = sphi 0, %s143
    %s165 = sphi 0, %s167
    %s168 = sphi 0, %s165
    %s169 = sphi 0, %s168
    %s185 = sphi 0, %s169
  $region4: #{forward.7} parent=0 // loop_header_branch
    %14 = sbr.rel (%p12) target = $region8
  $region5: #{forward.7} parent=0 // loop_body
    %s16 = ssub.s32 %s11, 1
    %s17 = ssub.s32 %s11, 2
    %s24 = sadd.s32 1, %s19
    %p25 = scmp.ge.s32.totalorder %s24, 4
    %s26 = scalar_select %p25, 0, %s24
    %s27 = sadd.s32 1, %s18
    %s28 = scalar_select %p25, %s27, %s18
    %p29 = scmp.ge.s32.totalorder %s28, 2
    %s30 = scalar_select %p29, 0, %s28
    %s31 = ssub.s32 %s18, %s30
    %s32 = ssub.s32 %s19, %s26
    %s33 = sor.u32 %s31, %s32
    %p34 = scmp.eq.s32.totalorder %s33, 0
    %s36 = sadd.s32 %s35, 1
    %s37 = scalar_select %p34, %s35, %s36
    %p40 = pneg %p34
    %p41 = scmp.eq.s32.totalorder %s11, 7
    %p42 = por %p40, %p41
    %p43 = scmp.ne.s32.totalorder %s35, %s38
    %p44 = scmp.eq.s32.totalorder %s11, 0
    %p45 = por %p43, %p44
    %p46 = scmp.ne.s32.totalorder %s35, %s38
    %p47 = scmp.eq.s32.totalorder %s16, 7
    %p48 = por %p46, %p47
    %p49 = scmp.ne.s32.totalorder %s38, %s39
    %p50 = scmp.eq.s32.totalorder %s16, 0
    %p51 = por %p49, %p50
    %p52 = scmp.ne.s32.totalorder %s38, %s39
    %p53 = scmp.eq.s32.totalorder %s17, 7
    %p54 = por %p52, %p53
    %p56 = scmp.ne.s32.totalorder %s39, %s55
    %p57 = scmp.eq.s32.totalorder %s17, 0
    %p58 = por %p56, %p57
    %s59 = sadd.s32 %s19, 1
    %s60 = sadd.s32 %s26, 1
    %s61 = ssub.s32 %s18, %s30
    %s62 = ssub.s32 %s59, %s60
    %s63 = sor.u32 %s61, %s62
    %p64 = scmp.eq.s32.totalorder %s63, 0
    %s66 = sadd.s32 %s65, 1
    %s67 = scalar_select %p64, %s65, %s66
    %p70 = pneg %p64
    %p71 = scmp.eq.s32.totalorder %s11, 7
    %p72 = por %p70, %p71
    %p73 = scmp.ne.s32.totalorder %s65, %s68
    %p74 = scmp.eq.s32.totalorder %s11, 0
    %p75 = por %p73, %p74
    %p76 = scmp.ne.s32.totalorder %s65, %s68
    %p77 = scmp.eq.s32.totalorder %s16, 7
    %p78 = por %p76, %p77
    %p79 = scmp.ne.s32.totalorder %s68, %s69
    %p80 = scmp.eq.s32.totalorder %s16, 0
    %p81 = por %p79, %p80
    %p82 = scmp.ne.s32.totalorder %s68, %s69
    %p83 = scmp.eq.s32.totalorder %s17, 7
    %p84 = por %p82, %p83
    %p86 = scmp.ne.s32.totalorder %s69, %s85
    %p87 = scmp.eq.s32.totalorder %s17, 0
    %p88 = por %p86, %p87
    %s89 = sadd.s32 %s19, 2
    %s90 = sadd.s32 %s26, 2
    %s91 = ssub.s32 %s18, %s30
    %s92 = ssub.s32 %s89, %s90
    %s93 = sor.u32 %s91, %s92
    %p94 = scmp.eq.s32.totalorder %s93, 0
    %s96 = sadd.s32 %s95, 1
    %s97 = scalar_select %p94, %s95, %s96
    %p100 = pneg %p94
    %p101 = scmp.eq.s32.totalorder %s11, 7
    %p102 = por %p100, %p101
    %p103 = scmp.ne.s32.totalorder %s95, %s98
    %p104 = scmp.eq.s32.totalorder %s11, 0
    %p105 = por %p103, %p104
    %p106 = scmp.ne.s32.totalorder %s95, %s98
    %p107 = scmp.eq.s32.totalorder %s16, 7
    %p108 = por %p106, %p107
    %p109 = scmp.ne.s32.totalorder %s98, %s99
    %p110 = scmp.eq.s32.totalorder %s16, 0
    %p111 = por %p109, %p110
    %p112 = scmp.ne.s32.totalorder %s98, %s99
    %p113 = scmp.eq.s32.totalorder %s17, 7
    %p114 = por %p112, %p113
    %p116 = scmp.ne.s32.totalorder %s99, %s115
    %p117 = scmp.eq.s32.totalorder %s17, 0
    %p118 = por %p116, %p117
    %s120 = sadd.s32 %s119, 1
    %p123 = scmp.eq.s32.totalorder %s11, 7
    %p124 = scmp.ne.s32.totalorder %s119, %s121
    %p125 = scmp.eq.s32.totalorder %s11, 0
    %p126 = por %p124, %p125
    %p127 = scmp.ne.s32.totalorder %s119, %s121
    %p128 = scmp.eq.s32.totalorder %s16, 7
    %p129 = por %p127, %p128
    %p130 = scmp.ne.s32.totalorder %s121, %s122
    %p131 = scmp.eq.s32.totalorder %s16, 0
    %p132 = por %p130, %p131
    %p133 = scmp.ne.s32.totalorder %s121, %s122
    %p134 = scmp.eq.s32.totalorder %s17, 7
    %p135 = por %p133, %p134
    %p137 = scmp.ne.s32.totalorder %s122, %s136
    %p138 = scmp.eq.s32.totalorder %s17, 0
    %p139 = por %p137, %p138
    %s141 = sadd.s32 %s140, 1
    %p144 = scmp.eq.s32.totalorder %s11, 7
    %p145 = scmp.ne.s32.totalorder %s140, %s142
    %p146 = scmp.eq.s32.totalorder %s11, 0
    %p147 = por %p145, %p146
    %p148 = scmp.ne.s32.totalorder %s140, %s142
    %p149 = scmp.eq.s32.totalorder %s16, 7
    %p150 = por %p148, %p149
    %p151 = scmp.ne.s32.totalorder %s142, %s143
    %p152 = scmp.eq.s32.totalorder %s16, 0
    %p153 = por %p151, %p152
    %p154 = scmp.ne.s32.totalorder %s142, %s143
    %p155 = scmp.eq.s32.totalorder %s17, 7
    %p156 = por %p154, %p155
    %p158 = scmp.ne.s32.totalorder %s143, %s157
    %p159 = scmp.eq.s32.totalorder %s17, 0
    %p160 = por %p158, %p159
    %s161 = ssub.s32 %s18, %s30
    %s162 = ssub.s32 %s19, %s26
    %s163 = sor.u32 %s161, %s162
    %p164 = scmp.eq.s32.totalorder %s163, 0
    %s166 = sadd.s32 %s165, 1
    %s167 = scalar_select %p164, %s165, %s166
    %p170 = pneg %p164
    %p171 = scmp.eq.s32.totalorder %s11, 7
    %p172 = por %p170, %p171
    %p173 = scmp.ne.s32.totalorder %s165, %s168
    %p174 = scmp.eq.s32.totalorder %s11, 0
    %p175 = por %p173, %p174
    %p176 = scmp.ne.s32.totalorder %s165, %s168
    %p177 = scmp.eq.s32.totalorder %s16, 7
    %p178 = por %p176, %p177
    %p179 = scmp.ne.s32.totalorder %s168, %s169
    %p180 = scmp.eq.s32.totalorder %s16, 0
    %p181 = por %p179, %p180
    %p182 = scmp.ne.s32.totalorder %s168, %s169
    %p183 = scmp.eq.s32.totalorder %s17, 7
    %p184 = por %p182, %p183
    %p186 = scmp.ne.s32.totalorder %s169, %s185
    %p187 = scmp.eq.s32.totalorder %s17, 0
    %p188 = por %p186, %p187
    %p189 = scmp.le.s32.totalorder 1, %s11
    %p190 = scmp.lt.s32.totalorder %s11, 9
    %p191 = pnand %p189, %p190
    %p192 = pneg %p191
    // Predicated region
    $region9: #{forward.7} parent=5 // pred_check
      _
    $region10: #{forward.7} parent=5 // pred_check_branch
      %194 = sbr.rel (%p191) target = $region12
    $region11: #{forward.7} parent=5 // pred_region
      %s195 = ssub.s32 %s11, 1
      // Predicated region
      $region13: #{forward.7} parent=11 // pred_check
        %p196 = pneg %p132
      $region14: #{forward.7} parent=11 // pred_check_branch
        %198 = sbr.rel (%p196) target = $region16
      $region15: #{forward.7} parent=11 // pred_region
        _
      $region16: #{forward.7} parent=11 // pred_fallthru
        _
      // Predicated region
      $region17: #{forward.7} parent=11 // pred_check
        %p199 = pneg %p153
      $region18: #{forward.7} parent=11 // pred_check_branch
        %201 = sbr.rel (%p199) target = $region20
      $region19: #{forward.7} parent=11 // pred_region
        _
      $region20: #{forward.7} parent=11 // pred_fallthru
        _
    $region12: #{forward.7} parent=5 // pred_fallthru
      _
    %p202 = scmp.lt.s32.totalorder %s11, 8
    // Predicated region
    $region21: #{forward.7} parent=5 // pred_check
      %p203 = pneg %p202
    $region22: #{forward.7} parent=5 // pred_check_branch
      %205 = sbr.rel (%p203) target = $region24
    $region23: #{forward.7} parent=5 // pred_region
      // Predicated region
      $region25: #{forward.7} parent=23 // pred_check
        %p206 = pneg %p45
      $region26: #{forward.7} parent=23 // pred_check_branch
        %208 = sbr.rel (%p206) target = $region28
      $region27: #{forward.7} parent=23 // pred_region
        %p209 = scmp.lt.s32.totalorder %s18, 1
        %s210 = scalar_select %p209, %s18, 1
        %p211 = scmp.lt.s32.totalorder %s19, 5
        %s212 = scalar_select %p211, %s19, 5
        %s213 = smul.addr %s212, 16
        %s214 = smul.addr %s210, 96
        %s215 = sadd.s32 %s213, %s214
        %s216 = smul.addr %s215, 4
        %s217 = scalar_lea.vmem %s0, %s216
      $region28: #{forward.7} parent=23 // pred_fallthru
        _
      // Predicated region
      $region29: #{forward.7} parent=23 // pred_check
        %p218 = pneg %p75
      $region30: #{forward.7} parent=23 // pred_check_branch
        %220 = sbr.rel (%p218) target = $region32
      $region31: #{forward.7} parent=23 // pred_region
        %s221 = sadd.s32 %s19, 1
        %p222 = scmp.lt.s32.totalorder %s18, 1
        %s223 = scalar_select %p222, %s18, 1
        %p224 = scmp.lt.s32.totalorder %s221, 5
        %s225 = scalar_select %p224, %s221, 5
        %s226 = smul.addr %s225, 16
        %s227 = smul.addr %s223, 96
        %s228 = sadd.s32 %s226, %s227
        %s229 = smul.addr %s228, 4
        %s230 = scalar_lea.vmem %s1, %s229
        %s231 = sadd.s32 %s19, 1
      $region32: #{forward.7} parent=23 // pred_fallthru
        _
      // Predicated region
      $region33: #{forward.7} parent=23 // pred_check
        %p232 = pneg %p105
      $region34: #{forward.7} parent=23 // pred_check_branch
        %234 = sbr.rel (%p232) target = $region36
      $region35: #{forward.7} parent=23 // pred_region
        %s235 = sadd.s32 %s19, 2
        %p236 = scmp.lt.s32.totalorder %s18, 1
        %s237 = scalar_select %p236, %s18, 1
        %p238 = scmp.lt.s32.totalorder %s235, 5
        %s239 = scalar_select %p238, %s235, 5
        %s240 = smul.addr %s239, 16
        %s241 = smul.addr %s237, 96
        %s242 = sadd.s32 %s240, %s241
        %s243 = smul.addr %s242, 4
        %s244 = scalar_lea.vmem %s2, %s243
        %s245 = sadd.s32 %s19, 2
      $region36: #{forward.7} parent=23 // pred_fallthru
        _
    $region24: #{forward.7} parent=5 // pred_fallthru
      _
    %p246 = scmp.le.s32.totalorder 1, %s11
    %p247 = scmp.lt.s32.totalorder %s11, 9
    %p248 = pnand %p246, %p247
    %p249 = pneg %p248
    // Predicated region
    $region37: #{forward.7} parent=5 // pred_check
      _
    $region38: #{forward.7} parent=5 // pred_check_branch
      %251 = sbr.rel (%p248) target = $region40
    $region39: #{forward.7} parent=5 // pred_region
      %s252 = ssub.s32 %s11, 1
      %p253 = scmp.lt.s32.totalorder %s20, 1
      %s254 = scalar_select %p253, %s20, 1
      %p255 = scmp.lt.s32.totalorder %s21, 5
      %s256 = scalar_select %p255, %s21, 5
      %s257 = smul.addr %s256, 16
      %s258 = smul.addr %s254, 96
      %s259 = sadd.s32 %s257, %s258
      %s260 = smul.addr %s259, 4
      %s261 = scalar_lea.vmem %s0, %s260
      %p262 = pneg %p51
      %p263 = pneg %p48
      %s264 = sadd.s32 %s21, 1
      %p265 = scmp.lt.s32.totalorder %s20, 1
      %s266 = scalar_select %p265, %s20, 1
      %p267 = scmp.lt.s32.totalorder %s264, 5
      %s268 = scalar_select %p267, %s264, 5
      %s269 = smul.addr %s268, 16
      %s270 = smul.addr %s266, 96
      %s271 = sadd.s32 %s269, %s270
      %s272 = smul.addr %s271, 4
      %s273 = scalar_lea.vmem %s1, %s272
      %p274 = pneg %p81
      %p275 = pneg %p78
      %s276 = sadd.s32 %s21, 2
      %p277 = scmp.lt.s32.totalorder %s20, 1
      %s278 = scalar_select %p277, %s20, 1
      %p279 = scmp.lt.s32.totalorder %s276, 5
      %s280 = scalar_select %p279, %s276, 5
      %s281 = smul.addr %s280, 16
      %s282 = smul.addr %s278, 96
      %s283 = sadd.s32 %s281, %s282
      %s284 = smul.addr %s283, 4
      %s285 = scalar_lea.vmem %s2, %s284
      %p286 = pneg %p111
      %p287 = pneg %p108
      %p288 = pneg %p132
      %p289 = pneg %p129
      %p290 = pneg %p153
      %p291 = pneg %p150
      %p292 = pneg %p181
      %p293 = pneg %p178
      %p294 = scmp.lt.s32.totalorder %s20, 1
      %s295 = scalar_select %p294, %s20, 1
      %p296 = scmp.lt.s32.totalorder %s21, 3
      %s297 = scalar_select %p296, %s21, 3
      %s298 = smul.addr %s297, 6
      %s299 = smul.addr %s295, 24
      %s300 = sadd.s32 %s298, %s299
      %s301 = smul.addr %s300, 8
      %s302 = scalar_lea.vmem %s5, %s301
      %p303 = scmp.lt.s32.totalorder %s20, 1
      %s304 = scalar_select %p303, %s20, 1
      %p305 = scmp.lt.s32.totalorder %s21, 5
      %s306 = scalar_select %p305, %s21, 5
      %s307 = smul.addr %s306, 16
      %s308 = smul.addr %s304, 96
      %s309 = sadd.s32 %s307, %s308
      %s310 = smul.addr %s309, 4
      %s311 = scalar_lea.vmem %s0, %s310
      %s312 = sadd.s32 %s21, 1
      %p313 = scmp.lt.s32.totalorder %s20, 1
      %s314 = scalar_select %p313, %s20, 1
      %p315 = scmp.lt.s32.totalorder %s312, 5
      %s316 = scalar_select %p315, %s312, 5
      %s317 = smul.addr %s316, 16
      %s318 = smul.addr %s314, 96
      %s319 = sadd.s32 %s317, %s318
      %s320 = smul.addr %s319, 4
      %s321 = scalar_lea.vmem %s1, %s320
      %s322 = sadd.s32 %s21, 1
      %s323 = sadd.s32 %s21, 2
      %p324 = scmp.lt.s32.totalorder %s20, 1
      %s325 = scalar_select %p324, %s20, 1
      %p326 = scmp.lt.s32.totalorder %s323, 5
      %s327 = scalar_select %p326, %s323, 5
      %s328 = smul.addr %s327, 16
      %s329 = smul.addr %s325, 96
      %s330 = sadd.s32 %s328, %s329
      %s331 = smul.addr %s330, 4
      %s332 = scalar_lea.vmem %s2, %s331
      %s333 = sadd.s32 %s21, 2
      %p334 = scmp.lt.s32.totalorder %s20, 1
      %s335 = scalar_select %p334, %s20, 1
      %p336 = scmp.lt.s32.totalorder %s21, 3
      %s337 = scalar_select %p336, %s21, 3
      %s338 = smul.addr %s337, 6
      %s339 = smul.addr %s335, 24
      %s340 = sadd.s32 %s338, %s339
      %s341 = smul.addr %s340, 8
      %s342 = scalar_lea.vmem %s5, %s341
      %v344 = vld [vmem:[%s311] sm:$0xff]
      %v345 = vld [vmem:[%s311 + $0x8] sm:$0xf]
      %v346 = vld [vmem:[%s311 + $0x10] sm:$0xff]
      %v347 = vld [vmem:[%s311 + $0x18] sm:$0xf]
      %v348 = vld [vmem:[%s311 + $0x20] sm:$0xff]
      %v349 = vld [vmem:[%s311 + $0x28] sm:$0xf]
      %v350 = vld [vmem:[%s311 + $0x30] sm:$0xff]
      %v351 = vld [vmem:[%s311 + $0x38] sm:$0xf]
      %v352 = vld [vmem:[%s3] sm:$0xf]
      %v353 = vld [vmem:[%s3 + $0x4] sm:$0x7]
      %v354 = vld [vmem:[%s311] sm:$0xff]
      %v355 = vld [vmem:[%s311 + $0x8] sm:$0xff]
      %v356 = vld [vmem:[%s311 + $0x10] sm:$0xff]
      %v357 = vld [vmem:[%s311 + $0x18] sm:$0xff]
      %v358 = vld [vmem:[%s311 + $0x20] sm:$0xff]
      %v359 = vld [vmem:[%s311 + $0x28] sm:$0xff]
      %v360 = vld [vmem:[%s311 + $0x30] sm:$0xff]
      %v361 = vld [vmem:[%s311 + $0x38] sm:$0xff]
      %s362 = scalar_lea.vmem %s3, 8
      %v363 = vld [vmem:[%s362] sm:$0xf]
      %v364 = vld [vmem:[%s362 + $0x4] sm:$0x7]
      %v367 = vunpack.c.l.b16 %v363
      %v368 = vunpack.c.l.b16 %v364
      %v369 = vpack.c.b16 %v368, %v367
      %v378 = vunpack.c.l.b16 %v354
      %v379 = vunpack.c.h.b16 %v354
      %v380 = vunpack.c.l.b16 %v355
      %v381 = vunpack.c.h.b16 %v355
      %v382 = vunpack.c.l.b16 %v356
      %v383 = vunpack.c.h.b16 %v356
      %v384 = vunpack.c.l.b16 %v357
      %v385 = vunpack.c.h.b16 %v357
      %v386 = vunpack.c.l.b16 %v358
      %v387 = vunpack.c.h.b16 %v358
      %v388 = vunpack.c.l.b16 %v359
      %v389 = vunpack.c.h.b16 %v359
      %v390 = vunpack.c.l.b16 %v360
      %v391 = vunpack.c.h.b16 %v360
      %v392 = vunpack.c.l.b16 %v361
      %v393 = vunpack.c.h.b16 %v361
      %v394 = vpack.c.b16 %v382, %v378
      %v395 = vpack.c.b16 %v383, %v379
      %v396 = vpack.c.b16 %v384, %v380
      %v397 = vpack.c.b16 %v385, %v381
      %v398 = vpack.c.b16 %v390, %v386
      %v399 = vpack.c.b16 %v391, %v387
      %v400 = vpack.c.b16 %v392, %v388
      %v401 = vpack.c.b16 %v393, %v389
      %402 = vrot.lane.b32.xlu0 %v394, 127
      %v403 = vpop.permute.xlu0 %402
      %404 = vrot.lane.b32.xlu0 %v395, 127
      %v405 = vpop.permute.xlu0 %404
      %406 = vrot.lane.b32.xlu0 %v396, 127
      %v407 = vpop.permute.xlu0 %406
      %408 = vrot.lane.b32.xlu0 %v397, 127
      %v409 = vpop.permute.xlu0 %408
      %410 = vrot.lane.b32.xlu0 %v398, 127
      %v411 = vpop.permute.xlu0 %410
      %412 = vrot.lane.b32.xlu0 %v399, 127
      %v413 = vpop.permute.xlu0 %412
      %414 = vrot.lane.b32.xlu0 %v400, 127
      %v415 = vpop.permute.xlu0 %414
      %416 = vrot.lane.b32.xlu0 %v401, 127
      %v417 = vpop.permute.xlu0 %416
      %vm418 = vcmask 1039360
      %v419 = vsel %vm418, %v403, %v405
      %v420 = vsel %vm418, %v405, %v407
      %v421 = vsel %vm418, %v407, %v409
      %v422 = vsel %vm418, %v411, %v413
      %v423 = vsel %vm418, %v413, %v415
      %v424 = vsel %vm418, %v415, %v417
      %vm431 = vcmask 261120
      %v433 = vsel %vm431, %v369, 0
      %435 = vmatpush.bf16.msra.mxu0 0
      %436 = vmatpush.bf16.msra.mxu0 0
      %437 = vmatpush.bf16.msra.mxu0 0
      %438 = vmatpush.bf16.msra.mxu0 0
      %439 = vmatpush.bf16.msra.mxu0 0
      %440 = vmatpush.bf16.msra.mxu0 0
      %441 = vmatpush.bf16.msra.mxu0 %v422
      %442 = vmatpush.bf16.msra.mxu0 %v419
      %443 = vmatmul.bf16.gmra.mxu0 %v433
      %v444 = vpop.f32.mrf.mxu0
      %v445 = vadd.f32 0.0, %v444
      %v446 = vpop.f32.mrf.mxu0
      %v447 = vadd.f32 0.0, %v446
      %448 = vdwg.mxu0
      %449 = vmatpush.bf16.msra.mxu0 0
      %450 = vmatpush.bf16.msra.mxu0 0
      %451 = vmatpush.bf16.msra.mxu0 0
      %452 = vmatpush.bf16.msra.mxu0 0
      %453 = vmatpush.bf16.msra.mxu0 0
      %454 = vmatpush.bf16.msra.mxu0 0
      %455 = vmatpush.bf16.msra.mxu0 %v423
      %456 = vmatpush.bf16.msra.mxu0 %v420
      %457 = vmatmul.bf16.gmra.mxu0 %v433
      %v458 = vpop.f32.mrf.mxu0
      %v459 = vadd.f32 0.0, %v458
      %v460 = vpop.f32.mrf.mxu0
      %v461 = vadd.f32 0.0, %v460
      %462 = vdwg.mxu0
      %463 = vmatpush.bf16.msra.mxu0 0
      %464 = vmatpush.bf16.msra.mxu0 0
      %465 = vmatpush.bf16.msra.mxu0 0
      %466 = vmatpush.bf16.msra.mxu0 0
      %467 = vmatpush.bf16.msra.mxu0 0
      %468 = vmatpush.bf16.msra.mxu0 0
      %469 = vmatpush.bf16.msra.mxu0 %v424
      %470 = vmatpush.bf16.msra.mxu0 %v421
      %471 = vmatmul.bf16.gmra.mxu0 %v433
      %v472 = vpop.f32.mrf.mxu0
      %v473 = vadd.f32 0.0, %v472
      %v474 = vpop.f32.mrf.mxu0
      %v475 = vadd.f32 0.0, %v474
      %476 = vdwg.mxu0
      %v479 = vunpack.c.l.b16 %v352
      %v480 = vunpack.c.l.b16 %v353
      %v481 = vpack.c.b16 %v480, %v479
      %v490 = vunpack.c.l.b16 %v344
      %v491 = vunpack.c.h.b16 %v344
      %v492 = vunpack.c.l.b16 %v345
      %v493 = vunpack.c.l.b16 %v346
      %v494 = vunpack.c.h.b16 %v346
      %v495 = vunpack.c.l.b16 %v347
      %v496 = vunpack.c.l.b16 %v348
      %v497 = vunpack.c.h.b16 %v348
      %v498 = vunpack.c.l.b16 %v349
      %v499 = vunpack.c.l.b16 %v350
      %v500 = vunpack.c.h.b16 %v350
      %v501 = vunpack.c.l.b16 %v351
      %v502 = vpack.c.b16 %v493, %v490
      %v503 = vpack.c.b16 %v494, %v491
      %v504 = vpack.c.b16 %v495, %v492
      %v505 = vpack.c.b16 %v499, %v496
      %v506 = vpack.c.b16 %v500, %v497
      %v507 = vpack.c.b16 %v501, %v498
      %v515 = vsel %vm431, %v481, 0
      %517 = vmatpush.bf16.msra.mxu0 0
      %518 = vmatpush.bf16.msra.mxu0 0
      %519 = vmatpush.bf16.msra.mxu0 0
      %520 = vmatpush.bf16.msra.mxu0 0
      %521 = vmatpush.bf16.msra.mxu0 0
      %522 = vmatpush.bf16.msra.mxu0 0
      %523 = vmatpush.bf16.msra.mxu0 %v505
      %524 = vmatpush.bf16.msra.mxu0 %v502
      %525 = vmatmul.bf16.gmra.mxu0 %v515
      %v526 = vpop.f32.mrf.mxu0
      %v527 = vadd.f32 %v445, %v526
      %v528 = vpop.f32.mrf.mxu0
      %v529 = vadd.f32 %v447, %v528
      %530 = vdwg.mxu0
      %531 = vmatpush.bf16.msra.mxu0 0
      %532 = vmatpush.bf16.msra.mxu0 0
      %533 = vmatpush.bf16.msra.mxu0 0
      %534 = vmatpush.bf16.msra.mxu0 0
      %535 = vmatpush.bf16.msra.mxu0 0
      %536 = vmatpush.bf16.msra.mxu0 0
      %537 = vmatpush.bf16.msra.mxu0 %v506
      %538 = vmatpush.bf16.msra.mxu0 %v503
      %539 = vmatmul.bf16.gmra.mxu0 %v515
      %v540 = vpop.f32.mrf.mxu0
      %v541 = vadd.f32 %v459, %v540
      %v542 = vpop.f32.mrf.mxu0
      %v543 = vadd.f32 %v461, %v542
      %544 = vdwg.mxu0
      %545 = vmatpush.bf16.msra.mxu0 0
      %546 = vmatpush.bf16.msra.mxu0 0
      %547 = vmatpush.bf16.msra.mxu0 0
      %548 = vmatpush.bf16.msra.mxu0 0
      %549 = vmatpush.bf16.msra.mxu0 0
      %550 = vmatpush.bf16.msra.mxu0 0
      %551 = vmatpush.bf16.msra.mxu0 %v507
      %552 = vmatpush.bf16.msra.mxu0 %v504
      %553 = vmatmul.bf16.gmra.mxu0 %v515
      %v554 = vpop.f32.mrf.mxu0
      %v555 = vadd.f32 %v473, %v554
      %v556 = vpop.f32.mrf.mxu0
      %v557 = vadd.f32 %v475, %v556
      %558 = vdwg.mxu0
      %s559 = scalar_lea.vmem %s3, 16
      %v560 = vld [vmem:[%s559] sm:$0xf]
      %v561 = vld [vmem:[%s559 + $0x4] sm:$0x7]
      %v564 = vunpack.c.l.b16 %v560
      %v565 = vunpack.c.l.b16 %v561
      %v566 = vpack.c.b16 %v565, %v564
      %567 = vrot.lane.b32.xlu0 %v394, 126
      %v568 = vpop.permute.xlu0 %567
      %569 = vrot.lane.b32.xlu0 %v395, 126
      %v570 = vpop.permute.xlu0 %569
      %571 = vrot.lane.b32.xlu0 %v396, 126
      %v572 = vpop.permute.xlu0 %571
      %573 = vrot.lane.b32.xlu0 %v397, 126
      %v574 = vpop.permute.xlu0 %573
      %575 = vrot.lane.b32.xlu0 %v398, 126
      %v576 = vpop.permute.xlu0 %575
      %577 = vrot.lane.b32.xlu0 %v399, 126
      %v578 = vpop.permute.xlu0 %577
      %579 = vrot.lane.b32.xlu0 %v400, 126
      %v580 = vpop.permute.xlu0 %579
      %581 = vrot.lane.b32.xlu0 %v401, 126
      %v582 = vpop.permute.xlu0 %581
      %vm583 = vcmask 1031168
      %v584 = vsel %vm583, %v568, %v570
      %v585 = vsel %vm583, %v570, %v572
      %v586 = vsel %vm583, %v572, %v574
      %v587 = vsel %vm583, %v576, %v578
      %v588 = vsel %vm583, %v578, %v580
      %v589 = vsel %vm583, %v580, %v582
      %v597 = vsel %vm431, %v566, 0
      %599 = vmatpush.bf16.msra.mxu0 0
      %600 = vmatpush.bf16.msra.mxu0 0
      %601 = vmatpush.bf16.msra.mxu0 0
      %602 = vmatpush.bf16.msra.mxu0 0
      %603 = vmatpush.bf16.msra.mxu0 0
      %604 = vmatpush.bf16.msra.mxu0 0
      %605 = vmatpush.bf16.msra.mxu0 %v587
      %606 = vmatpush.bf16.msra.mxu0 %v584
      %607 = vmatmul.bf16.gmra.mxu0 %v597
      %v608 = vpop.f32.mrf.mxu0
      %v609 = vadd.f32 0.0, %v608
      %v610 = vpop.f32.mrf.mxu0
      %v611 = vadd.f32 0.0, %v610
      %612 = vdwg.mxu0
      %613 = vmatpush.bf16.msra.mxu0 0
      %614 = vmatpush.bf16.msra.mxu0 0
      %615 = vmatpush.bf16.msra.mxu0 0
      %616 = vmatpush.bf16.msra.mxu0 0
      %617 = vmatpush.bf16.msra.mxu0 0
      %618 = vmatpush.bf16.msra.mxu0 0
      %619 = vmatpush.bf16.msra.mxu0 %v588
      %620 = vmatpush.bf16.msra.mxu0 %v585
      %621 = vmatmul.bf16.gmra.mxu0 %v597
      %v622 = vpop.f32.mrf.mxu0
      %v623 = vadd.f32 0.0, %v622
      %v624 = vpop.f32.mrf.mxu0
      %v625 = vadd.f32 0.0, %v624
      %626 = vdwg.mxu0
      %627 = vmatpush.bf16.msra.mxu0 0
      %628 = vmatpush.bf16.msra.mxu0 0
      %629 = vmatpush.bf16.msra.mxu0 0
      %630 = vmatpush.bf16.msra.mxu0 0
      %631 = vmatpush.bf16.msra.mxu0 0
      %632 = vmatpush.bf16.msra.mxu0 0
      %633 = vmatpush.bf16.msra.mxu0 %v589
      %634 = vmatpush.bf16.msra.mxu0 %v586
      %635 = vmatmul.bf16.gmra.mxu0 %v597
      %v636 = vpop.f32.mrf.mxu0
      %v637 = vadd.f32 0.0, %v636
      %v638 = vpop.f32.mrf.mxu0
      %v639 = vadd.f32 0.0, %v638
      %640 = vdwg.mxu0
      %v641 = vadd.f32 %v527, %v609
      %v642 = vadd.f32 %v541, %v623
      %v643 = vadd.f32 %v555, %v637
      %v644 = vadd.f32 %v529, %v611
      %v645 = vadd.f32 %v543, %v625
      %v646 = vadd.f32 %v557, %v639
      %s647 = scalar_lea.vmem %s3, 24
      %v648 = vld [vmem:[%s647] sm:$0xf]
      %v649 = vld [vmem:[%s647 + $0x4] sm:$0x7]
      %v652 = vunpack.c.l.b16 %v648
      %v653 = vunpack.c.l.b16 %v649
      %v654 = vpack.c.b16 %v653, %v652
      %655 = vrot.lane.b32.xlu0 %v394, 110
      %v656 = vpop.permute.xlu0 %655
      %657 = vrot.lane.b32.xlu0 %v395, 110
      %v658 = vpop.permute.xlu0 %657
      %659 = vrot.lane.b32.xlu0 %v396, 110
      %v660 = vpop.permute.xlu0 %659
      %661 = vrot.lane.b32.xlu0 %v397, 110
      %v662 = vpop.permute.xlu0 %661
      %663 = vrot.lane.b32.xlu0 %v398, 110
      %v664 = vpop.permute.xlu0 %663
      %665 = vrot.lane.b32.xlu0 %v399, 110
      %v666 = vpop.permute.xlu0 %665
      %667 = vrot.lane.b32.xlu0 %v400, 110
      %v668 = vpop.permute.xlu0 %667
      %669 = vrot.lane.b32.xlu0 %v401, 110
      %v670 = vpop.permute.xlu0 %669
      %vm671 = vcmask 900096
      %v672 = vsel %vm671, %v656, %v658
      %v673 = vsel %vm671, %v658, %v660
      %v674 = vsel %vm671, %v660, %v662
      %v675 = vsel %vm671, %v664, %v666
      %v676 = vsel %vm671, %v666, %v668
      %v677 = vsel %vm671, %v668, %v670
      %v685 = vsel %vm431, %v654, 0
      %687 = vmatpush.bf16.msra.mxu0 0
      %688 = vmatpush.bf16.msra.mxu0 0
      %689 = vmatpush.bf16.msra.mxu0 0
      %690 = vmatpush.bf16.msra.mxu0 0
      %691 = vmatpush.bf16.msra.mxu0 0
      %692 = vmatpush.bf16.msra.mxu0 0
      %693 = vmatpush.bf16.msra.mxu0 %v675
      %694 = vmatpush.bf16.msra.mxu0 %v672
      %695 = vmatmul.bf16.gmra.mxu0 %v685
      %v696 = vpop.f32.mrf.mxu0
      %v697 = vadd.f32 0.0, %v696
      %v698 = vpop.f32.mrf.mxu0
      %v699 = vadd.f32 0.0, %v698
      %700 = vdwg.mxu0
      %701 = vmatpush.bf16.msra.mxu0 0
      %702 = vmatpush.bf16.msra.mxu0 0
      %703 = vmatpush.bf16.msra.mxu0 0
      %704 = vmatpush.bf16.msra.mxu0 0
      %705 = vmatpush.bf16.msra.mxu0 0
      %706 = vmatpush.bf16.msra.mxu0 0
      %707 = vmatpush.bf16.msra.mxu0 %v676
      %708 = vmatpush.bf16.msra.mxu0 %v673
      %709 = vmatmul.bf16.gmra.mxu0 %v685
      %v710 = vpop.f32.mrf.mxu0
      %v711 = vadd.f32 0.0, %v710
      %v712 = vpop.f32.mrf.mxu0
      %v713 = vadd.f32 0.0, %v712
      %714 = vdwg.mxu0
      %715 = vmatpush.bf16.msra.mxu0 0
      %716 = vmatpush.bf16.msra.mxu0 0
      %717 = vmatpush.bf16.msra.mxu0 0
      %718 = vmatpush.bf16.msra.mxu0 0
      %719 = vmatpush.bf16.msra.mxu0 0
      %720 = vmatpush.bf16.msra.mxu0 0
      %721 = vmatpush.bf16.msra.mxu0 %v677
      %722 = vmatpush.bf16.msra.mxu0 %v674
      %723 = vmatmul.bf16.gmra.mxu0 %v685
      %v724 = vpop.f32.mrf.mxu0
      %v725 = vadd.f32 0.0, %v724
      %v726 = vpop.f32.mrf.mxu0
      %v727 = vadd.f32 0.0, %v726
      %728 = vdwg.mxu0
      %v729 = vadd.f32 %v641, %v697
      %v730 = vadd.f32 %v642, %v711
      %v731 = vadd.f32 %v643, %v725
      %v732 = vadd.f32 %v644, %v699
      %v733 = vadd.f32 %v645, %v713
      %v734 = vadd.f32 %v646, %v727
      %s735 = scalar_lea.vmem %s3, 32
      %v736 = vld [vmem:[%s735] sm:$0xf]
      %v737 = vld [vmem:[%s735 + $0x4] sm:$0x7]
      %v740 = vunpack.c.l.b16 %v736
      %v741 = vunpack.c.l.b16 %v737
      %v742 = vpack.c.b16 %v741, %v740
      %743 = vrot.lane.b32.xlu0 %v394, 109
      %v744 = vpop.permute.xlu0 %743
      %745 = vrot.lane.b32.xlu0 %v395, 109
      %v746 = vpop.permute.xlu0 %745
      %747 = vrot.lane.b32.xlu0 %v396, 109
      %v748 = vpop.permute.xlu0 %747
      %749 = vrot.lane.b32.xlu0 %v397, 109
      %v750 = vpop.permute.xlu0 %749
      %751 = vrot.lane.b32.xlu0 %v398, 109
      %v752 = vpop.permute.xlu0 %751
      %753 = vrot.lane.b32.xlu0 %v399, 109
      %v754 = vpop.permute.xlu0 %753
      %755 = vrot.lane.b32.xlu0 %v400, 109
      %v756 = vpop.permute.xlu0 %755
      %757 = vrot.lane.b32.xlu0 %v401, 109
      %v758 = vpop.permute.xlu0 %757
      %vm759 = vcmask 891904
      %v760 = vsel %vm759, %v744, %v746
      %v761 = vsel %vm759, %v746, %v748
      %v762 = vsel %vm759, %v748, %v750
      %v763 = vsel %vm759, %v752, %v754
      %v764 = vsel %vm759, %v754, %v756
      %v765 = vsel %vm759, %v756, %v758
      %v773 = vsel %vm431, %v742, 0
      %775 = vmatpush.bf16.msra.mxu0 0
      %776 = vmatpush.bf16.msra.mxu0 0
      %777 = vmatpush.bf16.msra.mxu0 0
      %778 = vmatpush.bf16.msra.mxu0 0
      %779 = vmatpush.bf16.msra.mxu0 0
      %780 = vmatpush.bf16.msra.mxu0 0
      %781 = vmatpush.bf16.msra.mxu0 %v763
      %782 = vmatpush.bf16.msra.mxu0 %v760
      %783 = vmatmul.bf16.gmra.mxu0 %v773
      %v784 = vpop.f32.mrf.mxu0
      %v785 = vadd.f32 0.0, %v784
      %v786 = vpop.f32.mrf.mxu0
      %v787 = vadd.f32 0.0, %v786
      %788 = vdwg.mxu0
      %789 = vmatpush.bf16.msra.mxu0 0
      %790 = vmatpush.bf16.msra.mxu0 0
      %791 = vmatpush.bf16.msra.mxu0 0
      %792 = vmatpush.bf16.msra.mxu0 0
      %793 = vmatpush.bf16.msra.mxu0 0
      %794 = vmatpush.bf16.msra.mxu0 0
      %795 = vmatpush.bf16.msra.mxu0 %v764
      %796 = vmatpush.bf16.msra.mxu0 %v761
      %797 = vmatmul.bf16.gmra.mxu0 %v773
      %v798 = vpop.f32.mrf.mxu0
      %v799 = vadd.f32 0.0, %v798
      %v800 = vpop.f32.mrf.mxu0
      %v801 = vadd.f32 0.0, %v800
      %802 = vdwg.mxu0
      %803 = vmatpush.bf16.msra.mxu0 0
      %804 = vmatpush.bf16.msra.mxu0 0
      %805 = vmatpush.bf16.msra.mxu0 0
      %806 = vmatpush.bf16.msra.mxu0 0
      %807 = vmatpush.bf16.msra.mxu0 0
      %808 = vmatpush.bf16.msra.mxu0 0
      %809 = vmatpush.bf16.msra.mxu0 %v765
      %810 = vmatpush.bf16.msra.mxu0 %v762
      %811 = vmatmul.bf16.gmra.mxu0 %v773
      %v812 = vpop.f32.mrf.mxu0
      %v813 = vadd.f32 0.0, %v812
      %v814 = vpop.f32.mrf.mxu0
      %v815 = vadd.f32 0.0, %v814
      %816 = vdwg.mxu0
      %v817 = vadd.f32 %v729, %v785
      %v818 = vadd.f32 %v730, %v799
      %v819 = vadd.f32 %v731, %v813
      %v820 = vadd.f32 %v732, %v787
      %v821 = vadd.f32 %v733, %v801
      %v822 = vadd.f32 %v734, %v815
      %s823 = scalar_lea.vmem %s3, 40
      %v824 = vld [vmem:[%s823] sm:$0xf]
      %v825 = vld [vmem:[%s823 + $0x4] sm:$0x7]
      %v828 = vunpack.c.l.b16 %v824
      %v829 = vunpack.c.l.b16 %v825
      %v830 = vpack.c.b16 %v829, %v828
      %831 = vrot.lane.b32.xlu0 %v394, 108
      %v832 = vpop.permute.xlu0 %831
      %833 = vrot.lane.b32.xlu0 %v395, 108
      %v834 = vpop.permute.xlu0 %833
      %835 = vrot.lane.b32.xlu0 %v396, 108
      %v836 = vpop.permute.xlu0 %835
      %837 = vrot.lane.b32.xlu0 %v397, 108
      %v838 = vpop.permute.xlu0 %837
      %839 = vrot.lane.b32.xlu0 %v398, 108
      %v840 = vpop.permute.xlu0 %839
      %841 = vrot.lane.b32.xlu0 %v399, 108
      %v842 = vpop.permute.xlu0 %841
      %843 = vrot.lane.b32.xlu0 %v400, 108
      %v844 = vpop.permute.xlu0 %843
      %845 = vrot.lane.b32.xlu0 %v401, 108
      %v846 = vpop.permute.xlu0 %845
      %vm847 = vcmask 883712
      %v848 = vsel %vm847, %v832, %v834
      %v849 = vsel %vm847, %v834, %v836
      %v850 = vsel %vm847, %v836, %v838
      %v851 = vsel %vm847, %v840, %v842
      %v852 = vsel %vm847, %v842, %v844
      %v853 = vsel %vm847, %v844, %v846
      %v861 = vsel %vm431, %v830, 0
      %863 = vmatpush.bf16.msra.mxu0 0
      %864 = vmatpush.bf16.msra.mxu0 0
      %865 = vmatpush.bf16.msra.mxu0 0
      %866 = vmatpush.bf16.msra.mxu0 0
      %867 = vmatpush.bf16.msra.mxu0 0
      %868 = vmatpush.bf16.msra.mxu0 0
      %869 = vmatpush.bf16.msra.mxu0 %v851
      %870 = vmatpush.bf16.msra.mxu0 %v848
      %871 = vmatmul.bf16.gmra.mxu0 %v861
      %v872 = vpop.f32.mrf.mxu0
      %v873 = vadd.f32 0.0, %v872
      %v874 = vpop.f32.mrf.mxu0
      %v875 = vadd.f32 0.0, %v874
      %876 = vdwg.mxu0
      %877 = vmatpush.bf16.msra.mxu0 0
      %878 = vmatpush.bf16.msra.mxu0 0
      %879 = vmatpush.bf16.msra.mxu0 0
      %880 = vmatpush.bf16.msra.mxu0 0
      %881 = vmatpush.bf16.msra.mxu0 0
      %882 = vmatpush.bf16.msra.mxu0 0
      %883 = vmatpush.bf16.msra.mxu0 %v852
      %884 = vmatpush.bf16.msra.mxu0 %v849
      %885 = vmatmul.bf16.gmra.mxu0 %v861
      %v886 = vpop.f32.mrf.mxu0
      %v887 = vadd.f32 0.0, %v886
      %v888 = vpop.f32.mrf.mxu0
      %v889 = vadd.f32 0.0, %v888
      %890 = vdwg.mxu0
      %891 = vmatpush.bf16.msra.mxu0 0
      %892 = vmatpush.bf16.msra.mxu0 0
      %893 = vmatpush.bf16.msra.mxu0 0
      %894 = vmatpush.bf16.msra.mxu0 0
      %895 = vmatpush.bf16.msra.mxu0 0
      %896 = vmatpush.bf16.msra.mxu0 0
      %897 = vmatpush.bf16.msra.mxu0 %v853
      %898 = vmatpush.bf16.msra.mxu0 %v850
      %899 = vmatmul.bf16.gmra.mxu0 %v861
      %v900 = vpop.f32.mrf.mxu0
      %v901 = vadd.f32 0.0, %v900
      %v902 = vpop.f32.mrf.mxu0
      %v903 = vadd.f32 0.0, %v902
      %904 = vdwg.mxu0
      %v905 = vadd.f32 %v817, %v873
      %v906 = vadd.f32 %v818, %v887
      %v907 = vadd.f32 %v819, %v901
      %v908 = vadd.f32 %v820, %v875
      %v909 = vadd.f32 %v821, %v889
      %v910 = vadd.f32 %v822, %v903
      %s911 = scalar_lea.vmem %s3, 48
      %v912 = vld [vmem:[%s911] sm:$0xf]
      %v913 = vld [vmem:[%s911 + $0x4] sm:$0x7]
      %v916 = vunpack.c.l.b16 %v912
      %v917 = vunpack.c.l.b16 %v913
      %v918 = vpack.c.b16 %v917, %v916
      %919 = vrot.lane.b32.xlu0 %v394, 92
      %v920 = vpop.permute.xlu0 %919
      %921 = vrot.lane.b32.xlu0 %v395, 92
      %v922 = vpop.permute.xlu0 %921
      %923 = vrot.lane.b32.xlu0 %v396, 92
      %v924 = vpop.permute.xlu0 %923
      %925 = vrot.lane.b32.xlu0 %v397, 92
      %v926 = vpop.permute.xlu0 %925
      %927 = vrot.lane.b32.xlu0 %v398, 92
      %v928 = vpop.permute.xlu0 %927
      %929 = vrot.lane.b32.xlu0 %v399, 92
      %v930 = vpop.permute.xlu0 %929
      %931 = vrot.lane.b32.xlu0 %v400, 92
      %v932 = vpop.permute.xlu0 %931
      %933 = vrot.lane.b32.xlu0 %v401, 92
      %v934 = vpop.permute.xlu0 %933
      %vm935 = vcmask 752640
      %v936 = vsel %vm935, %v920, %v922
      %v937 = vsel %vm935, %v922, %v924
      %v938 = vsel %vm935, %v924, %v926
      %v939 = vsel %vm935, %v928, %v930
      %v940 = vsel %vm935, %v930, %v932
      %v941 = vsel %vm935, %v932, %v934
      %v949 = vsel %vm431, %v918, 0
      %951 = vmatpush.bf16.msra.mxu0 0
      %952 = vmatpush.bf16.msra.mxu0 0
      %953 = vmatpush.bf16.msra.mxu0 0
      %954 = vmatpush.bf16.msra.mxu0 0
      %955 = vmatpush.bf16.msra.mxu0 0
      %956 = vmatpush.bf16.msra.mxu0 0
      %957 = vmatpush.bf16.msra.mxu0 %v939
      %958 = vmatpush.bf16.msra.mxu0 %v936
      %959 = vmatmul.bf16.gmra.mxu0 %v949
      %v960 = vpop.f32.mrf.mxu0
      %v961 = vadd.f32 0.0, %v960
      %v962 = vpop.f32.mrf.mxu0
      %v963 = vadd.f32 0.0, %v962
      %964 = vdwg.mxu0
      %965 = vmatpush.bf16.msra.mxu0 0
      %966 = vmatpush.bf16.msra.mxu0 0
      %967 = vmatpush.bf16.msra.mxu0 0
      %968 = vmatpush.bf16.msra.mxu0 0
      %969 = vmatpush.bf16.msra.mxu0 0
      %970 = vmatpush.bf16.msra.mxu0 0
      %971 = vmatpush.bf16.msra.mxu0 %v940
      %972 = vmatpush.bf16.msra.mxu0 %v937
      %973 = vmatmul.bf16.gmra.mxu0 %v949
      %v974 = vpop.f32.mrf.mxu0
      %v975 = vadd.f32 0.0, %v974
      %v976 = vpop.f32.mrf.mxu0
      %v977 = vadd.f32 0.0, %v976
      %978 = vdwg.mxu0
      %979 = vmatpush.bf16.msra.mxu0 0
      %980 = vmatpush.bf16.msra.mxu0 0
      %981 = vmatpush.bf16.msra.mxu0 0
      %982 = vmatpush.bf16.msra.mxu0 0
      %983 = vmatpush.bf16.msra.mxu0 0
      %984 = vmatpush.bf16.msra.mxu0 0
      %985 = vmatpush.bf16.msra.mxu0 %v941
      %986 = vmatpush.bf16.msra.mxu0 %v938
      %987 = vmatmul.bf16.gmra.mxu0 %v949
      %v988 = vpop.f32.mrf.mxu0
      %v989 = vadd.f32 0.0, %v988
      %v990 = vpop.f32.mrf.mxu0
      %v991 = vadd.f32 0.0, %v990
      %992 = vdwg.mxu0
      %v993 = vadd.f32 %v905, %v961
      %v994 = vadd.f32 %v906, %v975
      %v995 = vadd.f32 %v907, %v989
      %v996 = vadd.f32 %v908, %v963
      %v997 = vadd.f32 %v909, %v977
      %v998 = vadd.f32 %v910, %v991
      %s999 = scalar_lea.vmem %s3, 56
      %v1000 = vld [vmem:[%s999] sm:$0xf]
      %v1001 = vld [vmem:[%s999 + $0x4] sm:$0x7]
      %v1004 = vunpack.c.l.b16 %v1000
      %v1005 = vunpack.c.l.b16 %v1001
      %v1006 = vpack.c.b16 %v1005, %v1004
      %1007 = vrot.lane.b32.xlu0 %v394, 91
      %v1008 = vpop.permute.xlu0 %1007
      %1009 = vrot.lane.b32.xlu0 %v395, 91
      %v1010 = vpop.permute.xlu0 %1009
      %1011 = vrot.lane.b32.xlu0 %v396, 91
      %v1012 = vpop.permute.xlu0 %1011
      %1013 = vrot.lane.b32.xlu0 %v397, 91
      %v1014 = vpop.permute.xlu0 %1013
      %1015 = vrot.lane.b32.xlu0 %v398, 91
      %v1016 = vpop.permute.xlu0 %1015
      %1017 = vrot.lane.b32.xlu0 %v399, 91
      %v1018 = vpop.permute.xlu0 %1017
      %1019 = vrot.lane.b32.xlu0 %v400, 91
      %v1020 = vpop.permute.xlu0 %1019
      %1021 = vrot.lane.b32.xlu0 %v401, 91
      %v1022 = vpop.permute.xlu0 %1021
      %vm1023 = vcmask 744448
      %v1024 = vsel %vm1023, %v1008, %v1010
      %v1025 = vsel %vm1023, %v1010, %v1012
      %v1026 = vsel %vm1023, %v1012, %v1014
      %v1027 = vsel %vm1023, %v1016, %v1018
      %v1028 = vsel %vm1023, %v1018, %v1020
      %v1029 = vsel %vm1023, %v1020, %v1022
      %v1037 = vsel %vm431, %v1006, 0
      %1039 = vmatpush.bf16.msra.mxu0 0
      %1040 = vmatpush.bf16.msra.mxu0 0
      %1041 = vmatpush.bf16.msra.mxu0 0
      %1042 = vmatpush.bf16.msra.mxu0 0
      %1043 = vmatpush.bf16.msra.mxu0 0
      %1044 = vmatpush.bf16.msra.mxu0 0
      %1045 = vmatpush.bf16.msra.mxu0 %v1027
      %1046 = vmatpush.bf16.msra.mxu0 %v1024
      %1047 = vmatmul.bf16.gmra.mxu0 %v1037
      %v1048 = vpop.f32.mrf.mxu0
      %v1049 = vadd.f32 0.0, %v1048
      %v1050 = vpop.f32.mrf.mxu0
      %v1051 = vadd.f32 0.0, %v1050
      %1052 = vdwg.mxu0
      %1053 = vmatpush.bf16.msra.mxu0 0
      %1054 = vmatpush.bf16.msra.mxu0 0
      %1055 = vmatpush.bf16.msra.mxu0 0
      %1056 = vmatpush.bf16.msra.mxu0 0
      %1057 = vmatpush.bf16.msra.mxu0 0
      %1058 = vmatpush.bf16.msra.mxu0 0
      %1059 = vmatpush.bf16.msra.mxu0 %v1028
      %1060 = vmatpush.bf16.msra.mxu0 %v1025
      %1061 = vmatmul.bf16.gmra.mxu0 %v1037
      %v1062 = vpop.f32.mrf.mxu0
      %v1063 = vadd.f32 0.0, %v1062
      %v1064 = vpop.f32.mrf.mxu0
      %v1065 = vadd.f32 0.0, %v1064
      %1066 = vdwg.mxu0
      %1067 = vmatpush.bf16.msra.mxu0 0
      %1068 = vmatpush.bf16.msra.mxu0 0
      %1069 = vmatpush.bf16.msra.mxu0 0
      %1070 = vmatpush.bf16.msra.mxu0 0
      %1071 = vmatpush.bf16.msra.mxu0 0
      %1072 = vmatpush.bf16.msra.mxu0 0
      %1073 = vmatpush.bf16.msra.mxu0 %v1029
      %1074 = vmatpush.bf16.msra.mxu0 %v1026
      %1075 = vmatmul.bf16.gmra.mxu0 %v1037
      %v1076 = vpop.f32.mrf.mxu0
      %v1077 = vadd.f32 0.0, %v1076
      %v1078 = vpop.f32.mrf.mxu0
      %v1079 = vadd.f32 0.0, %v1078
      %1080 = vdwg.mxu0
      %v1081 = vadd.f32 %v993, %v1049
      %v1082 = vadd.f32 %v994, %v1063
      %v1083 = vadd.f32 %v995, %v1077
      %v1084 = vadd.f32 %v996, %v1051
      %v1085 = vadd.f32 %v997, %v1065
      %v1086 = vadd.f32 %v998, %v1079
      %s1087 = scalar_lea.vmem %s3, 64
      %v1088 = vld [vmem:[%s1087] sm:$0xf]
      %v1089 = vld [vmem:[%s1087 + $0x4] sm:$0x7]
      %v1092 = vunpack.c.l.b16 %v1088
      %v1093 = vunpack.c.l.b16 %v1089
      %v1094 = vpack.c.b16 %v1093, %v1092
      %1095 = vrot.lane.b32.xlu0 %v394, 90
      %v1096 = vpop.permute.xlu0 %1095
      %1097 = vrot.lane.b32.xlu0 %v395, 90
      %v1098 = vpop.permute.xlu0 %1097
      %1099 = vrot.lane.b32.xlu0 %v396, 90
      %v1100 = vpop.permute.xlu0 %1099
      %1101 = vrot.lane.b32.xlu0 %v397, 90
      %v1102 = vpop.permute.xlu0 %1101
      %1103 = vrot.lane.b32.xlu0 %v398, 90
      %v1104 = vpop.permute.xlu0 %1103
      %1105 = vrot.lane.b32.xlu0 %v399, 90
      %v1106 = vpop.permute.xlu0 %1105
      %1107 = vrot.lane.b32.xlu0 %v400, 90
      %v1108 = vpop.permute.xlu0 %1107
      %1109 = vrot.lane.b32.xlu0 %v401, 90
      %v1110 = vpop.permute.xlu0 %1109
      %vm1111 = vcmask 736256
      %v1112 = vsel %vm1111, %v1096, %v1098
      %v1113 = vsel %vm1111, %v1098, %v1100
      %v1114 = vsel %vm1111, %v1100, %v1102
      %v1115 = vsel %vm1111, %v1104, %v1106
      %v1116 = vsel %vm1111, %v1106, %v1108
      %v1117 = vsel %vm1111, %v1108, %v1110
      %v1125 = vsel %vm431, %v1094, 0
      %1127 = vmatpush.bf16.msra.mxu0 0
      %1128 = vmatpush.bf16.msra.mxu0 0
      %1129 = vmatpush.bf16.msra.mxu0 0
      %1130 = vmatpush.bf16.msra.mxu0 0
      %1131 = vmatpush.bf16.msra.mxu0 0
      %1132 = vmatpush.bf16.msra.mxu0 0
      %1133 = vmatpush.bf16.msra.mxu0 %v1115
      %1134 = vmatpush.bf16.msra.mxu0 %v1112
      %1135 = vmatmul.bf16.gmra.mxu0 %v1125
      %v1136 = vpop.f32.mrf.mxu0
      %v1137 = vadd.f32 0.0, %v1136
      %v1138 = vpop.f32.mrf.mxu0
      %v1139 = vadd.f32 0.0, %v1138
      %1140 = vdwg.mxu0
      %1141 = vmatpush.bf16.msra.mxu0 0
      %1142 = vmatpush.bf16.msra.mxu0 0
      %1143 = vmatpush.bf16.msra.mxu0 0
      %1144 = vmatpush.bf16.msra.mxu0 0
      %1145 = vmatpush.bf16.msra.mxu0 0
      %1146 = vmatpush.bf16.msra.mxu0 0
      %1147 = vmatpush.bf16.msra.mxu0 %v1116
      %1148 = vmatpush.bf16.msra.mxu0 %v1113
      %1149 = vmatmul.bf16.gmra.mxu0 %v1125
      %v1150 = vpop.f32.mrf.mxu0
      %v1151 = vadd.f32 0.0, %v1150
      %v1152 = vpop.f32.mrf.mxu0
      %v1153 = vadd.f32 0.0, %v1152
      %1154 = vdwg.mxu0
      %1155 = vmatpush.bf16.msra.mxu0 0
      %1156 = vmatpush.bf16.msra.mxu0 0
      %1157 = vmatpush.bf16.msra.mxu0 0
      %1158 = vmatpush.bf16.msra.mxu0 0
      %1159 = vmatpush.bf16.msra.mxu0 0
      %1160 = vmatpush.bf16.msra.mxu0 0
      %1161 = vmatpush.bf16.msra.mxu0 %v1117
      %1162 = vmatpush.bf16.msra.mxu0 %v1114
      %1163 = vmatmul.bf16.gmra.mxu0 %v1125
      %v1164 = vpop.f32.mrf.mxu0
      %v1165 = vadd.f32 0.0, %v1164
      %v1166 = vpop.f32.mrf.mxu0
      %v1167 = vadd.f32 0.0, %v1166
      %1168 = vdwg.mxu0
      %v1169 = vadd.f32 %v1081, %v1137
      %v1170 = vadd.f32 %v1082, %v1151
      %v1171 = vadd.f32 %v1083, %v1165
      %v1172 = vadd.f32 %v1084, %v1139
      %v1173 = vadd.f32 %v1085, %v1153
      %v1174 = vadd.f32 %v1086, %v1167
      %v1175 = vld [vmem:[%s321] sm:$0xff]
      %v1176 = vld [vmem:[%s321 + $0x8] sm:$0xf]
      %v1177 = vld [vmem:[%s321 + $0x10] sm:$0xff]
      %v1178 = vld [vmem:[%s321 + $0x18] sm:$0xf]
      %v1179 = vld [vmem:[%s321 + $0x20] sm:$0xff]
      %v1180 = vld [vmem:[%s321 + $0x28] sm:$0xf]
      %v1181 = vld [vmem:[%s321 + $0x30] sm:$0xff]
      %v1182 = vld [vmem:[%s321 + $0x38] sm:$0xf]
      %s1183 = scalar_lea.vmem %s3, 72
      %v1184 = vld [vmem:[%s1183] sm:$0xf]
      %v1185 = vld [vmem:[%s1183 + $0x4] sm:$0x7]
      %v1188 = vunpack.c.l.b16 %v1184
      %v1189 = vunpack.c.l.b16 %v1185
      %v1190 = vpack.c.b16 %v1189, %v1188
      %v1199 = vunpack.c.l.b16 %v1175
      %v1200 = vunpack.c.h.b16 %v1175
      %v1201 = vunpack.c.l.b16 %v1176
      %v1202 = vunpack.c.l.b16 %v1177
      %v1203 = vunpack.c.h.b16 %v1177
      %v1204 = vunpack.c.l.b16 %v1178
      %v1205 = vunpack.c.l.b16 %v1179
      %v1206 = vunpack.c.h.b16 %v1179
      %v1207 = vunpack.c.l.b16 %v1180
      %v1208 = vunpack.c.l.b16 %v1181
      %v1209 = vunpack.c.h.b16 %v1181
      %v1210 = vunpack.c.l.b16 %v1182
      %v1211 = vpack.c.b16 %v1202, %v1199
      %v1212 = vpack.c.b16 %v1203, %v1200
      %v1213 = vpack.c.b16 %v1204, %v1201
      %v1214 = vpack.c.b16 %v1208, %v1205
      %v1215 = vpack.c.b16 %v1209, %v1206
      %v1216 = vpack.c.b16 %v1210, %v1207
      %v1224 = vsel %vm431, %v1190, 0
      %1226 = vmatpush.bf16.msra.mxu0 0
      %1227 = vmatpush.bf16.msra.mxu0 0
      %1228 = vmatpush.bf16.msra.mxu0 0
      %1229 = vmatpush.bf16.msra.mxu0 0
      %1230 = vmatpush.bf16.msra.mxu0 0
      %1231 = vmatpush.bf16.msra.mxu0 0
      %1232 = vmatpush.bf16.msra.mxu0 %v1214
      %1233 = vmatpush.bf16.msra.mxu0 %v1211
      %1234 = vmatmul.bf16.gmra.mxu0 %v1224
      %v1235 = vpop.f32.mrf.mxu0
      %v1236 = vadd.f32 0.0, %v1235
      %v1237 = vpop.f32.mrf.mxu0
      %v1238 = vadd.f32 0.0, %v1237
      %1239 = vdwg.mxu0
      %1240 = vmatpush.bf16.msra.mxu0 0
      %1241 = vmatpush.bf16.msra.mxu0 0
      %1242 = vmatpush.bf16.msra.mxu0 0
      %1243 = vmatpush.bf16.msra.mxu0 0
      %1244 = vmatpush.bf16.msra.mxu0 0
      %1245 = vmatpush.bf16.msra.mxu0 0
      %1246 = vmatpush.bf16.msra.mxu0 %v1215
      %1247 = vmatpush.bf16.msra.mxu0 %v1212
      %1248 = vmatmul.bf16.gmra.mxu0 %v1224
      %v1249 = vpop.f32.mrf.mxu0
      %v1250 = vadd.f32 0.0, %v1249
      %v1251 = vpop.f32.mrf.mxu0
      %v1252 = vadd.f32 0.0, %v1251
      %1253 = vdwg.mxu0
      %1254 = vmatpush.bf16.msra.mxu0 0
      %1255 = vmatpush.bf16.msra.mxu0 0
      %1256 = vmatpush.bf16.msra.mxu0 0
      %1257 = vmatpush.bf16.msra.mxu0 0
      %1258 = vmatpush.bf16.msra.mxu0 0
      %1259 = vmatpush.bf16.msra.mxu0 0
      %1260 = vmatpush.bf16.msra.mxu0 %v1216
      %1261 = vmatpush.bf16.msra.mxu0 %v1213
      %1262 = vmatmul.bf16.gmra.mxu0 %v1224
      %v1263 = vpop.f32.mrf.mxu0
      %v1264 = vadd.f32 0.0, %v1263
      %v1265 = vpop.f32.mrf.mxu0
      %v1266 = vadd.f32 0.0, %v1265
      %1267 = vdwg.mxu0
      %v1268 = vadd.f32 %v1169, %v1236
      %v1269 = vadd.f32 %v1170, %v1250
      %v1270 = vadd.f32 %v1171, %v1264
      %v1271 = vadd.f32 %v1172, %v1238
      %v1272 = vadd.f32 %v1173, %v1252
      %v1273 = vadd.f32 %v1174, %v1266
      %v1274 = vld [vmem:[%s321] sm:$0xff]
      %v1275 = vld [vmem:[%s321 + $0x8] sm:$0xff]
      %v1276 = vld [vmem:[%s321 + $0x10] sm:$0xff]
      %v1277 = vld [vmem:[%s321 + $0x18] sm:$0xff]
      %v1278 = vld [vmem:[%s321 + $0x20] sm:$0xff]
      %v1279 = vld [vmem:[%s321 + $0x28] sm:$0xff]
      %v1280 = vld [vmem:[%s321 + $0x30] sm:$0xff]
      %v1281 = vld [vmem:[%s321 + $0x38] sm:$0xff]
      %s1282 = scalar_lea.vmem %s3, 80
      %v1283 = vld [vmem:[%s1282] sm:$0xf]
      %v1284 = vld [vmem:[%s1282 + $0x4] sm:$0x7]
      %v1287 = vunpack.c.l.b16 %v1283
      %v1288 = vunpack.c.l.b16 %v1284
      %v1289 = vpack.c.b16 %v1288, %v1287
      %v1298 = vunpack.c.l.b16 %v1274
      %v1299 = vunpack.c.h.b16 %v1274
      %v1300 = vunpack.c.l.b16 %v1275
      %v1301 = vunpack.c.h.b16 %v1275
      %v1302 = vunpack.c.l.b16 %v1276
      %v1303 = vunpack.c.h.b16 %v1276
      %v1304 = vunpack.c.l.b16 %v1277
      %v1305 = vunpack.c.h.b16 %v1277
      %v1306 = vunpack.c.l.b16 %v1278
      %v1307 = vunpack.c.h.b16 %v1278
      %v1308 = vunpack.c.l.b16 %v1279
      %v1309 = vunpack.c.h.b16 %v1279
      %v1310 = vunpack.c.l.b16 %v1280
      %v1311 = vunpack.c.h.b16 %v1280
      %v1312 = vunpack.c.l.b16 %v1281
      %v1313 = vunpack.c.h.b16 %v1281
      %v1314 = vpack.c.b16 %v1302, %v1298
      %v1315 = vpack.c.b16 %v1303, %v1299
      %v1316 = vpack.c.b16 %v1304, %v1300
      %v1317 = vpack.c.b16 %v1305, %v1301
      %v1318 = vpack.c.b16 %v1310, %v1306
      %v1319 = vpack.c.b16 %v1311, %v1307
      %v1320 = vpack.c.b16 %v1312, %v1308
      %v1321 = vpack.c.b16 %v1313, %v1309
      %1322 = vrot.lane.b32.xlu0 %v1314, 127
      %v1323 = vpop.permute.xlu0 %1322
      %1324 = vrot.lane.b32.xlu0 %v1315, 127
      %v1325 = vpop.permute.xlu0 %1324
      %1326 = vrot.lane.b32.xlu0 %v1316, 127
      %v1327 = vpop.permute.xlu0 %1326
      %1328 = vrot.lane.b32.xlu0 %v1317, 127
      %v1329 = vpop.permute.xlu0 %1328
      %1330 = vrot.lane.b32.xlu0 %v1318, 127
      %v1331 = vpop.permute.xlu0 %1330
      %1332 = vrot.lane.b32.xlu0 %v1319, 127
      %v1333 = vpop.permute.xlu0 %1332
      %1334 = vrot.lane.b32.xlu0 %v1320, 127
      %v1335 = vpop.permute.xlu0 %1334
      %1336 = vrot.lane.b32.xlu0 %v1321, 127
      %v1337 = vpop.permute.xlu0 %1336
      %v1338 = vsel %vm418, %v1323, %v1325
      %v1339 = vsel %vm418, %v1325, %v1327
      %v1340 = vsel %vm418, %v1327, %v1329
      %v1341 = vsel %vm418, %v1331, %v1333
      %v1342 = vsel %vm418, %v1333, %v1335
      %v1343 = vsel %vm418, %v1335, %v1337
      %v1351 = vsel %vm431, %v1289, 0
      %1353 = vmatpush.bf16.msra.mxu0 0
      %1354 = vmatpush.bf16.msra.mxu0 0
      %1355 = vmatpush.bf16.msra.mxu0 0
      %1356 = vmatpush.bf16.msra.mxu0 0
      %1357 = vmatpush.bf16.msra.mxu0 0
      %1358 = vmatpush.bf16.msra.mxu0 0
      %1359 = vmatpush.bf16.msra.mxu0 %v1341
      %1360 = vmatpush.bf16.msra.mxu0 %v1338
      %1361 = vmatmul.bf16.gmra.mxu0 %v1351
      %v1362 = vpop.f32.mrf.mxu0
      %v1363 = vadd.f32 0.0, %v1362
      %v1364 = vpop.f32.mrf.mxu0
      %v1365 = vadd.f32 0.0, %v1364
      %1366 = vdwg.mxu0
      %1367 = vmatpush.bf16.msra.mxu0 0
      %1368 = vmatpush.bf16.msra.mxu0 0
      %1369 = vmatpush.bf16.msra.mxu0 0
      %1370 = vmatpush.bf16.msra.mxu0 0
      %1371 = vmatpush.bf16.msra.mxu0 0
      %1372 = vmatpush.bf16.msra.mxu0 0
      %1373 = vmatpush.bf16.msra.mxu0 %v1342
      %1374 = vmatpush.bf16.msra.mxu0 %v1339
      %1375 = vmatmul.bf16.gmra.mxu0 %v1351
      %v1376 = vpop.f32.mrf.mxu0
      %v1377 = vadd.f32 0.0, %v1376
      %v1378 = vpop.f32.mrf.mxu0
      %v1379 = vadd.f32 0.0, %v1378
      %1380 = vdwg.mxu0
      %1381 = vmatpush.bf16.msra.mxu0 0
      %1382 = vmatpush.bf16.msra.mxu0 0
      %1383 = vmatpush.bf16.msra.mxu0 0
      %1384 = vmatpush.bf16.msra.mxu0 0
      %1385 = vmatpush.bf16.msra.mxu0 0
      %1386 = vmatpush.bf16.msra.mxu0 0
      %1387 = vmatpush.bf16.msra.mxu0 %v1343
      %1388 = vmatpush.bf16.msra.mxu0 %v1340
      %1389 = vmatmul.bf16.gmra.mxu0 %v1351
      %v1390 = vpop.f32.mrf.mxu0
      %v1391 = vadd.f32 0.0, %v1390
      %v1392 = vpop.f32.mrf.mxu0
      %v1393 = vadd.f32 0.0, %v1392
      %1394 = vdwg.mxu0
      %v1395 = vadd.f32 %v1268, %v1363
      %v1396 = vadd.f32 %v1269, %v1377
      %v1397 = vadd.f32 %v1270, %v1391
      %v1398 = vadd.f32 %v1271, %v1365
      %v1399 = vadd.f32 %v1272, %v1379
      %v1400 = vadd.f32 %v1273, %v1393
      %s1401 = scalar_lea.vmem %s3, 88
      %v1402 = vld [vmem:[%s1401] sm:$0xf]
      %v1403 = vld [vmem:[%s1401 + $0x4] sm:$0x7]
      %v1406 = vunpack.c.l.b16 %v1402
      %v1407 = vunpack.c.l.b16 %v1403
      %v1408 = vpack.c.b16 %v1407, %v1406
      %1409 = vrot.lane.b32.xlu0 %v1314, 126
      %v1410 = vpop.permute.xlu0 %1409
      %1411 = vrot.lane.b32.xlu0 %v1315, 126
      %v1412 = vpop.permute.xlu0 %1411
      %1413 = vrot.lane.b32.xlu0 %v1316, 126
      %v1414 = vpop.permute.xlu0 %1413
      %1415 = vrot.lane.b32.xlu0 %v1317, 126
      %v1416 = vpop.permute.xlu0 %1415
      %1417 = vrot.lane.b32.xlu0 %v1318, 126
      %v1418 = vpop.permute.xlu0 %1417
      %1419 = vrot.lane.b32.xlu0 %v1319, 126
      %v1420 = vpop.permute.xlu0 %1419
      %1421 = vrot.lane.b32.xlu0 %v1320, 126
      %v1422 = vpop.permute.xlu0 %1421
      %1423 = vrot.lane.b32.xlu0 %v1321, 126
      %v1424 = vpop.permute.xlu0 %1423
      %v1425 = vsel %vm583, %v1410, %v1412
      %v1426 = vsel %vm583, %v1412, %v1414
      %v1427 = vsel %vm583, %v1414, %v1416
      %v1428 = vsel %vm583, %v1418, %v1420
      %v1429 = vsel %vm583, %v1420, %v1422
      %v1430 = vsel %vm583, %v1422, %v1424
      %v1438 = vsel %vm431, %v1408, 0
      %1440 = vmatpush.bf16.msra.mxu0 0
      %1441 = vmatpush.bf16.msra.mxu0 0
      %1442 = vmatpush.bf16.msra.mxu0 0
      %1443 = vmatpush.bf16.msra.mxu0 0
      %1444 = vmatpush.bf16.msra.mxu0 0
      %1445 = vmatpush.bf16.msra.mxu0 0
      %1446 = vmatpush.bf16.msra.mxu0 %v1428
      %1447 = vmatpush.bf16.msra.mxu0 %v1425
      %1448 = vmatmul.bf16.gmra.mxu0 %v1438
      %v1449 = vpop.f32.mrf.mxu0
      %v1450 = vadd.f32 0.0, %v1449
      %v1451 = vpop.f32.mrf.mxu0
      %v1452 = vadd.f32 0.0, %v1451
      %1453 = vdwg.mxu0
      %1454 = vmatpush.bf16.msra.mxu0 0
      %1455 = vmatpush.bf16.msra.mxu0 0
      %1456 = vmatpush.bf16.msra.mxu0 0
      %1457 = vmatpush.bf16.msra.mxu0 0
      %1458 = vmatpush.bf16.msra.mxu0 0
      %1459 = vmatpush.bf16.msra.mxu0 0
      %1460 = vmatpush.bf16.msra.mxu0 %v1429
      %1461 = vmatpush.bf16.msra.mxu0 %v1426
      %1462 = vmatmul.bf16.gmra.mxu0 %v1438
      %v1463 = vpop.f32.mrf.mxu0
      %v1464 = vadd.f32 0.0, %v1463
      %v1465 = vpop.f32.mrf.mxu0
      %v1466 = vadd.f32 0.0, %v1465
      %1467 = vdwg.mxu0
      %1468 = vmatpush.bf16.msra.mxu0 0
      %1469 = vmatpush.bf16.msra.mxu0 0
      %1470 = vmatpush.bf16.msra.mxu0 0
      %1471 = vmatpush.bf16.msra.mxu0 0
      %1472 = vmatpush.bf16.msra.mxu0 0
      %1473 = vmatpush.bf16.msra.mxu0 0
      %1474 = vmatpush.bf16.msra.mxu0 %v1430
      %1475 = vmatpush.bf16.msra.mxu0 %v1427
      %1476 = vmatmul.bf16.gmra.mxu0 %v1438
      %v1477 = vpop.f32.mrf.mxu0
      %v1478 = vadd.f32 0.0, %v1477
      %v1479 = vpop.f32.mrf.mxu0
      %v1480 = vadd.f32 0.0, %v1479
      %1481 = vdwg.mxu0
      %v1482 = vadd.f32 %v1395, %v1450
      %v1483 = vadd.f32 %v1396, %v1464
      %v1484 = vadd.f32 %v1397, %v1478
      %v1485 = vadd.f32 %v1398, %v1452
      %v1486 = vadd.f32 %v1399, %v1466
      %v1487 = vadd.f32 %v1400, %v1480
      %s1488 = scalar_lea.vmem %s3, 96
      %v1489 = vld [vmem:[%s1488] sm:$0xf]
      %v1490 = vld [vmem:[%s1488 + $0x4] sm:$0x7]
      %v1493 = vunpack.c.l.b16 %v1489
      %v1494 = vunpack.c.l.b16 %v1490
      %v1495 = vpack.c.b16 %v1494, %v1493
      %1496 = vrot.lane.b32.xlu0 %v1314, 110
      %v1497 = vpop.permute.xlu0 %1496
      %1498 = vrot.lane.b32.xlu0 %v1315, 110
      %v1499 = vpop.permute.xlu0 %1498
      %1500 = vrot.lane.b32.xlu0 %v1316, 110
      %v1501 = vpop.permute.xlu0 %1500
      %1502 = vrot.lane.b32.xlu0 %v1317, 110
      %v1503 = vpop.permute.xlu0 %1502
      %1504 = vrot.lane.b32.xlu0 %v1318, 110
      %v1505 = vpop.permute.xlu0 %1504
      %1506 = vrot.lane.b32.xlu0 %v1319, 110
      %v1507 = vpop.permute.xlu0 %1506
      %1508 = vrot.lane.b32.xlu0 %v1320, 110
      %v1509 = vpop.permute.xlu0 %1508
      %1510 = vrot.lane.b32.xlu0 %v1321, 110
      %v1511 = vpop.permute.xlu0 %1510
      %v1512 = vsel %vm671, %v1497, %v1499
      %v1513 = vsel %vm671, %v1499, %v1501
      %v1514 = vsel %vm671, %v1501, %v1503
      %v1515 = vsel %vm671, %v1505, %v1507
      %v1516 = vsel %vm671, %v1507, %v1509
      %v1517 = vsel %vm671, %v1509, %v1511
      %v1525 = vsel %vm431, %v1495, 0
      %1527 = vmatpush.bf16.msra.mxu0 0
      %1528 = vmatpush.bf16.msra.mxu0 0
      %1529 = vmatpush.bf16.msra.mxu0 0
      %1530 = vmatpush.bf16.msra.mxu0 0
      %1531 = vmatpush.bf16.msra.mxu0 0
      %1532 = vmatpush.bf16.msra.mxu0 0
      %1533 = vmatpush.bf16.msra.mxu0 %v1515
      %1534 = vmatpush.bf16.msra.mxu0 %v1512
      %1535 = vmatmul.bf16.gmra.mxu0 %v1525
      %v1536 = vpop.f32.mrf.mxu0
      %v1537 = vadd.f32 0.0, %v1536
      %v1538 = vpop.f32.mrf.mxu0
      %v1539 = vadd.f32 0.0, %v1538
      %1540 = vdwg.mxu0
      %1541 = vmatpush.bf16.msra.mxu0 0
      %1542 = vmatpush.bf16.msra.mxu0 0
      %1543 = vmatpush.bf16.msra.mxu0 0
      %1544 = vmatpush.bf16.msra.mxu0 0
      %1545 = vmatpush.bf16.msra.mxu0 0
      %1546 = vmatpush.bf16.msra.mxu0 0
      %1547 = vmatpush.bf16.msra.mxu0 %v1516
      %1548 = vmatpush.bf16.msra.mxu0 %v1513
      %1549 = vmatmul.bf16.gmra.mxu0 %v1525
      %v1550 = vpop.f32.mrf.mxu0
      %v1551 = vadd.f32 0.0, %v1550
      %v1552 = vpop.f32.mrf.mxu0
      %v1553 = vadd.f32 0.0, %v1552
      %1554 = vdwg.mxu0
      %1555 = vmatpush.bf16.msra.mxu0 0
      %1556 = vmatpush.bf16.msra.mxu0 0
      %1557 = vmatpush.bf16.msra.mxu0 0
      %1558 = vmatpush.bf16.msra.mxu0 0
      %1559 = vmatpush.bf16.msra.mxu0 0
      %1560 = vmatpush.bf16.msra.mxu0 0
      %1561 = vmatpush.bf16.msra.mxu0 %v1517
      %1562 = vmatpush.bf16.msra.mxu0 %v1514
      %1563 = vmatmul.bf16.gmra.mxu0 %v1525
      %v1564 = vpop.f32.mrf.mxu0
      %v1565 = vadd.f32 0.0, %v1564
      %v1566 = vpop.f32.mrf.mxu0
      %v1567 = vadd.f32 0.0, %v1566
      %1568 = vdwg.mxu0
      %v1569 = vadd.f32 %v1482, %v1537
      %v1570 = vadd.f32 %v1483, %v1551
      %v1571 = vadd.f32 %v1484, %v1565
      %v1572 = vadd.f32 %v1485, %v1539
      %v1573 = vadd.f32 %v1486, %v1553
      %v1574 = vadd.f32 %v1487, %v1567
      %s1575 = scalar_lea.vmem %s3, 104
      %v1576 = vld [vmem:[%s1575] sm:$0xf]
      %v1577 = vld [vmem:[%s1575 + $0x4] sm:$0x7]
      %v1580 = vunpack.c.l.b16 %v1576
      %v1581 = vunpack.c.l.b16 %v1577
      %v1582 = vpack.c.b16 %v1581, %v1580
      %1583 = vrot.lane.b32.xlu0 %v1314, 109
      %v1584 = vpop.permute.xlu0 %1583
      %1585 = vrot.lane.b32.xlu0 %v1315, 109
      %v1586 = vpop.permute.xlu0 %1585
      %1587 = vrot.lane.b32.xlu0 %v1316, 109
      %v1588 = vpop.permute.xlu0 %1587
      %1589 = vrot.lane.b32.xlu0 %v1317, 109
      %v1590 = vpop.permute.xlu0 %1589
      %1591 = vrot.lane.b32.xlu0 %v1318, 109
      %v1592 = vpop.permute.xlu0 %1591
      %1593 = vrot.lane.b32.xlu0 %v1319, 109
      %v1594 = vpop.permute.xlu0 %1593
      %1595 = vrot.lane.b32.xlu0 %v1320, 109
      %v1596 = vpop.permute.xlu0 %1595
      %1597 = vrot.lane.b32.xlu0 %v1321, 109
      %v1598 = vpop.permute.xlu0 %1597
      %v1599 = vsel %vm759, %v1584, %v1586
      %v1600 = vsel %vm759, %v1586, %v1588
      %v1601 = vsel %vm759, %v1588, %v1590
      %v1602 = vsel %vm759, %v1592, %v1594
      %v1603 = vsel %vm759, %v1594, %v1596
      %v1604 = vsel %vm759, %v1596, %v1598
      %v1612 = vsel %vm431, %v1582, 0
      %1614 = vmatpush.bf16.msra.mxu0 0
      %1615 = vmatpush.bf16.msra.mxu0 0
      %1616 = vmatpush.bf16.msra.mxu0 0
      %1617 = vmatpush.bf16.msra.mxu0 0
      %1618 = vmatpush.bf16.msra.mxu0 0
      %1619 = vmatpush.bf16.msra.mxu0 0
      %1620 = vmatpush.bf16.msra.mxu0 %v1602
      %1621 = vmatpush.bf16.msra.mxu0 %v1599
      %1622 = vmatmul.bf16.gmra.mxu0 %v1612
      %v1623 = vpop.f32.mrf.mxu0
      %v1624 = vadd.f32 0.0, %v1623
      %v1625 = vpop.f32.mrf.mxu0
      %v1626 = vadd.f32 0.0, %v1625
      %1627 = vdwg.mxu0
      %1628 = vmatpush.bf16.msra.mxu0 0
      %1629 = vmatpush.bf16.msra.mxu0 0
      %1630 = vmatpush.bf16.msra.mxu0 0
      %1631 = vmatpush.bf16.msra.mxu0 0
      %1632 = vmatpush.bf16.msra.mxu0 0
      %1633 = vmatpush.bf16.msra.mxu0 0
      %1634 = vmatpush.bf16.msra.mxu0 %v1603
      %1635 = vmatpush.bf16.msra.mxu0 %v1600
      %1636 = vmatmul.bf16.gmra.mxu0 %v1612
      %v1637 = vpop.f32.mrf.mxu0
      %v1638 = vadd.f32 0.0, %v1637
      %v1639 = vpop.f32.mrf.mxu0
      %v1640 = vadd.f32 0.0, %v1639
      %1641 = vdwg.mxu0
      %1642 = vmatpush.bf16.msra.mxu0 0
      %1643 = vmatpush.bf16.msra.mxu0 0
      %1644 = vmatpush.bf16.msra.mxu0 0
      %1645 = vmatpush.bf16.msra.mxu0 0
      %1646 = vmatpush.bf16.msra.mxu0 0
      %1647 = vmatpush.bf16.msra.mxu0 0
      %1648 = vmatpush.bf16.msra.mxu0 %v1604
      %1649 = vmatpush.bf16.msra.mxu0 %v1601
      %1650 = vmatmul.bf16.gmra.mxu0 %v1612
      %v1651 = vpop.f32.mrf.mxu0
      %v1652 = vadd.f32 0.0, %v1651
      %v1653 = vpop.f32.mrf.mxu0
      %v1654 = vadd.f32 0.0, %v1653
      %1655 = vdwg.mxu0
      %v1656 = vadd.f32 %v1569, %v1624
      %v1657 = vadd.f32 %v1570, %v1638
      %v1658 = vadd.f32 %v1571, %v1652
      %v1659 = vadd.f32 %v1572, %v1626
      %v1660 = vadd.f32 %v1573, %v1640
      %v1661 = vadd.f32 %v1574, %v1654
      %s1662 = scalar_lea.vmem %s3, 112
      %v1663 = vld [vmem:[%s1662] sm:$0xf]
      %v1664 = vld [vmem:[%s1662 + $0x4] sm:$0x7]
      %v1667 = vunpack.c.l.b16 %v1663
      %v1668 = vunpack.c.l.b16 %v1664
      %v1669 = vpack.c.b16 %v1668, %v1667
      %1670 = vrot.lane.b32.xlu0 %v1314, 108
      %v1671 = vpop.permute.xlu0 %1670
      %1672 = vrot.lane.b32.xlu0 %v1315, 108
      %v1673 = vpop.permute.xlu0 %1672
      %1674 = vrot.lane.b32.xlu0 %v1316, 108
      %v1675 = vpop.permute.xlu0 %1674
      %1676 = vrot.lane.b32.xlu0 %v1317, 108
      %v1677 = vpop.permute.xlu0 %1676
      %1678 = vrot.lane.b32.xlu0 %v1318, 108
      %v1679 = vpop.permute.xlu0 %1678
      %1680 = vrot.lane.b32.xlu0 %v1319, 108
      %v1681 = vpop.permute.xlu0 %1680
      %1682 = vrot.lane.b32.xlu0 %v1320, 108
      %v1683 = vpop.permute.xlu0 %1682
      %1684 = vrot.lane.b32.xlu0 %v1321, 108
      %v1685 = vpop.permute.xlu0 %1684
      %v1686 = vsel %vm847, %v1671, %v1673
      %v1687 = vsel %vm847, %v1673, %v1675
      %v1688 = vsel %vm847, %v1675, %v1677
      %v1689 = vsel %vm847, %v1679, %v1681
      %v1690 = vsel %vm847, %v1681, %v1683
      %v1691 = vsel %vm847, %v1683, %v1685
      %v1699 = vsel %vm431, %v1669, 0
      %1701 = vmatpush.bf16.msra.mxu0 0
      %1702 = vmatpush.bf16.msra.mxu0 0
      %1703 = vmatpush.bf16.msra.mxu0 0
      %1704 = vmatpush.bf16.msra.mxu0 0
      %1705 = vmatpush.bf16.msra.mxu0 0
      %1706 = vmatpush.bf16.msra.mxu0 0
      %1707 = vmatpush.bf16.msra.mxu0 %v1689
      %1708 = vmatpush.bf16.msra.mxu0 %v1686
      %1709 = vmatmul.bf16.gmra.mxu0 %v1699
      %v1710 = vpop.f32.mrf.mxu0
      %v1711 = vadd.f32 0.0, %v1710
      %v1712 = vpop.f32.mrf.mxu0
      %v1713 = vadd.f32 0.0, %v1712
      %1714 = vdwg.mxu0
      %1715 = vmatpush.bf16.msra.mxu0 0
      %1716 = vmatpush.bf16.msra.mxu0 0
      %1717 = vmatpush.bf16.msra.mxu0 0
      %1718 = vmatpush.bf16.msra.mxu0 0
      %1719 = vmatpush.bf16.msra.mxu0 0
      %1720 = vmatpush.bf16.msra.mxu0 0
      %1721 = vmatpush.bf16.msra.mxu0 %v1690
      %1722 = vmatpush.bf16.msra.mxu0 %v1687
      %1723 = vmatmul.bf16.gmra.mxu0 %v1699
      %v1724 = vpop.f32.mrf.mxu0
      %v1725 = vadd.f32 0.0, %v1724
      %v1726 = vpop.f32.mrf.mxu0
      %v1727 = vadd.f32 0.0, %v1726
      %1728 = vdwg.mxu0
      %1729 = vmatpush.bf16.msra.mxu0 0
      %1730 = vmatpush.bf16.msra.mxu0 0
      %1731 = vmatpush.bf16.msra.mxu0 0
      %1732 = vmatpush.bf16.msra.mxu0 0
      %1733 = vmatpush.bf16.msra.mxu0 0
      %1734 = vmatpush.bf16.msra.mxu0 0
      %1735 = vmatpush.bf16.msra.mxu0 %v1691
      %1736 = vmatpush.bf16.msra.mxu0 %v1688
      %1737 = vmatmul.bf16.gmra.mxu0 %v1699
      %v1738 = vpop.f32.mrf.mxu0
      %v1739 = vadd.f32 0.0, %v1738
      %v1740 = vpop.f32.mrf.mxu0
      %v1741 = vadd.f32 0.0, %v1740
      %1742 = vdwg.mxu0
      %v1743 = vadd.f32 %v1656, %v1711
      %v1744 = vadd.f32 %v1657, %v1725
      %v1745 = vadd.f32 %v1658, %v1739
      %v1746 = vadd.f32 %v1659, %v1713
      %v1747 = vadd.f32 %v1660, %v1727
      %v1748 = vadd.f32 %v1661, %v1741
      %s1749 = scalar_lea.vmem %s3, 120
      %v1750 = vld [vmem:[%s1749] sm:$0xf]
      %v1751 = vld [vmem:[%s1749 + $0x4] sm:$0x7]
      %v1754 = vunpack.c.l.b16 %v1750
      %v1755 = vunpack.c.l.b16 %v1751
      %v1756 = vpack.c.b16 %v1755, %v1754
      %1757 = vrot.lane.b32.xlu0 %v1314, 92
      %v1758 = vpop.permute.xlu0 %1757
      %1759 = vrot.lane.b32.xlu0 %v1315, 92
      %v1760 = vpop.permute.xlu0 %1759
      %1761 = vrot.lane.b32.xlu0 %v1316, 92
      %v1762 = vpop.permute.xlu0 %1761
      %1763 = vrot.lane.b32.xlu0 %v1317, 92
      %v1764 = vpop.permute.xlu0 %1763
      %1765 = vrot.lane.b32.xlu0 %v1318, 92
      %v1766 = vpop.permute.xlu0 %1765
      %1767 = vrot.lane.b32.xlu0 %v1319, 92
      %v1768 = vpop.permute.xlu0 %1767
      %1769 = vrot.lane.b32.xlu0 %v1320, 92
      %v1770 = vpop.permute.xlu0 %1769
      %1771 = vrot.lane.b32.xlu0 %v1321, 92
      %v1772 = vpop.permute.xlu0 %1771
      %v1773 = vsel %vm935, %v1758, %v1760
      %v1774 = vsel %vm935, %v1760, %v1762
      %v1775 = vsel %vm935, %v1762, %v1764
      %v1776 = vsel %vm935, %v1766, %v1768
      %v1777 = vsel %vm935, %v1768, %v1770
      %v1778 = vsel %vm935, %v1770, %v1772
      %v1786 = vsel %vm431, %v1756, 0
      %1788 = vmatpush.bf16.msra.mxu0 0
      %1789 = vmatpush.bf16.msra.mxu0 0
      %1790 = vmatpush.bf16.msra.mxu0 0
      %1791 = vmatpush.bf16.msra.mxu0 0
      %1792 = vmatpush.bf16.msra.mxu0 0
      %1793 = vmatpush.bf16.msra.mxu0 0
      %1794 = vmatpush.bf16.msra.mxu0 %v1776
      %1795 = vmatpush.bf16.msra.mxu0 %v1773
      %1796 = vmatmul.bf16.gmra.mxu0 %v1786
      %v1797 = vpop.f32.mrf.mxu0
      %v1798 = vadd.f32 0.0, %v1797
      %v1799 = vpop.f32.mrf.mxu0
      %v1800 = vadd.f32 0.0, %v1799
      %1801 = vdwg.mxu0
      %1802 = vmatpush.bf16.msra.mxu0 0
      %1803 = vmatpush.bf16.msra.mxu0 0
      %1804 = vmatpush.bf16.msra.mxu0 0
      %1805 = vmatpush.bf16.msra.mxu0 0
      %1806 = vmatpush.bf16.msra.mxu0 0
      %1807 = vmatpush.bf16.msra.mxu0 0
      %1808 = vmatpush.bf16.msra.mxu0 %v1777
      %1809 = vmatpush.bf16.msra.mxu0 %v1774
      %1810 = vmatmul.bf16.gmra.mxu0 %v1786
      %v1811 = vpop.f32.mrf.mxu0
      %v1812 = vadd.f32 0.0, %v1811
      %v1813 = vpop.f32.mrf.mxu0
      %v1814 = vadd.f32 0.0, %v1813
      %1815 = vdwg.mxu0
      %1816 = vmatpush.bf16.msra.mxu0 0
      %1817 = vmatpush.bf16.msra.mxu0 0
      %1818 = vmatpush.bf16.msra.mxu0 0
      %1819 = vmatpush.bf16.msra.mxu0 0
      %1820 = vmatpush.bf16.msra.mxu0 0
      %1821 = vmatpush.bf16.msra.mxu0 0
      %1822 = vmatpush.bf16.msra.mxu0 %v1778
      %1823 = vmatpush.bf16.msra.mxu0 %v1775
      %1824 = vmatmul.bf16.gmra.mxu0 %v1786
      %v1825 = vpop.f32.mrf.mxu0
      %v1826 = vadd.f32 0.0, %v1825
      %v1827 = vpop.f32.mrf.mxu0
      %v1828 = vadd.f32 0.0, %v1827
      %1829 = vdwg.mxu0
      %v1830 = vadd.f32 %v1743, %v1798
      %v1831 = vadd.f32 %v1744, %v1812
      %v1832 = vadd.f32 %v1745, %v1826
      %v1833 = vadd.f32 %v1746, %v1800
      %v1834 = vadd.f32 %v1747, %v1814
      %v1835 = vadd.f32 %v1748, %v1828
      %s1836 = scalar_lea.vmem %s3, 128
      %v1837 = vld [vmem:[%s1836] sm:$0xf]
      %v1838 = vld [vmem:[%s1836 + $0x4] sm:$0x7]
      %v1841 = vunpack.c.l.b16 %v1837
      %v1842 = vunpack.c.l.b16 %v1838
      %v1843 = vpack.c.b16 %v1842, %v1841
      %1844 = vrot.lane.b32.xlu0 %v1314, 91
      %v1845 = vpop.permute.xlu0 %1844
      %1846 = vrot.lane.b32.xlu0 %v1315, 91
      %v1847 = vpop.permute.xlu0 %1846
      %1848 = vrot.lane.b32.xlu0 %v1316, 91
      %v1849 = vpop.permute.xlu0 %1848
      %1850 = vrot.lane.b32.xlu0 %v1317, 91
      %v1851 = vpop.permute.xlu0 %1850
      %1852 = vrot.lane.b32.xlu0 %v1318, 91
      %v1853 = vpop.permute.xlu0 %1852
      %1854 = vrot.lane.b32.xlu0 %v1319, 91
      %v1855 = vpop.permute.xlu0 %1854
      %1856 = vrot.lane.b32.xlu0 %v1320, 91
      %v1857 = vpop.permute.xlu0 %1856
      %1858 = vrot.lane.b32.xlu0 %v1321, 91
      %v1859 = vpop.permute.xlu0 %1858
      %v1860 = vsel %vm1023, %v1845, %v1847
      %v1861 = vsel %vm1023, %v1847, %v1849
      %v1862 = vsel %vm1023, %v1849, %v1851
      %v1863 = vsel %vm1023, %v1853, %v1855
      %v1864 = vsel %vm1023, %v1855, %v1857
      %v1865 = vsel %vm1023, %v1857, %v1859
      %v1873 = vsel %vm431, %v1843, 0
      %1875 = vmatpush.bf16.msra.mxu0 0
      %1876 = vmatpush.bf16.msra.mxu0 0
      %1877 = vmatpush.bf16.msra.mxu0 0
      %1878 = vmatpush.bf16.msra.mxu0 0
      %1879 = vmatpush.bf16.msra.mxu0 0
      %1880 = vmatpush.bf16.msra.mxu0 0
      %1881 = vmatpush.bf16.msra.mxu0 %v1863
      %1882 = vmatpush.bf16.msra.mxu0 %v1860
      %1883 = vmatmul.bf16.gmra.mxu0 %v1873
      %v1884 = vpop.f32.mrf.mxu0
      %v1885 = vadd.f32 0.0, %v1884
      %v1886 = vpop.f32.mrf.mxu0
      %v1887 = vadd.f32 0.0, %v1886
      %1888 = vdwg.mxu0
      %1889 = vmatpush.bf16.msra.mxu0 0
      %1890 = vmatpush.bf16.msra.mxu0 0
      %1891 = vmatpush.bf16.msra.mxu0 0
      %1892 = vmatpush.bf16.msra.mxu0 0
      %1893 = vmatpush.bf16.msra.mxu0 0
      %1894 = vmatpush.bf16.msra.mxu0 0
      %1895 = vmatpush.bf16.msra.mxu0 %v1864
      %1896 = vmatpush.bf16.msra.mxu0 %v1861
      %1897 = vmatmul.bf16.gmra.mxu0 %v1873
      %v1898 = vpop.f32.mrf.mxu0
      %v1899 = vadd.f32 0.0, %v1898
      %v1900 = vpop.f32.mrf.mxu0
      %v1901 = vadd.f32 0.0, %v1900
      %1902 = vdwg.mxu0
      %1903 = vmatpush.bf16.msra.mxu0 0
      %1904 = vmatpush.bf16.msra.mxu0 0
      %1905 = vmatpush.bf16.msra.mxu0 0
      %1906 = vmatpush.bf16.msra.mxu0 0
      %1907 = vmatpush.bf16.msra.mxu0 0
      %1908 = vmatpush.bf16.msra.mxu0 0
      %1909 = vmatpush.bf16.msra.mxu0 %v1865
      %1910 = vmatpush.bf16.msra.mxu0 %v1862
      %1911 = vmatmul.bf16.gmra.mxu0 %v1873
      %v1912 = vpop.f32.mrf.mxu0
      %v1913 = vadd.f32 0.0, %v1912
      %v1914 = vpop.f32.mrf.mxu0
      %v1915 = vadd.f32 0.0, %v1914
      %1916 = vdwg.mxu0
      %v1917 = vadd.f32 %v1830, %v1885
      %v1918 = vadd.f32 %v1831, %v1899
      %v1919 = vadd.f32 %v1832, %v1913
      %v1920 = vadd.f32 %v1833, %v1887
      %v1921 = vadd.f32 %v1834, %v1901
      %v1922 = vadd.f32 %v1835, %v1915
      %s1923 = scalar_lea.vmem %s3, 136
      %v1924 = vld [vmem:[%s1923] sm:$0xf]
      %v1925 = vld [vmem:[%s1923 + $0x4] sm:$0x7]
      %v1928 = vunpack.c.l.b16 %v1924
      %v1929 = vunpack.c.l.b16 %v1925
      %v1930 = vpack.c.b16 %v1929, %v1928
      %1931 = vrot.lane.b32.xlu0 %v1314, 90
      %v1932 = vpop.permute.xlu0 %1931
      %1933 = vrot.lane.b32.xlu0 %v1315, 90
      %v1934 = vpop.permute.xlu0 %1933
      %1935 = vrot.lane.b32.xlu0 %v1316, 90
      %v1936 = vpop.permute.xlu0 %1935
      %1937 = vrot.lane.b32.xlu0 %v1317, 90
      %v1938 = vpop.permute.xlu0 %1937
      %1939 = vrot.lane.b32.xlu0 %v1318, 90
      %v1940 = vpop.permute.xlu0 %1939
      %1941 = vrot.lane.b32.xlu0 %v1319, 90
      %v1942 = vpop.permute.xlu0 %1941
      %1943 = vrot.lane.b32.xlu0 %v1320, 90
      %v1944 = vpop.permute.xlu0 %1943
      %1945 = vrot.lane.b32.xlu0 %v1321, 90
      %v1946 = vpop.permute.xlu0 %1945
      %v1947 = vsel %vm1111, %v1932, %v1934
      %v1948 = vsel %vm1111, %v1934, %v1936
      %v1949 = vsel %vm1111, %v1936, %v1938
      %v1950 = vsel %vm1111, %v1940, %v1942
      %v1951 = vsel %vm1111, %v1942, %v1944
      %v1952 = vsel %vm1111, %v1944, %v1946
      %v1960 = vsel %vm431, %v1930, 0
      %1962 = vmatpush.bf16.msra.mxu0 0
      %1963 = vmatpush.bf16.msra.mxu0 0
      %1964 = vmatpush.bf16.msra.mxu0 0
      %1965 = vmatpush.bf16.msra.mxu0 0
      %1966 = vmatpush.bf16.msra.mxu0 0
      %1967 = vmatpush.bf16.msra.mxu0 0
      %1968 = vmatpush.bf16.msra.mxu0 %v1950
      %1969 = vmatpush.bf16.msra.mxu0 %v1947
      %1970 = vmatmul.bf16.gmra.mxu0 %v1960
      %v1971 = vpop.f32.mrf.mxu0
      %v1972 = vadd.f32 0.0, %v1971
      %v1973 = vpop.f32.mrf.mxu0
      %v1974 = vadd.f32 0.0, %v1973
      %1975 = vdwg.mxu0
      %1976 = vmatpush.bf16.msra.mxu0 0
      %1977 = vmatpush.bf16.msra.mxu0 0
      %1978 = vmatpush.bf16.msra.mxu0 0
      %1979 = vmatpush.bf16.msra.mxu0 0
      %1980 = vmatpush.bf16.msra.mxu0 0
      %1981 = vmatpush.bf16.msra.mxu0 0
      %1982 = vmatpush.bf16.msra.mxu0 %v1951
      %1983 = vmatpush.bf16.msra.mxu0 %v1948
      %1984 = vmatmul.bf16.gmra.mxu0 %v1960
      %v1985 = vpop.f32.mrf.mxu0
      %v1986 = vadd.f32 0.0, %v1985
      %v1987 = vpop.f32.mrf.mxu0
      %v1988 = vadd.f32 0.0, %v1987
      %1989 = vdwg.mxu0
      %1990 = vmatpush.bf16.msra.mxu0 0
      %1991 = vmatpush.bf16.msra.mxu0 0
      %1992 = vmatpush.bf16.msra.mxu0 0
      %1993 = vmatpush.bf16.msra.mxu0 0
      %1994 = vmatpush.bf16.msra.mxu0 0
      %1995 = vmatpush.bf16.msra.mxu0 0
      %1996 = vmatpush.bf16.msra.mxu0 %v1952
      %1997 = vmatpush.bf16.msra.mxu0 %v1949
      %1998 = vmatmul.bf16.gmra.mxu0 %v1960
      %v1999 = vpop.f32.mrf.mxu0
      %v2000 = vadd.f32 0.0, %v1999
      %v2001 = vpop.f32.mrf.mxu0
      %v2002 = vadd.f32 0.0, %v2001
      %2003 = vdwg.mxu0
      %v2004 = vadd.f32 %v1917, %v1972
      %v2005 = vadd.f32 %v1918, %v1986
      %v2006 = vadd.f32 %v1919, %v2000
      %v2007 = vadd.f32 %v1920, %v1974
      %v2008 = vadd.f32 %v1921, %v1988
      %v2009 = vadd.f32 %v1922, %v2002
      %v2010 = vld [vmem:[%s332] sm:$0xff]
      %v2011 = vld [vmem:[%s332 + $0x8] sm:$0xf]
      %v2012 = vld [vmem:[%s332 + $0x10] sm:$0xff]
      %v2013 = vld [vmem:[%s332 + $0x18] sm:$0xf]
      %v2014 = vld [vmem:[%s332 + $0x20] sm:$0xff]
      %v2015 = vld [vmem:[%s332 + $0x28] sm:$0xf]
      %v2016 = vld [vmem:[%s332 + $0x30] sm:$0xff]
      %v2017 = vld [vmem:[%s332 + $0x38] sm:$0xf]
      %s2018 = scalar_lea.vmem %s3, 144
      %v2019 = vld [vmem:[%s2018] sm:$0xf]
      %v2020 = vld [vmem:[%s2018 + $0x4] sm:$0x7]
      %v2023 = vunpack.c.l.b16 %v2019
      %v2024 = vunpack.c.l.b16 %v2020
      %v2025 = vpack.c.b16 %v2024, %v2023
      %v2034 = vunpack.c.l.b16 %v2010
      %v2035 = vunpack.c.h.b16 %v2010
      %v2036 = vunpack.c.l.b16 %v2011
      %v2037 = vunpack.c.l.b16 %v2012
      %v2038 = vunpack.c.h.b16 %v2012
      %v2039 = vunpack.c.l.b16 %v2013
      %v2040 = vunpack.c.l.b16 %v2014
      %v2041 = vunpack.c.h.b16 %v2014
      %v2042 = vunpack.c.l.b16 %v2015
      %v2043 = vunpack.c.l.b16 %v2016
      %v2044 = vunpack.c.h.b16 %v2016
      %v2045 = vunpack.c.l.b16 %v2017
      %v2046 = vpack.c.b16 %v2037, %v2034
      %v2047 = vpack.c.b16 %v2038, %v2035
      %v2048 = vpack.c.b16 %v2039, %v2036
      %v2049 = vpack.c.b16 %v2043, %v2040
      %v2050 = vpack.c.b16 %v2044, %v2041
      %v2051 = vpack.c.b16 %v2045, %v2042
      %v2059 = vsel %vm431, %v2025, 0
      %2061 = vmatpush.bf16.msra.mxu0 0
      %2062 = vmatpush.bf16.msra.mxu0 0
      %2063 = vmatpush.bf16.msra.mxu0 0
      %2064 = vmatpush.bf16.msra.mxu0 0
      %2065 = vmatpush.bf16.msra.mxu0 0
      %2066 = vmatpush.bf16.msra.mxu0 0
      %2067 = vmatpush.bf16.msra.mxu0 %v2049
      %2068 = vmatpush.bf16.msra.mxu0 %v2046
      %2069 = vmatmul.bf16.gmra.mxu0 %v2059
      %v2070 = vpop.f32.mrf.mxu0
      %v2071 = vadd.f32 0.0, %v2070
      %v2072 = vpop.f32.mrf.mxu0
      %v2073 = vadd.f32 0.0, %v2072
      %2074 = vdwg.mxu0
      %2075 = vmatpush.bf16.msra.mxu0 0
      %2076 = vmatpush.bf16.msra.mxu0 0
      %2077 = vmatpush.bf16.msra.mxu0 0
      %2078 = vmatpush.bf16.msra.mxu0 0
      %2079 = vmatpush.bf16.msra.mxu0 0
      %2080 = vmatpush.bf16.msra.mxu0 0
      %2081 = vmatpush.bf16.msra.mxu0 %v2050
      %2082 = vmatpush.bf16.msra.mxu0 %v2047
      %2083 = vmatmul.bf16.gmra.mxu0 %v2059
      %v2084 = vpop.f32.mrf.mxu0
      %v2085 = vadd.f32 0.0, %v2084
      %v2086 = vpop.f32.mrf.mxu0
      %v2087 = vadd.f32 0.0, %v2086
      %2088 = vdwg.mxu0
      %2089 = vmatpush.bf16.msra.mxu0 0
      %2090 = vmatpush.bf16.msra.mxu0 0
      %2091 = vmatpush.bf16.msra.mxu0 0
      %2092 = vmatpush.bf16.msra.mxu0 0
      %2093 = vmatpush.bf16.msra.mxu0 0
      %2094 = vmatpush.bf16.msra.mxu0 0
      %2095 = vmatpush.bf16.msra.mxu0 %v2051
      %2096 = vmatpush.bf16.msra.mxu0 %v2048
      %2097 = vmatmul.bf16.gmra.mxu0 %v2059
      %v2098 = vpop.f32.mrf.mxu0
      %v2099 = vadd.f32 0.0, %v2098
      %v2100 = vpop.f32.mrf.mxu0
      %v2101 = vadd.f32 0.0, %v2100
      %2102 = vdwg.mxu0
      %v2103 = vadd.f32 %v2004, %v2071
      %v2104 = vadd.f32 %v2005, %v2085
      %v2105 = vadd.f32 %v2006, %v2099
      %v2106 = vadd.f32 %v2007, %v2073
      %v2107 = vadd.f32 %v2008, %v2087
      %v2108 = vadd.f32 %v2009, %v2101
      %v2109 = vld [vmem:[%s332] sm:$0xff]
      %v2110 = vld [vmem:[%s332 + $0x8] sm:$0xff]
      %v2111 = vld [vmem:[%s332 + $0x10] sm:$0xff]
      %v2112 = vld [vmem:[%s332 + $0x18] sm:$0xff]
      %v2113 = vld [vmem:[%s332 + $0x20] sm:$0xff]
      %v2114 = vld [vmem:[%s332 + $0x28] sm:$0xff]
      %v2115 = vld [vmem:[%s332 + $0x30] sm:$0xff]
      %v2116 = vld [vmem:[%s332 + $0x38] sm:$0xff]
      %s2117 = scalar_lea.vmem %s3, 152
      %v2118 = vld [vmem:[%s2117] sm:$0xf]
      %v2119 = vld [vmem:[%s2117 + $0x4] sm:$0x7]
      %v2122 = vunpack.c.l.b16 %v2118
      %v2123 = vunpack.c.l.b16 %v2119
      %v2124 = vpack.c.b16 %v2123, %v2122
      %v2133 = vunpack.c.l.b16 %v2109
      %v2134 = vunpack.c.h.b16 %v2109
      %v2135 = vunpack.c.l.b16 %v2110
      %v2136 = vunpack.c.h.b16 %v2110
      %v2137 = vunpack.c.l.b16 %v2111
      %v2138 = vunpack.c.h.b16 %v2111
      %v2139 = vunpack.c.l.b16 %v2112
      %v2140 = vunpack.c.h.b16 %v2112
      %v2141 = vunpack.c.l.b16 %v2113
      %v2142 = vunpack.c.h.b16 %v2113
      %v2143 = vunpack.c.l.b16 %v2114
      %v2144 = vunpack.c.h.b16 %v2114
      %v2145 = vunpack.c.l.b16 %v2115
      %v2146 = vunpack.c.h.b16 %v2115
      %v2147 = vunpack.c.l.b16 %v2116
      %v2148 = vunpack.c.h.b16 %v2116
      %v2149 = vpack.c.b16 %v2137, %v2133
      %v2150 = vpack.c.b16 %v2138, %v2134
      %v2151 = vpack.c.b16 %v2139, %v2135
      %v2152 = vpack.c.b16 %v2140, %v2136
      %v2153 = vpack.c.b16 %v2145, %v2141
      %v2154 = vpack.c.b16 %v2146, %v2142
      %v2155 = vpack.c.b16 %v2147, %v2143
      %v2156 = vpack.c.b16 %v2148, %v2144
      %2157 = vrot.lane.b32.xlu0 %v2149, 127
      %v2158 = vpop.permute.xlu0 %2157
      %2159 = vrot.lane.b32.xlu0 %v2150, 127
      %v2160 = vpop.permute.xlu0 %2159
      %2161 = vrot.lane.b32.xlu0 %v2151, 127
      %v2162 = vpop.permute.xlu0 %2161
      %2163 = vrot.lane.b32.xlu0 %v2152, 127
      %v2164 = vpop.permute.xlu0 %2163
      %2165 = vrot.lane.b32.xlu0 %v2153, 127
      %v2166 = vpop.permute.xlu0 %2165
      %2167 = vrot.lane.b32.xlu0 %v2154, 127
      %v2168 = vpop.permute.xlu0 %2167
      %2169 = vrot.lane.b32.xlu0 %v2155, 127
      %v2170 = vpop.permute.xlu0 %2169
      %2171 = vrot.lane.b32.xlu0 %v2156, 127
      %v2172 = vpop.permute.xlu0 %2171
      %v2173 = vsel %vm418, %v2158, %v2160
      %v2174 = vsel %vm418, %v2160, %v2162
      %v2175 = vsel %vm418, %v2162, %v2164
      %v2176 = vsel %vm418, %v2166, %v2168
      %v2177 = vsel %vm418, %v2168, %v2170
      %v2178 = vsel %vm418, %v2170, %v2172
      %v2186 = vsel %vm431, %v2124, 0
      %2188 = vmatpush.bf16.msra.mxu0 0
      %2189 = vmatpush.bf16.msra.mxu0 0
      %2190 = vmatpush.bf16.msra.mxu0 0
      %2191 = vmatpush.bf16.msra.mxu0 0
      %2192 = vmatpush.bf16.msra.mxu0 0
      %2193 = vmatpush.bf16.msra.mxu0 0
      %2194 = vmatpush.bf16.msra.mxu0 %v2176
      %2195 = vmatpush.bf16.msra.mxu0 %v2173
      %2196 = vmatmul.bf16.gmra.mxu0 %v2186
      %v2197 = vpop.f32.mrf.mxu0
      %v2198 = vadd.f32 0.0, %v2197
      %v2199 = vpop.f32.mrf.mxu0
      %v2200 = vadd.f32 0.0, %v2199
      %2201 = vdwg.mxu0
      %2202 = vmatpush.bf16.msra.mxu0 0
      %2203 = vmatpush.bf16.msra.mxu0 0
      %2204 = vmatpush.bf16.msra.mxu0 0
      %2205 = vmatpush.bf16.msra.mxu0 0
      %2206 = vmatpush.bf16.msra.mxu0 0
      %2207 = vmatpush.bf16.msra.mxu0 0
      %2208 = vmatpush.bf16.msra.mxu0 %v2177
      %2209 = vmatpush.bf16.msra.mxu0 %v2174
      %2210 = vmatmul.bf16.gmra.mxu0 %v2186
      %v2211 = vpop.f32.mrf.mxu0
      %v2212 = vadd.f32 0.0, %v2211
      %v2213 = vpop.f32.mrf.mxu0
      %v2214 = vadd.f32 0.0, %v2213
      %2215 = vdwg.mxu0
      %2216 = vmatpush.bf16.msra.mxu0 0
      %2217 = vmatpush.bf16.msra.mxu0 0
      %2218 = vmatpush.bf16.msra.mxu0 0
      %2219 = vmatpush.bf16.msra.mxu0 0
      %2220 = vmatpush.bf16.msra.mxu0 0
      %2221 = vmatpush.bf16.msra.mxu0 0
      %2222 = vmatpush.bf16.msra.mxu0 %v2178
      %2223 = vmatpush.bf16.msra.mxu0 %v2175
      %2224 = vmatmul.bf16.gmra.mxu0 %v2186
      %v2225 = vpop.f32.mrf.mxu0
      %v2226 = vadd.f32 0.0, %v2225
      %v2227 = vpop.f32.mrf.mxu0
      %v2228 = vadd.f32 0.0, %v2227
      %2229 = vdwg.mxu0
      %v2230 = vadd.f32 %v2103, %v2198
      %v2231 = vadd.f32 %v2104, %v2212
      %v2232 = vadd.f32 %v2105, %v2226
      %v2233 = vadd.f32 %v2106, %v2200
      %v2234 = vadd.f32 %v2107, %v2214
      %v2235 = vadd.f32 %v2108, %v2228
      %s2236 = scalar_lea.vmem %s3, 160
      %v2237 = vld [vmem:[%s2236] sm:$0xf]
      %v2238 = vld [vmem:[%s2236 + $0x4] sm:$0x7]
      %v2241 = vunpack.c.l.b16 %v2237
      %v2242 = vunpack.c.l.b16 %v2238
      %v2243 = vpack.c.b16 %v2242, %v2241
      %2244 = vrot.lane.b32.xlu0 %v2149, 126
      %v2245 = vpop.permute.xlu0 %2244
      %2246 = vrot.lane.b32.xlu0 %v2150, 126
      %v2247 = vpop.permute.xlu0 %2246
      %2248 = vrot.lane.b32.xlu0 %v2151, 126
      %v2249 = vpop.permute.xlu0 %2248
      %2250 = vrot.lane.b32.xlu0 %v2152, 126
      %v2251 = vpop.permute.xlu0 %2250
      %2252 = vrot.lane.b32.xlu0 %v2153, 126
      %v2253 = vpop.permute.xlu0 %2252
      %2254 = vrot.lane.b32.xlu0 %v2154, 126
      %v2255 = vpop.permute.xlu0 %2254
      %2256 = vrot.lane.b32.xlu0 %v2155, 126
      %v2257 = vpop.permute.xlu0 %2256
      %2258 = vrot.lane.b32.xlu0 %v2156, 126
      %v2259 = vpop.permute.xlu0 %2258
      %v2260 = vsel %vm583, %v2245, %v2247
      %v2261 = vsel %vm583, %v2247, %v2249
      %v2262 = vsel %vm583, %v2249, %v2251
      %v2263 = vsel %vm583, %v2253, %v2255
      %v2264 = vsel %vm583, %v2255, %v2257
      %v2265 = vsel %vm583, %v2257, %v2259
      %v2273 = vsel %vm431, %v2243, 0
      %2275 = vmatpush.bf16.msra.mxu0 0
      %2276 = vmatpush.bf16.msra.mxu0 0
      %2277 = vmatpush.bf16.msra.mxu0 0
      %2278 = vmatpush.bf16.msra.mxu0 0
      %2279 = vmatpush.bf16.msra.mxu0 0
      %2280 = vmatpush.bf16.msra.mxu0 0
      %2281 = vmatpush.bf16.msra.mxu0 %v2263
      %2282 = vmatpush.bf16.msra.mxu0 %v2260
      %2283 = vmatmul.bf16.gmra.mxu0 %v2273
      %v2284 = vpop.f32.mrf.mxu0
      %v2285 = vadd.f32 0.0, %v2284
      %v2286 = vpop.f32.mrf.mxu0
      %v2287 = vadd.f32 0.0, %v2286
      %2288 = vdwg.mxu0
      %2289 = vmatpush.bf16.msra.mxu0 0
      %2290 = vmatpush.bf16.msra.mxu0 0
      %2291 = vmatpush.bf16.msra.mxu0 0
      %2292 = vmatpush.bf16.msra.mxu0 0
      %2293 = vmatpush.bf16.msra.mxu0 0
      %2294 = vmatpush.bf16.msra.mxu0 0
      %2295 = vmatpush.bf16.msra.mxu0 %v2264
      %2296 = vmatpush.bf16.msra.mxu0 %v2261
      %2297 = vmatmul.bf16.gmra.mxu0 %v2273
      %v2298 = vpop.f32.mrf.mxu0
      %v2299 = vadd.f32 0.0, %v2298
      %v2300 = vpop.f32.mrf.mxu0
      %v2301 = vadd.f32 0.0, %v2300
      %2302 = vdwg.mxu0
      %2303 = vmatpush.bf16.msra.mxu0 0
      %2304 = vmatpush.bf16.msra.mxu0 0
      %2305 = vmatpush.bf16.msra.mxu0 0
      %2306 = vmatpush.bf16.msra.mxu0 0
      %2307 = vmatpush.bf16.msra.mxu0 0
      %2308 = vmatpush.bf16.msra.mxu0 0
      %2309 = vmatpush.bf16.msra.mxu0 %v2265
      %2310 = vmatpush.bf16.msra.mxu0 %v2262
      %2311 = vmatmul.bf16.gmra.mxu0 %v2273
      %v2312 = vpop.f32.mrf.mxu0
      %v2313 = vadd.f32 0.0, %v2312
      %v2314 = vpop.f32.mrf.mxu0
      %v2315 = vadd.f32 0.0, %v2314
      %2316 = vdwg.mxu0
      %v2317 = vadd.f32 %v2230, %v2285
      %v2318 = vadd.f32 %v2231, %v2299
      %v2319 = vadd.f32 %v2232, %v2313
      %v2320 = vadd.f32 %v2233, %v2287
      %v2321 = vadd.f32 %v2234, %v2301
      %v2322 = vadd.f32 %v2235, %v2315
      %s2323 = scalar_lea.vmem %s3, 168
      %v2324 = vld [vmem:[%s2323] sm:$0xf]
      %v2325 = vld [vmem:[%s2323 + $0x4] sm:$0x7]
      %v2328 = vunpack.c.l.b16 %v2324
      %v2329 = vunpack.c.l.b16 %v2325
      %v2330 = vpack.c.b16 %v2329, %v2328
      %2331 = vrot.lane.b32.xlu0 %v2149, 110
      %v2332 = vpop.permute.xlu0 %2331
      %2333 = vrot.lane.b32.xlu0 %v2150, 110
      %v2334 = vpop.permute.xlu0 %2333
      %2335 = vrot.lane.b32.xlu0 %v2151, 110
      %v2336 = vpop.permute.xlu0 %2335
      %2337 = vrot.lane.b32.xlu0 %v2152, 110
      %v2338 = vpop.permute.xlu0 %2337
      %2339 = vrot.lane.b32.xlu0 %v2153, 110
      %v2340 = vpop.permute.xlu0 %2339
      %2341 = vrot.lane.b32.xlu0 %v2154, 110
      %v2342 = vpop.permute.xlu0 %2341
      %2343 = vrot.lane.b32.xlu0 %v2155, 110
      %v2344 = vpop.permute.xlu0 %2343
      %2345 = vrot.lane.b32.xlu0 %v2156, 110
      %v2346 = vpop.permute.xlu0 %2345
      %v2347 = vsel %vm671, %v2332, %v2334
      %v2348 = vsel %vm671, %v2334, %v2336
      %v2349 = vsel %vm671, %v2336, %v2338
      %v2350 = vsel %vm671, %v2340, %v2342
      %v2351 = vsel %vm671, %v2342, %v2344
      %v2352 = vsel %vm671, %v2344, %v2346
      %v2360 = vsel %vm431, %v2330, 0
      %2362 = vmatpush.bf16.msra.mxu0 0
      %2363 = vmatpush.bf16.msra.mxu0 0
      %2364 = vmatpush.bf16.msra.mxu0 0
      %2365 = vmatpush.bf16.msra.mxu0 0
      %2366 = vmatpush.bf16.msra.mxu0 0
      %2367 = vmatpush.bf16.msra.mxu0 0
      %2368 = vmatpush.bf16.msra.mxu0 %v2350
      %2369 = vmatpush.bf16.msra.mxu0 %v2347
      %2370 = vmatmul.bf16.gmra.mxu0 %v2360
      %v2371 = vpop.f32.mrf.mxu0
      %v2372 = vadd.f32 0.0, %v2371
      %v2373 = vpop.f32.mrf.mxu0
      %v2374 = vadd.f32 0.0, %v2373
      %2375 = vdwg.mxu0
      %2376 = vmatpush.bf16.msra.mxu0 0
      %2377 = vmatpush.bf16.msra.mxu0 0
      %2378 = vmatpush.bf16.msra.mxu0 0
      %2379 = vmatpush.bf16.msra.mxu0 0
      %2380 = vmatpush.bf16.msra.mxu0 0
      %2381 = vmatpush.bf16.msra.mxu0 0
      %2382 = vmatpush.bf16.msra.mxu0 %v2351
      %2383 = vmatpush.bf16.msra.mxu0 %v2348
      %2384 = vmatmul.bf16.gmra.mxu0 %v2360
      %v2385 = vpop.f32.mrf.mxu0
      %v2386 = vadd.f32 0.0, %v2385
      %v2387 = vpop.f32.mrf.mxu0
      %v2388 = vadd.f32 0.0, %v2387
      %2389 = vdwg.mxu0
      %2390 = vmatpush.bf16.msra.mxu0 0
      %2391 = vmatpush.bf16.msra.mxu0 0
      %2392 = vmatpush.bf16.msra.mxu0 0
      %2393 = vmatpush.bf16.msra.mxu0 0
      %2394 = vmatpush.bf16.msra.mxu0 0
      %2395 = vmatpush.bf16.msra.mxu0 0
      %2396 = vmatpush.bf16.msra.mxu0 %v2352
      %2397 = vmatpush.bf16.msra.mxu0 %v2349
      %2398 = vmatmul.bf16.gmra.mxu0 %v2360
      %v2399 = vpop.f32.mrf.mxu0
      %v2400 = vadd.f32 0.0, %v2399
      %v2401 = vpop.f32.mrf.mxu0
      %v2402 = vadd.f32 0.0, %v2401
      %2403 = vdwg.mxu0
      %v2404 = vadd.f32 %v2317, %v2372
      %v2405 = vadd.f32 %v2318, %v2386
      %v2406 = vadd.f32 %v2319, %v2400
      %v2407 = vadd.f32 %v2320, %v2374
      %v2408 = vadd.f32 %v2321, %v2388
      %v2409 = vadd.f32 %v2322, %v2402
      %s2410 = scalar_lea.vmem %s3, 176
      %v2411 = vld [vmem:[%s2410] sm:$0xf]
      %v2412 = vld [vmem:[%s2410 + $0x4] sm:$0x7]
      %v2415 = vunpack.c.l.b16 %v2411
      %v2416 = vunpack.c.l.b16 %v2412
      %v2417 = vpack.c.b16 %v2416, %v2415
      %2418 = vrot.lane.b32.xlu0 %v2149, 109
      %v2419 = vpop.permute.xlu0 %2418
      %2420 = vrot.lane.b32.xlu0 %v2150, 109
      %v2421 = vpop.permute.xlu0 %2420
      %2422 = vrot.lane.b32.xlu0 %v2151, 109
      %v2423 = vpop.permute.xlu0 %2422
      %2424 = vrot.lane.b32.xlu0 %v2152, 109
      %v2425 = vpop.permute.xlu0 %2424
      %2426 = vrot.lane.b32.xlu0 %v2153, 109
      %v2427 = vpop.permute.xlu0 %2426
      %2428 = vrot.lane.b32.xlu0 %v2154, 109
      %v2429 = vpop.permute.xlu0 %2428
      %2430 = vrot.lane.b32.xlu0 %v2155, 109
      %v2431 = vpop.permute.xlu0 %2430
      %2432 = vrot.lane.b32.xlu0 %v2156, 109
      %v2433 = vpop.permute.xlu0 %2432
      %v2434 = vsel %vm759, %v2419, %v2421
      %v2435 = vsel %vm759, %v2421, %v2423
      %v2436 = vsel %vm759, %v2423, %v2425
      %v2437 = vsel %vm759, %v2427, %v2429
      %v2438 = vsel %vm759, %v2429, %v2431
      %v2439 = vsel %vm759, %v2431, %v2433
      %v2447 = vsel %vm431, %v2417, 0
      %2449 = vmatpush.bf16.msra.mxu0 0
      %2450 = vmatpush.bf16.msra.mxu0 0
      %2451 = vmatpush.bf16.msra.mxu0 0
      %2452 = vmatpush.bf16.msra.mxu0 0
      %2453 = vmatpush.bf16.msra.mxu0 0
      %2454 = vmatpush.bf16.msra.mxu0 0
      %2455 = vmatpush.bf16.msra.mxu0 %v2437
      %2456 = vmatpush.bf16.msra.mxu0 %v2434
      %2457 = vmatmul.bf16.gmra.mxu0 %v2447
      %v2458 = vpop.f32.mrf.mxu0
      %v2459 = vadd.f32 0.0, %v2458
      %v2460 = vpop.f32.mrf.mxu0
      %v2461 = vadd.f32 0.0, %v2460
      %2462 = vdwg.mxu0
      %2463 = vmatpush.bf16.msra.mxu0 0
      %2464 = vmatpush.bf16.msra.mxu0 0
      %2465 = vmatpush.bf16.msra.mxu0 0
      %2466 = vmatpush.bf16.msra.mxu0 0
      %2467 = vmatpush.bf16.msra.mxu0 0
      %2468 = vmatpush.bf16.msra.mxu0 0
      %2469 = vmatpush.bf16.msra.mxu0 %v2438
      %2470 = vmatpush.bf16.msra.mxu0 %v2435
      %2471 = vmatmul.bf16.gmra.mxu0 %v2447
      %v2472 = vpop.f32.mrf.mxu0
      %v2473 = vadd.f32 0.0, %v2472
      %v2474 = vpop.f32.mrf.mxu0
      %v2475 = vadd.f32 0.0, %v2474
      %2476 = vdwg.mxu0
      %2477 = vmatpush.bf16.msra.mxu0 0
      %2478 = vmatpush.bf16.msra.mxu0 0
      %2479 = vmatpush.bf16.msra.mxu0 0
      %2480 = vmatpush.bf16.msra.mxu0 0
      %2481 = vmatpush.bf16.msra.mxu0 0
      %2482 = vmatpush.bf16.msra.mxu0 0
      %2483 = vmatpush.bf16.msra.mxu0 %v2439
      %2484 = vmatpush.bf16.msra.mxu0 %v2436
      %2485 = vmatmul.bf16.gmra.mxu0 %v2447
      %v2486 = vpop.f32.mrf.mxu0
      %v2487 = vadd.f32 0.0, %v2486
      %v2488 = vpop.f32.mrf.mxu0
      %v2489 = vadd.f32 0.0, %v2488
      %2490 = vdwg.mxu0
      %v2491 = vadd.f32 %v2404, %v2459
      %v2492 = vadd.f32 %v2405, %v2473
      %v2493 = vadd.f32 %v2406, %v2487
      %v2494 = vadd.f32 %v2407, %v2461
      %v2495 = vadd.f32 %v2408, %v2475
      %v2496 = vadd.f32 %v2409, %v2489
      %s2497 = scalar_lea.vmem %s3, 184
      %v2498 = vld [vmem:[%s2497] sm:$0xf]
      %v2499 = vld [vmem:[%s2497 + $0x4] sm:$0x7]
      %v2502 = vunpack.c.l.b16 %v2498
      %v2503 = vunpack.c.l.b16 %v2499
      %v2504 = vpack.c.b16 %v2503, %v2502
      %2505 = vrot.lane.b32.xlu0 %v2149, 108
      %v2506 = vpop.permute.xlu0 %2505
      %2507 = vrot.lane.b32.xlu0 %v2150, 108
      %v2508 = vpop.permute.xlu0 %2507
      %2509 = vrot.lane.b32.xlu0 %v2151, 108
      %v2510 = vpop.permute.xlu0 %2509
      %2511 = vrot.lane.b32.xlu0 %v2152, 108
      %v2512 = vpop.permute.xlu0 %2511
      %2513 = vrot.lane.b32.xlu0 %v2153, 108
      %v2514 = vpop.permute.xlu0 %2513
      %2515 = vrot.lane.b32.xlu0 %v2154, 108
      %v2516 = vpop.permute.xlu0 %2515
      %2517 = vrot.lane.b32.xlu0 %v2155, 108
      %v2518 = vpop.permute.xlu0 %2517
      %2519 = vrot.lane.b32.xlu0 %v2156, 108
      %v2520 = vpop.permute.xlu0 %2519
      %v2521 = vsel %vm847, %v2506, %v2508
      %v2522 = vsel %vm847, %v2508, %v2510
      %v2523 = vsel %vm847, %v2510, %v2512
      %v2524 = vsel %vm847, %v2514, %v2516
      %v2525 = vsel %vm847, %v2516, %v2518
      %v2526 = vsel %vm847, %v2518, %v2520
      %v2534 = vsel %vm431, %v2504, 0
      %2536 = vmatpush.bf16.msra.mxu0 0
      %2537 = vmatpush.bf16.msra.mxu0 0
      %2538 = vmatpush.bf16.msra.mxu0 0
      %2539 = vmatpush.bf16.msra.mxu0 0
      %2540 = vmatpush.bf16.msra.mxu0 0
      %2541 = vmatpush.bf16.msra.mxu0 0
      %2542 = vmatpush.bf16.msra.mxu0 %v2524
      %2543 = vmatpush.bf16.msra.mxu0 %v2521
      %2544 = vmatmul.bf16.gmra.mxu0 %v2534
      %v2545 = vpop.f32.mrf.mxu0
      %v2546 = vadd.f32 0.0, %v2545
      %v2547 = vpop.f32.mrf.mxu0
      %v2548 = vadd.f32 0.0, %v2547
      %2549 = vdwg.mxu0
      %2550 = vmatpush.bf16.msra.mxu0 0
      %2551 = vmatpush.bf16.msra.mxu0 0
      %2552 = vmatpush.bf16.msra.mxu0 0
      %2553 = vmatpush.bf16.msra.mxu0 0
      %2554 = vmatpush.bf16.msra.mxu0 0
      %2555 = vmatpush.bf16.msra.mxu0 0
      %2556 = vmatpush.bf16.msra.mxu0 %v2525
      %2557 = vmatpush.bf16.msra.mxu0 %v2522
      %2558 = vmatmul.bf16.gmra.mxu0 %v2534
      %v2559 = vpop.f32.mrf.mxu0
      %v2560 = vadd.f32 0.0, %v2559
      %v2561 = vpop.f32.mrf.mxu0
      %v2562 = vadd.f32 0.0, %v2561
      %2563 = vdwg.mxu0
      %2564 = vmatpush.bf16.msra.mxu0 0
      %2565 = vmatpush.bf16.msra.mxu0 0
      %2566 = vmatpush.bf16.msra.mxu0 0
      %2567 = vmatpush.bf16.msra.mxu0 0
      %2568 = vmatpush.bf16.msra.mxu0 0
      %2569 = vmatpush.bf16.msra.mxu0 0
      %2570 = vmatpush.bf16.msra.mxu0 %v2526
      %2571 = vmatpush.bf16.msra.mxu0 %v2523
      %2572 = vmatmul.bf16.gmra.mxu0 %v2534
      %v2573 = vpop.f32.mrf.mxu0
      %v2574 = vadd.f32 0.0, %v2573
      %v2575 = vpop.f32.mrf.mxu0
      %v2576 = vadd.f32 0.0, %v2575
      %2577 = vdwg.mxu0
      %v2578 = vadd.f32 %v2491, %v2546
      %v2579 = vadd.f32 %v2492, %v2560
      %v2580 = vadd.f32 %v2493, %v2574
      %v2581 = vadd.f32 %v2494, %v2548
      %v2582 = vadd.f32 %v2495, %v2562
      %v2583 = vadd.f32 %v2496, %v2576
      %s2584 = scalar_lea.vmem %s3, 192
      %v2585 = vld [vmem:[%s2584] sm:$0xf]
      %v2586 = vld [vmem:[%s2584 + $0x4] sm:$0x7]
      %v2589 = vunpack.c.l.b16 %v2585
      %v2590 = vunpack.c.l.b16 %v2586
      %v2591 = vpack.c.b16 %v2590, %v2589
      %2592 = vrot.lane.b32.xlu0 %v2149, 92
      %v2593 = vpop.permute.xlu0 %2592
      %2594 = vrot.lane.b32.xlu0 %v2150, 92
      %v2595 = vpop.permute.xlu0 %2594
      %2596 = vrot.lane.b32.xlu0 %v2151, 92
      %v2597 = vpop.permute.xlu0 %2596
      %2598 = vrot.lane.b32.xlu0 %v2152, 92
      %v2599 = vpop.permute.xlu0 %2598
      %2600 = vrot.lane.b32.xlu0 %v2153, 92
      %v2601 = vpop.permute.xlu0 %2600
      %2602 = vrot.lane.b32.xlu0 %v2154, 92
      %v2603 = vpop.permute.xlu0 %2602
      %2604 = vrot.lane.b32.xlu0 %v2155, 92
      %v2605 = vpop.permute.xlu0 %2604
      %2606 = vrot.lane.b32.xlu0 %v2156, 92
      %v2607 = vpop.permute.xlu0 %2606
      %v2608 = vsel %vm935, %v2593, %v2595
      %v2609 = vsel %vm935, %v2595, %v2597
      %v2610 = vsel %vm935, %v2597, %v2599
      %v2611 = vsel %vm935, %v2601, %v2603
      %v2612 = vsel %vm935, %v2603, %v2605
      %v2613 = vsel %vm935, %v2605, %v2607
      %v2621 = vsel %vm431, %v2591, 0
      %2623 = vmatpush.bf16.msra.mxu0 0
      %2624 = vmatpush.bf16.msra.mxu0 0
      %2625 = vmatpush.bf16.msra.mxu0 0
      %2626 = vmatpush.bf16.msra.mxu0 0
      %2627 = vmatpush.bf16.msra.mxu0 0
      %2628 = vmatpush.bf16.msra.mxu0 0
      %2629 = vmatpush.bf16.msra.mxu0 %v2611
      %2630 = vmatpush.bf16.msra.mxu0 %v2608
      %2631 = vmatmul.bf16.gmra.mxu0 %v2621
      %v2632 = vpop.f32.mrf.mxu0
      %v2633 = vadd.f32 0.0, %v2632
      %v2634 = vpop.f32.mrf.mxu0
      %v2635 = vadd.f32 0.0, %v2634
      %2636 = vdwg.mxu0
      %2637 = vmatpush.bf16.msra.mxu0 0
      %2638 = vmatpush.bf16.msra.mxu0 0
      %2639 = vmatpush.bf16.msra.mxu0 0
      %2640 = vmatpush.bf16.msra.mxu0 0
      %2641 = vmatpush.bf16.msra.mxu0 0
      %2642 = vmatpush.bf16.msra.mxu0 0
      %2643 = vmatpush.bf16.msra.mxu0 %v2612
      %2644 = vmatpush.bf16.msra.mxu0 %v2609
      %2645 = vmatmul.bf16.gmra.mxu0 %v2621
      %v2646 = vpop.f32.mrf.mxu0
      %v2647 = vadd.f32 0.0, %v2646
      %v2648 = vpop.f32.mrf.mxu0
      %v2649 = vadd.f32 0.0, %v2648
      %2650 = vdwg.mxu0
      %2651 = vmatpush.bf16.msra.mxu0 0
      %2652 = vmatpush.bf16.msra.mxu0 0
      %2653 = vmatpush.bf16.msra.mxu0 0
      %2654 = vmatpush.bf16.msra.mxu0 0
      %2655 = vmatpush.bf16.msra.mxu0 0
      %2656 = vmatpush.bf16.msra.mxu0 0
      %2657 = vmatpush.bf16.msra.mxu0 %v2613
      %2658 = vmatpush.bf16.msra.mxu0 %v2610
      %2659 = vmatmul.bf16.gmra.mxu0 %v2621
      %v2660 = vpop.f32.mrf.mxu0
      %v2661 = vadd.f32 0.0, %v2660
      %v2662 = vpop.f32.mrf.mxu0
      %v2663 = vadd.f32 0.0, %v2662
      %2664 = vdwg.mxu0
      %v2665 = vadd.f32 %v2578, %v2633
      %v2666 = vadd.f32 %v2579, %v2647
      %v2667 = vadd.f32 %v2580, %v2661
      %v2668 = vadd.f32 %v2581, %v2635
      %v2669 = vadd.f32 %v2582, %v2649
      %v2670 = vadd.f32 %v2583, %v2663
      %s2671 = scalar_lea.vmem %s3, 200
      %v2672 = vld [vmem:[%s2671] sm:$0xf]
      %v2673 = vld [vmem:[%s2671 + $0x4] sm:$0x7]
      %v2676 = vunpack.c.l.b16 %v2672
      %v2677 = vunpack.c.l.b16 %v2673
      %v2678 = vpack.c.b16 %v2677, %v2676
      %2679 = vrot.lane.b32.xlu0 %v2149, 91
      %v2680 = vpop.permute.xlu0 %2679
      %2681 = vrot.lane.b32.xlu0 %v2150, 91
      %v2682 = vpop.permute.xlu0 %2681
      %2683 = vrot.lane.b32.xlu0 %v2151, 91
      %v2684 = vpop.permute.xlu0 %2683
      %2685 = vrot.lane.b32.xlu0 %v2152, 91
      %v2686 = vpop.permute.xlu0 %2685
      %2687 = vrot.lane.b32.xlu0 %v2153, 91
      %v2688 = vpop.permute.xlu0 %2687
      %2689 = vrot.lane.b32.xlu0 %v2154, 91
      %v2690 = vpop.permute.xlu0 %2689
      %2691 = vrot.lane.b32.xlu0 %v2155, 91
      %v2692 = vpop.permute.xlu0 %2691
      %2693 = vrot.lane.b32.xlu0 %v2156, 91
      %v2694 = vpop.permute.xlu0 %2693
      %v2695 = vsel %vm1023, %v2680, %v2682
      %v2696 = vsel %vm1023, %v2682, %v2684
      %v2697 = vsel %vm1023, %v2684, %v2686
      %v2698 = vsel %vm1023, %v2688, %v2690
      %v2699 = vsel %vm1023, %v2690, %v2692
      %v2700 = vsel %vm1023, %v2692, %v2694
      %v2708 = vsel %vm431, %v2678, 0
      %2710 = vmatpush.bf16.msra.mxu0 0
      %2711 = vmatpush.bf16.msra.mxu0 0
      %2712 = vmatpush.bf16.msra.mxu0 0
      %2713 = vmatpush.bf16.msra.mxu0 0
      %2714 = vmatpush.bf16.msra.mxu0 0
      %2715 = vmatpush.bf16.msra.mxu0 0
      %2716 = vmatpush.bf16.msra.mxu0 %v2698
      %2717 = vmatpush.bf16.msra.mxu0 %v2695
      %2718 = vmatmul.bf16.gmra.mxu0 %v2708
      %v2719 = vpop.f32.mrf.mxu0
      %v2720 = vadd.f32 0.0, %v2719
      %v2721 = vpop.f32.mrf.mxu0
      %v2722 = vadd.f32 0.0, %v2721
      %2723 = vdwg.mxu0
      %2724 = vmatpush.bf16.msra.mxu0 0
      %2725 = vmatpush.bf16.msra.mxu0 0
      %2726 = vmatpush.bf16.msra.mxu0 0
      %2727 = vmatpush.bf16.msra.mxu0 0
      %2728 = vmatpush.bf16.msra.mxu0 0
      %2729 = vmatpush.bf16.msra.mxu0 0
      %2730 = vmatpush.bf16.msra.mxu0 %v2699
      %2731 = vmatpush.bf16.msra.mxu0 %v2696
      %2732 = vmatmul.bf16.gmra.mxu0 %v2708
      %v2733 = vpop.f32.mrf.mxu0
      %v2734 = vadd.f32 0.0, %v2733
      %v2735 = vpop.f32.mrf.mxu0
      %v2736 = vadd.f32 0.0, %v2735
      %2737 = vdwg.mxu0
      %2738 = vmatpush.bf16.msra.mxu0 0
      %2739 = vmatpush.bf16.msra.mxu0 0
      %2740 = vmatpush.bf16.msra.mxu0 0
      %2741 = vmatpush.bf16.msra.mxu0 0
      %2742 = vmatpush.bf16.msra.mxu0 0
      %2743 = vmatpush.bf16.msra.mxu0 0
      %2744 = vmatpush.bf16.msra.mxu0 %v2700
      %2745 = vmatpush.bf16.msra.mxu0 %v2697
      %2746 = vmatmul.bf16.gmra.mxu0 %v2708
      %v2747 = vpop.f32.mrf.mxu0
      %v2748 = vadd.f32 0.0, %v2747
      %v2749 = vpop.f32.mrf.mxu0
      %v2750 = vadd.f32 0.0, %v2749
      %2751 = vdwg.mxu0
      %v2752 = vadd.f32 %v2665, %v2720
      %v2753 = vadd.f32 %v2666, %v2734
      %v2754 = vadd.f32 %v2667, %v2748
      %v2755 = vadd.f32 %v2668, %v2722
      %v2756 = vadd.f32 %v2669, %v2736
      %v2757 = vadd.f32 %v2670, %v2750
      %s2758 = scalar_lea.vmem %s3, 208
      %v2759 = vld [vmem:[%s2758] sm:$0xf]
      %v2760 = vld [vmem:[%s2758 + $0x4] sm:$0x7]
      %v2763 = vunpack.c.l.b16 %v2759
      %v2764 = vunpack.c.l.b16 %v2760
      %v2765 = vpack.c.b16 %v2764, %v2763
      %2766 = vrot.lane.b32.xlu0 %v2149, 90
      %v2767 = vpop.permute.xlu0 %2766
      %2768 = vrot.lane.b32.xlu0 %v2150, 90
      %v2769 = vpop.permute.xlu0 %2768
      %2770 = vrot.lane.b32.xlu0 %v2151, 90
      %v2771 = vpop.permute.xlu0 %2770
      %2772 = vrot.lane.b32.xlu0 %v2152, 90
      %v2773 = vpop.permute.xlu0 %2772
      %2774 = vrot.lane.b32.xlu0 %v2153, 90
      %v2775 = vpop.permute.xlu0 %2774
      %2776 = vrot.lane.b32.xlu0 %v2154, 90
      %v2777 = vpop.permute.xlu0 %2776
      %2778 = vrot.lane.b32.xlu0 %v2155, 90
      %v2779 = vpop.permute.xlu0 %2778
      %2780 = vrot.lane.b32.xlu0 %v2156, 90
      %v2781 = vpop.permute.xlu0 %2780
      %v2782 = vsel %vm1111, %v2767, %v2769
      %v2783 = vsel %vm1111, %v2769, %v2771
      %v2784 = vsel %vm1111, %v2771, %v2773
      %v2785 = vsel %vm1111, %v2775, %v2777
      %v2786 = vsel %vm1111, %v2777, %v2779
      %v2787 = vsel %vm1111, %v2779, %v2781
      %v2795 = vsel %vm431, %v2765, 0
      %2797 = vmatpush.bf16.msra.mxu0 0
      %2798 = vmatpush.bf16.msra.mxu0 0
      %2799 = vmatpush.bf16.msra.mxu0 0
      %2800 = vmatpush.bf16.msra.mxu0 0
      %2801 = vmatpush.bf16.msra.mxu0 0
      %2802 = vmatpush.bf16.msra.mxu0 0
      %2803 = vmatpush.bf16.msra.mxu0 %v2785
      %2804 = vmatpush.bf16.msra.mxu0 %v2782
      %2805 = vmatmul.bf16.gmra.mxu0 %v2795
      %v2806 = vpop.f32.mrf.mxu0
      %v2807 = vadd.f32 0.0, %v2806
      %v2808 = vpop.f32.mrf.mxu0
      %v2809 = vadd.f32 0.0, %v2808
      %2810 = vdwg.mxu0
      %2811 = vmatpush.bf16.msra.mxu0 0
      %2812 = vmatpush.bf16.msra.mxu0 0
      %2813 = vmatpush.bf16.msra.mxu0 0
      %2814 = vmatpush.bf16.msra.mxu0 0
      %2815 = vmatpush.bf16.msra.mxu0 0
      %2816 = vmatpush.bf16.msra.mxu0 0
      %2817 = vmatpush.bf16.msra.mxu0 %v2786
      %2818 = vmatpush.bf16.msra.mxu0 %v2783
      %2819 = vmatmul.bf16.gmra.mxu0 %v2795
      %v2820 = vpop.f32.mrf.mxu0
      %v2821 = vadd.f32 0.0, %v2820
      %v2822 = vpop.f32.mrf.mxu0
      %v2823 = vadd.f32 0.0, %v2822
      %2824 = vdwg.mxu0
      %2825 = vmatpush.bf16.msra.mxu0 0
      %2826 = vmatpush.bf16.msra.mxu0 0
      %2827 = vmatpush.bf16.msra.mxu0 0
      %2828 = vmatpush.bf16.msra.mxu0 0
      %2829 = vmatpush.bf16.msra.mxu0 0
      %2830 = vmatpush.bf16.msra.mxu0 0
      %2831 = vmatpush.bf16.msra.mxu0 %v2787
      %2832 = vmatpush.bf16.msra.mxu0 %v2784
      %2833 = vmatmul.bf16.gmra.mxu0 %v2795
      %v2834 = vpop.f32.mrf.mxu0
      %v2835 = vadd.f32 0.0, %v2834
      %v2836 = vpop.f32.mrf.mxu0
      %v2837 = vadd.f32 0.0, %v2836
      %2838 = vdwg.mxu0
      %v2839 = vadd.f32 %v2752, %v2807
      %v2840 = vadd.f32 %v2753, %v2821
      %v2841 = vadd.f32 %v2754, %v2835
      %v2842 = vadd.f32 %v2755, %v2809
      %v2843 = vadd.f32 %v2756, %v2823
      %v2844 = vadd.f32 %v2757, %v2837
      %v2845 = vld [vmem:[%s4] sm:$0xff]
      %v2846 = vld [vmem:[%s4 + $0x8] sm:$0x3f]
      %2848 = vset.pattern.permute.xlu0 0
      %2849 = vperm.xlu0 %2848, %v2845
      %v2850 = vpop.permute.xlu0 %2849
      %2853 = vset.pattern.permute.xlu0 0
      %2854 = vperm.xlu0 %2853, %v2846
      %v2855 = vpop.permute.xlu0 %2854
      %v2857 = vadd.f32 %v2839, %v2850
      %v2858 = vadd.f32 %v2840, %v2850
      %v2859 = vadd.f32 %v2841, %v2850
      %v2860 = vadd.f32 %v2842, %v2855
      %v2861 = vadd.f32 %v2843, %v2855
      %v2862 = vadd.f32 %v2844, %v2855
      %v2863 = vmax.f32 %v2857, 0.0
      %v2864 = vmax.f32 %v2858, 0.0
      %v2865 = vmax.f32 %v2859, 0.0
      %v2866 = vmax.f32 %v2860, 0.0
      %v2867 = vmax.f32 %v2861, 0.0
      %v2868 = vmax.f32 %v2862, 0.0
      %2869 = vst [vmem:[%s342] sm:$0xff] %v2863
      %2870 = vst [vmem:[%s342 + $0x8] sm:$0xff] %v2864
      %2871 = vst [vmem:[%s342 + $0x10] sm:$0xff] %v2865
      %2872 = vst [vmem:[%s342 + $0x18] sm:$0x3f] %v2866
      %2873 = vst [vmem:[%s342 + $0x20] sm:$0x3f] %v2867
      %2874 = vst [vmem:[%s342 + $0x28] sm:$0x3f] %v2868
      %p2875 = scmp.lt.s32.totalorder %s20, 1
      %s2876 = scalar_select %p2875, %s20, 1
      %p2877 = scmp.lt.s32.totalorder %s21, 3
      %s2878 = scalar_select %p2877, %s21, 3
      %s2879 = smul.addr %s2878, 6
      %s2880 = smul.addr %s2876, 24
      %s2881 = sadd.s32 %s2879, %s2880
      %s2882 = smul.addr %s2881, 8
      %s2883 = scalar_lea.vmem %s5, %s2882
      // Predicated region
      $region41: #{forward.7} parent=39 // pred_check
        %p2884 = pneg %p178
      $region42: #{forward.7} parent=39 // pred_check_branch
        %2886 = sbr.rel (%p2884) target = $region44
      $region43: #{forward.7} parent=39 // pred_region
        _
      $region44: #{forward.7} parent=39 // pred_fallthru
        _
    $region40: #{forward.7} parent=5 // pred_fallthru
      _
    %p2887 = scmp.le.s32.totalorder 2, %s11
    // Predicated region
    $region45: #{forward.7} parent=5 // pred_check
      %p2888 = pneg %p2887
    $region46: #{forward.7} parent=5 // pred_check_branch
      %2890 = sbr.rel (%p2888) target = $region48
    $region47: #{forward.7} parent=5 // pred_region
      %s2891 = ssub.s32 %s11, 2
      // Predicated region
      $region49: #{forward.7} parent=47 // pred_check
        %p2892 = pneg %p184
      $region50: #{forward.7} parent=47 // pred_check_branch
        %2894 = sbr.rel (%p2892) target = $region52
      $region51: #{forward.7} parent=47 // pred_region
        %p2895 = scmp.lt.s32.totalorder %s22, 1
        %s2896 = scalar_select %p2895, %s22, 1
        %p2897 = scmp.lt.s32.totalorder %s23, 3
        %s2898 = scalar_select %p2897, %s23, 3
        %s2899 = smul.addr %s2898, 6
        %s2900 = smul.addr %s2896, 24
        %s2901 = sadd.s32 %s2899, %s2900
        %s2902 = smul.addr %s2901, 8
        %s2903 = scalar_lea.vmem %s5, %s2902
      $region52: #{forward.7} parent=47 // pred_fallthru
        _
    $region48: #{forward.7} parent=5 // pred_fallthru
      _
  $region6: #{forward.7} parent=0 // loop_footer
    %s15 = sadd.s32 1, %s11
  $region7: #{forward.7} parent=0 // loop_footer_branch
    %10 = sbr.rel target = $region3
  $region8: #{forward.7} parent=0 // loop_exit
    _

// kernel: forward.8
$region0: #{forward.8}
  #allocation0 [shape = 'u32[]', space=smem, size = 0x4, offset = 0x4, fixed_abs, tag = 'smem constant byte address 0x4 - core index']
  #allocation1 [shape = 'u32[72,128]{1,0:T(1,128)}', space=vmem, size = 0x9000, scoped, tag = 'internal scratch']
  %s0 = inlined_call_operand.vmem [shape: bf16[36,24,128], index: 0, kind: input, shape index: {}]
  %s1 = inlined_call_operand.vmem [shape: f32[36,24,1], index: 1, kind: output, shape index: {}]
  %s2 = sld [smem:[#allocation0]]
  $region44: #{forward.8} parent=0
    _
  %s4 = ssub.s32 1, %s2
  %s5 = scalar_select 0, %s4, %s2
  loop: start=0, step=1, limit=4
  $region2: #{forward.8} parent=0 // loop_pre_header
    _
  $region3: #{forward.8} parent=0 // loop_header
    %s7 = sphi 0, %s11
    %p8 = scmp.ge.s32.totalorder %s7, 4
    %s17 = sphi 0, %s19
    %s20 = sphi 0, %s17
    %s21 = sphi 0, %s20
    %s37 = sphi 0, %s21
    %s43 = sphi 0, %s45
    %s46 = sphi 0, %s43
    %s47 = sphi 0, %s46
    %s63 = sphi 0, %s47
  $region4: #{forward.8} parent=0 // loop_header_branch
    %10 = sbr.rel (%p8) target = $region8
  $region5: #{forward.8} parent=0 // loop_body
    %s12 = ssub.s32 %s7, 1
    %s13 = ssub.s32 %s7, 2
    %s14 = sadd.s32 %s7, 1
    %s15 = ssub.s32 %s7, %s14
    %p16 = scmp.eq.s32.totalorder %s15, 0
    %s18 = sadd.s32 %s17, 1
    %s19 = scalar_select %p16, %s17, %s18
    %p22 = pneg %p16
    %p23 = scmp.eq.s32.totalorder %s7, 1
    %p24 = por %p22, %p23
    %p25 = scmp.ne.s32.totalorder %s17, %s20
    %p26 = scmp.eq.s32.totalorder %s7, 0
    %p27 = por %p25, %p26
    %p28 = scmp.ne.s32.totalorder %s17, %s20
    %p29 = scmp.eq.s32.totalorder %s12, 1
    %p30 = por %p28, %p29
    %p31 = scmp.ne.s32.totalorder %s20, %s21
    %p32 = scmp.eq.s32.totalorder %s12, 0
    %p33 = por %p31, %p32
    %p34 = scmp.ne.s32.totalorder %s20, %s21
    %p35 = scmp.eq.s32.totalorder %s13, 1
    %p36 = por %p34, %p35
    %p38 = scmp.ne.s32.totalorder %s21, %s37
    %p39 = scmp.eq.s32.totalorder %s13, 0
    %p40 = por %p38, %p39
    %s41 = ssub.s32 %s7, %s14
    %p42 = scmp.eq.s32.totalorder %s41, 0
    %s44 = sadd.s32 %s43, 1
    %s45 = scalar_select %p42, %s43, %s44
    %p48 = pneg %p42
    %p49 = scmp.eq.s32.totalorder %s7, 1
    %p50 = por %p48, %p49
    %p51 = scmp.ne.s32.totalorder %s43, %s46
    %p52 = scmp.eq.s32.totalorder %s7, 0
    %p53 = por %p51, %p52
    %p54 = scmp.ne.s32.totalorder %s43, %s46
    %p55 = scmp.eq.s32.totalorder %s12, 1
    %p56 = por %p54, %p55
    %p57 = scmp.ne.s32.totalorder %s46, %s47
    %p58 = scmp.eq.s32.totalorder %s12, 0
    %p59 = por %p57, %p58
    %p60 = scmp.ne.s32.totalorder %s46, %s47
    %p61 = scmp.eq.s32.totalorder %s13, 1
    %p62 = por %p60, %p61
    %p64 = scmp.ne.s32.totalorder %s47, %s63
    %p65 = scmp.eq.s32.totalorder %s13, 0
    %p66 = por %p64, %p65
    %p67 = scmp.le.s32.totalorder 1, %s7
    %p68 = scmp.lt.s32.totalorder %s7, 3
    %p69 = pnand %p67, %p68
    %p70 = pneg %p69
    // Predicated region
    $region9: #{forward.8} parent=5 // pred_check
      _
    $region10: #{forward.8} parent=5 // pred_check_branch
      %72 = sbr.rel (%p69) target = $region12
    $region11: #{forward.8} parent=5 // pred_region
      %s73 = ssub.s32 %s7, 1
    $region12: #{forward.8} parent=5 // pred_fallthru
      _
    %p74 = scmp.lt.s32.totalorder %s7, 2
    // Predicated region
    $region13: #{forward.8} parent=5 // pred_check
      %p75 = pneg %p74
    $region14: #{forward.8} parent=5 // pred_check_branch
      %77 = sbr.rel (%p75) target = $region16
    $region15: #{forward.8} parent=5 // pred_region
      // Predicated region
      $region17: #{forward.8} parent=15 // pred_check
        %p78 = pneg %p27
      $region18: #{forward.8} parent=15 // pred_check_branch
        %80 = sbr.rel (%p78) target = $region20
      $region19: #{forward.8} parent=15 // pred_region
        %s81 = smul.u32 18, %s7
        %p82 = scmp.lt.s32.totalorder %s81, 35
        %s83 = scalar_select %p82, %s81, 35
        %s84 = smul.addr %s83, 3
        %s85 = smul.addr %s84, 4
        %s86 = scalar_lea.vmem %s0, %s85
        %s87 = smul.u32 18, %s7
      $region20: #{forward.8} parent=15 // pred_fallthru
        _
    $region16: #{forward.8} parent=5 // pred_fallthru
      _
    %p88 = scmp.le.s32.totalorder 1, %s7
    %p89 = scmp.lt.s32.totalorder %s7, 3
    %p90 = pnand %p88, %p89
    %p91 = pneg %p90
    // Predicated region
    $region21: #{forward.8} parent=5 // pred_check
      _
    $region22: #{forward.8} parent=5 // pred_check_branch
      %93 = sbr.rel (%p90) target = $region24
    $region23: #{forward.8} parent=5 // pred_region
      %s94 = ssub.s32 %s7, 1
      %s95 = smul.u32 18, %s12
      %p96 = scmp.lt.s32.totalorder %s95, 35
      %s97 = scalar_select %p96, %s95, 35
      %s98 = smul.addr %s97, 3
      %s99 = smul.addr %s98, 4
      %s100 = scalar_lea.vmem %s0, %s99
      %p101 = pneg %p33
      %p102 = pneg %p30
      %p103 = pneg %p59
      %p104 = pneg %p56
      %s105 = smul.u32 18, %s12
      %p106 = scmp.lt.s32.totalorder %s105, 35
      %s107 = scalar_select %p106, %s105, 35
      %s108 = smul.addr %s107, 3
      %s109 = smul.addr %s108, 8
      %s110 = scalar_lea.vmem %s1, %s109
      %s111 = smul.u32 18, %s12
      %p112 = scmp.lt.s32.totalorder %s111, 35
      %s113 = scalar_select %p112, %s111, 35
      %s114 = smul.addr %s113, 3
      %s115 = smul.addr %s114, 4
      %s116 = scalar_lea.vmem %s0, %s115
      %s117 = smul.u32 18, %s12
      %s118 = smul.u32 18, %s12
      %p119 = scmp.lt.s32.totalorder %s118, 35
      %s120 = scalar_select %p119, %s118, 35
      %s121 = smul.addr %s120, 3
      %s122 = smul.addr %s121, 8
      %s123 = scalar_lea.vmem %s1, %s122
      %s124 = smul.u32 18, %s12
      loop: start=0, step=1, limit=18
      $region25: #{forward.8} parent=23 // loop_pre_header
        _
      $region26: #{forward.8} parent=23 // loop_header
        %s126 = sphi 0, %s130
        %p127 = scmp.ge.s32.totalorder %s126, 18
      $region27: #{forward.8} parent=23 // loop_header_branch
        %129 = sbr.rel (%p127) target = $region31
      $region28: #{forward.8} parent=23 // loop_body
        %s131 = smul.u32 %s126, 3
        %s132 = smul.addr %s131, 4
        %s133 = scalar_lea.vmem %s116, %s132
        %v134 = vld [vmem:[%s133] sm:$0xf]
        %v135 = vld [vmem:[%s133 + $0x4] sm:$0xf]
        %v136 = vld [vmem:[%s133 + $0x8] sm:$0xf]
        %v137 = vunpack.c.l.bf16 %v134
        %v138 = vunpack.c.l.bf16 %v135
        %v139 = vunpack.c.l.bf16 %v136
        %140 = vadd.xlane.f32.xlu0 %v137
        %v141 = vpop.xlane.xlu0 %140
        %142 = vadd.xlane.f32.xlu0 %v138
        %v143 = vpop.xlane.xlu0 %142
        %144 = vadd.xlane.f32.xlu0 %v139
        %v145 = vpop.xlane.xlu0 %144
        %s146 = smul.u32 %s126, 24
        %s147 = scalar_lea.vmem %s123, %s146
        %vm148 = vcmask 7168
        %149 = vst.msk [vmem:[%s147] sm:$0xff] %vm148, %v141
        %150 = vst.msk [vmem:[%s147 + $0x8] sm:$0xff] %vm148, %v143
        %151 = vst.msk [vmem:[%s147 + $0x10] sm:$0xff] %vm148, %v145
      $region29: #{forward.8} parent=23 // loop_footer
        %s130 = sadd.s32 1, %s126
      $region30: #{forward.8} parent=23 // loop_footer_branch
        %125 = sbr.rel target = $region26
      $region31: #{forward.8} parent=23 // loop_exit
        _
      %s152 = smul.u32 18, %s12
      %p153 = scmp.lt.s32.totalorder %s152, 35
      %s154 = scalar_select %p153, %s152, 35
      %s155 = smul.addr %s154, 3
      %s156 = smul.addr %s155, 8
      %s157 = scalar_lea.vmem %s1, %s156
      // Predicated region
      $region32: #{forward.8} parent=23 // pred_check
        %p158 = pneg %p56
      $region33: #{forward.8} parent=23 // pred_check_branch
        %160 = sbr.rel (%p158) target = $region35
      $region34: #{forward.8} parent=23 // pred_region
        %s161 = smul.u32 18, %s12
      $region35: #{forward.8} parent=23 // pred_fallthru
        _
    $region24: #{forward.8} parent=5 // pred_fallthru
      _
    %p162 = scmp.le.s32.totalorder 2, %s7
    // Predicated region
    $region36: #{forward.8} parent=5 // pred_check
      %p163 = pneg %p162
    $region37: #{forward.8} parent=5 // pred_check_branch
      %165 = sbr.rel (%p163) target = $region39
    $region38: #{forward.8} parent=5 // pred_region
      %s166 = ssub.s32 %s7, 2
      // Predicated region
      $region40: #{forward.8} parent=38 // pred_check
        %p167 = pneg %p62
      $region41: #{forward.8} parent=38 // pred_check_branch
        %169 = sbr.rel (%p167) target = $region43
      $region42: #{forward.8} parent=38 // pred_region
        %s170 = smul.u32 18, %s13
        %p171 = scmp.lt.s32.totalorder %s170, 35
        %s172 = scalar_select %p171, %s170, 35
        %s173 = smul.addr %s172, 3
        %s174 = smul.addr %s173, 8
        %s175 = scalar_lea.vmem %s1, %s174
      $region43: #{forward.8} parent=38 // pred_fallthru
        _
    $region39: #{forward.8} parent=5 // pred_fallthru
      _
  $region6: #{forward.8} parent=0 // loop_footer
    %s11 = sadd.s32 1, %s7
  $region7: #{forward.8} parent=0 // loop_footer_branch
    %6 = sbr.rel target = $region3
  $region8: #{forward.8} parent=0 // loop_exit
    _

// kernel: forward.9
$region0: #{forward.9}
  #allocation0 [shape = 'u32[]', space=smem, size = 0x4, offset = 0x4, fixed_abs, tag = 'smem constant byte address 0x4 - core index']
  #allocation1 [shape = 'u32[72,128]{1,0:T(1,128)}', space=vmem, size = 0x9000, scoped, tag = 'internal scratch']
  %s0 = inlined_call_operand.vmem [shape: bf16[36,27,24], index: 0, kind: input, shape index: {}]
  %s1 = inlined_call_operand.vmem [shape: bf16[36,24,128], index: 1, kind: input, shape index: {}]
  %s2 = inlined_call_operand.vmem [shape: f32[36,27,24], index: 2, kind: output, shape index: {}]
  %s3 = sld [smem:[#allocation0]]
  $region48: #{forward.9} parent=0
    _
  %s5 = ssub.s32 1, %s3
  %s6 = scalar_select 0, %s5, %s3
  loop: start=0, step=1, limit=4
  $region2: #{forward.9} parent=0 // loop_pre_header
    _
  $region3: #{forward.9} parent=0 // loop_header
    %s8 = sphi 0, %s12
    %p9 = scmp.ge.s32.totalorder %s8, 4
    %s18 = sphi 0, %s20
    %s21 = sphi 0, %s18
    %s22 = sphi 0, %s21
    %s38 = sphi 0, %s22
    %s44 = sphi 0, %s46
    %s47 = sphi 0, %s44
    %s48 = sphi 0, %s47
    %s64 = sphi 0, %s48
    %s70 = sphi 0, %s72
    %s73 = sphi 0, %s70
    %s74 = sphi 0, %s73
    %s90 = sphi 0, %s74
  $region4: #{forward.9} parent=0 // loop_header_branch
    %11 = sbr.rel (%p9) target = $region8
  $region5: #{forward.9} parent=0 // loop_body
    %s13 = ssub.s32 %s8, 1
    %s14 = ssub.s32 %s8, 2
    %s15 = sadd.s32 %s8, 1
    %s16 = ssub.s32 %s8, %s15
    %p17 = scmp.eq.s32.totalorder %s16, 0
    %s19 = sadd.s32 %s18, 1
    %s20 = scalar_select %p17, %s18, %s19
    %p23 = pneg %p17
    %p24 = scmp.eq.s32.totalorder %s8, 1
    %p25 = por %p23, %p24
    %p26 = scmp.ne.s32.totalorder %s18, %s21
    %p27 = scmp.eq.s32.totalorder %s8, 0
    %p28 = por %p26, %p27
    %p29 = scmp.ne.s32.totalorder %s18, %s21
    %p30 = scmp.eq.s32.totalorder %s13, 1
    %p31 = por %p29, %p30
    %p32 = scmp.ne.s32.totalorder %s21, %s22
    %p33 = scmp.eq.s32.totalorder %s13, 0
    %p34 = por %p32, %p33
    %p35 = scmp.ne.s32.totalorder %s21, %s22
    %p36 = scmp.eq.s32.totalorder %s14, 1
    %p37 = por %p35, %p36
    %p39 = scmp.ne.s32.totalorder %s22, %s38
    %p40 = scmp.eq.s32.totalorder %s14, 0
    %p41 = por %p39, %p40
    %s42 = ssub.s32 %s8, %s15
    %p43 = scmp.eq.s32.totalorder %s42, 0
    %s45 = sadd.s32 %s44, 1
    %s46 = scalar_select %p43, %s44, %s45
    %p49 = pneg %p43
    %p50 = scmp.eq.s32.totalorder %s8, 1
    %p51 = por %p49, %p50
    %p52 = scmp.ne.s32.totalorder %s44, %s47
    %p53 = scmp.eq.s32.totalorder %s8, 0
    %p54 = por %p52, %p53
    %p55 = scmp.ne.s32.totalorder %s44, %s47
    %p56 = scmp.eq.s32.totalorder %s13, 1
    %p57 = por %p55, %p56
    %p58 = scmp.ne.s32.totalorder %s47, %s48
    %p59 = scmp.eq.s32.totalorder %s13, 0
    %p60 = por %p58, %p59
    %p61 = scmp.ne.s32.totalorder %s47, %s48
    %p62 = scmp.eq.s32.totalorder %s14, 1
    %p63 = por %p61, %p62
    %p65 = scmp.ne.s32.totalorder %s48, %s64
    %p66 = scmp.eq.s32.totalorder %s14, 0
    %p67 = por %p65, %p66
    %s68 = ssub.s32 %s8, %s15
    %p69 = scmp.eq.s32.totalorder %s68, 0
    %s71 = sadd.s32 %s70, 1
    %s72 = scalar_select %p69, %s70, %s71
    %p75 = pneg %p69
    %p76 = scmp.eq.s32.totalorder %s8, 1
    %p77 = por %p75, %p76
    %p78 = scmp.ne.s32.totalorder %s70, %s73
    %p79 = scmp.eq.s32.totalorder %s8, 0
    %p80 = por %p78, %p79
    %p81 = scmp.ne.s32.totalorder %s70, %s73
    %p82 = scmp.eq.s32.totalorder %s13, 1
    %p83 = por %p81, %p82
    %p84 = scmp.ne.s32.totalorder %s73, %s74
    %p85 = scmp.eq.s32.totalorder %s13, 0
    %p86 = por %p84, %p85
    %p87 = scmp.ne.s32.totalorder %s73, %s74
    %p88 = scmp.eq.s32.totalorder %s14, 1
    %p89 = por %p87, %p88
    %p91 = scmp.ne.s32.totalorder %s74, %s90
    %p92 = scmp.eq.s32.totalorder %s14, 0
    %p93 = por %p91, %p92
    %p94 = scmp.le.s32.totalorder 1, %s8
    %p95 = scmp.lt.s32.totalorder %s8, 3
    %p96 = pnand %p94, %p95
    %p97 = pneg %p96
    // Predicated region
    $region9: #{forward.9} parent=5 // pred_check
      _
    $region10: #{forward.9} parent=5 // pred_check_branch
      %99 = sbr.rel (%p96) target = $region12
    $region11: #{forward.9} parent=5 // pred_region
      %s100 = ssub.s32 %s8, 1
    $region12: #{forward.9} parent=5 // pred_fallthru
      _
    %p101 = scmp.lt.s32.totalorder %s8, 2
    // Predicated region
    $region13: #{forward.9} parent=5 // pred_check
      %p102 = pneg %p101
    $region14: #{forward.9} parent=5 // pred_check_branch
      %104 = sbr.rel (%p102) target = $region16
    $region15: #{forward.9} parent=5 // pred_region
      // Predicated region
      $region17: #{forward.9} parent=15 // pred_check
        %p105 = pneg %p28
      $region18: #{forward.9} parent=15 // pred_check_branch
        %107 = sbr.rel (%p105) target = $region20
      $region19: #{forward.9} parent=15 // pred_region
        %s108 = smul.u32 18, %s8
        %p109 = scmp.lt.s32.totalorder %s108, 35
        %s110 = scalar_select %p109, %s108, 35
        %s111 = smul.addr %s110, 4
        %s112 = smul.addr %s111, 4
        %s113 = scalar_lea.vmem %s0, %s112
        %s114 = smul.u32 18, %s8
      $region20: #{forward.9} parent=15 // pred_fallthru
        _
      // Predicated region
      $region21: #{forward.9} parent=15 // pred_check
        %p115 = pneg %p54
      $region22: #{forward.9} parent=15 // pred_check_branch
        %117 = sbr.rel (%p115) target = $region24
      $region23: #{forward.9} parent=15 // pred_region
        %s118 = smul.u32 18, %s8
        %p119 = scmp.lt.s32.totalorder %s118, 35
        %s120 = scalar_select %p119, %s118, 35
        %s121 = smul.addr %s120, 3
        %s122 = smul.addr %s121, 4
        %s123 = scalar_lea.vmem %s1, %s122
        %s124 = smul.u32 18, %s8
      $region24: #{forward.9} parent=15 // pred_fallthru
        _
    $region16: #{forward.9} parent=5 // pred_fallthru
      _
    %p125 = scmp.le.s32.totalorder 1, %s8
    %p126 = scmp.lt.s32.totalorder %s8, 3
    %p127 = pnand %p125, %p126
    %p128 = pneg %p127
    // Predicated region
    $region25: #{forward.9} parent=5 // pred_check
      _
    $region26: #{forward.9} parent=5 // pred_check_branch
      %130 = sbr.rel (%p127) target = $region28
    $region27: #{forward.9} parent=5 // pred_region
      %s131 = ssub.s32 %s8, 1
      %s132 = smul.u32 18, %s13
      %p133 = scmp.lt.s32.totalorder %s132, 35
      %s134 = scalar_select %p133, %s132, 35
      %s135 = smul.addr %s134, 4
      %s136 = smul.addr %s135, 4
      %s137 = scalar_lea.vmem %s0, %s136
      %p138 = pneg %p34
      %p139 = pneg %p31
      %s140 = smul.u32 18, %s13
      %p141 = scmp.lt.s32.totalorder %s140, 35
      %s142 = scalar_select %p141, %s140, 35
      %s143 = smul.addr %s142, 3
      %s144 = smul.addr %s143, 4
      %s145 = scalar_lea.vmem %s1, %s144
      %p146 = pneg %p60
      %p147 = pneg %p57
      %p148 = pneg %p86
      %p149 = pneg %p83
      %s150 = smul.u32 18, %s13
      %p151 = scmp.lt.s32.totalorder %s150, 35
      %s152 = scalar_select %p151, %s150, 35
      %s153 = smul.addr %s152, 4
      %s154 = smul.addr %s153, 8
      %s155 = scalar_lea.vmem %s2, %s154
      %s156 = smul.u32 18, %s13
      %p157 = scmp.lt.s32.totalorder %s156, 35
      %s158 = scalar_select %p157, %s156, 35
      %s159 = smul.addr %s158, 4
      %s160 = smul.addr %s159, 4
      %s161 = scalar_lea.vmem %s0, %s160
      %s162 = smul.u32 18, %s13
      %s163 = smul.u32 18, %s13
      %p164 = scmp.lt.s32.totalorder %s163, 35
      %s165 = scalar_select %p164, %s163, 35
      %s166 = smul.addr %s165, 3
      %s167 = smul.addr %s166, 4
      %s168 = scalar_lea.vmem %s1, %s167
      %s169 = smul.u32 18, %s13
      %s170 = smul.u32 18, %s13
      %p171 = scmp.lt.s32.totalorder %s170, 35
      %s172 = scalar_select %p171, %s170, 35
      %s173 = smul.addr %s172, 4
      %s174 = smul.addr %s173, 8
      %s175 = scalar_lea.vmem %s2, %s174
      %s176 = smul.u32 18, %s13
      loop: start=0, step=1, limit=18
      $region29: #{forward.9} parent=27 // loop_pre_header
        _
      $region30: #{forward.9} parent=27 // loop_header
        %s179 = sphi 0, %s183
        %p180 = scmp.ge.s32.totalorder %s179, 18
      $region31: #{forward.9} parent=27 // loop_header_branch
        %182 = sbr.rel (%p180) target = $region35
      $region32: #{forward.9} parent=27 // loop_body
        %s184 = smul.u32 %s179, 3
        %s185 = smul.addr %s184, 4
        %s186 = scalar_lea.vmem %s168, %s185
        %v187 = vld [vmem:[%s186] sm:$0xf]
        %v188 = vld [vmem:[%s186 + $0x4] sm:$0xf]
        %v189 = vld [vmem:[%s186 + $0x8] sm:$0xf]
        %s190 = smul.u32 %s179, 4
        %s191 = smul.addr %s190, 4
        %s192 = scalar_lea.vmem %s161, %s191
        %v193 = vld [vmem:[%s192] sm:$0xf]
        %v194 = vld [vmem:[%s192 + $0x4] sm:$0xf]
        %v195 = vld [vmem:[%s192 + $0x8] sm:$0xf]
        %v196 = vld [vmem:[%s192 + $0xc] sm:$0x3]
        %v201 = vunpack.c.l.b16 %v193
        %v202 = vunpack.c.l.b16 %v194
        %v203 = vunpack.c.l.b16 %v195
        %v204 = vunpack.c.l.b16 %v196
        %v205 = vpack.c.b16 %v202, %v201
        %v206 = vpack.c.b16 %v204, %v203
        %v210 = vunpack.c.l.b16 %v187
        %v211 = vunpack.c.l.b16 %v188
        %v212 = vunpack.c.l.b16 %v189
        %v213 = vpack.c.b16 %v211, %v210
        %v214 = vpack.c.b16 %v212, %v212
        %vm216 = vcmask 195584
        %v218 = vsel %vm216, %v205, 0
        %v221 = vsel %vm216, %v206, 0
        %vm223 = vcmask 1043456
        %v225 = vsel %vm223, %v214, 0
        %227 = vmatpush.bf16.msra.mxu0 0
        %228 = vmatpush.bf16.msra.mxu0 0
        %229 = vmatpush.bf16.msra.mxu0 0
        %230 = vmatpush.bf16.msra.mxu0 0
        %231 = vmatpush.bf16.msra.mxu0 0
        %232 = vmatpush.bf16.msra.mxu0 0
        %233 = vmatpush.bf16.msra.mxu0 %v225
        %234 = vmatpush.bf16.msra.mxu0 %v213
        %235 = vmatmul.bf16.gmra.mxu0 %v218
        %v236 = vpop.f32.mrf.mxu0
        %v237 = vadd.f32 0.0, %v236
        %v238 = vpop.f32.mrf.mxu0
        %v239 = vadd.f32 0.0, %v238
        %240 = vmatmul.bf16.gmra.mxu0 %v221
        %v241 = vpop.f32.mrf.mxu0
        %v242 = vadd.f32 0.0, %v241
        %v243 = vpop.f32.mrf.mxu0
        %v244 = vadd.f32 0.0, %v243
        %245 = vdwg.mxu0
        %vm246 = vcmask 1042432
        %v247 = vsel %vm246, %v244, -inf
        %v248 = vmax.f32 %v237, %v239
        %v249 = vmax.f32 %v242, %v247
        %v250 = vmax.f32 %v248, %v249
        %v251 = vrot.slane %v250, 4
        %v252 = vmax.f32 %v250, %v251
        %v253 = vrot.slane %v252, 2
        %v254 = vmax.f32 %v252, %v253
        %v255 = vrot.slane %v254, 1
        %v256 = vmax.f32 %v254, %v255
        %v257 = vsub.f32 %v237, %v256
        %v258 = vsub.f32 %v239, %v256
        %v259 = vsub.f32 %v242, %v256
        %v260 = vsub.f32 %v244, %v256
        %v261 = vmul.f32 %v257, 1.442695
        %v262 = vpow.pop %v261
        %v263 = vmul.f32 %v258, 1.442695
        %v264 = vpow.pop %v263
        %v265 = vmul.f32 %v259, 1.442695
        %v266 = vpow.pop %v265
        %v267 = vmul.f32 %v260, 1.442695
        %v268 = vpow.pop %v267
        %v269 = vadd.f32 %v262, %v264
        %v270 = vadd.f32 %v269, %v266
        %v271 = vsel %vm246, %v268, 0.0
        %v272 = vadd.f32 %v270, %v271
        %v273 = vrot.slane %v272, 4
        %v274 = vadd.f32 %v272, %v273
        %v275 = vrot.slane %v274, 2
        %v276 = vadd.f32 %v274, %v275
        %v277 = vrot.slane %v276, 1
        %v278 = vadd.f32 %v276, %v277
        %v279 = vrcp.pop %v278
        %v280 = vmul.f32 %v262, %v279
        %v281 = vmul.f32 %v264, %v279
        %v282 = vmul.f32 %v266, %v279
        %v283 = vmul.f32 %v268, %v279
        %v284 = vpack.c.bf16 %v281, %v280
        %v285 = vpack.c.bf16 %v283, %v282
        %287 = vmatpush.bf16.xpose.msra.mxu0 0
        %288 = vmatpush.bf16.xpose.msra.mxu0 0
        %289 = vmatpush.bf16.xpose.msra.mxu0 0
        %290 = vmatpush.bf16.xpose.msra.mxu0 0
        %291 = vmatpush.bf16.xpose.msra.mxu0 0
        %292 = vmatpush.bf16.xpose.msra.mxu0 0
        %293 = vmatpush.bf16.xpose.msra.mxu0 %v214
        %294 = vmatpush.bf16.xpose.msra.mxu0 %v213
        %295 = vmatmul.bf16.gmra.mxu0 %v284
        %v296 = vpop.f32.mrf.mxu0
        %v297 = vadd.f32 0.0, %v296
        %v298 = vpop.f32.mrf.mxu0
        %v299 = vadd.f32 0.0, %v298
        %300 = vmatmul.bf16.gmra.mxu0 %v285
        %v301 = vpop.f32.mrf.mxu0
        %v302 = vadd.f32 0.0, %v301
        %v303 = vpop.f32.mrf.mxu0
        %v304 = vadd.f32 0.0, %v303
        %305 = vdwg.mxu0
        %s306 = smul.u32 %s179, 32
        %s307 = scalar_lea.vmem %s175, %s306
        %308 = vst.msk [vmem:[%s307] sm:$0xff] %vm216, %v297
        %309 = vst.msk [vmem:[%s307 + $0x8] sm:$0xff] %vm216, %v299
        %310 = vst.msk [vmem:[%s307 + $0x10] sm:$0xff] %vm216, %v302
        %vm311 = vcmask 190464
        %312 = vst.msk [vmem:[%s307 + $0x18] sm:$0x7] %vm311, %v304
      $region33: #{forward.9} parent=27 // loop_footer
        %s183 = sadd.s32 1, %s179
      $region34: #{forward.9} parent=27 // loop_footer_branch
        %178 = sbr.rel target = $region30
      $region35: #{forward.9} parent=27 // loop_exit
        _
      %s313 = smul.u32 18, %s13
      %p314 = scmp.lt.s32.totalorder %s313, 35
      %s315 = scalar_select %p314, %s313, 35
      %s316 = smul.addr %s315, 4
      %s317 = smul.addr %s316, 8
      %s318 = scalar_lea.vmem %s2, %s317
      // Predicated region
      $region36: #{forward.9} parent=27 // pred_check
        %p319 = pneg %p83
      $region37: #{forward.9} parent=27 // pred_check_branch
        %321 = sbr.rel (%p319) target = $region39
      $region38: #{forward.9} parent=27 // pred_region
        %s322 = smul.u32 18, %s13
      $region39: #{forward.9} parent=27 // pred_fallthru
        _
    $region28: #{forward.9} parent=5 // pred_fallthru
      _
    %p323 = scmp.le.s32.totalorder 2, %s8
    // Predicated region
    $region40: #{forward.9} parent=5 // pred_check
      %p324 = pneg %p323
    $region41: #{forward.9} parent=5 // pred_check_branch
      %326 = sbr.rel (%p324) target = $region43
    $region42: #{forward.9} parent=5 // pred_region
      %s327 = ssub.s32 %s8, 2
      // Predicated region
      $region44: #{forward.9} parent=42 // pred_check
        %p328 = pneg %p89
      $region45: #{forward.9} parent=42 // pred_check_branch
        %330 = sbr.rel (%p328) target = $region47
      $region46: #{forward.9} parent=42 // pred_region
        %s331 = smul.u32 18, %s14
        %p332 = scmp.lt.s32.totalorder %s331, 35
        %s333 = scalar_select %p332, %s331, 35
        %s334 = smul.addr %s333, 4
        %s335 = smul.addr %s334, 8
        %s336 = scalar_lea.vmem %s2, %s335
      $region47: #{forward.9} parent=42 // pred_fallthru
        _
    $region43: #{forward.9} parent=5 // pred_fallthru
      _
  $region6: #{forward.9} parent=0 // loop_footer
    %s12 = sadd.s32 1, %s8
  $region7: #{forward.9} parent=0 // loop_footer_branch
    %7 = sbr.rel target = $region3
  $region8: #{forward.9} parent=0 // loop_exit
    _

// kernel: forward.11
$region0: #{forward.11}
  #allocation0 [shape = 'u32[]', space=smem, size = 0x4, offset = 0x4, fixed_abs, tag = 'smem constant byte address 0x4 - core index']
  #allocation1 [shape = 'u32[72,128]{1,0:T(1,128)}', space=vmem, size = 0x9000, scoped, tag = 'internal scratch']
  %s0 = inlined_call_operand.vmem [shape: bf16[36,27,24], index: 0, kind: input, shape index: {}]
  %s1 = inlined_call_operand.vmem [shape: bf16[36,24,128], index: 1, kind: input, shape index: {}]
  %s2 = inlined_call_operand.vmem [shape: f32[36,27,128], index: 2, kind: output, shape index: {}]
  %s3 = sld [smem:[#allocation0]]
  $region48: #{forward.11} parent=0
    _
  %s5 = ssub.s32 1, %s3
  %s6 = scalar_select 0, %s5, %s3
  loop: start=0, step=1, limit=4
  $region2: #{forward.11} parent=0 // loop_pre_header
    _
  $region3: #{forward.11} parent=0 // loop_header
    %s8 = sphi 0, %s12
    %p9 = scmp.ge.s32.totalorder %s8, 4
    %s18 = sphi 0, %s20
    %s21 = sphi 0, %s18
    %s22 = sphi 0, %s21
    %s38 = sphi 0, %s22
    %s44 = sphi 0, %s46
    %s47 = sphi 0, %s44
    %s48 = sphi 0, %s47
    %s64 = sphi 0, %s48
    %s70 = sphi 0, %s72
    %s73 = sphi 0, %s70
    %s74 = sphi 0, %s73
    %s90 = sphi 0, %s74
  $region4: #{forward.11} parent=0 // loop_header_branch
    %11 = sbr.rel (%p9) target = $region8
  $region5: #{forward.11} parent=0 // loop_body
    %s13 = ssub.s32 %s8, 1
    %s14 = ssub.s32 %s8, 2
    %s15 = sadd.s32 %s8, 1
    %s16 = ssub.s32 %s8, %s15
    %p17 = scmp.eq.s32.totalorder %s16, 0
    %s19 = sadd.s32 %s18, 1
    %s20 = scalar_select %p17, %s18, %s19
    %p23 = pneg %p17
    %p24 = scmp.eq.s32.totalorder %s8, 1
    %p25 = por %p23, %p24
    %p26 = scmp.ne.s32.totalorder %s18, %s21
    %p27 = scmp.eq.s32.totalorder %s8, 0
    %p28 = por %p26, %p27
    %p29 = scmp.ne.s32.totalorder %s18, %s21
    %p30 = scmp.eq.s32.totalorder %s13, 1
    %p31 = por %p29, %p30
    %p32 = scmp.ne.s32.totalorder %s21, %s22
    %p33 = scmp.eq.s32.totalorder %s13, 0
    %p34 = por %p32, %p33
    %p35 = scmp.ne.s32.totalorder %s21, %s22
    %p36 = scmp.eq.s32.totalorder %s14, 1
    %p37 = por %p35, %p36
    %p39 = scmp.ne.s32.totalorder %s22, %s38
    %p40 = scmp.eq.s32.totalorder %s14, 0
    %p41 = por %p39, %p40
    %s42 = ssub.s32 %s8, %s15
    %p43 = scmp.eq.s32.totalorder %s42, 0
    %s45 = sadd.s32 %s44, 1
    %s46 = scalar_select %p43, %s44, %s45
    %p49 = pneg %p43
    %p50 = scmp.eq.s32.totalorder %s8, 1
    %p51 = por %p49, %p50
    %p52 = scmp.ne.s32.totalorder %s44, %s47
    %p53 = scmp.eq.s32.totalorder %s8, 0
    %p54 = por %p52, %p53
    %p55 = scmp.ne.s32.totalorder %s44, %s47
    %p56 = scmp.eq.s32.totalorder %s13, 1
    %p57 = por %p55, %p56
    %p58 = scmp.ne.s32.totalorder %s47, %s48
    %p59 = scmp.eq.s32.totalorder %s13, 0
    %p60 = por %p58, %p59
    %p61 = scmp.ne.s32.totalorder %s47, %s48
    %p62 = scmp.eq.s32.totalorder %s14, 1
    %p63 = por %p61, %p62
    %p65 = scmp.ne.s32.totalorder %s48, %s64
    %p66 = scmp.eq.s32.totalorder %s14, 0
    %p67 = por %p65, %p66
    %s68 = ssub.s32 %s8, %s15
    %p69 = scmp.eq.s32.totalorder %s68, 0
    %s71 = sadd.s32 %s70, 1
    %s72 = scalar_select %p69, %s70, %s71
    %p75 = pneg %p69
    %p76 = scmp.eq.s32.totalorder %s8, 1
    %p77 = por %p75, %p76
    %p78 = scmp.ne.s32.totalorder %s70, %s73
    %p79 = scmp.eq.s32.totalorder %s8, 0
    %p80 = por %p78, %p79
    %p81 = scmp.ne.s32.totalorder %s70, %s73
    %p82 = scmp.eq.s32.totalorder %s13, 1
    %p83 = por %p81, %p82
    %p84 = scmp.ne.s32.totalorder %s73, %s74
    %p85 = scmp.eq.s32.totalorder %s13, 0
    %p86 = por %p84, %p85
    %p87 = scmp.ne.s32.totalorder %s73, %s74
    %p88 = scmp.eq.s32.totalorder %s14, 1
    %p89 = por %p87, %p88
    %p91 = scmp.ne.s32.totalorder %s74, %s90
    %p92 = scmp.eq.s32.totalorder %s14, 0
    %p93 = por %p91, %p92
    %p94 = scmp.le.s32.totalorder 1, %s8
    %p95 = scmp.lt.s32.totalorder %s8, 3
    %p96 = pnand %p94, %p95
    %p97 = pneg %p96
    // Predicated region
    $region9: #{forward.11} parent=5 // pred_check
      _
    $region10: #{forward.11} parent=5 // pred_check_branch
      %99 = sbr.rel (%p96) target = $region12
    $region11: #{forward.11} parent=5 // pred_region
      %s100 = ssub.s32 %s8, 1
    $region12: #{forward.11} parent=5 // pred_fallthru
      _
    %p101 = scmp.lt.s32.totalorder %s8, 2
    // Predicated region
    $region13: #{forward.11} parent=5 // pred_check
      %p102 = pneg %p101
    $region14: #{forward.11} parent=5 // pred_check_branch
      %104 = sbr.rel (%p102) target = $region16
    $region15: #{forward.11} parent=5 // pred_region
      // Predicated region
      $region17: #{forward.11} parent=15 // pred_check
        %p105 = pneg %p28
      $region18: #{forward.11} parent=15 // pred_check_branch
        %107 = sbr.rel (%p105) target = $region20
      $region19: #{forward.11} parent=15 // pred_region
        %s108 = smul.u32 18, %s8
        %p109 = scmp.lt.s32.totalorder %s108, 35
        %s110 = scalar_select %p109, %s108, 35
        %s111 = smul.addr %s110, 4
        %s112 = smul.addr %s111, 4
        %s113 = scalar_lea.vmem %s0, %s112
        %s114 = smul.u32 18, %s8
      $region20: #{forward.11} parent=15 // pred_fallthru
        _
      // Predicated region
      $region21: #{forward.11} parent=15 // pred_check
        %p115 = pneg %p54
      $region22: #{forward.11} parent=15 // pred_check_branch
        %117 = sbr.rel (%p115) target = $region24
      $region23: #{forward.11} parent=15 // pred_region
        %s118 = smul.u32 18, %s8
        %p119 = scmp.lt.s32.totalorder %s118, 35
        %s120 = scalar_select %p119, %s118, 35
        %s121 = smul.addr %s120, 3
        %s122 = smul.addr %s121, 4
        %s123 = scalar_lea.vmem %s1, %s122
        %s124 = smul.u32 18, %s8
      $region24: #{forward.11} parent=15 // pred_fallthru
        _
    $region16: #{forward.11} parent=5 // pred_fallthru
      _
    %p125 = scmp.le.s32.totalorder 1, %s8
    %p126 = scmp.lt.s32.totalorder %s8, 3
    %p127 = pnand %p125, %p126
    %p128 = pneg %p127
    // Predicated region
    $region25: #{forward.11} parent=5 // pred_check
      _
    $region26: #{forward.11} parent=5 // pred_check_branch
      %130 = sbr.rel (%p127) target = $region28
    $region27: #{forward.11} parent=5 // pred_region
      %s131 = ssub.s32 %s8, 1
      %s132 = smul.u32 18, %s13
      %p133 = scmp.lt.s32.totalorder %s132, 35
      %s134 = scalar_select %p133, %s132, 35
      %s135 = smul.addr %s134, 4
      %s136 = smul.addr %s135, 4
      %s137 = scalar_lea.vmem %s0, %s136
      %p138 = pneg %p34
      %p139 = pneg %p31
      %s140 = smul.u32 18, %s13
      %p141 = scmp.lt.s32.totalorder %s140, 35
      %s142 = scalar_select %p141, %s140, 35
      %s143 = smul.addr %s142, 3
      %s144 = smul.addr %s143, 4
      %s145 = scalar_lea.vmem %s1, %s144
      %p146 = pneg %p60
      %p147 = pneg %p57
      %p148 = pneg %p86
      %p149 = pneg %p83
      %s150 = smul.u32 18, %s13
      %p151 = scmp.lt.s32.totalorder %s150, 35
      %s152 = scalar_select %p151, %s150, 35
      %s153 = smul.addr %s152, 4
      %s154 = smul.addr %s153, 8
      %s155 = scalar_lea.vmem %s2, %s154
      %s156 = smul.u32 18, %s13
      %p157 = scmp.lt.s32.totalorder %s156, 35
      %s158 = scalar_select %p157, %s156, 35
      %s159 = smul.addr %s158, 4
      %s160 = smul.addr %s159, 4
      %s161 = scalar_lea.vmem %s0, %s160
      %s162 = smul.u32 18, %s13
      %s163 = smul.u32 18, %s13
      %p164 = scmp.lt.s32.totalorder %s163, 35
      %s165 = scalar_select %p164, %s163, 35
      %s166 = smul.addr %s165, 3
      %s167 = smul.addr %s166, 4
      %s168 = scalar_lea.vmem %s1, %s167
      %s169 = smul.u32 18, %s13
      %s170 = smul.u32 18, %s13
      %p171 = scmp.lt.s32.totalorder %s170, 35
      %s172 = scalar_select %p171, %s170, 35
      %s173 = smul.addr %s172, 4
      %s174 = smul.addr %s173, 8
      %s175 = scalar_lea.vmem %s2, %s174
      %s176 = smul.u32 18, %s13
      loop: start=0, step=1, limit=18
      $region29: #{forward.11} parent=27 // loop_pre_header
        _
      $region30: #{forward.11} parent=27 // loop_header
        %s179 = sphi 0, %s183
        %p180 = scmp.ge.s32.totalorder %s179, 18
      $region31: #{forward.11} parent=27 // loop_header_branch
        %182 = sbr.rel (%p180) target = $region35
      $region32: #{forward.11} parent=27 // loop_body
        %s184 = smul.u32 %s179, 4
        %s185 = smul.addr %s184, 4
        %s186 = scalar_lea.vmem %s161, %s185
        %v187 = vld [vmem:[%s186] sm:$0xf]
        %v188 = vld [vmem:[%s186 + $0x4] sm:$0xf]
        %v189 = vld [vmem:[%s186 + $0x8] sm:$0xf]
        %v190 = vld [vmem:[%s186 + $0xc] sm:$0x3]
        %s191 = smul.u32 %s179, 3
        %s192 = smul.addr %s191, 4
        %s193 = scalar_lea.vmem %s168, %s192
        %v194 = vld [vmem:[%s193] sm:$0xf]
        %v195 = vld [vmem:[%s193 + $0x4] sm:$0xf]
        %v196 = vld [vmem:[%s193 + $0x8] sm:$0xf]
        %v201 = vunpack.c.l.b16 %v187
        %v202 = vunpack.c.l.b16 %v188
        %v203 = vunpack.c.l.b16 %v189
        %v204 = vunpack.c.l.b16 %v190
        %v205 = vpack.c.b16 %v202, %v201
        %v206 = vpack.c.b16 %v204, %v203
        %v210 = vunpack.c.l.b16 %v194
        %v211 = vunpack.c.l.b16 %v195
        %v212 = vunpack.c.l.b16 %v196
        %v213 = vpack.c.b16 %v211, %v210
        %v214 = vpack.c.b16 %v212, %v212
        %vm216 = vcmask 195584
        %v218 = vsel %vm216, %v205, 0
        %v221 = vsel %vm216, %v206, 0
        %vm223 = vcmask 1043456
        %v225 = vsel %vm223, %v214, 0
        %227 = vmatpush.bf16.msra.mxu0 0
        %228 = vmatpush.bf16.msra.mxu0 0
        %229 = vmatpush.bf16.msra.mxu0 0
        %230 = vmatpush.bf16.msra.mxu0 0
        %231 = vmatpush.bf16.msra.mxu0 0
        %232 = vmatpush.bf16.msra.mxu0 0
        %233 = vmatpush.bf16.msra.mxu0 %v225
        %234 = vmatpush.bf16.msra.mxu0 %v213
        %235 = vmatmul.bf16.gmra.mxu0 %v218
        %v236 = vpop.f32.mrf.mxu0
        %v237 = vadd.f32 0.0, %v236
        %v238 = vpop.f32.mrf.mxu0
        %v239 = vadd.f32 0.0, %v238
        %240 = vmatmul.bf16.gmra.mxu0 %v221
        %v241 = vpop.f32.mrf.mxu0
        %v242 = vadd.f32 0.0, %v241
        %v243 = vpop.f32.mrf.mxu0
        %v244 = vadd.f32 0.0, %v243
        %245 = vdwg.mxu0
        %vm246 = vcmask 1042432
        %v247 = vsel %vm246, %v244, -inf
        %v248 = vmax.f32 %v237, %v239
        %v249 = vmax.f32 %v242, %v247
        %v250 = vmax.f32 %v248, %v249
        %v251 = vrot.slane %v250, 4
        %v252 = vmax.f32 %v250, %v251
        %v253 = vrot.slane %v252, 2
        %v254 = vmax.f32 %v252, %v253
        %v255 = vrot.slane %v254, 1
        %v256 = vmax.f32 %v254, %v255
        %v257 = vsub.f32 %v237, %v256
        %v258 = vsub.f32 %v239, %v256
        %v259 = vsub.f32 %v242, %v256
        %v260 = vsub.f32 %v244, %v256
        %v261 = vmul.f32 %v257, 1.442695
        %v262 = vpow.pop %v261
        %v263 = vmul.f32 %v258, 1.442695
        %v264 = vpow.pop %v263
        %v265 = vmul.f32 %v259, 1.442695
        %v266 = vpow.pop %v265
        %v267 = vmul.f32 %v260, 1.442695
        %v268 = vpow.pop %v267
        %v269 = vadd.f32 %v262, %v264
        %v270 = vadd.f32 %v269, %v266
        %v271 = vsel %vm246, %v268, 0.0
        %v272 = vadd.f32 %v270, %v271
        %v273 = vrot.slane %v272, 4
        %v274 = vadd.f32 %v272, %v273
        %v275 = vrot.slane %v274, 2
        %v276 = vadd.f32 %v274, %v275
        %v277 = vrot.slane %v276, 1
        %v278 = vadd.f32 %v276, %v277
        %v279 = vrcp.pop %v278
        %v280 = vmul.f32 %v262, %v279
        %v281 = vmul.f32 %v264, %v279
        %v282 = vmul.f32 %v266, %v279
        %v283 = vmul.f32 %v268, %v279
        %s284 = smul.u32 %s179, 32
        %s285 = scalar_lea.vmem %s175, %s284
        %286 = vst [vmem:[%s285] sm:$0xff] %v280
        %287 = vst [vmem:[%s285 + $0x8] sm:$0xff] %v281
        %288 = vst [vmem:[%s285 + $0x10] sm:$0xff] %v282
        %289 = vst [vmem:[%s285 + $0x18] sm:$0x7] %v283
      $region33: #{forward.11} parent=27 // loop_footer
        %s183 = sadd.s32 1, %s179
      $region34: #{forward.11} parent=27 // loop_footer_branch
        %178 = sbr.rel target = $region30
      $region35: #{forward.11} parent=27 // loop_exit
        _
      %s290 = smul.u32 18, %s13
      %p291 = scmp.lt.s32.totalorder %s290, 35
      %s292 = scalar_select %p291, %s290, 35
      %s293 = smul.addr %s292, 4
      %s294 = smul.addr %s293, 8
      %s295 = scalar_lea.vmem %s2, %s294
      // Predicated region
      $region36: #{forward.11} parent=27 // pred_check
        %p296 = pneg %p83
      $region37: #{forward.11} parent=27 // pred_check_branch
        %298 = sbr.rel (%p296) target = $region39
      $region38: #{forward.11} parent=27 // pred_region
        %s299 = smul.u32 18, %s13
      $region39: #{forward.11} parent=27 // pred_fallthru
        _
    $region28: #{forward.11} parent=5 // pred_fallthru
      _
    %p300 = scmp.le.s32.totalorder 2, %s8
    // Predicated region
    $region40: #{forward.11} parent=5 // pred_check
      %p301 = pneg %p300
    $region41: #{forward.11} parent=5 // pred_check_branch
      %303 = sbr.rel (%p301) target = $region43
    $region42: #{forward.11} parent=5 // pred_region
      %s304 = ssub.s32 %s8, 2
      // Predicated region
      $region44: #{forward.11} parent=42 // pred_check
        %p305 = pneg %p89
      $region45: #{forward.11} parent=42 // pred_check_branch
        %307 = sbr.rel (%p305) target = $region47
      $region46: #{forward.11} parent=42 // pred_region
        %s308 = smul.u32 18, %s14
        %p309 = scmp.lt.s32.totalorder %s308, 35
        %s310 = scalar_select %p309, %s308, 35
        %s311 = smul.addr %s310, 4
        %s312 = smul.addr %s311, 8
        %s313 = scalar_lea.vmem %s2, %s312
      $region47: #{forward.11} parent=42 // pred_fallthru
        _
    $region43: #{forward.11} parent=5 // pred_fallthru
      _
  $region6: #{forward.11} parent=0 // loop_footer
    %s12 = sadd.s32 1, %s8
  $region7: #{forward.11} parent=0 // loop_footer_branch
    %7 = sbr.rel target = $region3
  $region8: #{forward.11} parent=0 // loop_exit
    _

</llo_original>
